<compile_context>
chip_gen: v5e
topology: v5e:2x2
jax: 0.10.0
libtpu: 0.0.40
codegen_flags: <defaults>
</compile_context>

<pallas_src>
import functools

import jax
import jax.numpy as jnp
from jax.experimental import pallas as pl
from jax.experimental.pallas import tpu as pltpu


D_TRUE = 300        # embedding / GCN hidden dim of the reference model
D_PAD = 384         # 3 * 128 lanes (padding lanes stay exactly zero)
NUM_CLASSES = 4
C_PAD = 128         # lane-dense logits store; sliced back to NUM_CLASSES


def _vmem_specs(n):
    return [pl.BlockSpec(memory_space=pltpu.MemorySpace.VMEM) for _ in range(n)]


# ---------------------------------------------------------------------------
# In-kernel building blocks
# ---------------------------------------------------------------------------

def _mxu(a, b):
    """bf16 MXU matmul with f32 accumulation (operands cast at the call site)."""
    return jnp.dot(a.astype(jnp.bfloat16), b.astype(jnp.bfloat16),
                   preferred_element_type=jnp.float32)


def _attn3_mean(h0, h1, h2, scale):
    """softmax(Q K^T * scale) V over the 3 views, averaged to (N, D), in f32."""
    def rdot(a, b):
        return jnp.sum(a * b, axis=-1, keepdims=True) * scale
    s00, s01, s02 = rdot(h0, h0), rdot(h0, h1), rdot(h0, h2)
    s11, s12 = rdot(h1, h1), rdot(h1, h2)
    s22 = rdot(h2, h2)
    rows = ((s00, s01, s02), (s01, s11, s12), (s02, s12, s22))  # symmetric scores
    xs = (h0, h1, h2)
    acc = None
    for r in rows:
        m = jnp.maximum(jnp.maximum(r[0], r[1]), r[2])
        e = [jnp.exp(rk - m) for rk in r]
        # EUP approximate reciprocal (~1e-4 rel err) — well below the bf16
        # matmul error already accepted for the MXU operands.
        inv = pl.reciprocal(e[0] + e[1] + e[2], approx=True)
        ctx = (e[0] * inv) * xs[0] + (e[1] * inv) * xs[1] + (e[2] * inv) * xs[2]
        acc = ctx if acc is None else acc + ctx
    return acc * (1.0 / 3.0)


def _three_sage(h_dst, wdst_ref, bias_row, adj_refs, hsrc_refs, wngh_refs):
    """3x SAGEConv sharing h_dst.

    Fused dst projection: one (N,384)@(384,1152) matmul for all 3 relations
    (no concatenate); adjacency is already row-normalised host-side, so the
    neighbour mean is a single matmul per relation.
    """
    dst_proj = _mxu(h_dst, wdst_ref[...]) + bias_row              # (N, 3*D_PAD)
    outs = []
    for r, (a_ref, s_ref, w_ref) in enumerate(zip(adj_refs, hsrc_refs, wngh_refs)):
        h_neigh = jnp.dot(a_ref[...], s_ref[...],
                          preferred_element_type=jnp.float32)      # (N, D_PAD)
        outs.append(dst_proj[:, r * D_PAD:(r + 1) * D_PAD]         # 128-aligned slice
                    + _mxu(h_neigh, w_ref[...]))
    return outs   # dropout(p=0.8) -> identity (eval mode)


# ---------------------------------------------------------------------------
# The single fused kernel (grid-less, everything VMEM-resident)
# ---------------------------------------------------------------------------

def fused_kernel(hdw_ref,                                    # (Nd, D_PAD) f32
                 hsw0_ref, hsw1_ref, hsw2_ref,               # (Nsw, D_PAD) bf16
                 aw0_ref, aw1_ref, aw2_ref,                  # (Nd, Nsw) bf16
                 wdst_w_ref,                                 # (D_PAD, 3*D_PAD) bf16
                 wnw0_ref, wnw1_ref, wnw2_ref,               # (D_PAD, D_PAD) bf16
                 sage_bias_ref,                              # (2, 3*D_PAD) f32
                 counts_ref,                                 # (B, Nd) f32
                 dense_w_ref, dense_b_ref,                   # (D_PAD,D_PAD) bf16 / (1,D_PAD) f32
                 hsd0_ref, hsd1_ref, hsd2_ref,               # (Nsd, D_PAD) bf16
                 ad0_ref, ad1_ref, ad2_ref,                  # (B, Nsd) bf16
                 wdst_d_ref,                                 # (D_PAD, 3*D_PAD) bf16
                 wnd0_ref, wnd1_ref, wnd2_ref,               # (D_PAD, D_PAD) bf16
                 fc_w_ref, fc_b_ref,                         # (D_PAD,C_PAD) bf16 / (1,C_PAD) f32
                 out_ref, *, scale, want_logits):
    sage_bias = sage_bias_ref[...]                           # (2, 3*D_PAD) f32

    # ---------------- word-graph branch ----------------
    h_dst_w = hdw_ref[...]                                   # (Nd, D_PAD) f32
    h0, h1, h2 = _three_sage(h_dst_w, wdst_w_ref, sage_bias[0:1, :],
                             (aw0_ref, aw1_ref, aw2_ref),
                             (hsw0_ref, hsw1_ref, hsw2_ref),
                             (wnw0_ref, wnw1_ref, wnw2_ref))
    gwe = _attn3_mean(h0, h1, h2, scale) + h_dst_w           # residual (f32)

    # F.embedding(x_batch) -> dense -> mean(L), rewritten as
    # (counts/L) @ gwe @ W + b; counts was precomputed host-side (XLA).
    x_mean = _mxu(counts_ref[...], gwe)                      # (B, D_PAD)
    doc_out = _mxu(x_mean, dense_w_ref[...]) + dense_b_ref[...]

    # ---------------- doc-graph branch (dst == doc_out, stays in VMEM) -------
    d0, d1, d2 = _three_sage(doc_out, wdst_d_ref, sage_bias[1:2, :],
                             (ad0_ref, ad1_ref, ad2_ref),
                             (hsd0_ref, hsd1_ref, hsd2_ref),
                             (wnd0_ref, wnd1_ref, wnd2_ref))
    resid = _attn3_mean(d0, d1, d2, scale) + doc_out         # doc_out_residual

    # Static (trace-time) gating: compute & store only the requested output.
    if want_logits:
        out_ref[...] = _mxu(resid, fc_w_ref[...]) + fc_b_ref[...]
    else:
        out_ref[...] = resid


# ---------------------------------------------------------------------------
# Forward: tiny XLA preprocessing + ONE pallas_call
# ---------------------------------------------------------------------------

@functools.partial(jax.jit, static_argnames=("return_doc_representation",))
def merge_model_forward(pp, blocks, blocks_doc, x_batch,
                        return_doc_representation=False):
    scale = float(D_TRUE) ** (-0.5)     # cat_tensor.reshape(N,3,300).size(-1) == 300
    blk = list(blocks)
    dblk = list(blocks_doc)
    bsz, seq_len = x_batch.shape

    emb_w, emb_d = pp["embedding"], pp["embedding_doc"]      # HBM-resident tables

    # Real XLA gathers (O(n*D)); tables never enter the kernel's VMEM.
    h_dst_w = jnp.take(emb_w, blk[0]["dst_ids"], axis=0)                       # f32
    hs_w = [jnp.take(emb_w, b["src_ids"], axis=0).astype(jnp.bfloat16) for b in blk]
    hs_d = [jnp.take(emb_d, b["src_ids"], axis=0).astype(jnp.bfloat16) for b in dblk]

    def norm_adj(adj):  # DGL mean-aggregation: rows pre-normalised, 0 if isolated
        deg = jnp.sum(adj, axis=-1, keepdims=True)
        return jnp.where(deg > 0.0, adj / jnp.maximum(deg, 1.0), 0.0).astype(jnp.bfloat16)

    an_w = [norm_adj(b["adj"]) for b in blk]
    an_d = [norm_adj(b["adj"]) for b in dblk]

    # x_batch histogram / L (pad index == Nd falls outside -> contributes 0,
    # exactly the reference's appended zero row).
    n_dst = h_dst_w.shape[0]
    counts = jnp.sum(jax.nn.one_hot(x_batch, n_dst, dtype=jnp.float32),
                     axis=1) * (1.0 / float(seq_len))

    want_logits = not return_doc_representation
    out_shape = jax.ShapeDtypeStruct(
        (bsz, C_PAD if want_logits else D_PAD), jnp.float32)

    args = (h_dst_w,
            hs_w[0], hs_w[1], hs_w[2],
            an_w[0], an_w[1], an_w[2],
            pp["wdst_word"],
            pp["wngh_word"][0], pp["wngh_word"][1], pp["wngh_word"][2],
            pp["sage_bias"], counts, pp["dense_w"], pp["dense_b"],
            hs_d[0], hs_d[1], hs_d[2],
            an_d[0], an_d[1], an_d[2],
            pp["wdst_doc"],
            pp["wngh_doc"][0], pp["wngh_doc"][1], pp["wngh_doc"][2],
            pp["fc_w"], pp["fc_b"])

    out = pl.pallas_call(
        functools.partial(fused_kernel, scale=scale, want_logits=want_logits),
        out_shape=out_shape,
        in_specs=_vmem_specs(len(args)),
        out_specs=pl.BlockSpec(memory_space=pltpu.MemorySpace.VMEM),
        compiler_params=pltpu.CompilerParams(
            vmem_limit_bytes=32 * 1024 * 1024),
    )(*args)

    if return_doc_representation:
        return out[:, :D_TRUE]
    return out[:, :NUM_CLASSES]


# ---------------------------------------------------------------------------
# Deterministic synthetic parameters / inputs + one-time parameter prep
# ---------------------------------------------------------------------------

def make_params(key, vocab_word, vocab_doc, d, num_classes):
    keys = jax.random.split(key, 20)
    p = {}
    p["embedding"] = jax.random.normal(keys[0], (vocab_word, d), jnp.float32) * 0.02
    p["embedding_doc"] = jax.random.normal(keys[1], (vocab_doc, d), jnp.float32) * 0.02
    names = ["Dis", "Pmi", "Top", "Dis_doc", "Pmi_doc", "Top_doc"]
    for i, name in enumerate(names):
        # stored pre-transposed: out = cat([h_dst, h_neigh]) @ W + b,
        # with W = [W_dst_part ; W_neigh_part], shape (2d, d).
        p[f"sage_{name}_w"] = (
            jax.random.normal(keys[2 + 2 * i], (2 * d, d), jnp.float32) * 0.02)
        p[f"sage_{name}_b"] = jnp.zeros((1, d), jnp.float32)
    p["dense_w"] = jax.random.normal(keys[15], (d, d), jnp.float32) * 0.02  # Linear(300,300)
    p["dense_b"] = jnp.zeros((1, d), jnp.float32)
    p["fc_w"] = jax.random.normal(keys[16], (d, num_classes), jnp.float32) * 0.02
    p["fc_b"] = jnp.zeros((1, num_classes), jnp.float32)
    return p


def prepare_params(p, d=D_TRUE, d_pad=D_PAD, c=NUM_CLASSES, c_pad=C_PAD):
    """Zero-pad to lane-dense widths, split/fuse SAGE weights, pack biases,
    and cast every pure-MXU operand to bf16 (pad lanes stay exactly zero)."""
    def pad_cols(x, width):
        return jnp.pad(x, ((0, 0), (0, width - x.shape[1])))

    def pad_rc(x, rows, cols):
        return jnp.pad(x, ((0, rows - x.shape[0]), (0, cols - x.shape[1])))

    pp = {}
    pp["embedding"] = pad_cols(p["embedding"], d_pad)           # f32, stays in HBM
    pp["embedding_doc"] = pad_cols(p["embedding_doc"], d_pad)

    def split_sage(names):
        wdst_blocks, wngh, biases = [], [], []
        for name in names:
            w = p[f"sage_{name}_w"]                 # (2d, d): [W_dst ; W_neigh]
            wdst_blocks.append(pad_rc(w[:d], d_pad, d_pad))
            wngh.append(pad_rc(w[d:], d_pad, d_pad).astype(jnp.bfloat16))
            biases.append(pad_cols(p[f"sage_{name}_b"], d_pad))
        wdst = jnp.concatenate(wdst_blocks, axis=1).astype(jnp.bfloat16)  # (d_pad, 3*d_pad)
        bias = jnp.concatenate(biases, axis=1)                            # (1, 3*d_pad) f32
        return wdst, wngh, bias

    pp["wdst_word"], pp["wngh_word"], bias_w = split_sage(["Dis", "Pmi", "Top"])
    pp["wdst_doc"], pp["wngh_doc"], bias_d = split_sage(["Dis_doc", "Pmi_doc", "Top_doc"])
    pp["sage_bias"] = jnp.concatenate([bias_w, bias_d], axis=0)           # (2, 3*d_pad)

    pp["dense_w"] = pad_rc(p["dense_w"], d_pad, d_pad).astype(jnp.bfloat16)
    pp["dense_b"] = pad_cols(p["dense_b"], d_pad)
    pp["fc_w"] = pad_rc(p["fc_w"], d_pad, c_pad).astype(jnp.bfloat16)
    pp["fc_b"] = pad_cols(p["fc_b"], c_pad)
    return pp


def make_block(key, n_dst, n_src, vocab, shared_dst_ids=None):
    k_adj, k_src, k_dst = jax.random.split(key, 3)
    adj = jax.random.bernoulli(k_adj, 0.3, (n_dst, n_src)).astype(jnp.float32)
    src_ids = jax.random.randint(k_src, (n_src,), 0, vocab, dtype=jnp.int32)
    dst_ids = (shared_dst_ids if shared_dst_ids is not None
               else jax.random.randint(k_dst, (n_dst,), 0, vocab, dtype=jnp.int32))
    return {"adj": adj, "src_ids": src_ids, "dst_ids": dst_ids}


if __name__ == "__main__":
    VOCAB_WORD, VOCAB_DOC = 40, 30
    N_DST_WORD, N_SRC_WORD = 16, 24   # word-graph block sizes
    B, L = 8, 10                      # doc batch, sequence length
    N_SRC_DOC = 20                    # doc-graph source nodes (dst == B docs)

    root = jax.random.PRNGKey(0)
    k_params, k_blocks, k_x = jax.random.split(root, 3)

    params = make_params(k_params, VOCAB_WORD, VOCAB_DOC, D_TRUE, NUM_CLASSES)
    prepared = prepare_params(params)

    bk = jax.random.split(k_blocks, 7)
    shared_dst = jax.random.randint(bk[6], (N_DST_WORD,), 0, VOCAB_WORD,
                                    dtype=jnp.int32)
    blocks = tuple(make_block(bk[i], N_DST_WORD, N_SRC_WORD, VOCAB_WORD,
                              shared_dst_ids=shared_dst) for i in range(3))
    blocks_doc = tuple(make_block(bk[3 + i], B, N_SRC_DOC, VOCAB_DOC)
                       for i in range(3))

    # x_batch indexes graph_word_embeddings of size N_DST_WORD + 1 (last row = pad)
    x_batch = jax.random.randint(k_x, (B, L), 0, N_DST_WORD + 1, dtype=jnp.int32)

    logits = merge_model_forward(prepared, blocks, blocks_doc, x_batch,
                                 return_doc_representation=False)
    doc_repr = merge_model_forward(prepared, blocks, blocks_doc, x_batch,
                                   return_doc_representation=True)
    jax.block_until_ready((logits, doc_repr))

    assert logits.shape == (B, NUM_CLASSES)
    assert doc_repr.shape == (B, D_TRUE)
    print("KERNEL_OK")
</pallas_src>

<mosaic_0001>
module attributes {stable_mosaic.version = 11 : i64} {
  func.func @fused_kernel(%arg0: memref<16x384xf32, #tpu.memory_space<vmem>>, %arg1: memref<24x384xbf16, #tpu.memory_space<vmem>>, %arg2: memref<24x384xbf16, #tpu.memory_space<vmem>>, %arg3: memref<24x384xbf16, #tpu.memory_space<vmem>>, %arg4: memref<16x24xbf16, #tpu.memory_space<vmem>>, %arg5: memref<16x24xbf16, #tpu.memory_space<vmem>>, %arg6: memref<16x24xbf16, #tpu.memory_space<vmem>>, %arg7: memref<384x1152xbf16, #tpu.memory_space<vmem>>, %arg8: memref<384x384xbf16, #tpu.memory_space<vmem>>, %arg9: memref<384x384xbf16, #tpu.memory_space<vmem>>, %arg10: memref<384x384xbf16, #tpu.memory_space<vmem>>, %arg11: memref<2x1152xf32, #tpu.memory_space<vmem>>, %arg12: memref<8x16xf32, #tpu.memory_space<vmem>>, %arg13: memref<384x384xbf16, #tpu.memory_space<vmem>>, %arg14: memref<1x384xf32, #tpu.memory_space<vmem>>, %arg15: memref<20x384xbf16, #tpu.memory_space<vmem>>, %arg16: memref<20x384xbf16, #tpu.memory_space<vmem>>, %arg17: memref<20x384xbf16, #tpu.memory_space<vmem>>, %arg18: memref<8x20xbf16, #tpu.memory_space<vmem>>, %arg19: memref<8x20xbf16, #tpu.memory_space<vmem>>, %arg20: memref<8x20xbf16, #tpu.memory_space<vmem>>, %arg21: memref<384x1152xbf16, #tpu.memory_space<vmem>>, %arg22: memref<384x384xbf16, #tpu.memory_space<vmem>>, %arg23: memref<384x384xbf16, #tpu.memory_space<vmem>>, %arg24: memref<384x384xbf16, #tpu.memory_space<vmem>>, %arg25: memref<384x128xbf16, #tpu.memory_space<vmem>>, %arg26: memref<1x128xf32, #tpu.memory_space<vmem>>, %arg27: memref<8x128xf32, #tpu.memory_space<vmem>>) attributes {dimension_semantics = [], scalar_prefetch = 0 : i64, scratch_operands = 0 : i64, tpu.core_type = #tpu.core_type<tc>} {
    %c0 = arith.constant 0 : index
    %c0_0 = arith.constant 0 : index
    %0 = vector.load %arg11[%c0, %c0_0] : memref<2x1152xf32, #tpu.memory_space<vmem>>, vector<2x1152xf32>
    %c0_1 = arith.constant 0 : index
    %c0_2 = arith.constant 0 : index
    %1 = vector.load %arg0[%c0_1, %c0_2] : memref<16x384xf32, #tpu.memory_space<vmem>>, vector<16x384xf32>
    %2 = vector.extract_strided_slice %0 {offsets = [0, 0], sizes = [1, 1152], strides = [1, 1]} : vector<2x1152xf32> to vector<1x1152xf32>
    %c0_3 = arith.constant 0 : index
    %c0_4 = arith.constant 0 : index
    %3 = vector.load %arg7[%c0_3, %c0_4] : memref<384x1152xbf16, #tpu.memory_space<vmem>>, vector<384x1152xbf16>
    %4 = arith.truncf %1 : vector<16x384xf32> to vector<16x384xbf16>
    %cst = arith.constant dense<0.000000e+00> : vector<16x1152xf32>
    %5 = tpu.matmul %4, %3, %cst {dimension_numbers = #tpu.dot_dimension_numbers<[1], [0], [0], [1], [0, 0, 1, 1], [], []>} : vector<16x384xbf16>, vector<384x1152xbf16>, vector<16x1152xf32> -> vector<16x1152xf32>
    %6 = vector.broadcast %2 : vector<1x1152xf32> to vector<16x1152xf32>
    %7 = arith.addf %5, %6 : vector<16x1152xf32>
    %c0_5 = arith.constant 0 : index
    %c0_6 = arith.constant 0 : index
    %8 = vector.load %arg4[%c0_5, %c0_6] : memref<16x24xbf16, #tpu.memory_space<vmem>>, vector<16x24xbf16>
    %c0_7 = arith.constant 0 : index
    %c0_8 = arith.constant 0 : index
    %9 = vector.load %arg1[%c0_7, %c0_8] : memref<24x384xbf16, #tpu.memory_space<vmem>>, vector<24x384xbf16>
    %cst_9 = arith.constant dense<0.000000e+00> : vector<16x384xf32>
    %10 = tpu.matmul %8, %9, %cst_9 {dimension_numbers = #tpu.dot_dimension_numbers<[1], [0], [0], [1], [0, 0, 1, 1], [], []>} : vector<16x24xbf16>, vector<24x384xbf16>, vector<16x384xf32> -> vector<16x384xf32>
    %11 = vector.extract_strided_slice %7 {offsets = [0, 0], sizes = [16, 384], strides = [1, 1]} : vector<16x1152xf32> to vector<16x384xf32>
    %c0_10 = arith.constant 0 : index
    %c0_11 = arith.constant 0 : index
    %12 = vector.load %arg8[%c0_10, %c0_11] : memref<384x384xbf16, #tpu.memory_space<vmem>>, vector<384x384xbf16>
    %13 = arith.truncf %10 : vector<16x384xf32> to vector<16x384xbf16>
    %cst_12 = arith.constant dense<0.000000e+00> : vector<16x384xf32>
    %14 = tpu.matmul %13, %12, %cst_12 {dimension_numbers = #tpu.dot_dimension_numbers<[1], [0], [0], [1], [0, 0, 1, 1], [], []>} : vector<16x384xbf16>, vector<384x384xbf16>, vector<16x384xf32> -> vector<16x384xf32>
    %15 = arith.addf %11, %14 : vector<16x384xf32>
    %c0_13 = arith.constant 0 : index
    %c0_14 = arith.constant 0 : index
    %16 = vector.load %arg5[%c0_13, %c0_14] : memref<16x24xbf16, #tpu.memory_space<vmem>>, vector<16x24xbf16>
    %c0_15 = arith.constant 0 : index
    %c0_16 = arith.constant 0 : index
    %17 = vector.load %arg2[%c0_15, %c0_16] : memref<24x384xbf16, #tpu.memory_space<vmem>>, vector<24x384xbf16>
    %cst_17 = arith.constant dense<0.000000e+00> : vector<16x384xf32>
    %18 = tpu.matmul %16, %17, %cst_17 {dimension_numbers = #tpu.dot_dimension_numbers<[1], [0], [0], [1], [0, 0, 1, 1], [], []>} : vector<16x24xbf16>, vector<24x384xbf16>, vector<16x384xf32> -> vector<16x384xf32>
    %19 = vector.extract_strided_slice %7 {offsets = [0, 384], sizes = [16, 384], strides = [1, 1]} : vector<16x1152xf32> to vector<16x384xf32>
    %c0_18 = arith.constant 0 : index
    %c0_19 = arith.constant 0 : index
    %20 = vector.load %arg9[%c0_18, %c0_19] : memref<384x384xbf16, #tpu.memory_space<vmem>>, vector<384x384xbf16>
    %21 = arith.truncf %18 : vector<16x384xf32> to vector<16x384xbf16>
    %cst_20 = arith.constant dense<0.000000e+00> : vector<16x384xf32>
    %22 = tpu.matmul %21, %20, %cst_20 {dimension_numbers = #tpu.dot_dimension_numbers<[1], [0], [0], [1], [0, 0, 1, 1], [], []>} : vector<16x384xbf16>, vector<384x384xbf16>, vector<16x384xf32> -> vector<16x384xf32>
    %23 = arith.addf %19, %22 : vector<16x384xf32>
    %c0_21 = arith.constant 0 : index
    %c0_22 = arith.constant 0 : index
    %24 = vector.load %arg6[%c0_21, %c0_22] : memref<16x24xbf16, #tpu.memory_space<vmem>>, vector<16x24xbf16>
    %c0_23 = arith.constant 0 : index
    %c0_24 = arith.constant 0 : index
    %25 = vector.load %arg3[%c0_23, %c0_24] : memref<24x384xbf16, #tpu.memory_space<vmem>>, vector<24x384xbf16>
    %cst_25 = arith.constant dense<0.000000e+00> : vector<16x384xf32>
    %26 = tpu.matmul %24, %25, %cst_25 {dimension_numbers = #tpu.dot_dimension_numbers<[1], [0], [0], [1], [0, 0, 1, 1], [], []>} : vector<16x24xbf16>, vector<24x384xbf16>, vector<16x384xf32> -> vector<16x384xf32>
    %27 = vector.extract_strided_slice %7 {offsets = [0, 768], sizes = [16, 384], strides = [1, 1]} : vector<16x1152xf32> to vector<16x384xf32>
    %c0_26 = arith.constant 0 : index
    %c0_27 = arith.constant 0 : index
    %28 = vector.load %arg10[%c0_26, %c0_27] : memref<384x384xbf16, #tpu.memory_space<vmem>>, vector<384x384xbf16>
    %29 = arith.truncf %26 : vector<16x384xf32> to vector<16x384xbf16>
    %cst_28 = arith.constant dense<0.000000e+00> : vector<16x384xf32>
    %30 = tpu.matmul %29, %28, %cst_28 {dimension_numbers = #tpu.dot_dimension_numbers<[1], [0], [0], [1], [0, 0, 1, 1], [], []>} : vector<16x384xbf16>, vector<384x384xbf16>, vector<16x384xf32> -> vector<16x384xf32>
    %31 = arith.addf %27, %30 : vector<16x384xf32>
    %32 = arith.mulf %15, %15 : vector<16x384xf32>
    %cst_29 = arith.constant dense<0.000000e+00> : vector<16xf32>
    %33 = vector.multi_reduction <add>, %32, %cst_29 [1] : vector<16x384xf32> to vector<16xf32>
    %34 = vector.shape_cast %33 : vector<16xf32> to vector<16x1xf32>
    %cst_30 = arith.constant 0.0577350259 : f32
    %35 = vector.broadcast %cst_30 : f32 to vector<16x1xf32>
    %36 = arith.mulf %34, %35 : vector<16x1xf32>
    %37 = arith.mulf %15, %23 : vector<16x384xf32>
    %cst_31 = arith.constant dense<0.000000e+00> : vector<16xf32>
    %38 = vector.multi_reduction <add>, %37, %cst_31 [1] : vector<16x384xf32> to vector<16xf32>
    %39 = vector.shape_cast %38 : vector<16xf32> to vector<16x1xf32>
    %cst_32 = arith.constant 0.0577350259 : f32
    %40 = vector.broadcast %cst_32 : f32 to vector<16x1xf32>
    %41 = arith.mulf %39, %40 : vector<16x1xf32>
    %42 = arith.mulf %15, %31 : vector<16x384xf32>
    %cst_33 = arith.constant dense<0.000000e+00> : vector<16xf32>
    %43 = vector.multi_reduction <add>, %42, %cst_33 [1] : vector<16x384xf32> to vector<16xf32>
    %44 = vector.shape_cast %43 : vector<16xf32> to vector<16x1xf32>
    %cst_34 = arith.constant 0.0577350259 : f32
    %45 = vector.broadcast %cst_34 : f32 to vector<16x1xf32>
    %46 = arith.mulf %44, %45 : vector<16x1xf32>
    %47 = arith.mulf %23, %23 : vector<16x384xf32>
    %cst_35 = arith.constant dense<0.000000e+00> : vector<16xf32>
    %48 = vector.multi_reduction <add>, %47, %cst_35 [1] : vector<16x384xf32> to vector<16xf32>
    %49 = vector.shape_cast %48 : vector<16xf32> to vector<16x1xf32>
    %cst_36 = arith.constant 0.0577350259 : f32
    %50 = vector.broadcast %cst_36 : f32 to vector<16x1xf32>
    %51 = arith.mulf %49, %50 : vector<16x1xf32>
    %52 = arith.mulf %23, %31 : vector<16x384xf32>
    %cst_37 = arith.constant dense<0.000000e+00> : vector<16xf32>
    %53 = vector.multi_reduction <add>, %52, %cst_37 [1] : vector<16x384xf32> to vector<16xf32>
    %54 = vector.shape_cast %53 : vector<16xf32> to vector<16x1xf32>
    %cst_38 = arith.constant 0.0577350259 : f32
    %55 = vector.broadcast %cst_38 : f32 to vector<16x1xf32>
    %56 = arith.mulf %54, %55 : vector<16x1xf32>
    %57 = arith.mulf %31, %31 : vector<16x384xf32>
    %cst_39 = arith.constant dense<0.000000e+00> : vector<16xf32>
    %58 = vector.multi_reduction <add>, %57, %cst_39 [1] : vector<16x384xf32> to vector<16xf32>
    %59 = vector.shape_cast %58 : vector<16xf32> to vector<16x1xf32>
    %cst_40 = arith.constant 0.0577350259 : f32
    %60 = vector.broadcast %cst_40 : f32 to vector<16x1xf32>
    %61 = arith.mulf %59, %60 : vector<16x1xf32>
    %62 = arith.maximumf %36, %41 : vector<16x1xf32>
    %63 = arith.maximumf %62, %46 : vector<16x1xf32>
    %64 = arith.subf %36, %63 : vector<16x1xf32>
    %65 = math.exp %64 : vector<16x1xf32>
    %66 = arith.subf %41, %63 : vector<16x1xf32>
    %67 = math.exp %66 : vector<16x1xf32>
    %68 = arith.subf %46, %63 : vector<16x1xf32>
    %69 = math.exp %68 : vector<16x1xf32>
    %70 = arith.addf %65, %67 : vector<16x1xf32>
    %71 = arith.addf %70, %69 : vector<16x1xf32>
    %72 = tpu.reciprocal %71 {approx = true} : vector<16x1xf32> -> vector<16x1xf32>
    %73 = arith.mulf %65, %72 : vector<16x1xf32>
    %74 = vector.broadcast %73 : vector<16x1xf32> to vector<16x384xf32>
    %75 = arith.mulf %74, %15 : vector<16x384xf32>
    %76 = arith.mulf %67, %72 : vector<16x1xf32>
    %77 = vector.broadcast %76 : vector<16x1xf32> to vector<16x384xf32>
    %78 = arith.mulf %77, %23 : vector<16x384xf32>
    %79 = arith.addf %75, %78 : vector<16x384xf32>
    %80 = arith.mulf %69, %72 : vector<16x1xf32>
    %81 = vector.broadcast %80 : vector<16x1xf32> to vector<16x384xf32>
    %82 = arith.mulf %81, %31 : vector<16x384xf32>
    %83 = arith.addf %79, %82 : vector<16x384xf32>
    %84 = arith.maximumf %41, %51 : vector<16x1xf32>
    %85 = arith.maximumf %84, %56 : vector<16x1xf32>
    %86 = arith.subf %41, %85 : vector<16x1xf32>
    %87 = math.exp %86 : vector<16x1xf32>
    %88 = arith.subf %51, %85 : vector<16x1xf32>
    %89 = math.exp %88 : vector<16x1xf32>
    %90 = arith.subf %56, %85 : vector<16x1xf32>
    %91 = math.exp %90 : vector<16x1xf32>
    %92 = arith.addf %87, %89 : vector<16x1xf32>
    %93 = arith.addf %92, %91 : vector<16x1xf32>
    %94 = tpu.reciprocal %93 {approx = true} : vector<16x1xf32> -> vector<16x1xf32>
    %95 = arith.mulf %87, %94 : vector<16x1xf32>
    %96 = vector.broadcast %95 : vector<16x1xf32> to vector<16x384xf32>
    %97 = arith.mulf %96, %15 : vector<16x384xf32>
    %98 = arith.mulf %89, %94 : vector<16x1xf32>
    %99 = vector.broadcast %98 : vector<16x1xf32> to vector<16x384xf32>
    %100 = arith.mulf %99, %23 : vector<16x384xf32>
    %101 = arith.addf %97, %100 : vector<16x384xf32>
    %102 = arith.mulf %91, %94 : vector<16x1xf32>
    %103 = vector.broadcast %102 : vector<16x1xf32> to vector<16x384xf32>
    %104 = arith.mulf %103, %31 : vector<16x384xf32>
    %105 = arith.addf %101, %104 : vector<16x384xf32>
    %106 = arith.addf %83, %105 : vector<16x384xf32>
    %107 = arith.maximumf %46, %56 : vector<16x1xf32>
    %108 = arith.maximumf %107, %61 : vector<16x1xf32>
    %109 = arith.subf %46, %108 : vector<16x1xf32>
    %110 = math.exp %109 : vector<16x1xf32>
    %111 = arith.subf %56, %108 : vector<16x1xf32>
    %112 = math.exp %111 : vector<16x1xf32>
    %113 = arith.subf %61, %108 : vector<16x1xf32>
    %114 = math.exp %113 : vector<16x1xf32>
    %115 = arith.addf %110, %112 : vector<16x1xf32>
    %116 = arith.addf %115, %114 : vector<16x1xf32>
    %117 = tpu.reciprocal %116 {approx = true} : vector<16x1xf32> -> vector<16x1xf32>
    %118 = arith.mulf %110, %117 : vector<16x1xf32>
    %119 = vector.broadcast %118 : vector<16x1xf32> to vector<16x384xf32>
    %120 = arith.mulf %119, %15 : vector<16x384xf32>
    %121 = arith.mulf %112, %117 : vector<16x1xf32>
    %122 = vector.broadcast %121 : vector<16x1xf32> to vector<16x384xf32>
    %123 = arith.mulf %122, %23 : vector<16x384xf32>
    %124 = arith.addf %120, %123 : vector<16x384xf32>
    %125 = arith.mulf %114, %117 : vector<16x1xf32>
    %126 = vector.broadcast %125 : vector<16x1xf32> to vector<16x384xf32>
    %127 = arith.mulf %126, %31 : vector<16x384xf32>
    %128 = arith.addf %124, %127 : vector<16x384xf32>
    %129 = arith.addf %106, %128 : vector<16x384xf32>
    %cst_41 = arith.constant 0.333333343 : f32
    %130 = vector.broadcast %cst_41 : f32 to vector<16x384xf32>
    %131 = arith.mulf %129, %130 : vector<16x384xf32>
    %132 = arith.addf %131, %1 : vector<16x384xf32>
    %c0_42 = arith.constant 0 : index
    %c0_43 = arith.constant 0 : index
    %133 = vector.load %arg12[%c0_42, %c0_43] : memref<8x16xf32, #tpu.memory_space<vmem>>, vector<8x16xf32>
    %134 = arith.truncf %133 : vector<8x16xf32> to vector<8x16xbf16>
    %135 = arith.truncf %132 : vector<16x384xf32> to vector<16x384xbf16>
    %cst_44 = arith.constant dense<0.000000e+00> : vector<8x384xf32>
    %136 = tpu.matmul %134, %135, %cst_44 {dimension_numbers = #tpu.dot_dimension_numbers<[1], [0], [0], [1], [0, 0, 1, 1], [], []>} : vector<8x16xbf16>, vector<16x384xbf16>, vector<8x384xf32> -> vector<8x384xf32>
    %c0_45 = arith.constant 0 : index
    %c0_46 = arith.constant 0 : index
    %137 = vector.load %arg13[%c0_45, %c0_46] : memref<384x384xbf16, #tpu.memory_space<vmem>>, vector<384x384xbf16>
    %138 = arith.truncf %136 : vector<8x384xf32> to vector<8x384xbf16>
    %cst_47 = arith.constant dense<0.000000e+00> : vector<8x384xf32>
    %139 = tpu.matmul %138, %137, %cst_47 {dimension_numbers = #tpu.dot_dimension_numbers<[1], [0], [0], [1], [0, 0, 1, 1], [], []>} : vector<8x384xbf16>, vector<384x384xbf16>, vector<8x384xf32> -> vector<8x384xf32>
    %c0_48 = arith.constant 0 : index
    %c0_49 = arith.constant 0 : index
    %140 = vector.load %arg14[%c0_48, %c0_49] : memref<1x384xf32, #tpu.memory_space<vmem>>, vector<1x384xf32>
    %141 = vector.broadcast %140 : vector<1x384xf32> to vector<8x384xf32>
    %142 = arith.addf %139, %141 : vector<8x384xf32>
    %143 = vector.extract_strided_slice %0 {offsets = [1, 0], sizes = [1, 1152], strides = [1, 1]} : vector<2x1152xf32> to vector<1x1152xf32>
    %c0_50 = arith.constant 0 : index
    %c0_51 = arith.constant 0 : index
    %144 = vector.load %arg21[%c0_50, %c0_51] : memref<384x1152xbf16, #tpu.memory_space<vmem>>, vector<384x1152xbf16>
    %145 = arith.truncf %142 : vector<8x384xf32> to vector<8x384xbf16>
    %cst_52 = arith.constant dense<0.000000e+00> : vector<8x1152xf32>
    %146 = tpu.matmul %145, %144, %cst_52 {dimension_numbers = #tpu.dot_dimension_numbers<[1], [0], [0], [1], [0, 0, 1, 1], [], []>} : vector<8x384xbf16>, vector<384x1152xbf16>, vector<8x1152xf32> -> vector<8x1152xf32>
    %147 = vector.broadcast %143 : vector<1x1152xf32> to vector<8x1152xf32>
    %148 = arith.addf %146, %147 : vector<8x1152xf32>
    %c0_53 = arith.constant 0 : index
    %c0_54 = arith.constant 0 : index
    %149 = vector.load %arg18[%c0_53, %c0_54] : memref<8x20xbf16, #tpu.memory_space<vmem>>, vector<8x20xbf16>
    %c0_55 = arith.constant 0 : index
    %c0_56 = arith.constant 0 : index
    %150 = vector.load %arg15[%c0_55, %c0_56] : memref<20x384xbf16, #tpu.memory_space<vmem>>, vector<20x384xbf16>
    %cst_57 = arith.constant dense<0.000000e+00> : vector<8x384xf32>
    %151 = tpu.matmul %149, %150, %cst_57 {dimension_numbers = #tpu.dot_dimension_numbers<[1], [0], [0], [1], [0, 0, 1, 1], [], []>} : vector<8x20xbf16>, vector<20x384xbf16>, vector<8x384xf32> -> vector<8x384xf32>
    %152 = vector.extract_strided_slice %148 {offsets = [0, 0], sizes = [8, 384], strides = [1, 1]} : vector<8x1152xf32> to vector<8x384xf32>
    %c0_58 = arith.constant 0 : index
    %c0_59 = arith.constant 0 : index
    %153 = vector.load %arg22[%c0_58, %c0_59] : memref<384x384xbf16, #tpu.memory_space<vmem>>, vector<384x384xbf16>
    %154 = arith.truncf %151 : vector<8x384xf32> to vector<8x384xbf16>
    %cst_60 = arith.constant dense<0.000000e+00> : vector<8x384xf32>
    %155 = tpu.matmul %154, %153, %cst_60 {dimension_numbers = #tpu.dot_dimension_numbers<[1], [0], [0], [1], [0, 0, 1, 1], [], []>} : vector<8x384xbf16>, vector<384x384xbf16>, vector<8x384xf32> -> vector<8x384xf32>
    %156 = arith.addf %152, %155 : vector<8x384xf32>
    %c0_61 = arith.constant 0 : index
    %c0_62 = arith.constant 0 : index
    %157 = vector.load %arg19[%c0_61, %c0_62] : memref<8x20xbf16, #tpu.memory_space<vmem>>, vector<8x20xbf16>
    %c0_63 = arith.constant 0 : index
    %c0_64 = arith.constant 0 : index
    %158 = vector.load %arg16[%c0_63, %c0_64] : memref<20x384xbf16, #tpu.memory_space<vmem>>, vector<20x384xbf16>
    %cst_65 = arith.constant dense<0.000000e+00> : vector<8x384xf32>
    %159 = tpu.matmul %157, %158, %cst_65 {dimension_numbers = #tpu.dot_dimension_numbers<[1], [0], [0], [1], [0, 0, 1, 1], [], []>} : vector<8x20xbf16>, vector<20x384xbf16>, vector<8x384xf32> -> vector<8x384xf32>
    %160 = vector.extract_strided_slice %148 {offsets = [0, 384], sizes = [8, 384], strides = [1, 1]} : vector<8x1152xf32> to vector<8x384xf32>
    %c0_66 = arith.constant 0 : index
    %c0_67 = arith.constant 0 : index
    %161 = vector.load %arg23[%c0_66, %c0_67] : memref<384x384xbf16, #tpu.memory_space<vmem>>, vector<384x384xbf16>
    %162 = arith.truncf %159 : vector<8x384xf32> to vector<8x384xbf16>
    %cst_68 = arith.constant dense<0.000000e+00> : vector<8x384xf32>
    %163 = tpu.matmul %162, %161, %cst_68 {dimension_numbers = #tpu.dot_dimension_numbers<[1], [0], [0], [1], [0, 0, 1, 1], [], []>} : vector<8x384xbf16>, vector<384x384xbf16>, vector<8x384xf32> -> vector<8x384xf32>
    %164 = arith.addf %160, %163 : vector<8x384xf32>
    %c0_69 = arith.constant 0 : index
    %c0_70 = arith.constant 0 : index
    %165 = vector.load %arg20[%c0_69, %c0_70] : memref<8x20xbf16, #tpu.memory_space<vmem>>, vector<8x20xbf16>
    %c0_71 = arith.constant 0 : index
    %c0_72 = arith.constant 0 : index
    %166 = vector.load %arg17[%c0_71, %c0_72] : memref<20x384xbf16, #tpu.memory_space<vmem>>, vector<20x384xbf16>
    %cst_73 = arith.constant dense<0.000000e+00> : vector<8x384xf32>
    %167 = tpu.matmul %165, %166, %cst_73 {dimension_numbers = #tpu.dot_dimension_numbers<[1], [0], [0], [1], [0, 0, 1, 1], [], []>} : vector<8x20xbf16>, vector<20x384xbf16>, vector<8x384xf32> -> vector<8x384xf32>
    %168 = vector.extract_strided_slice %148 {offsets = [0, 768], sizes = [8, 384], strides = [1, 1]} : vector<8x1152xf32> to vector<8x384xf32>
    %c0_74 = arith.constant 0 : index
    %c0_75 = arith.constant 0 : index
    %169 = vector.load %arg24[%c0_74, %c0_75] : memref<384x384xbf16, #tpu.memory_space<vmem>>, vector<384x384xbf16>
    %170 = arith.truncf %167 : vector<8x384xf32> to vector<8x384xbf16>
    %cst_76 = arith.constant dense<0.000000e+00> : vector<8x384xf32>
    %171 = tpu.matmul %170, %169, %cst_76 {dimension_numbers = #tpu.dot_dimension_numbers<[1], [0], [0], [1], [0, 0, 1, 1], [], []>} : vector<8x384xbf16>, vector<384x384xbf16>, vector<8x384xf32> -> vector<8x384xf32>
    %172 = arith.addf %168, %171 : vector<8x384xf32>
    %173 = arith.mulf %156, %156 : vector<8x384xf32>
    %cst_77 = arith.constant dense<0.000000e+00> : vector<8xf32>
    %174 = vector.multi_reduction <add>, %173, %cst_77 [1] : vector<8x384xf32> to vector<8xf32>
    %175 = vector.shape_cast %174 : vector<8xf32> to vector<8x1xf32>
    %cst_78 = arith.constant 0.0577350259 : f32
    %176 = vector.broadcast %cst_78 : f32 to vector<8x1xf32>
    %177 = arith.mulf %175, %176 : vector<8x1xf32>
    %178 = arith.mulf %156, %164 : vector<8x384xf32>
    %cst_79 = arith.constant dense<0.000000e+00> : vector<8xf32>
    %179 = vector.multi_reduction <add>, %178, %cst_79 [1] : vector<8x384xf32> to vector<8xf32>
    %180 = vector.shape_cast %179 : vector<8xf32> to vector<8x1xf32>
    %cst_80 = arith.constant 0.0577350259 : f32
    %181 = vector.broadcast %cst_80 : f32 to vector<8x1xf32>
    %182 = arith.mulf %180, %181 : vector<8x1xf32>
    %183 = arith.mulf %156, %172 : vector<8x384xf32>
    %cst_81 = arith.constant dense<0.000000e+00> : vector<8xf32>
    %184 = vector.multi_reduction <add>, %183, %cst_81 [1] : vector<8x384xf32> to vector<8xf32>
    %185 = vector.shape_cast %184 : vector<8xf32> to vector<8x1xf32>
    %cst_82 = arith.constant 0.0577350259 : f32
    %186 = vector.broadcast %cst_82 : f32 to vector<8x1xf32>
    %187 = arith.mulf %185, %186 : vector<8x1xf32>
    %188 = arith.mulf %164, %164 : vector<8x384xf32>
    %cst_83 = arith.constant dense<0.000000e+00> : vector<8xf32>
    %189 = vector.multi_reduction <add>, %188, %cst_83 [1] : vector<8x384xf32> to vector<8xf32>
    %190 = vector.shape_cast %189 : vector<8xf32> to vector<8x1xf32>
    %cst_84 = arith.constant 0.0577350259 : f32
    %191 = vector.broadcast %cst_84 : f32 to vector<8x1xf32>
    %192 = arith.mulf %190, %191 : vector<8x1xf32>
    %193 = arith.mulf %164, %172 : vector<8x384xf32>
    %cst_85 = arith.constant dense<0.000000e+00> : vector<8xf32>
    %194 = vector.multi_reduction <add>, %193, %cst_85 [1] : vector<8x384xf32> to vector<8xf32>
    %195 = vector.shape_cast %194 : vector<8xf32> to vector<8x1xf32>
    %cst_86 = arith.constant 0.0577350259 : f32
    %196 = vector.broadcast %cst_86 : f32 to vector<8x1xf32>
    %197 = arith.mulf %195, %196 : vector<8x1xf32>
    %198 = arith.mulf %172, %172 : vector<8x384xf32>
    %cst_87 = arith.constant dense<0.000000e+00> : vector<8xf32>
    %199 = vector.multi_reduction <add>, %198, %cst_87 [1] : vector<8x384xf32> to vector<8xf32>
    %200 = vector.shape_cast %199 : vector<8xf32> to vector<8x1xf32>
    %cst_88 = arith.constant 0.0577350259 : f32
    %201 = vector.broadcast %cst_88 : f32 to vector<8x1xf32>
    %202 = arith.mulf %200, %201 : vector<8x1xf32>
    %203 = arith.maximumf %177, %182 : vector<8x1xf32>
    %204 = arith.maximumf %203, %187 : vector<8x1xf32>
    %205 = arith.subf %177, %204 : vector<8x1xf32>
    %206 = math.exp %205 : vector<8x1xf32>
    %207 = arith.subf %182, %204 : vector<8x1xf32>
    %208 = math.exp %207 : vector<8x1xf32>
    %209 = arith.subf %187, %204 : vector<8x1xf32>
    %210 = math.exp %209 : vector<8x1xf32>
    %211 = arith.addf %206, %208 : vector<8x1xf32>
    %212 = arith.addf %211, %210 : vector<8x1xf32>
    %213 = tpu.reciprocal %212 {approx = true} : vector<8x1xf32> -> vector<8x1xf32>
    %214 = arith.mulf %206, %213 : vector<8x1xf32>
    %215 = vector.broadcast %214 : vector<8x1xf32> to vector<8x384xf32>
    %216 = arith.mulf %215, %156 : vector<8x384xf32>
    %217 = arith.mulf %208, %213 : vector<8x1xf32>
    %218 = vector.broadcast %217 : vector<8x1xf32> to vector<8x384xf32>
    %219 = arith.mulf %218, %164 : vector<8x384xf32>
    %220 = arith.addf %216, %219 : vector<8x384xf32>
    %221 = arith.mulf %210, %213 : vector<8x1xf32>
    %222 = vector.broadcast %221 : vector<8x1xf32> to vector<8x384xf32>
    %223 = arith.mulf %222, %172 : vector<8x384xf32>
    %224 = arith.addf %220, %223 : vector<8x384xf32>
    %225 = arith.maximumf %182, %192 : vector<8x1xf32>
    %226 = arith.maximumf %225, %197 : vector<8x1xf32>
    %227 = arith.subf %182, %226 : vector<8x1xf32>
    %228 = math.exp %227 : vector<8x1xf32>
    %229 = arith.subf %192, %226 : vector<8x1xf32>
    %230 = math.exp %229 : vector<8x1xf32>
    %231 = arith.subf %197, %226 : vector<8x1xf32>
    %232 = math.exp %231 : vector<8x1xf32>
    %233 = arith.addf %228, %230 : vector<8x1xf32>
    %234 = arith.addf %233, %232 : vector<8x1xf32>
    %235 = tpu.reciprocal %234 {approx = true} : vector<8x1xf32> -> vector<8x1xf32>
    %236 = arith.mulf %228, %235 : vector<8x1xf32>
    %237 = vector.broadcast %236 : vector<8x1xf32> to vector<8x384xf32>
    %238 = arith.mulf %237, %156 : vector<8x384xf32>
    %239 = arith.mulf %230, %235 : vector<8x1xf32>
    %240 = vector.broadcast %239 : vector<8x1xf32> to vector<8x384xf32>
    %241 = arith.mulf %240, %164 : vector<8x384xf32>
    %242 = arith.addf %238, %241 : vector<8x384xf32>
    %243 = arith.mulf %232, %235 : vector<8x1xf32>
    %244 = vector.broadcast %243 : vector<8x1xf32> to vector<8x384xf32>
    %245 = arith.mulf %244, %172 : vector<8x384xf32>
    %246 = arith.addf %242, %245 : vector<8x384xf32>
    %247 = arith.addf %224, %246 : vector<8x384xf32>
    %248 = arith.maximumf %187, %197 : vector<8x1xf32>
    %249 = arith.maximumf %248, %202 : vector<8x1xf32>
    %250 = arith.subf %187, %249 : vector<8x1xf32>
    %251 = math.exp %250 : vector<8x1xf32>
    %252 = arith.subf %197, %249 : vector<8x1xf32>
    %253 = math.exp %252 : vector<8x1xf32>
    %254 = arith.subf %202, %249 : vector<8x1xf32>
    %255 = math.exp %254 : vector<8x1xf32>
    %256 = arith.addf %251, %253 : vector<8x1xf32>
    %257 = arith.addf %256, %255 : vector<8x1xf32>
    %258 = tpu.reciprocal %257 {approx = true} : vector<8x1xf32> -> vector<8x1xf32>
    %259 = arith.mulf %251, %258 : vector<8x1xf32>
    %260 = vector.broadcast %259 : vector<8x1xf32> to vector<8x384xf32>
    %261 = arith.mulf %260, %156 : vector<8x384xf32>
    %262 = arith.mulf %253, %258 : vector<8x1xf32>
    %263 = vector.broadcast %262 : vector<8x1xf32> to vector<8x384xf32>
    %264 = arith.mulf %263, %164 : vector<8x384xf32>
    %265 = arith.addf %261, %264 : vector<8x384xf32>
    %266 = arith.mulf %255, %258 : vector<8x1xf32>
    %267 = vector.broadcast %266 : vector<8x1xf32> to vector<8x384xf32>
    %268 = arith.mulf %267, %172 : vector<8x384xf32>
    %269 = arith.addf %265, %268 : vector<8x384xf32>
    %270 = arith.addf %247, %269 : vector<8x384xf32>
    %cst_89 = arith.constant 0.333333343 : f32
    %271 = vector.broadcast %cst_89 : f32 to vector<8x384xf32>
    %272 = arith.mulf %270, %271 : vector<8x384xf32>
    %273 = arith.addf %272, %142 : vector<8x384xf32>
    %c0_90 = arith.constant 0 : index
    %c0_91 = arith.constant 0 : index
    %274 = vector.load %arg25[%c0_90, %c0_91] : memref<384x128xbf16, #tpu.memory_space<vmem>>, vector<384x128xbf16>
    %275 = arith.truncf %273 : vector<8x384xf32> to vector<8x384xbf16>
    %cst_92 = arith.constant dense<0.000000e+00> : vector<8x128xf32>
    %276 = tpu.matmul %275, %274, %cst_92 {dimension_numbers = #tpu.dot_dimension_numbers<[1], [0], [0], [1], [0, 0, 1, 1], [], []>} : vector<8x384xbf16>, vector<384x128xbf16>, vector<8x128xf32> -> vector<8x128xf32>
    %c0_93 = arith.constant 0 : index
    %c0_94 = arith.constant 0 : index
    %277 = vector.load %arg26[%c0_93, %c0_94] : memref<1x128xf32, #tpu.memory_space<vmem>>, vector<1x128xf32>
    %278 = vector.broadcast %277 : vector<1x128xf32> to vector<8x128xf32>
    %279 = arith.addf %276, %278 : vector<8x128xf32>
    %c0_95 = arith.constant 0 : index
    %c0_96 = arith.constant 0 : index
    %280 = vector.load %arg27[%c0_95, %c0_96] : memref<8x128xf32, #tpu.memory_space<vmem>>, vector<8x128xf32>
    tpu.vector_store %arg27[%c0_95, %c0_96], %279 {strides = array<i32>} : memref<8x128xf32, #tpu.memory_space<vmem>>, vector<8x128xf32>,
    return
  }
}

</mosaic_0001>

<llo_original>
// kernel: merge_model_forward.1
$region0: #{merge_model_forward.1}
  #allocation0 [shape = 'u32[]', space=smem, size = 0x4, offset = 0x4, fixed_abs, tag = 'smem constant byte address 0x4 - core index']
  #allocation1 [shape = 'u32[72,128]{1,0:T(1,128)}', space=vmem, size = 0x9000, scoped, tag = 'internal scratch']
  %s0 = inlined_call_operand.vmem [shape: f32[16,384], index: 0, kind: input, shape index: {}]
  %s1 = inlined_call_operand.vmem [shape: bf16[24,384], index: 1, kind: input, shape index: {}]
  %s2 = inlined_call_operand.vmem [shape: bf16[24,384], index: 2, kind: input, shape index: {}]
  %s3 = inlined_call_operand.vmem [shape: bf16[24,384], index: 3, kind: input, shape index: {}]
  %s4 = inlined_call_operand.vmem [shape: bf16[16,24], index: 4, kind: input, shape index: {}]
  %s5 = inlined_call_operand.vmem [shape: bf16[16,24], index: 5, kind: input, shape index: {}]
  %s6 = inlined_call_operand.vmem [shape: bf16[16,24], index: 6, kind: input, shape index: {}]
  %s7 = inlined_call_operand.hbm [shape: bf16[384,1152], index: 7, kind: input, shape index: {}]
  %s8 = inlined_call_operand.hbm [shape: bf16[384,384], index: 8, kind: input, shape index: {}]
  %s9 = inlined_call_operand.hbm [shape: bf16[384,384], index: 9, kind: input, shape index: {}]
  %s10 = inlined_call_operand.hbm [shape: bf16[384,384], index: 10, kind: input, shape index: {}]
  %s11 = inlined_call_operand.vmem [shape: f32[2,1152], index: 11, kind: input, shape index: {}]
  %s12 = inlined_call_operand.vmem [shape: f32[8,16], index: 12, kind: input, shape index: {}]
  %s13 = inlined_call_operand.hbm [shape: bf16[384,384], index: 13, kind: input, shape index: {}]
  %s14 = inlined_call_operand.vmem [shape: f32[1,384], index: 14, kind: input, shape index: {}]
  %s15 = inlined_call_operand.vmem [shape: bf16[20,384], index: 15, kind: input, shape index: {}]
  %s16 = inlined_call_operand.vmem [shape: bf16[20,384], index: 16, kind: input, shape index: {}]
  %s17 = inlined_call_operand.vmem [shape: bf16[20,384], index: 17, kind: input, shape index: {}]
  %s18 = inlined_call_operand.vmem [shape: bf16[8,20], index: 18, kind: input, shape index: {}]
  %s19 = inlined_call_operand.vmem [shape: bf16[8,20], index: 19, kind: input, shape index: {}]
  %s20 = inlined_call_operand.vmem [shape: bf16[8,20], index: 20, kind: input, shape index: {}]
  %s21 = inlined_call_operand.hbm [shape: bf16[384,1152], index: 21, kind: input, shape index: {}]
  %s22 = inlined_call_operand.hbm [shape: bf16[384,384], index: 22, kind: input, shape index: {}]
  %s23 = inlined_call_operand.hbm [shape: bf16[384,384], index: 23, kind: input, shape index: {}]
  %s24 = inlined_call_operand.hbm [shape: bf16[384,384], index: 24, kind: input, shape index: {}]
  %s25 = inlined_call_operand.vmem [shape: bf16[384,128], index: 25, kind: input, shape index: {}]
  %s26 = inlined_call_operand.vmem [shape: f32[1,128], index: 26, kind: input, shape index: {}]
  %s27 = inlined_call_operand.vmem [shape: f32[8,128], index: 27, kind: output, shape index: {}]
  %s28 = sld [smem:[#allocation0]]
  $region154: #{merge_model_forward.1} parent=0
    _
  %s30 = ssub.s32 1, %s28
  %s31 = scalar_select 0, %s30, %s28
  $region1: #{merge_model_forward.1} parent=0
    #allocation2 [shape = 'u8[884736]{0}', space=vmem, size = 0xd8000, scoped, tag = 'input window, operand 7, single buffered']
    #allocation3 [shape = 's32[1]{0}', space=sflag, size = 0x4, scoped, tag = 'scoped memory for merge_model_forward.1']
    #allocation4 [shape = 'u8[294912]{0}', space=vmem, size = 0x48000, scoped, tag = 'input window, operand 8, single buffered']
    #allocation5 [shape = 's32[1]{0}', space=sflag, size = 0x4, scoped, tag = 'scoped memory for merge_model_forward.1']
    #allocation6 [shape = 'u8[294912]{0}', space=vmem, size = 0x48000, scoped, tag = 'input window, operand 9, single buffered']
    #allocation7 [shape = 'u8[294912]{0}', space=vmem, size = 0x48000, scoped, tag = 'input window, operand 10, single buffered']
    #allocation8 [shape = 's32[1]{0}', space=sflag, size = 0x4, scoped, tag = 'scoped memory for merge_model_forward.1']
    #allocation9 [shape = 'u8[294912]{0}', space=vmem, size = 0x48000, scoped, tag = 'input window, operand 13, single buffered']
    #allocation10 [shape = 'u8[884736]{0}', space=vmem, size = 0xd8000, scoped, tag = 'input window, operand 21, single buffered']
    #allocation11 [shape = 's32[1]{0}', space=sflag, size = 0x4, scoped, tag = 'scoped memory for merge_model_forward.1']
    #allocation12 [shape = 'u8[294912]{0}', space=vmem, size = 0x48000, scoped, tag = 'input window, operand 22, single buffered']
    #allocation13 [shape = 'u8[294912]{0}', space=vmem, size = 0x48000, scoped, tag = 'input window, operand 23, single buffered']
    #allocation14 [shape = 's32[1]{0}', space=sflag, size = 0x4, scoped, tag = 'scoped memory for merge_model_forward.1']
    #allocation15 [shape = 'u8[294912]{0}', space=vmem, size = 0x48000, scoped, tag = 'input window, operand 24, single buffered']
    %32 = vsyncpa [#allocation3], 0
    %33 = vsyncpa [#allocation5], 0
    %34 = vsyncpa [#allocation8], 0
    %35 = vsyncpa [#allocation11], 0
    %36 = vsyncpa [#allocation14], 0
    // Predicated region
    $region2: #{merge_model_forward.1} parent=1 // pred_check
      _
    $region3: #{merge_model_forward.1} parent=1 // pred_check_branch
      %38 = sbr.rel (0) target = $region5
    $region4: #{merge_model_forward.1} parent=1 // pred_region
      _
    $region5: #{merge_model_forward.1} parent=1 // pred_fallthru
      _
    // Predicated region
    $region6: #{merge_model_forward.1} parent=1 // pred_check
      _
    $region7: #{merge_model_forward.1} parent=1 // pred_check_branch
      %40 = sbr.rel (0) target = $region9
    $region8: #{merge_model_forward.1} parent=1 // pred_region
      _
    $region9: #{merge_model_forward.1} parent=1 // pred_fallthru
      _
    // Predicated region
    $region10: #{merge_model_forward.1} parent=1 // pred_check
      _
    $region11: #{merge_model_forward.1} parent=1 // pred_check_branch
      %42 = sbr.rel (0) target = $region13
    $region12: #{merge_model_forward.1} parent=1 // pred_region
      _
    $region13: #{merge_model_forward.1} parent=1 // pred_fallthru
      _
    // Predicated region
    $region14: #{merge_model_forward.1} parent=1 // pred_check
      _
    $region15: #{merge_model_forward.1} parent=1 // pred_check_branch
      %44 = sbr.rel (0) target = $region17
    $region16: #{merge_model_forward.1} parent=1 // pred_region
      _
    $region17: #{merge_model_forward.1} parent=1 // pred_fallthru
      _
    // Predicated region
    $region18: #{merge_model_forward.1} parent=1 // pred_check
      _
    $region19: #{merge_model_forward.1} parent=1 // pred_check_branch
      %46 = sbr.rel (0) target = $region21
    $region20: #{merge_model_forward.1} parent=1 // pred_region
      _
    $region21: #{merge_model_forward.1} parent=1 // pred_fallthru
      _
    // Predicated region
    $region22: #{merge_model_forward.1} parent=1 // pred_check
      _
    $region23: #{merge_model_forward.1} parent=1 // pred_check_branch
      %48 = sbr.rel (0) target = $region25
    $region24: #{merge_model_forward.1} parent=1 // pred_region
      _
    $region25: #{merge_model_forward.1} parent=1 // pred_fallthru
      _
    // Predicated region
    $region26: #{merge_model_forward.1} parent=1 // pred_check
      _
    $region27: #{merge_model_forward.1} parent=1 // pred_check_branch
      %50 = sbr.rel (0) target = $region29
    $region28: #{merge_model_forward.1} parent=1 // pred_region
      _
    $region29: #{merge_model_forward.1} parent=1 // pred_fallthru
      _
    // Predicated region
    $region30: #{merge_model_forward.1} parent=1 // pred_check
      _
    $region31: #{merge_model_forward.1} parent=1 // pred_check_branch
      %52 = sbr.rel (0) target = $region33
    $region32: #{merge_model_forward.1} parent=1 // pred_region
      %54 = vsyncadd [#allocation3], 0
      %s55 = sshll.u32 %s7, 4
      %s56 = int_to_ptr.hbm [resolvable:$true] %s55
      %s57 = sshll.u32 [#allocation2], 4
      %s58 = int_to_ptr.vmem [resolvable:$true] %s57
      %63 = dma.hbm_to_vmem [thread:$0]  %s56, 27648, %s58, [#allocation3], 576, 576, 36
    $region33: #{merge_model_forward.1} parent=1 // pred_fallthru
      _
    // Predicated region
    $region34: #{merge_model_forward.1} parent=1 // pred_check
      _
    $region35: #{merge_model_forward.1} parent=1 // pred_check_branch
      %65 = sbr.rel (0) target = $region37
    $region36: #{merge_model_forward.1} parent=1 // pred_region
      %67 = vsyncadd [#allocation5], 0
      %s68 = sshll.u32 %s8, 4
      %s69 = int_to_ptr.hbm [resolvable:$true] %s68
      %s70 = sshll.u32 [#allocation4], 4
      %s71 = int_to_ptr.vmem [resolvable:$true] %s70
      %76 = dma.hbm_to_vmem [thread:$0]  %s69, 9216, %s71, [#allocation5], 192, 192, 12
    $region37: #{merge_model_forward.1} parent=1 // pred_fallthru
      _
    // Predicated region
    $region38: #{merge_model_forward.1} parent=1 // pred_check
      _
    $region39: #{merge_model_forward.1} parent=1 // pred_check_branch
      %78 = sbr.rel (0) target = $region41
    $region40: #{merge_model_forward.1} parent=1 // pred_region
      %80 = vsyncadd [#allocation5], 0
      %s81 = sshll.u32 %s9, 4
      %s82 = int_to_ptr.hbm [resolvable:$true] %s81
      %s83 = sshll.u32 [#allocation6], 4
      %s84 = int_to_ptr.vmem [resolvable:$true] %s83
      %89 = dma.hbm_to_vmem [thread:$0]  %s82, 9216, %s84, [#allocation5], 192, 192, 12
    $region41: #{merge_model_forward.1} parent=1 // pred_fallthru
      _
    // Predicated region
    $region42: #{merge_model_forward.1} parent=1 // pred_check
      _
    $region43: #{merge_model_forward.1} parent=1 // pred_check_branch
      %91 = sbr.rel (0) target = $region45
    $region44: #{merge_model_forward.1} parent=1 // pred_region
      %93 = vsyncadd [#allocation8], 0
      %s94 = sshll.u32 %s10, 4
      %s95 = int_to_ptr.hbm [resolvable:$true] %s94
      %s96 = sshll.u32 [#allocation7], 4
      %s97 = int_to_ptr.vmem [resolvable:$true] %s96
      %102 = dma.hbm_to_vmem [thread:$0]  %s95, 9216, %s97, [#allocation8], 192, 192, 12
    $region45: #{merge_model_forward.1} parent=1 // pred_fallthru
      _
    // Predicated region
    $region46: #{merge_model_forward.1} parent=1 // pred_check
      _
    $region47: #{merge_model_forward.1} parent=1 // pred_check_branch
      %104 = sbr.rel (0) target = $region49
    $region48: #{merge_model_forward.1} parent=1 // pred_region
      _
    $region49: #{merge_model_forward.1} parent=1 // pred_fallthru
      _
    // Predicated region
    $region50: #{merge_model_forward.1} parent=1 // pred_check
      _
    $region51: #{merge_model_forward.1} parent=1 // pred_check_branch
      %106 = sbr.rel (0) target = $region53
    $region52: #{merge_model_forward.1} parent=1 // pred_region
      _
    $region53: #{merge_model_forward.1} parent=1 // pred_fallthru
      _
    // Predicated region
    $region54: #{merge_model_forward.1} parent=1 // pred_check
      _
    $region55: #{merge_model_forward.1} parent=1 // pred_check_branch
      %108 = sbr.rel (0) target = $region57
    $region56: #{merge_model_forward.1} parent=1 // pred_region
      %110 = vsyncadd [#allocation8], 0
      %s111 = sshll.u32 %s13, 4
      %s112 = int_to_ptr.hbm [resolvable:$true] %s111
      %s113 = sshll.u32 [#allocation9], 4
      %s114 = int_to_ptr.vmem [resolvable:$true] %s113
      %119 = dma.hbm_to_vmem [thread:$0]  %s112, 9216, %s114, [#allocation8], 192, 192, 12
    $region57: #{merge_model_forward.1} parent=1 // pred_fallthru
      _
    // Predicated region
    $region58: #{merge_model_forward.1} parent=1 // pred_check
      _
    $region59: #{merge_model_forward.1} parent=1 // pred_check_branch
      %121 = sbr.rel (0) target = $region61
    $region60: #{merge_model_forward.1} parent=1 // pred_region
      _
    $region61: #{merge_model_forward.1} parent=1 // pred_fallthru
      _
    // Predicated region
    $region62: #{merge_model_forward.1} parent=1 // pred_check
      _
    $region63: #{merge_model_forward.1} parent=1 // pred_check_branch
      %123 = sbr.rel (0) target = $region65
    $region64: #{merge_model_forward.1} parent=1 // pred_region
      _
    $region65: #{merge_model_forward.1} parent=1 // pred_fallthru
      _
    // Predicated region
    $region66: #{merge_model_forward.1} parent=1 // pred_check
      _
    $region67: #{merge_model_forward.1} parent=1 // pred_check_branch
      %125 = sbr.rel (0) target = $region69
    $region68: #{merge_model_forward.1} parent=1 // pred_region
      _
    $region69: #{merge_model_forward.1} parent=1 // pred_fallthru
      _
    // Predicated region
    $region70: #{merge_model_forward.1} parent=1 // pred_check
      _
    $region71: #{merge_model_forward.1} parent=1 // pred_check_branch
      %127 = sbr.rel (0) target = $region73
    $region72: #{merge_model_forward.1} parent=1 // pred_region
      _
    $region73: #{merge_model_forward.1} parent=1 // pred_fallthru
      _
    // Predicated region
    $region74: #{merge_model_forward.1} parent=1 // pred_check
      _
    $region75: #{merge_model_forward.1} parent=1 // pred_check_branch
      %129 = sbr.rel (0) target = $region77
    $region76: #{merge_model_forward.1} parent=1 // pred_region
      _
    $region77: #{merge_model_forward.1} parent=1 // pred_fallthru
      _
    // Predicated region
    $region78: #{merge_model_forward.1} parent=1 // pred_check
      _
    $region79: #{merge_model_forward.1} parent=1 // pred_check_branch
      %131 = sbr.rel (0) target = $region81
    $region80: #{merge_model_forward.1} parent=1 // pred_region
      _
    $region81: #{merge_model_forward.1} parent=1 // pred_fallthru
      _
    // Predicated region
    $region82: #{merge_model_forward.1} parent=1 // pred_check
      _
    $region83: #{merge_model_forward.1} parent=1 // pred_check_branch
      %133 = sbr.rel (0) target = $region85
    $region84: #{merge_model_forward.1} parent=1 // pred_region
      _
    $region85: #{merge_model_forward.1} parent=1 // pred_fallthru
      _
    // Predicated region
    $region86: #{merge_model_forward.1} parent=1 // pred_check
      _
    $region87: #{merge_model_forward.1} parent=1 // pred_check_branch
      %135 = sbr.rel (0) target = $region89
    $region88: #{merge_model_forward.1} parent=1 // pred_region
      %137 = vsyncadd [#allocation11], 0
      %s138 = sshll.u32 %s21, 4
      %s139 = int_to_ptr.hbm [resolvable:$true] %s138
      %s140 = sshll.u32 [#allocation10], 4
      %s141 = int_to_ptr.vmem [resolvable:$true] %s140
      %146 = dma.hbm_to_vmem [thread:$0]  %s139, 27648, %s141, [#allocation11], 576, 576, 36
    $region89: #{merge_model_forward.1} parent=1 // pred_fallthru
      _
    // Predicated region
    $region90: #{merge_model_forward.1} parent=1 // pred_check
      _
    $region91: #{merge_model_forward.1} parent=1 // pred_check_branch
      %148 = sbr.rel (0) target = $region93
    $region92: #{merge_model_forward.1} parent=1 // pred_region
      %150 = vsyncadd [#allocation11], 0
      %s151 = sshll.u32 %s22, 4
      %s152 = int_to_ptr.hbm [resolvable:$true] %s151
      %s153 = sshll.u32 [#allocation12], 4
      %s154 = int_to_ptr.vmem [resolvable:$true] %s153
      %159 = dma.hbm_to_vmem [thread:$0]  %s152, 9216, %s154, [#allocation11], 192, 192, 12
    $region93: #{merge_model_forward.1} parent=1 // pred_fallthru
      _
    // Predicated region
    $region94: #{merge_model_forward.1} parent=1 // pred_check
      _
    $region95: #{merge_model_forward.1} parent=1 // pred_check_branch
      %161 = sbr.rel (0) target = $region97
    $region96: #{merge_model_forward.1} parent=1 // pred_region
      %163 = vsyncadd [#allocation14], 0
      %s164 = sshll.u32 %s23, 4
      %s165 = int_to_ptr.hbm [resolvable:$true] %s164
      %s166 = sshll.u32 [#allocation13], 4
      %s167 = int_to_ptr.vmem [resolvable:$true] %s166
      %172 = dma.hbm_to_vmem [thread:$0]  %s165, 9216, %s167, [#allocation14], 192, 192, 12
    $region97: #{merge_model_forward.1} parent=1 // pred_fallthru
      _
    // Predicated region
    $region98: #{merge_model_forward.1} parent=1 // pred_check
      _
    $region99: #{merge_model_forward.1} parent=1 // pred_check_branch
      %174 = sbr.rel (0) target = $region101
    $region100: #{merge_model_forward.1} parent=1 // pred_region
      %176 = vsyncadd [#allocation14], 0
      %s177 = sshll.u32 %s24, 4
      %s178 = int_to_ptr.hbm [resolvable:$true] %s177
      %s179 = sshll.u32 [#allocation15], 4
      %s180 = int_to_ptr.vmem [resolvable:$true] %s179
      %185 = dma.hbm_to_vmem [thread:$0]  %s178, 9216, %s180, [#allocation14], 192, 192, 12
    $region101: #{merge_model_forward.1} parent=1 // pred_fallthru
      _
    // Predicated region
    $region102: #{merge_model_forward.1} parent=1 // pred_check
      _
    $region103: #{merge_model_forward.1} parent=1 // pred_check_branch
      %187 = sbr.rel (0) target = $region105
    $region104: #{merge_model_forward.1} parent=1 // pred_region
      _
    $region105: #{merge_model_forward.1} parent=1 // pred_fallthru
      _
    // Predicated region
    $region106: #{merge_model_forward.1} parent=1 // pred_check
      _
    $region107: #{merge_model_forward.1} parent=1 // pred_check_branch
      %189 = sbr.rel (0) target = $region109
    $region108: #{merge_model_forward.1} parent=1 // pred_region
      _
    $region109: #{merge_model_forward.1} parent=1 // pred_fallthru
      _
    // Predicated region
    $region110: #{merge_model_forward.1} parent=1 // pred_check
      _
    $region111: #{merge_model_forward.1} parent=1 // pred_check_branch
      %191 = sbr.rel (0) target = $region113
    $region112: #{merge_model_forward.1} parent=1 // pred_region
      %193 = dma.done [#allocation3], 27648
    $region113: #{merge_model_forward.1} parent=1 // pred_fallthru
      _
    // Predicated region
    $region114: #{merge_model_forward.1} parent=1 // pred_check
      _
    $region115: #{merge_model_forward.1} parent=1 // pred_check_branch
      %195 = sbr.rel (0) target = $region117
    $region116: #{merge_model_forward.1} parent=1 // pred_region
      %197 = dma.done [#allocation5], 9216
    $region117: #{merge_model_forward.1} parent=1 // pred_fallthru
      _
    // Predicated region
    $region118: #{merge_model_forward.1} parent=1 // pred_check
      _
    $region119: #{merge_model_forward.1} parent=1 // pred_check_branch
      %199 = sbr.rel (0) target = $region121
    $region120: #{merge_model_forward.1} parent=1 // pred_region
      %201 = dma.done [#allocation5], 9216
    $region121: #{merge_model_forward.1} parent=1 // pred_fallthru
      _
    // Predicated region
    $region122: #{merge_model_forward.1} parent=1 // pred_check
      _
    $region123: #{merge_model_forward.1} parent=1 // pred_check_branch
      %203 = sbr.rel (0) target = $region125
    $region124: #{merge_model_forward.1} parent=1 // pred_region
      %205 = dma.done [#allocation8], 9216
    $region125: #{merge_model_forward.1} parent=1 // pred_fallthru
      _
    // Predicated region
    $region126: #{merge_model_forward.1} parent=1 // pred_check
      _
    $region127: #{merge_model_forward.1} parent=1 // pred_check_branch
      %207 = sbr.rel (0) target = $region129
    $region128: #{merge_model_forward.1} parent=1 // pred_region
      %209 = dma.done [#allocation8], 9216
    $region129: #{merge_model_forward.1} parent=1 // pred_fallthru
      _
    // Predicated region
    $region130: #{merge_model_forward.1} parent=1 // pred_check
      _
    $region131: #{merge_model_forward.1} parent=1 // pred_check_branch
      %211 = sbr.rel (0) target = $region133
    $region132: #{merge_model_forward.1} parent=1 // pred_region
      %213 = dma.done [#allocation11], 27648
    $region133: #{merge_model_forward.1} parent=1 // pred_fallthru
      _
    // Predicated region
    $region134: #{merge_model_forward.1} parent=1 // pred_check
      _
    $region135: #{merge_model_forward.1} parent=1 // pred_check_branch
      %215 = sbr.rel (0) target = $region137
    $region136: #{merge_model_forward.1} parent=1 // pred_region
      %217 = dma.done [#allocation11], 9216
    $region137: #{merge_model_forward.1} parent=1 // pred_fallthru
      _
    // Predicated region
    $region138: #{merge_model_forward.1} parent=1 // pred_check
      _
    $region139: #{merge_model_forward.1} parent=1 // pred_check_branch
      %219 = sbr.rel (0) target = $region141
    $region140: #{merge_model_forward.1} parent=1 // pred_region
      %221 = dma.done [#allocation14], 9216
    $region141: #{merge_model_forward.1} parent=1 // pred_fallthru
      _
    // Predicated region
    $region142: #{merge_model_forward.1} parent=1 // pred_check
      _
    $region143: #{merge_model_forward.1} parent=1 // pred_check_branch
      %223 = sbr.rel (0) target = $region145
    $region144: #{merge_model_forward.1} parent=1 // pred_region
      %225 = dma.done [#allocation14], 9216
    $region145: #{merge_model_forward.1} parent=1 // pred_fallthru
      _
    %v227 = vld [vmem:[%s11] sm:$0xff]
    %v228 = vld [vmem:[%s11 + $0x8] sm:$0xff]
    %v229 = vld [vmem:[%s11 + $0x10] sm:$0x3]
    %v230 = vld [vmem:[%s0] sm:$0xff]
    %v231 = vld [vmem:[%s0 + $0x8] sm:$0xff]
    %v232 = vld [vmem:[%s0 + $0x10] sm:$0xff]
    %v233 = vld [vmem:[%s0 + $0x18] sm:$0xff]
    %v234 = vld [vmem:[%s0 + $0x20] sm:$0xff]
    %v235 = vld [vmem:[%s0 + $0x28] sm:$0xff]
    %v236 = vld [vmem:[#allocation2] sm:$0xff]
    %v237 = vld [vmem:[#allocation2 + $0x8] sm:$0xff]
    %v238 = vld [vmem:[#allocation2 + $0x10] sm:$0xff]
    %v239 = vld [vmem:[#allocation2 + $0x18] sm:$0xff]
    %v240 = vld [vmem:[#allocation2 + $0x20] sm:$0xf]
    %v241 = vld [vmem:[#allocation2 + $0x24] sm:$0xff]
    %v242 = vld [vmem:[#allocation2 + $0x2c] sm:$0xff]
    %v243 = vld [vmem:[#allocation2 + $0x34] sm:$0xff]
    %v244 = vld [vmem:[#allocation2 + $0x3c] sm:$0xff]
    %v245 = vld [vmem:[#allocation2 + $0x44] sm:$0xf]
    %v246 = vld [vmem:[#allocation2 + $0x48] sm:$0xff]
    %v247 = vld [vmem:[#allocation2 + $0x50] sm:$0xff]
    %v248 = vld [vmem:[#allocation2 + $0x58] sm:$0xff]
    %v249 = vld [vmem:[#allocation2 + $0x60] sm:$0xff]
    %v250 = vld [vmem:[#allocation2 + $0x68] sm:$0xf]
    %v251 = vld [vmem:[#allocation2 + $0x6c] sm:$0xff]
    %v252 = vld [vmem:[#allocation2 + $0x74] sm:$0xff]
    %v253 = vld [vmem:[#allocation2 + $0x7c] sm:$0xff]
    %v254 = vld [vmem:[#allocation2 + $0x84] sm:$0xff]
    %v255 = vld [vmem:[#allocation2 + $0x8c] sm:$0xf]
    %v256 = vld [vmem:[#allocation2 + $0x90] sm:$0xff]
    %v257 = vld [vmem:[#allocation2 + $0x98] sm:$0xff]
    %v258 = vld [vmem:[#allocation2 + $0xa0] sm:$0xff]
    %v259 = vld [vmem:[#allocation2 + $0xa8] sm:$0xff]
    %v260 = vld [vmem:[#allocation2 + $0xb0] sm:$0xf]
    %v261 = vld [vmem:[#allocation2 + $0xb4] sm:$0xff]
    %v262 = vld [vmem:[#allocation2 + $0xbc] sm:$0xff]
    %v263 = vld [vmem:[#allocation2 + $0xc4] sm:$0xff]
    %v264 = vld [vmem:[#allocation2 + $0xcc] sm:$0xff]
    %v265 = vld [vmem:[#allocation2 + $0xd4] sm:$0xf]
    %v266 = vld [vmem:[#allocation2 + $0xd8] sm:$0xff]
    %v267 = vld [vmem:[#allocation2 + $0xe0] sm:$0xff]
    %v268 = vld [vmem:[#allocation2 + $0xe8] sm:$0xff]
    %v269 = vld [vmem:[#allocation2 + $0xf0] sm:$0xff]
    %v270 = vld [vmem:[#allocation2 + $0xf8] sm:$0xf]
    %v271 = vld [vmem:[#allocation2 + $0xfc] sm:$0xff]
    %v272 = vld [vmem:[#allocation2 + $0x104] sm:$0xff]
    %v273 = vld [vmem:[#allocation2 + $0x10c] sm:$0xff]
    %v274 = vld [vmem:[#allocation2 + $0x114] sm:$0xff]
    %v275 = vld [vmem:[#allocation2 + $0x11c] sm:$0xf]
    %v276 = vld [vmem:[#allocation2 + $0x120] sm:$0xff]
    %v277 = vld [vmem:[#allocation2 + $0x128] sm:$0xff]
    %v278 = vld [vmem:[#allocation2 + $0x130] sm:$0xff]
    %v279 = vld [vmem:[#allocation2 + $0x138] sm:$0xff]
    %v280 = vld [vmem:[#allocation2 + $0x140] sm:$0xf]
    %v281 = vld [vmem:[#allocation2 + $0x144] sm:$0xff]
    %v282 = vld [vmem:[#allocation2 + $0x14c] sm:$0xff]
    %v283 = vld [vmem:[#allocation2 + $0x154] sm:$0xff]
    %v284 = vld [vmem:[#allocation2 + $0x15c] sm:$0xff]
    %v285 = vld [vmem:[#allocation2 + $0x164] sm:$0xf]
    %v286 = vld [vmem:[#allocation2 + $0x168] sm:$0xff]
    %v287 = vld [vmem:[#allocation2 + $0x170] sm:$0xff]
    %v288 = vld [vmem:[#allocation2 + $0x178] sm:$0xff]
    %v289 = vld [vmem:[#allocation2 + $0x180] sm:$0xff]
    %v290 = vld [vmem:[#allocation2 + $0x188] sm:$0xf]
    %v291 = vld [vmem:[#allocation2 + $0x18c] sm:$0xff]
    %v292 = vld [vmem:[#allocation2 + $0x194] sm:$0xff]
    %v293 = vld [vmem:[#allocation2 + $0x19c] sm:$0xff]
    %v294 = vld [vmem:[#allocation2 + $0x1a4] sm:$0xff]
    %v295 = vld [vmem:[#allocation2 + $0x1ac] sm:$0xf]
    %v296 = vld [vmem:[#allocation2 + $0x1b0] sm:$0xff]
    %v297 = vld [vmem:[#allocation2 + $0x1b8] sm:$0xff]
    %v298 = vld [vmem:[#allocation2 + $0x1c0] sm:$0xff]
    %v299 = vld [vmem:[#allocation2 + $0x1c8] sm:$0xff]
    %v300 = vld [vmem:[#allocation2 + $0x1d0] sm:$0xf]
    %v301 = vld [vmem:[#allocation2 + $0x1d4] sm:$0xff]
    %v302 = vld [vmem:[#allocation2 + $0x1dc] sm:$0xff]
    %v303 = vld [vmem:[#allocation2 + $0x1e4] sm:$0xff]
    %v304 = vld [vmem:[#allocation2 + $0x1ec] sm:$0xff]
    %v305 = vld [vmem:[#allocation2 + $0x1f4] sm:$0xf]
    %v306 = vld [vmem:[#allocation2 + $0x1f8] sm:$0xff]
    %v307 = vld [vmem:[#allocation2 + $0x200] sm:$0xff]
    %v308 = vld [vmem:[#allocation2 + $0x208] sm:$0xff]
    %v309 = vld [vmem:[#allocation2 + $0x210] sm:$0xff]
    %v310 = vld [vmem:[#allocation2 + $0x218] sm:$0xf]
    %v311 = vld [vmem:[#allocation2 + $0x21c] sm:$0xff]
    %v312 = vld [vmem:[#allocation2 + $0x224] sm:$0xff]
    %v313 = vld [vmem:[#allocation2 + $0x22c] sm:$0xff]
    %v314 = vld [vmem:[#allocation2 + $0x234] sm:$0xff]
    %v315 = vld [vmem:[#allocation2 + $0x23c] sm:$0xf]
    %v316 = vld [vmem:[#allocation2 + $0x240] sm:$0xff]
    %v317 = vld [vmem:[#allocation2 + $0x248] sm:$0xff]
    %v318 = vld [vmem:[#allocation2 + $0x250] sm:$0xff]
    %v319 = vld [vmem:[#allocation2 + $0x258] sm:$0xff]
    %v320 = vld [vmem:[#allocation2 + $0x260] sm:$0xf]
    %v321 = vld [vmem:[#allocation2 + $0x264] sm:$0xff]
    %v322 = vld [vmem:[#allocation2 + $0x26c] sm:$0xff]
    %v323 = vld [vmem:[#allocation2 + $0x274] sm:$0xff]
    %v324 = vld [vmem:[#allocation2 + $0x27c] sm:$0xff]
    %v325 = vld [vmem:[#allocation2 + $0x284] sm:$0xf]
    %v326 = vld [vmem:[#allocation2 + $0x288] sm:$0xff]
    %v327 = vld [vmem:[#allocation2 + $0x290] sm:$0xff]
    %v328 = vld [vmem:[#allocation2 + $0x298] sm:$0xff]
    %v329 = vld [vmem:[#allocation2 + $0x2a0] sm:$0xff]
    %v330 = vld [vmem:[#allocation2 + $0x2a8] sm:$0xf]
    %v331 = vld [vmem:[#allocation2 + $0x2ac] sm:$0xff]
    %v332 = vld [vmem:[#allocation2 + $0x2b4] sm:$0xff]
    %v333 = vld [vmem:[#allocation2 + $0x2bc] sm:$0xff]
    %v334 = vld [vmem:[#allocation2 + $0x2c4] sm:$0xff]
    %v335 = vld [vmem:[#allocation2 + $0x2cc] sm:$0xf]
    %v336 = vld [vmem:[#allocation2 + $0x2d0] sm:$0xff]
    %v337 = vld [vmem:[#allocation2 + $0x2d8] sm:$0xff]
    %v338 = vld [vmem:[#allocation2 + $0x2e0] sm:$0xff]
    %v339 = vld [vmem:[#allocation2 + $0x2e8] sm:$0xff]
    %v340 = vld [vmem:[#allocation2 + $0x2f0] sm:$0xf]
    %v341 = vld [vmem:[#allocation2 + $0x2f4] sm:$0xff]
    %v342 = vld [vmem:[#allocation2 + $0x2fc] sm:$0xff]
    %v343 = vld [vmem:[#allocation2 + $0x304] sm:$0xff]
    %v344 = vld [vmem:[#allocation2 + $0x30c] sm:$0xff]
    %v345 = vld [vmem:[#allocation2 + $0x314] sm:$0xf]
    %v346 = vld [vmem:[#allocation2 + $0x318] sm:$0xff]
    %v347 = vld [vmem:[#allocation2 + $0x320] sm:$0xff]
    %v348 = vld [vmem:[#allocation2 + $0x328] sm:$0xff]
    %v349 = vld [vmem:[#allocation2 + $0x330] sm:$0xff]
    %v350 = vld [vmem:[#allocation2 + $0x338] sm:$0xf]
    %v351 = vld [vmem:[#allocation2 + $0x33c] sm:$0xff]
    %v352 = vld [vmem:[#allocation2 + $0x344] sm:$0xff]
    %v353 = vld [vmem:[#allocation2 + $0x34c] sm:$0xff]
    %v354 = vld [vmem:[#allocation2 + $0x354] sm:$0xff]
    %v355 = vld [vmem:[#allocation2 + $0x35c] sm:$0xf]
    %v356 = vld [vmem:[#allocation2 + $0x360] sm:$0xff]
    %v357 = vld [vmem:[#allocation2 + $0x368] sm:$0xff]
    %v358 = vld [vmem:[#allocation2 + $0x370] sm:$0xff]
    %v359 = vld [vmem:[#allocation2 + $0x378] sm:$0xff]
    %v360 = vld [vmem:[#allocation2 + $0x380] sm:$0xf]
    %v361 = vld [vmem:[#allocation2 + $0x384] sm:$0xff]
    %v362 = vld [vmem:[#allocation2 + $0x38c] sm:$0xff]
    %v363 = vld [vmem:[#allocation2 + $0x394] sm:$0xff]
    %v364 = vld [vmem:[#allocation2 + $0x39c] sm:$0xff]
    %v365 = vld [vmem:[#allocation2 + $0x3a4] sm:$0xf]
    %v366 = vld [vmem:[#allocation2 + $0x3a8] sm:$0xff]
    %v367 = vld [vmem:[#allocation2 + $0x3b0] sm:$0xff]
    %v368 = vld [vmem:[#allocation2 + $0x3b8] sm:$0xff]
    %v369 = vld [vmem:[#allocation2 + $0x3c0] sm:$0xff]
    %v370 = vld [vmem:[#allocation2 + $0x3c8] sm:$0xf]
    %v371 = vld [vmem:[#allocation2 + $0x3cc] sm:$0xff]
    %v372 = vld [vmem:[#allocation2 + $0x3d4] sm:$0xff]
    %v373 = vld [vmem:[#allocation2 + $0x3dc] sm:$0xff]
    %v374 = vld [vmem:[#allocation2 + $0x3e4] sm:$0xff]
    %v375 = vld [vmem:[#allocation2 + $0x3ec] sm:$0xf]
    %v376 = vld [vmem:[#allocation2 + $0x3f0] sm:$0xff]
    %v377 = vld [vmem:[#allocation2 + $0x3f8] sm:$0xff]
    %v378 = vld [vmem:[#allocation2 + $0x400] sm:$0xff]
    %v379 = vld [vmem:[#allocation2 + $0x408] sm:$0xff]
    %v380 = vld [vmem:[#allocation2 + $0x410] sm:$0xf]
    %v381 = vld [vmem:[#allocation2 + $0x414] sm:$0xff]
    %v382 = vld [vmem:[#allocation2 + $0x41c] sm:$0xff]
    %v383 = vld [vmem:[#allocation2 + $0x424] sm:$0xff]
    %v384 = vld [vmem:[#allocation2 + $0x42c] sm:$0xff]
    %v385 = vld [vmem:[#allocation2 + $0x434] sm:$0xf]
    %v386 = vld [vmem:[#allocation2 + $0x438] sm:$0xff]
    %v387 = vld [vmem:[#allocation2 + $0x440] sm:$0xff]
    %v388 = vld [vmem:[#allocation2 + $0x448] sm:$0xff]
    %v389 = vld [vmem:[#allocation2 + $0x450] sm:$0xff]
    %v390 = vld [vmem:[#allocation2 + $0x458] sm:$0xf]
    %v391 = vld [vmem:[#allocation2 + $0x45c] sm:$0xff]
    %v392 = vld [vmem:[#allocation2 + $0x464] sm:$0xff]
    %v393 = vld [vmem:[#allocation2 + $0x46c] sm:$0xff]
    %v394 = vld [vmem:[#allocation2 + $0x474] sm:$0xff]
    %v395 = vld [vmem:[#allocation2 + $0x47c] sm:$0xf]
    %v396 = vld [vmem:[#allocation2 + $0x480] sm:$0xff]
    %v397 = vld [vmem:[#allocation2 + $0x488] sm:$0xff]
    %v398 = vld [vmem:[#allocation2 + $0x490] sm:$0xff]
    %v399 = vld [vmem:[#allocation2 + $0x498] sm:$0xff]
    %v400 = vld [vmem:[#allocation2 + $0x4a0] sm:$0xf]
    %v401 = vld [vmem:[#allocation2 + $0x4a4] sm:$0xff]
    %v402 = vld [vmem:[#allocation2 + $0x4ac] sm:$0xff]
    %v403 = vld [vmem:[#allocation2 + $0x4b4] sm:$0xff]
    %v404 = vld [vmem:[#allocation2 + $0x4bc] sm:$0xff]
    %v405 = vld [vmem:[#allocation2 + $0x4c4] sm:$0xf]
    %v406 = vld [vmem:[#allocation2 + $0x4c8] sm:$0xff]
    %v407 = vld [vmem:[#allocation2 + $0x4d0] sm:$0xff]
    %v408 = vld [vmem:[#allocation2 + $0x4d8] sm:$0xff]
    %v409 = vld [vmem:[#allocation2 + $0x4e0] sm:$0xff]
    %v410 = vld [vmem:[#allocation2 + $0x4e8] sm:$0xf]
    %v411 = vld [vmem:[#allocation2 + $0x4ec] sm:$0xff]
    %v412 = vld [vmem:[#allocation2 + $0x4f4] sm:$0xff]
    %v413 = vld [vmem:[#allocation2 + $0x4fc] sm:$0xff]
    %v414 = vld [vmem:[#allocation2 + $0x504] sm:$0xff]
    %v415 = vld [vmem:[#allocation2 + $0x50c] sm:$0xf]
    %v416 = vld [vmem:[#allocation2 + $0x510] sm:$0xff]
    %v417 = vld [vmem:[#allocation2 + $0x518] sm:$0xff]
    %v418 = vld [vmem:[#allocation2 + $0x520] sm:$0xff]
    %v419 = vld [vmem:[#allocation2 + $0x528] sm:$0xff]
    %v420 = vld [vmem:[#allocation2 + $0x530] sm:$0xf]
    %v421 = vld [vmem:[#allocation2 + $0x534] sm:$0xff]
    %v422 = vld [vmem:[#allocation2 + $0x53c] sm:$0xff]
    %v423 = vld [vmem:[#allocation2 + $0x544] sm:$0xff]
    %v424 = vld [vmem:[#allocation2 + $0x54c] sm:$0xff]
    %v425 = vld [vmem:[#allocation2 + $0x554] sm:$0xf]
    %v426 = vld [vmem:[#allocation2 + $0x558] sm:$0xff]
    %v427 = vld [vmem:[#allocation2 + $0x560] sm:$0xff]
    %v428 = vld [vmem:[#allocation2 + $0x568] sm:$0xff]
    %v429 = vld [vmem:[#allocation2 + $0x570] sm:$0xff]
    %v430 = vld [vmem:[#allocation2 + $0x578] sm:$0xf]
    %v431 = vld [vmem:[#allocation2 + $0x57c] sm:$0xff]
    %v432 = vld [vmem:[#allocation2 + $0x584] sm:$0xff]
    %v433 = vld [vmem:[#allocation2 + $0x58c] sm:$0xff]
    %v434 = vld [vmem:[#allocation2 + $0x594] sm:$0xff]
    %v435 = vld [vmem:[#allocation2 + $0x59c] sm:$0xf]
    %v436 = vld [vmem:[#allocation2 + $0x5a0] sm:$0xff]
    %v437 = vld [vmem:[#allocation2 + $0x5a8] sm:$0xff]
    %v438 = vld [vmem:[#allocation2 + $0x5b0] sm:$0xff]
    %v439 = vld [vmem:[#allocation2 + $0x5b8] sm:$0xff]
    %v440 = vld [vmem:[#allocation2 + $0x5c0] sm:$0xf]
    %v441 = vld [vmem:[#allocation2 + $0x5c4] sm:$0xff]
    %v442 = vld [vmem:[#allocation2 + $0x5cc] sm:$0xff]
    %v443 = vld [vmem:[#allocation2 + $0x5d4] sm:$0xff]
    %v444 = vld [vmem:[#allocation2 + $0x5dc] sm:$0xff]
    %v445 = vld [vmem:[#allocation2 + $0x5e4] sm:$0xf]
    %v446 = vld [vmem:[#allocation2 + $0x5e8] sm:$0xff]
    %v447 = vld [vmem:[#allocation2 + $0x5f0] sm:$0xff]
    %v448 = vld [vmem:[#allocation2 + $0x5f8] sm:$0xff]
    %v449 = vld [vmem:[#allocation2 + $0x600] sm:$0xff]
    %v450 = vld [vmem:[#allocation2 + $0x608] sm:$0xf]
    %v451 = vld [vmem:[#allocation2 + $0x60c] sm:$0xff]
    %v452 = vld [vmem:[#allocation2 + $0x614] sm:$0xff]
    %v453 = vld [vmem:[#allocation2 + $0x61c] sm:$0xff]
    %v454 = vld [vmem:[#allocation2 + $0x624] sm:$0xff]
    %v455 = vld [vmem:[#allocation2 + $0x62c] sm:$0xf]
    %v456 = vld [vmem:[#allocation2 + $0x630] sm:$0xff]
    %v457 = vld [vmem:[#allocation2 + $0x638] sm:$0xff]
    %v458 = vld [vmem:[#allocation2 + $0x640] sm:$0xff]
    %v459 = vld [vmem:[#allocation2 + $0x648] sm:$0xff]
    %v460 = vld [vmem:[#allocation2 + $0x650] sm:$0xf]
    %v461 = vld [vmem:[#allocation2 + $0x654] sm:$0xff]
    %v462 = vld [vmem:[#allocation2 + $0x65c] sm:$0xff]
    %v463 = vld [vmem:[#allocation2 + $0x664] sm:$0xff]
    %v464 = vld [vmem:[#allocation2 + $0x66c] sm:$0xff]
    %v465 = vld [vmem:[#allocation2 + $0x674] sm:$0xf]
    %v466 = vld [vmem:[#allocation2 + $0x678] sm:$0xff]
    %v467 = vld [vmem:[#allocation2 + $0x680] sm:$0xff]
    %v468 = vld [vmem:[#allocation2 + $0x688] sm:$0xff]
    %v469 = vld [vmem:[#allocation2 + $0x690] sm:$0xff]
    %v470 = vld [vmem:[#allocation2 + $0x698] sm:$0xf]
    %v471 = vld [vmem:[#allocation2 + $0x69c] sm:$0xff]
    %v472 = vld [vmem:[#allocation2 + $0x6a4] sm:$0xff]
    %v473 = vld [vmem:[#allocation2 + $0x6ac] sm:$0xff]
    %v474 = vld [vmem:[#allocation2 + $0x6b4] sm:$0xff]
    %v475 = vld [vmem:[#allocation2 + $0x6bc] sm:$0xf]
    %v476 = vpack.c.bf16 %v233, %v230
    %v477 = vpack.c.bf16 %v234, %v231
    %v478 = vpack.c.bf16 %v235, %v232
    %v482 = vperm.slane %v227, 0
    %v483 = vperm.slane %v227, 2
    %v484 = vperm.slane %v227, 4
    %v485 = vperm.slane %v227, 6
    %v486 = vperm.slane %v228, 0
    %v487 = vperm.slane %v228, 2
    %v488 = vperm.slane %v228, 4
    %v489 = vperm.slane %v228, 6
    %v490 = vperm.slane %v229, 0
    %v500 = vperm.slane %v482, 0
    %v501 = vperm.slane %v483, 0
    %v502 = vperm.slane %v484, 0
    %v503 = vperm.slane %v485, 0
    %v504 = vperm.slane %v486, 0
    %v505 = vperm.slane %v487, 0
    %v506 = vperm.slane %v488, 0
    %v507 = vperm.slane %v489, 0
    %v508 = vperm.slane %v490, 0
    %v749 = vunpack.c.l.b16 %v236
    %v750 = vunpack.c.h.b16 %v236
    %v751 = vunpack.c.l.b16 %v237
    %v752 = vunpack.c.h.b16 %v237
    %v753 = vunpack.c.l.b16 %v238
    %v754 = vunpack.c.h.b16 %v238
    %v755 = vunpack.c.l.b16 %v239
    %v756 = vunpack.c.h.b16 %v239
    %v757 = vunpack.c.l.b16 %v240
    %v758 = vunpack.c.l.b16 %v241
    %v759 = vunpack.c.h.b16 %v241
    %v760 = vunpack.c.l.b16 %v242
    %v761 = vunpack.c.h.b16 %v242
    %v762 = vunpack.c.l.b16 %v243
    %v763 = vunpack.c.h.b16 %v243
    %v764 = vunpack.c.l.b16 %v244
    %v765 = vunpack.c.h.b16 %v244
    %v766 = vunpack.c.l.b16 %v245
    %v767 = vunpack.c.l.b16 %v246
    %v768 = vunpack.c.h.b16 %v246
    %v769 = vunpack.c.l.b16 %v247
    %v770 = vunpack.c.h.b16 %v247
    %v771 = vunpack.c.l.b16 %v248
    %v772 = vunpack.c.h.b16 %v248
    %v773 = vunpack.c.l.b16 %v249
    %v774 = vunpack.c.h.b16 %v249
    %v775 = vunpack.c.l.b16 %v250
    %v776 = vunpack.c.l.b16 %v251
    %v777 = vunpack.c.h.b16 %v251
    %v778 = vunpack.c.l.b16 %v252
    %v779 = vunpack.c.h.b16 %v252
    %v780 = vunpack.c.l.b16 %v253
    %v781 = vunpack.c.h.b16 %v253
    %v782 = vunpack.c.l.b16 %v254
    %v783 = vunpack.c.h.b16 %v254
    %v784 = vunpack.c.l.b16 %v255
    %v785 = vunpack.c.l.b16 %v256
    %v786 = vunpack.c.h.b16 %v256
    %v787 = vunpack.c.l.b16 %v257
    %v788 = vunpack.c.h.b16 %v257
    %v789 = vunpack.c.l.b16 %v258
    %v790 = vunpack.c.h.b16 %v258
    %v791 = vunpack.c.l.b16 %v259
    %v792 = vunpack.c.h.b16 %v259
    %v793 = vunpack.c.l.b16 %v260
    %v794 = vunpack.c.l.b16 %v261
    %v795 = vunpack.c.h.b16 %v261
    %v796 = vunpack.c.l.b16 %v262
    %v797 = vunpack.c.h.b16 %v262
    %v798 = vunpack.c.l.b16 %v263
    %v799 = vunpack.c.h.b16 %v263
    %v800 = vunpack.c.l.b16 %v264
    %v801 = vunpack.c.h.b16 %v264
    %v802 = vunpack.c.l.b16 %v265
    %v803 = vunpack.c.l.b16 %v266
    %v804 = vunpack.c.h.b16 %v266
    %v805 = vunpack.c.l.b16 %v267
    %v806 = vunpack.c.h.b16 %v267
    %v807 = vunpack.c.l.b16 %v268
    %v808 = vunpack.c.h.b16 %v268
    %v809 = vunpack.c.l.b16 %v269
    %v810 = vunpack.c.h.b16 %v269
    %v811 = vunpack.c.l.b16 %v270
    %v812 = vunpack.c.l.b16 %v271
    %v813 = vunpack.c.h.b16 %v271
    %v814 = vunpack.c.l.b16 %v272
    %v815 = vunpack.c.h.b16 %v272
    %v816 = vunpack.c.l.b16 %v273
    %v817 = vunpack.c.h.b16 %v273
    %v818 = vunpack.c.l.b16 %v274
    %v819 = vunpack.c.h.b16 %v274
    %v820 = vunpack.c.l.b16 %v275
    %v821 = vunpack.c.l.b16 %v276
    %v822 = vunpack.c.h.b16 %v276
    %v823 = vunpack.c.l.b16 %v277
    %v824 = vunpack.c.h.b16 %v277
    %v825 = vunpack.c.l.b16 %v278
    %v826 = vunpack.c.h.b16 %v278
    %v827 = vunpack.c.l.b16 %v279
    %v828 = vunpack.c.h.b16 %v279
    %v829 = vunpack.c.l.b16 %v280
    %v830 = vunpack.c.l.b16 %v281
    %v831 = vunpack.c.h.b16 %v281
    %v832 = vunpack.c.l.b16 %v282
    %v833 = vunpack.c.h.b16 %v282
    %v834 = vunpack.c.l.b16 %v283
    %v835 = vunpack.c.h.b16 %v283
    %v836 = vunpack.c.l.b16 %v284
    %v837 = vunpack.c.h.b16 %v284
    %v838 = vunpack.c.l.b16 %v285
    %v839 = vunpack.c.l.b16 %v286
    %v840 = vunpack.c.h.b16 %v286
    %v841 = vunpack.c.l.b16 %v287
    %v842 = vunpack.c.h.b16 %v287
    %v843 = vunpack.c.l.b16 %v288
    %v844 = vunpack.c.h.b16 %v288
    %v845 = vunpack.c.l.b16 %v289
    %v846 = vunpack.c.h.b16 %v289
    %v847 = vunpack.c.l.b16 %v290
    %v848 = vunpack.c.l.b16 %v291
    %v849 = vunpack.c.h.b16 %v291
    %v850 = vunpack.c.l.b16 %v292
    %v851 = vunpack.c.h.b16 %v292
    %v852 = vunpack.c.l.b16 %v293
    %v853 = vunpack.c.h.b16 %v293
    %v854 = vunpack.c.l.b16 %v294
    %v855 = vunpack.c.h.b16 %v294
    %v856 = vunpack.c.l.b16 %v295
    %v857 = vunpack.c.l.b16 %v296
    %v858 = vunpack.c.h.b16 %v296
    %v859 = vunpack.c.l.b16 %v297
    %v860 = vunpack.c.h.b16 %v297
    %v861 = vunpack.c.l.b16 %v298
    %v862 = vunpack.c.h.b16 %v298
    %v863 = vunpack.c.l.b16 %v299
    %v864 = vunpack.c.h.b16 %v299
    %v865 = vunpack.c.l.b16 %v300
    %v866 = vunpack.c.l.b16 %v301
    %v867 = vunpack.c.h.b16 %v301
    %v868 = vunpack.c.l.b16 %v302
    %v869 = vunpack.c.h.b16 %v302
    %v870 = vunpack.c.l.b16 %v303
    %v871 = vunpack.c.h.b16 %v303
    %v872 = vunpack.c.l.b16 %v304
    %v873 = vunpack.c.h.b16 %v304
    %v874 = vunpack.c.l.b16 %v305
    %v875 = vunpack.c.l.b16 %v306
    %v876 = vunpack.c.h.b16 %v306
    %v877 = vunpack.c.l.b16 %v307
    %v878 = vunpack.c.h.b16 %v307
    %v879 = vunpack.c.l.b16 %v308
    %v880 = vunpack.c.h.b16 %v308
    %v881 = vunpack.c.l.b16 %v309
    %v882 = vunpack.c.h.b16 %v309
    %v883 = vunpack.c.l.b16 %v310
    %v884 = vunpack.c.l.b16 %v311
    %v885 = vunpack.c.h.b16 %v311
    %v886 = vunpack.c.l.b16 %v312
    %v887 = vunpack.c.h.b16 %v312
    %v888 = vunpack.c.l.b16 %v313
    %v889 = vunpack.c.h.b16 %v313
    %v890 = vunpack.c.l.b16 %v314
    %v891 = vunpack.c.h.b16 %v314
    %v892 = vunpack.c.l.b16 %v315
    %v893 = vunpack.c.l.b16 %v316
    %v894 = vunpack.c.h.b16 %v316
    %v895 = vunpack.c.l.b16 %v317
    %v896 = vunpack.c.h.b16 %v317
    %v897 = vunpack.c.l.b16 %v318
    %v898 = vunpack.c.h.b16 %v318
    %v899 = vunpack.c.l.b16 %v319
    %v900 = vunpack.c.h.b16 %v319
    %v901 = vunpack.c.l.b16 %v320
    %v902 = vunpack.c.l.b16 %v321
    %v903 = vunpack.c.h.b16 %v321
    %v904 = vunpack.c.l.b16 %v322
    %v905 = vunpack.c.h.b16 %v322
    %v906 = vunpack.c.l.b16 %v323
    %v907 = vunpack.c.h.b16 %v323
    %v908 = vunpack.c.l.b16 %v324
    %v909 = vunpack.c.h.b16 %v324
    %v910 = vunpack.c.l.b16 %v325
    %v911 = vunpack.c.l.b16 %v326
    %v912 = vunpack.c.h.b16 %v326
    %v913 = vunpack.c.l.b16 %v327
    %v914 = vunpack.c.h.b16 %v327
    %v915 = vunpack.c.l.b16 %v328
    %v916 = vunpack.c.h.b16 %v328
    %v917 = vunpack.c.l.b16 %v329
    %v918 = vunpack.c.h.b16 %v329
    %v919 = vunpack.c.l.b16 %v330
    %v920 = vunpack.c.l.b16 %v331
    %v921 = vunpack.c.h.b16 %v331
    %v922 = vunpack.c.l.b16 %v332
    %v923 = vunpack.c.h.b16 %v332
    %v924 = vunpack.c.l.b16 %v333
    %v925 = vunpack.c.h.b16 %v333
    %v926 = vunpack.c.l.b16 %v334
    %v927 = vunpack.c.h.b16 %v334
    %v928 = vunpack.c.l.b16 %v335
    %v929 = vunpack.c.l.b16 %v336
    %v930 = vunpack.c.h.b16 %v336
    %v931 = vunpack.c.l.b16 %v337
    %v932 = vunpack.c.h.b16 %v337
    %v933 = vunpack.c.l.b16 %v338
    %v934 = vunpack.c.h.b16 %v338
    %v935 = vunpack.c.l.b16 %v339
    %v936 = vunpack.c.h.b16 %v339
    %v937 = vunpack.c.l.b16 %v340
    %v938 = vunpack.c.l.b16 %v341
    %v939 = vunpack.c.h.b16 %v341
    %v940 = vunpack.c.l.b16 %v342
    %v941 = vunpack.c.h.b16 %v342
    %v942 = vunpack.c.l.b16 %v343
    %v943 = vunpack.c.h.b16 %v343
    %v944 = vunpack.c.l.b16 %v344
    %v945 = vunpack.c.h.b16 %v344
    %v946 = vunpack.c.l.b16 %v345
    %v947 = vunpack.c.l.b16 %v346
    %v948 = vunpack.c.h.b16 %v346
    %v949 = vunpack.c.l.b16 %v347
    %v950 = vunpack.c.h.b16 %v347
    %v951 = vunpack.c.l.b16 %v348
    %v952 = vunpack.c.h.b16 %v348
    %v953 = vunpack.c.l.b16 %v349
    %v954 = vunpack.c.h.b16 %v349
    %v955 = vunpack.c.l.b16 %v350
    %v956 = vunpack.c.l.b16 %v351
    %v957 = vunpack.c.h.b16 %v351
    %v958 = vunpack.c.l.b16 %v352
    %v959 = vunpack.c.h.b16 %v352
    %v960 = vunpack.c.l.b16 %v353
    %v961 = vunpack.c.h.b16 %v353
    %v962 = vunpack.c.l.b16 %v354
    %v963 = vunpack.c.h.b16 %v354
    %v964 = vunpack.c.l.b16 %v355
    %v965 = vunpack.c.l.b16 %v356
    %v966 = vunpack.c.h.b16 %v356
    %v967 = vunpack.c.l.b16 %v357
    %v968 = vunpack.c.h.b16 %v357
    %v969 = vunpack.c.l.b16 %v358
    %v970 = vunpack.c.h.b16 %v358
    %v971 = vunpack.c.l.b16 %v359
    %v972 = vunpack.c.h.b16 %v359
    %v973 = vunpack.c.l.b16 %v360
    %v974 = vunpack.c.l.b16 %v361
    %v975 = vunpack.c.h.b16 %v361
    %v976 = vunpack.c.l.b16 %v362
    %v977 = vunpack.c.h.b16 %v362
    %v978 = vunpack.c.l.b16 %v363
    %v979 = vunpack.c.h.b16 %v363
    %v980 = vunpack.c.l.b16 %v364
    %v981 = vunpack.c.h.b16 %v364
    %v982 = vunpack.c.l.b16 %v365
    %v983 = vunpack.c.l.b16 %v366
    %v984 = vunpack.c.h.b16 %v366
    %v985 = vunpack.c.l.b16 %v367
    %v986 = vunpack.c.h.b16 %v367
    %v987 = vunpack.c.l.b16 %v368
    %v988 = vunpack.c.h.b16 %v368
    %v989 = vunpack.c.l.b16 %v369
    %v990 = vunpack.c.h.b16 %v369
    %v991 = vunpack.c.l.b16 %v370
    %v992 = vunpack.c.l.b16 %v371
    %v993 = vunpack.c.h.b16 %v371
    %v994 = vunpack.c.l.b16 %v372
    %v995 = vunpack.c.h.b16 %v372
    %v996 = vunpack.c.l.b16 %v373
    %v997 = vunpack.c.h.b16 %v373
    %v998 = vunpack.c.l.b16 %v374
    %v999 = vunpack.c.h.b16 %v374
    %v1000 = vunpack.c.l.b16 %v375
    %v1001 = vunpack.c.l.b16 %v376
    %v1002 = vunpack.c.h.b16 %v376
    %v1003 = vunpack.c.l.b16 %v377
    %v1004 = vunpack.c.h.b16 %v377
    %v1005 = vunpack.c.l.b16 %v378
    %v1006 = vunpack.c.h.b16 %v378
    %v1007 = vunpack.c.l.b16 %v379
    %v1008 = vunpack.c.h.b16 %v379
    %v1009 = vunpack.c.l.b16 %v380
    %v1010 = vunpack.c.l.b16 %v381
    %v1011 = vunpack.c.h.b16 %v381
    %v1012 = vunpack.c.l.b16 %v382
    %v1013 = vunpack.c.h.b16 %v382
    %v1014 = vunpack.c.l.b16 %v383
    %v1015 = vunpack.c.h.b16 %v383
    %v1016 = vunpack.c.l.b16 %v384
    %v1017 = vunpack.c.h.b16 %v384
    %v1018 = vunpack.c.l.b16 %v385
    %v1019 = vunpack.c.l.b16 %v386
    %v1020 = vunpack.c.h.b16 %v386
    %v1021 = vunpack.c.l.b16 %v387
    %v1022 = vunpack.c.h.b16 %v387
    %v1023 = vunpack.c.l.b16 %v388
    %v1024 = vunpack.c.h.b16 %v388
    %v1025 = vunpack.c.l.b16 %v389
    %v1026 = vunpack.c.h.b16 %v389
    %v1027 = vunpack.c.l.b16 %v390
    %v1028 = vunpack.c.l.b16 %v391
    %v1029 = vunpack.c.h.b16 %v391
    %v1030 = vunpack.c.l.b16 %v392
    %v1031 = vunpack.c.h.b16 %v392
    %v1032 = vunpack.c.l.b16 %v393
    %v1033 = vunpack.c.h.b16 %v393
    %v1034 = vunpack.c.l.b16 %v394
    %v1035 = vunpack.c.h.b16 %v394
    %v1036 = vunpack.c.l.b16 %v395
    %v1037 = vunpack.c.l.b16 %v396
    %v1038 = vunpack.c.h.b16 %v396
    %v1039 = vunpack.c.l.b16 %v397
    %v1040 = vunpack.c.h.b16 %v397
    %v1041 = vunpack.c.l.b16 %v398
    %v1042 = vunpack.c.h.b16 %v398
    %v1043 = vunpack.c.l.b16 %v399
    %v1044 = vunpack.c.h.b16 %v399
    %v1045 = vunpack.c.l.b16 %v400
    %v1046 = vunpack.c.l.b16 %v401
    %v1047 = vunpack.c.h.b16 %v401
    %v1048 = vunpack.c.l.b16 %v402
    %v1049 = vunpack.c.h.b16 %v402
    %v1050 = vunpack.c.l.b16 %v403
    %v1051 = vunpack.c.h.b16 %v403
    %v1052 = vunpack.c.l.b16 %v404
    %v1053 = vunpack.c.h.b16 %v404
    %v1054 = vunpack.c.l.b16 %v405
    %v1055 = vunpack.c.l.b16 %v406
    %v1056 = vunpack.c.h.b16 %v406
    %v1057 = vunpack.c.l.b16 %v407
    %v1058 = vunpack.c.h.b16 %v407
    %v1059 = vunpack.c.l.b16 %v408
    %v1060 = vunpack.c.h.b16 %v408
    %v1061 = vunpack.c.l.b16 %v409
    %v1062 = vunpack.c.h.b16 %v409
    %v1063 = vunpack.c.l.b16 %v410
    %v1064 = vunpack.c.l.b16 %v411
    %v1065 = vunpack.c.h.b16 %v411
    %v1066 = vunpack.c.l.b16 %v412
    %v1067 = vunpack.c.h.b16 %v412
    %v1068 = vunpack.c.l.b16 %v413
    %v1069 = vunpack.c.h.b16 %v413
    %v1070 = vunpack.c.l.b16 %v414
    %v1071 = vunpack.c.h.b16 %v414
    %v1072 = vunpack.c.l.b16 %v415
    %v1073 = vunpack.c.l.b16 %v416
    %v1074 = vunpack.c.h.b16 %v416
    %v1075 = vunpack.c.l.b16 %v417
    %v1076 = vunpack.c.h.b16 %v417
    %v1077 = vunpack.c.l.b16 %v418
    %v1078 = vunpack.c.h.b16 %v418
    %v1079 = vunpack.c.l.b16 %v419
    %v1080 = vunpack.c.h.b16 %v419
    %v1081 = vunpack.c.l.b16 %v420
    %v1082 = vunpack.c.l.b16 %v421
    %v1083 = vunpack.c.h.b16 %v421
    %v1084 = vunpack.c.l.b16 %v422
    %v1085 = vunpack.c.h.b16 %v422
    %v1086 = vunpack.c.l.b16 %v423
    %v1087 = vunpack.c.h.b16 %v423
    %v1088 = vunpack.c.l.b16 %v424
    %v1089 = vunpack.c.h.b16 %v424
    %v1090 = vunpack.c.l.b16 %v425
    %v1091 = vunpack.c.l.b16 %v426
    %v1092 = vunpack.c.h.b16 %v426
    %v1093 = vunpack.c.l.b16 %v427
    %v1094 = vunpack.c.h.b16 %v427
    %v1095 = vunpack.c.l.b16 %v428
    %v1096 = vunpack.c.h.b16 %v428
    %v1097 = vunpack.c.l.b16 %v429
    %v1098 = vunpack.c.h.b16 %v429
    %v1099 = vunpack.c.l.b16 %v430
    %v1100 = vunpack.c.l.b16 %v431
    %v1101 = vunpack.c.h.b16 %v431
    %v1102 = vunpack.c.l.b16 %v432
    %v1103 = vunpack.c.h.b16 %v432
    %v1104 = vunpack.c.l.b16 %v433
    %v1105 = vunpack.c.h.b16 %v433
    %v1106 = vunpack.c.l.b16 %v434
    %v1107 = vunpack.c.h.b16 %v434
    %v1108 = vunpack.c.l.b16 %v435
    %v1109 = vunpack.c.l.b16 %v436
    %v1110 = vunpack.c.h.b16 %v436
    %v1111 = vunpack.c.l.b16 %v437
    %v1112 = vunpack.c.h.b16 %v437
    %v1113 = vunpack.c.l.b16 %v438
    %v1114 = vunpack.c.h.b16 %v438
    %v1115 = vunpack.c.l.b16 %v439
    %v1116 = vunpack.c.h.b16 %v439
    %v1117 = vunpack.c.l.b16 %v440
    %v1118 = vunpack.c.l.b16 %v441
    %v1119 = vunpack.c.h.b16 %v441
    %v1120 = vunpack.c.l.b16 %v442
    %v1121 = vunpack.c.h.b16 %v442
    %v1122 = vunpack.c.l.b16 %v443
    %v1123 = vunpack.c.h.b16 %v443
    %v1124 = vunpack.c.l.b16 %v444
    %v1125 = vunpack.c.h.b16 %v444
    %v1126 = vunpack.c.l.b16 %v445
    %v1127 = vunpack.c.l.b16 %v446
    %v1128 = vunpack.c.h.b16 %v446
    %v1129 = vunpack.c.l.b16 %v447
    %v1130 = vunpack.c.h.b16 %v447
    %v1131 = vunpack.c.l.b16 %v448
    %v1132 = vunpack.c.h.b16 %v448
    %v1133 = vunpack.c.l.b16 %v449
    %v1134 = vunpack.c.h.b16 %v449
    %v1135 = vunpack.c.l.b16 %v450
    %v1136 = vunpack.c.l.b16 %v451
    %v1137 = vunpack.c.h.b16 %v451
    %v1138 = vunpack.c.l.b16 %v452
    %v1139 = vunpack.c.h.b16 %v452
    %v1140 = vunpack.c.l.b16 %v453
    %v1141 = vunpack.c.h.b16 %v453
    %v1142 = vunpack.c.l.b16 %v454
    %v1143 = vunpack.c.h.b16 %v454
    %v1144 = vunpack.c.l.b16 %v455
    %v1145 = vunpack.c.l.b16 %v456
    %v1146 = vunpack.c.h.b16 %v456
    %v1147 = vunpack.c.l.b16 %v457
    %v1148 = vunpack.c.h.b16 %v457
    %v1149 = vunpack.c.l.b16 %v458
    %v1150 = vunpack.c.h.b16 %v458
    %v1151 = vunpack.c.l.b16 %v459
    %v1152 = vunpack.c.h.b16 %v459
    %v1153 = vunpack.c.l.b16 %v460
    %v1154 = vunpack.c.l.b16 %v461
    %v1155 = vunpack.c.h.b16 %v461
    %v1156 = vunpack.c.l.b16 %v462
    %v1157 = vunpack.c.h.b16 %v462
    %v1158 = vunpack.c.l.b16 %v463
    %v1159 = vunpack.c.h.b16 %v463
    %v1160 = vunpack.c.l.b16 %v464
    %v1161 = vunpack.c.h.b16 %v464
    %v1162 = vunpack.c.l.b16 %v465
    %v1163 = vunpack.c.l.b16 %v466
    %v1164 = vunpack.c.h.b16 %v466
    %v1165 = vunpack.c.l.b16 %v467
    %v1166 = vunpack.c.h.b16 %v467
    %v1167 = vunpack.c.l.b16 %v468
    %v1168 = vunpack.c.h.b16 %v468
    %v1169 = vunpack.c.l.b16 %v469
    %v1170 = vunpack.c.h.b16 %v469
    %v1171 = vunpack.c.l.b16 %v470
    %v1172 = vunpack.c.l.b16 %v471
    %v1173 = vunpack.c.h.b16 %v471
    %v1174 = vunpack.c.l.b16 %v472
    %v1175 = vunpack.c.h.b16 %v472
    %v1176 = vunpack.c.l.b16 %v473
    %v1177 = vunpack.c.h.b16 %v473
    %v1178 = vunpack.c.l.b16 %v474
    %v1179 = vunpack.c.h.b16 %v474
    %v1180 = vunpack.c.l.b16 %v475
    %v1181 = vpack.c.b16 %v758, %v749
    %v1182 = vpack.c.b16 %v759, %v750
    %v1183 = vpack.c.b16 %v760, %v751
    %v1184 = vpack.c.b16 %v761, %v752
    %v1185 = vpack.c.b16 %v762, %v753
    %v1186 = vpack.c.b16 %v763, %v754
    %v1187 = vpack.c.b16 %v764, %v755
    %v1188 = vpack.c.b16 %v765, %v756
    %v1189 = vpack.c.b16 %v766, %v757
    %v1190 = vpack.c.b16 %v776, %v767
    %v1191 = vpack.c.b16 %v777, %v768
    %v1192 = vpack.c.b16 %v778, %v769
    %v1193 = vpack.c.b16 %v779, %v770
    %v1194 = vpack.c.b16 %v780, %v771
    %v1195 = vpack.c.b16 %v781, %v772
    %v1196 = vpack.c.b16 %v782, %v773
    %v1197 = vpack.c.b16 %v783, %v774
    %v1198 = vpack.c.b16 %v784, %v775
    %v1199 = vpack.c.b16 %v794, %v785
    %v1200 = vpack.c.b16 %v795, %v786
    %v1201 = vpack.c.b16 %v796, %v787
    %v1202 = vpack.c.b16 %v797, %v788
    %v1203 = vpack.c.b16 %v798, %v789
    %v1204 = vpack.c.b16 %v799, %v790
    %v1205 = vpack.c.b16 %v800, %v791
    %v1206 = vpack.c.b16 %v801, %v792
    %v1207 = vpack.c.b16 %v802, %v793
    %v1208 = vpack.c.b16 %v812, %v803
    %v1209 = vpack.c.b16 %v813, %v804
    %v1210 = vpack.c.b16 %v814, %v805
    %v1211 = vpack.c.b16 %v815, %v806
    %v1212 = vpack.c.b16 %v816, %v807
    %v1213 = vpack.c.b16 %v817, %v808
    %v1214 = vpack.c.b16 %v818, %v809
    %v1215 = vpack.c.b16 %v819, %v810
    %v1216 = vpack.c.b16 %v820, %v811
    %v1217 = vpack.c.b16 %v830, %v821
    %v1218 = vpack.c.b16 %v831, %v822
    %v1219 = vpack.c.b16 %v832, %v823
    %v1220 = vpack.c.b16 %v833, %v824
    %v1221 = vpack.c.b16 %v834, %v825
    %v1222 = vpack.c.b16 %v835, %v826
    %v1223 = vpack.c.b16 %v836, %v827
    %v1224 = vpack.c.b16 %v837, %v828
    %v1225 = vpack.c.b16 %v838, %v829
    %v1226 = vpack.c.b16 %v848, %v839
    %v1227 = vpack.c.b16 %v849, %v840
    %v1228 = vpack.c.b16 %v850, %v841
    %v1229 = vpack.c.b16 %v851, %v842
    %v1230 = vpack.c.b16 %v852, %v843
    %v1231 = vpack.c.b16 %v853, %v844
    %v1232 = vpack.c.b16 %v854, %v845
    %v1233 = vpack.c.b16 %v855, %v846
    %v1234 = vpack.c.b16 %v856, %v847
    %v1235 = vpack.c.b16 %v866, %v857
    %v1236 = vpack.c.b16 %v867, %v858
    %v1237 = vpack.c.b16 %v868, %v859
    %v1238 = vpack.c.b16 %v869, %v860
    %v1239 = vpack.c.b16 %v870, %v861
    %v1240 = vpack.c.b16 %v871, %v862
    %v1241 = vpack.c.b16 %v872, %v863
    %v1242 = vpack.c.b16 %v873, %v864
    %v1243 = vpack.c.b16 %v874, %v865
    %v1244 = vpack.c.b16 %v884, %v875
    %v1245 = vpack.c.b16 %v885, %v876
    %v1246 = vpack.c.b16 %v886, %v877
    %v1247 = vpack.c.b16 %v887, %v878
    %v1248 = vpack.c.b16 %v888, %v879
    %v1249 = vpack.c.b16 %v889, %v880
    %v1250 = vpack.c.b16 %v890, %v881
    %v1251 = vpack.c.b16 %v891, %v882
    %v1252 = vpack.c.b16 %v892, %v883
    %v1253 = vpack.c.b16 %v902, %v893
    %v1254 = vpack.c.b16 %v903, %v894
    %v1255 = vpack.c.b16 %v904, %v895
    %v1256 = vpack.c.b16 %v905, %v896
    %v1257 = vpack.c.b16 %v906, %v897
    %v1258 = vpack.c.b16 %v907, %v898
    %v1259 = vpack.c.b16 %v908, %v899
    %v1260 = vpack.c.b16 %v909, %v900
    %v1261 = vpack.c.b16 %v910, %v901
    %v1262 = vpack.c.b16 %v920, %v911
    %v1263 = vpack.c.b16 %v921, %v912
    %v1264 = vpack.c.b16 %v922, %v913
    %v1265 = vpack.c.b16 %v923, %v914
    %v1266 = vpack.c.b16 %v924, %v915
    %v1267 = vpack.c.b16 %v925, %v916
    %v1268 = vpack.c.b16 %v926, %v917
    %v1269 = vpack.c.b16 %v927, %v918
    %v1270 = vpack.c.b16 %v928, %v919
    %v1271 = vpack.c.b16 %v938, %v929
    %v1272 = vpack.c.b16 %v939, %v930
    %v1273 = vpack.c.b16 %v940, %v931
    %v1274 = vpack.c.b16 %v941, %v932
    %v1275 = vpack.c.b16 %v942, %v933
    %v1276 = vpack.c.b16 %v943, %v934
    %v1277 = vpack.c.b16 %v944, %v935
    %v1278 = vpack.c.b16 %v945, %v936
    %v1279 = vpack.c.b16 %v946, %v937
    %v1280 = vpack.c.b16 %v956, %v947
    %v1281 = vpack.c.b16 %v957, %v948
    %v1282 = vpack.c.b16 %v958, %v949
    %v1283 = vpack.c.b16 %v959, %v950
    %v1284 = vpack.c.b16 %v960, %v951
    %v1285 = vpack.c.b16 %v961, %v952
    %v1286 = vpack.c.b16 %v962, %v953
    %v1287 = vpack.c.b16 %v963, %v954
    %v1288 = vpack.c.b16 %v964, %v955
    %v1289 = vpack.c.b16 %v974, %v965
    %v1290 = vpack.c.b16 %v975, %v966
    %v1291 = vpack.c.b16 %v976, %v967
    %v1292 = vpack.c.b16 %v977, %v968
    %v1293 = vpack.c.b16 %v978, %v969
    %v1294 = vpack.c.b16 %v979, %v970
    %v1295 = vpack.c.b16 %v980, %v971
    %v1296 = vpack.c.b16 %v981, %v972
    %v1297 = vpack.c.b16 %v982, %v973
    %v1298 = vpack.c.b16 %v992, %v983
    %v1299 = vpack.c.b16 %v993, %v984
    %v1300 = vpack.c.b16 %v994, %v985
    %v1301 = vpack.c.b16 %v995, %v986
    %v1302 = vpack.c.b16 %v996, %v987
    %v1303 = vpack.c.b16 %v997, %v988
    %v1304 = vpack.c.b16 %v998, %v989
    %v1305 = vpack.c.b16 %v999, %v990
    %v1306 = vpack.c.b16 %v1000, %v991
    %v1307 = vpack.c.b16 %v1010, %v1001
    %v1308 = vpack.c.b16 %v1011, %v1002
    %v1309 = vpack.c.b16 %v1012, %v1003
    %v1310 = vpack.c.b16 %v1013, %v1004
    %v1311 = vpack.c.b16 %v1014, %v1005
    %v1312 = vpack.c.b16 %v1015, %v1006
    %v1313 = vpack.c.b16 %v1016, %v1007
    %v1314 = vpack.c.b16 %v1017, %v1008
    %v1315 = vpack.c.b16 %v1018, %v1009
    %v1316 = vpack.c.b16 %v1028, %v1019
    %v1317 = vpack.c.b16 %v1029, %v1020
    %v1318 = vpack.c.b16 %v1030, %v1021
    %v1319 = vpack.c.b16 %v1031, %v1022
    %v1320 = vpack.c.b16 %v1032, %v1023
    %v1321 = vpack.c.b16 %v1033, %v1024
    %v1322 = vpack.c.b16 %v1034, %v1025
    %v1323 = vpack.c.b16 %v1035, %v1026
    %v1324 = vpack.c.b16 %v1036, %v1027
    %v1325 = vpack.c.b16 %v1046, %v1037
    %v1326 = vpack.c.b16 %v1047, %v1038
    %v1327 = vpack.c.b16 %v1048, %v1039
    %v1328 = vpack.c.b16 %v1049, %v1040
    %v1329 = vpack.c.b16 %v1050, %v1041
    %v1330 = vpack.c.b16 %v1051, %v1042
    %v1331 = vpack.c.b16 %v1052, %v1043
    %v1332 = vpack.c.b16 %v1053, %v1044
    %v1333 = vpack.c.b16 %v1054, %v1045
    %v1334 = vpack.c.b16 %v1064, %v1055
    %v1335 = vpack.c.b16 %v1065, %v1056
    %v1336 = vpack.c.b16 %v1066, %v1057
    %v1337 = vpack.c.b16 %v1067, %v1058
    %v1338 = vpack.c.b16 %v1068, %v1059
    %v1339 = vpack.c.b16 %v1069, %v1060
    %v1340 = vpack.c.b16 %v1070, %v1061
    %v1341 = vpack.c.b16 %v1071, %v1062
    %v1342 = vpack.c.b16 %v1072, %v1063
    %v1343 = vpack.c.b16 %v1082, %v1073
    %v1344 = vpack.c.b16 %v1083, %v1074
    %v1345 = vpack.c.b16 %v1084, %v1075
    %v1346 = vpack.c.b16 %v1085, %v1076
    %v1347 = vpack.c.b16 %v1086, %v1077
    %v1348 = vpack.c.b16 %v1087, %v1078
    %v1349 = vpack.c.b16 %v1088, %v1079
    %v1350 = vpack.c.b16 %v1089, %v1080
    %v1351 = vpack.c.b16 %v1090, %v1081
    %v1352 = vpack.c.b16 %v1100, %v1091
    %v1353 = vpack.c.b16 %v1101, %v1092
    %v1354 = vpack.c.b16 %v1102, %v1093
    %v1355 = vpack.c.b16 %v1103, %v1094
    %v1356 = vpack.c.b16 %v1104, %v1095
    %v1357 = vpack.c.b16 %v1105, %v1096
    %v1358 = vpack.c.b16 %v1106, %v1097
    %v1359 = vpack.c.b16 %v1107, %v1098
    %v1360 = vpack.c.b16 %v1108, %v1099
    %v1361 = vpack.c.b16 %v1118, %v1109
    %v1362 = vpack.c.b16 %v1119, %v1110
    %v1363 = vpack.c.b16 %v1120, %v1111
    %v1364 = vpack.c.b16 %v1121, %v1112
    %v1365 = vpack.c.b16 %v1122, %v1113
    %v1366 = vpack.c.b16 %v1123, %v1114
    %v1367 = vpack.c.b16 %v1124, %v1115
    %v1368 = vpack.c.b16 %v1125, %v1116
    %v1369 = vpack.c.b16 %v1126, %v1117
    %v1370 = vpack.c.b16 %v1136, %v1127
    %v1371 = vpack.c.b16 %v1137, %v1128
    %v1372 = vpack.c.b16 %v1138, %v1129
    %v1373 = vpack.c.b16 %v1139, %v1130
    %v1374 = vpack.c.b16 %v1140, %v1131
    %v1375 = vpack.c.b16 %v1141, %v1132
    %v1376 = vpack.c.b16 %v1142, %v1133
    %v1377 = vpack.c.b16 %v1143, %v1134
    %v1378 = vpack.c.b16 %v1144, %v1135
    %v1379 = vpack.c.b16 %v1154, %v1145
    %v1380 = vpack.c.b16 %v1155, %v1146
    %v1381 = vpack.c.b16 %v1156, %v1147
    %v1382 = vpack.c.b16 %v1157, %v1148
    %v1383 = vpack.c.b16 %v1158, %v1149
    %v1384 = vpack.c.b16 %v1159, %v1150
    %v1385 = vpack.c.b16 %v1160, %v1151
    %v1386 = vpack.c.b16 %v1161, %v1152
    %v1387 = vpack.c.b16 %v1162, %v1153
    %v1388 = vpack.c.b16 %v1172, %v1163
    %v1389 = vpack.c.b16 %v1173, %v1164
    %v1390 = vpack.c.b16 %v1174, %v1165
    %v1391 = vpack.c.b16 %v1175, %v1166
    %v1392 = vpack.c.b16 %v1176, %v1167
    %v1393 = vpack.c.b16 %v1177, %v1168
    %v1394 = vpack.c.b16 %v1178, %v1169
    %v1395 = vpack.c.b16 %v1179, %v1170
    %v1396 = vpack.c.b16 %v1180, %v1171
    %1613 = vmatpush.bf16.msra.mxu0 %v1244
    %1614 = vmatpush.bf16.msra.mxu0 %v1235
    %1615 = vmatpush.bf16.msra.mxu0 %v1226
    %1616 = vmatpush.bf16.msra.mxu0 %v1217
    %1617 = vmatpush.bf16.msra.mxu0 %v1208
    %1618 = vmatpush.bf16.msra.mxu0 %v1199
    %1619 = vmatpush.bf16.msra.mxu0 %v1190
    %1620 = vmatpush.bf16.msra.mxu0 %v1181
    %1621 = vmatmul.bf16.gmra.mxu0 %v476
    %v1622 = vpop.f32.mrf.mxu0
    %v1623 = vadd.f32 %v500, %v1622
    %v1624 = vpop.f32.mrf.mxu0
    %v1625 = vadd.f32 %v500, %v1624
    %1626 = vdwg.mxu0
    %1627 = vmatpush.bf16.msra.mxu0 %v1316
    %1628 = vmatpush.bf16.msra.mxu0 %v1307
    %1629 = vmatpush.bf16.msra.mxu0 %v1298
    %1630 = vmatpush.bf16.msra.mxu0 %v1289
    %1631 = vmatpush.bf16.msra.mxu0 %v1280
    %1632 = vmatpush.bf16.msra.mxu0 %v1271
    %1633 = vmatpush.bf16.msra.mxu0 %v1262
    %1634 = vmatpush.bf16.msra.mxu0 %v1253
    %1635 = vmatmul.bf16.gmra.mxu0 %v477
    %v1636 = vpop.f32.mrf.mxu0
    %v1637 = vadd.f32 %v1623, %v1636
    %v1638 = vpop.f32.mrf.mxu0
    %v1639 = vadd.f32 %v1625, %v1638
    %1640 = vdwg.mxu0
    %1641 = vmatpush.bf16.msra.mxu0 %v1388
    %1642 = vmatpush.bf16.msra.mxu0 %v1379
    %1643 = vmatpush.bf16.msra.mxu0 %v1370
    %1644 = vmatpush.bf16.msra.mxu0 %v1361
    %1645 = vmatpush.bf16.msra.mxu0 %v1352
    %1646 = vmatpush.bf16.msra.mxu0 %v1343
    %1647 = vmatpush.bf16.msra.mxu0 %v1334
    %1648 = vmatpush.bf16.msra.mxu0 %v1325
    %1649 = vmatmul.bf16.gmra.mxu0 %v478
    %v1650 = vpop.f32.mrf.mxu0
    %v1651 = vadd.f32 %v1637, %v1650
    %v1652 = vpop.f32.mrf.mxu0
    %v1653 = vadd.f32 %v1639, %v1652
    %1654 = vdwg.mxu0
    %1655 = vmatpush.bf16.msra.mxu0 %v1245
    %1656 = vmatpush.bf16.msra.mxu0 %v1236
    %1657 = vmatpush.bf16.msra.mxu0 %v1227
    %1658 = vmatpush.bf16.msra.mxu0 %v1218
    %1659 = vmatpush.bf16.msra.mxu0 %v1209
    %1660 = vmatpush.bf16.msra.mxu0 %v1200
    %1661 = vmatpush.bf16.msra.mxu0 %v1191
    %1662 = vmatpush.bf16.msra.mxu0 %v1182
    %1663 = vmatmul.bf16.gmra.mxu0 %v476
    %v1664 = vpop.f32.mrf.mxu0
    %v1665 = vadd.f32 %v501, %v1664
    %v1666 = vpop.f32.mrf.mxu0
    %v1667 = vadd.f32 %v501, %v1666
    %1668 = vdwg.mxu0
    %1669 = vmatpush.bf16.msra.mxu0 %v1317
    %1670 = vmatpush.bf16.msra.mxu0 %v1308
    %1671 = vmatpush.bf16.msra.mxu0 %v1299
    %1672 = vmatpush.bf16.msra.mxu0 %v1290
    %1673 = vmatpush.bf16.msra.mxu0 %v1281
    %1674 = vmatpush.bf16.msra.mxu0 %v1272
    %1675 = vmatpush.bf16.msra.mxu0 %v1263
    %1676 = vmatpush.bf16.msra.mxu0 %v1254
    %1677 = vmatmul.bf16.gmra.mxu0 %v477
    %v1678 = vpop.f32.mrf.mxu0
    %v1679 = vadd.f32 %v1665, %v1678
    %v1680 = vpop.f32.mrf.mxu0
    %v1681 = vadd.f32 %v1667, %v1680
    %1682 = vdwg.mxu0
    %1683 = vmatpush.bf16.msra.mxu0 %v1389
    %1684 = vmatpush.bf16.msra.mxu0 %v1380
    %1685 = vmatpush.bf16.msra.mxu0 %v1371
    %1686 = vmatpush.bf16.msra.mxu0 %v1362
    %1687 = vmatpush.bf16.msra.mxu0 %v1353
    %1688 = vmatpush.bf16.msra.mxu0 %v1344
    %1689 = vmatpush.bf16.msra.mxu0 %v1335
    %1690 = vmatpush.bf16.msra.mxu0 %v1326
    %1691 = vmatmul.bf16.gmra.mxu0 %v478
    %v1692 = vpop.f32.mrf.mxu0
    %v1693 = vadd.f32 %v1679, %v1692
    %v1694 = vpop.f32.mrf.mxu0
    %v1695 = vadd.f32 %v1681, %v1694
    %1696 = vdwg.mxu0
    %1697 = vmatpush.bf16.msra.mxu0 %v1246
    %1698 = vmatpush.bf16.msra.mxu0 %v1237
    %1699 = vmatpush.bf16.msra.mxu0 %v1228
    %1700 = vmatpush.bf16.msra.mxu0 %v1219
    %1701 = vmatpush.bf16.msra.mxu0 %v1210
    %1702 = vmatpush.bf16.msra.mxu0 %v1201
    %1703 = vmatpush.bf16.msra.mxu0 %v1192
    %1704 = vmatpush.bf16.msra.mxu0 %v1183
    %1705 = vmatmul.bf16.gmra.mxu0 %v476
    %v1706 = vpop.f32.mrf.mxu0
    %v1707 = vadd.f32 %v502, %v1706
    %v1708 = vpop.f32.mrf.mxu0
    %v1709 = vadd.f32 %v502, %v1708
    %1710 = vdwg.mxu0
    %1711 = vmatpush.bf16.msra.mxu0 %v1318
    %1712 = vmatpush.bf16.msra.mxu0 %v1309
    %1713 = vmatpush.bf16.msra.mxu0 %v1300
    %1714 = vmatpush.bf16.msra.mxu0 %v1291
    %1715 = vmatpush.bf16.msra.mxu0 %v1282
    %1716 = vmatpush.bf16.msra.mxu0 %v1273
    %1717 = vmatpush.bf16.msra.mxu0 %v1264
    %1718 = vmatpush.bf16.msra.mxu0 %v1255
    %1719 = vmatmul.bf16.gmra.mxu0 %v477
    %v1720 = vpop.f32.mrf.mxu0
    %v1721 = vadd.f32 %v1707, %v1720
    %v1722 = vpop.f32.mrf.mxu0
    %v1723 = vadd.f32 %v1709, %v1722
    %1724 = vdwg.mxu0
    %1725 = vmatpush.bf16.msra.mxu0 %v1390
    %1726 = vmatpush.bf16.msra.mxu0 %v1381
    %1727 = vmatpush.bf16.msra.mxu0 %v1372
    %1728 = vmatpush.bf16.msra.mxu0 %v1363
    %1729 = vmatpush.bf16.msra.mxu0 %v1354
    %1730 = vmatpush.bf16.msra.mxu0 %v1345
    %1731 = vmatpush.bf16.msra.mxu0 %v1336
    %1732 = vmatpush.bf16.msra.mxu0 %v1327
    %1733 = vmatmul.bf16.gmra.mxu0 %v478
    %v1734 = vpop.f32.mrf.mxu0
    %v1735 = vadd.f32 %v1721, %v1734
    %v1736 = vpop.f32.mrf.mxu0
    %v1737 = vadd.f32 %v1723, %v1736
    %1738 = vdwg.mxu0
    %1739 = vmatpush.bf16.msra.mxu0 %v1247
    %1740 = vmatpush.bf16.msra.mxu0 %v1238
    %1741 = vmatpush.bf16.msra.mxu0 %v1229
    %1742 = vmatpush.bf16.msra.mxu0 %v1220
    %1743 = vmatpush.bf16.msra.mxu0 %v1211
    %1744 = vmatpush.bf16.msra.mxu0 %v1202
    %1745 = vmatpush.bf16.msra.mxu0 %v1193
    %1746 = vmatpush.bf16.msra.mxu0 %v1184
    %1747 = vmatmul.bf16.gmra.mxu0 %v476
    %v1748 = vpop.f32.mrf.mxu0
    %v1749 = vadd.f32 %v503, %v1748
    %v1750 = vpop.f32.mrf.mxu0
    %v1751 = vadd.f32 %v503, %v1750
    %1752 = vdwg.mxu0
    %1753 = vmatpush.bf16.msra.mxu0 %v1319
    %1754 = vmatpush.bf16.msra.mxu0 %v1310
    %1755 = vmatpush.bf16.msra.mxu0 %v1301
    %1756 = vmatpush.bf16.msra.mxu0 %v1292
    %1757 = vmatpush.bf16.msra.mxu0 %v1283
    %1758 = vmatpush.bf16.msra.mxu0 %v1274
    %1759 = vmatpush.bf16.msra.mxu0 %v1265
    %1760 = vmatpush.bf16.msra.mxu0 %v1256
    %1761 = vmatmul.bf16.gmra.mxu0 %v477
    %v1762 = vpop.f32.mrf.mxu0
    %v1763 = vadd.f32 %v1749, %v1762
    %v1764 = vpop.f32.mrf.mxu0
    %v1765 = vadd.f32 %v1751, %v1764
    %1766 = vdwg.mxu0
    %1767 = vmatpush.bf16.msra.mxu0 %v1391
    %1768 = vmatpush.bf16.msra.mxu0 %v1382
    %1769 = vmatpush.bf16.msra.mxu0 %v1373
    %1770 = vmatpush.bf16.msra.mxu0 %v1364
    %1771 = vmatpush.bf16.msra.mxu0 %v1355
    %1772 = vmatpush.bf16.msra.mxu0 %v1346
    %1773 = vmatpush.bf16.msra.mxu0 %v1337
    %1774 = vmatpush.bf16.msra.mxu0 %v1328
    %1775 = vmatmul.bf16.gmra.mxu0 %v478
    %v1776 = vpop.f32.mrf.mxu0
    %v1777 = vadd.f32 %v1763, %v1776
    %v1778 = vpop.f32.mrf.mxu0
    %v1779 = vadd.f32 %v1765, %v1778
    %1780 = vdwg.mxu0
    %1781 = vmatpush.bf16.msra.mxu0 %v1248
    %1782 = vmatpush.bf16.msra.mxu0 %v1239
    %1783 = vmatpush.bf16.msra.mxu0 %v1230
    %1784 = vmatpush.bf16.msra.mxu0 %v1221
    %1785 = vmatpush.bf16.msra.mxu0 %v1212
    %1786 = vmatpush.bf16.msra.mxu0 %v1203
    %1787 = vmatpush.bf16.msra.mxu0 %v1194
    %1788 = vmatpush.bf16.msra.mxu0 %v1185
    %1789 = vmatmul.bf16.gmra.mxu0 %v476
    %v1790 = vpop.f32.mrf.mxu0
    %v1791 = vadd.f32 %v504, %v1790
    %v1792 = vpop.f32.mrf.mxu0
    %v1793 = vadd.f32 %v504, %v1792
    %1794 = vdwg.mxu0
    %1795 = vmatpush.bf16.msra.mxu0 %v1320
    %1796 = vmatpush.bf16.msra.mxu0 %v1311
    %1797 = vmatpush.bf16.msra.mxu0 %v1302
    %1798 = vmatpush.bf16.msra.mxu0 %v1293
    %1799 = vmatpush.bf16.msra.mxu0 %v1284
    %1800 = vmatpush.bf16.msra.mxu0 %v1275
    %1801 = vmatpush.bf16.msra.mxu0 %v1266
    %1802 = vmatpush.bf16.msra.mxu0 %v1257
    %1803 = vmatmul.bf16.gmra.mxu0 %v477
    %v1804 = vpop.f32.mrf.mxu0
    %v1805 = vadd.f32 %v1791, %v1804
    %v1806 = vpop.f32.mrf.mxu0
    %v1807 = vadd.f32 %v1793, %v1806
    %1808 = vdwg.mxu0
    %1809 = vmatpush.bf16.msra.mxu0 %v1392
    %1810 = vmatpush.bf16.msra.mxu0 %v1383
    %1811 = vmatpush.bf16.msra.mxu0 %v1374
    %1812 = vmatpush.bf16.msra.mxu0 %v1365
    %1813 = vmatpush.bf16.msra.mxu0 %v1356
    %1814 = vmatpush.bf16.msra.mxu0 %v1347
    %1815 = vmatpush.bf16.msra.mxu0 %v1338
    %1816 = vmatpush.bf16.msra.mxu0 %v1329
    %1817 = vmatmul.bf16.gmra.mxu0 %v478
    %v1818 = vpop.f32.mrf.mxu0
    %v1819 = vadd.f32 %v1805, %v1818
    %v1820 = vpop.f32.mrf.mxu0
    %v1821 = vadd.f32 %v1807, %v1820
    %1822 = vdwg.mxu0
    %1823 = vmatpush.bf16.msra.mxu0 %v1249
    %1824 = vmatpush.bf16.msra.mxu0 %v1240
    %1825 = vmatpush.bf16.msra.mxu0 %v1231
    %1826 = vmatpush.bf16.msra.mxu0 %v1222
    %1827 = vmatpush.bf16.msra.mxu0 %v1213
    %1828 = vmatpush.bf16.msra.mxu0 %v1204
    %1829 = vmatpush.bf16.msra.mxu0 %v1195
    %1830 = vmatpush.bf16.msra.mxu0 %v1186
    %1831 = vmatmul.bf16.gmra.mxu0 %v476
    %v1832 = vpop.f32.mrf.mxu0
    %v1833 = vadd.f32 %v505, %v1832
    %v1834 = vpop.f32.mrf.mxu0
    %v1835 = vadd.f32 %v505, %v1834
    %1836 = vdwg.mxu0
    %1837 = vmatpush.bf16.msra.mxu0 %v1321
    %1838 = vmatpush.bf16.msra.mxu0 %v1312
    %1839 = vmatpush.bf16.msra.mxu0 %v1303
    %1840 = vmatpush.bf16.msra.mxu0 %v1294
    %1841 = vmatpush.bf16.msra.mxu0 %v1285
    %1842 = vmatpush.bf16.msra.mxu0 %v1276
    %1843 = vmatpush.bf16.msra.mxu0 %v1267
    %1844 = vmatpush.bf16.msra.mxu0 %v1258
    %1845 = vmatmul.bf16.gmra.mxu0 %v477
    %v1846 = vpop.f32.mrf.mxu0
    %v1847 = vadd.f32 %v1833, %v1846
    %v1848 = vpop.f32.mrf.mxu0
    %v1849 = vadd.f32 %v1835, %v1848
    %1850 = vdwg.mxu0
    %1851 = vmatpush.bf16.msra.mxu0 %v1393
    %1852 = vmatpush.bf16.msra.mxu0 %v1384
    %1853 = vmatpush.bf16.msra.mxu0 %v1375
    %1854 = vmatpush.bf16.msra.mxu0 %v1366
    %1855 = vmatpush.bf16.msra.mxu0 %v1357
    %1856 = vmatpush.bf16.msra.mxu0 %v1348
    %1857 = vmatpush.bf16.msra.mxu0 %v1339
    %1858 = vmatpush.bf16.msra.mxu0 %v1330
    %1859 = vmatmul.bf16.gmra.mxu0 %v478
    %v1860 = vpop.f32.mrf.mxu0
    %v1861 = vadd.f32 %v1847, %v1860
    %v1862 = vpop.f32.mrf.mxu0
    %v1863 = vadd.f32 %v1849, %v1862
    %1864 = vdwg.mxu0
    %1865 = vmatpush.bf16.msra.mxu0 %v1250
    %1866 = vmatpush.bf16.msra.mxu0 %v1241
    %1867 = vmatpush.bf16.msra.mxu0 %v1232
    %1868 = vmatpush.bf16.msra.mxu0 %v1223
    %1869 = vmatpush.bf16.msra.mxu0 %v1214
    %1870 = vmatpush.bf16.msra.mxu0 %v1205
    %1871 = vmatpush.bf16.msra.mxu0 %v1196
    %1872 = vmatpush.bf16.msra.mxu0 %v1187
    %1873 = vmatmul.bf16.gmra.mxu0 %v476
    %v1874 = vpop.f32.mrf.mxu0
    %v1875 = vadd.f32 %v506, %v1874
    %v1876 = vpop.f32.mrf.mxu0
    %v1877 = vadd.f32 %v506, %v1876
    %1878 = vdwg.mxu0
    %1879 = vmatpush.bf16.msra.mxu0 %v1322
    %1880 = vmatpush.bf16.msra.mxu0 %v1313
    %1881 = vmatpush.bf16.msra.mxu0 %v1304
    %1882 = vmatpush.bf16.msra.mxu0 %v1295
    %1883 = vmatpush.bf16.msra.mxu0 %v1286
    %1884 = vmatpush.bf16.msra.mxu0 %v1277
    %1885 = vmatpush.bf16.msra.mxu0 %v1268
    %1886 = vmatpush.bf16.msra.mxu0 %v1259
    %1887 = vmatmul.bf16.gmra.mxu0 %v477
    %v1888 = vpop.f32.mrf.mxu0
    %v1889 = vadd.f32 %v1875, %v1888
    %v1890 = vpop.f32.mrf.mxu0
    %v1891 = vadd.f32 %v1877, %v1890
    %1892 = vdwg.mxu0
    %1893 = vmatpush.bf16.msra.mxu0 %v1394
    %1894 = vmatpush.bf16.msra.mxu0 %v1385
    %1895 = vmatpush.bf16.msra.mxu0 %v1376
    %1896 = vmatpush.bf16.msra.mxu0 %v1367
    %1897 = vmatpush.bf16.msra.mxu0 %v1358
    %1898 = vmatpush.bf16.msra.mxu0 %v1349
    %1899 = vmatpush.bf16.msra.mxu0 %v1340
    %1900 = vmatpush.bf16.msra.mxu0 %v1331
    %1901 = vmatmul.bf16.gmra.mxu0 %v478
    %v1902 = vpop.f32.mrf.mxu0
    %v1903 = vadd.f32 %v1889, %v1902
    %v1904 = vpop.f32.mrf.mxu0
    %v1905 = vadd.f32 %v1891, %v1904
    %1906 = vdwg.mxu0
    %1907 = vmatpush.bf16.msra.mxu0 %v1251
    %1908 = vmatpush.bf16.msra.mxu0 %v1242
    %1909 = vmatpush.bf16.msra.mxu0 %v1233
    %1910 = vmatpush.bf16.msra.mxu0 %v1224
    %1911 = vmatpush.bf16.msra.mxu0 %v1215
    %1912 = vmatpush.bf16.msra.mxu0 %v1206
    %1913 = vmatpush.bf16.msra.mxu0 %v1197
    %1914 = vmatpush.bf16.msra.mxu0 %v1188
    %1915 = vmatmul.bf16.gmra.mxu0 %v476
    %v1916 = vpop.f32.mrf.mxu0
    %v1917 = vadd.f32 %v507, %v1916
    %v1918 = vpop.f32.mrf.mxu0
    %v1919 = vadd.f32 %v507, %v1918
    %1920 = vdwg.mxu0
    %1921 = vmatpush.bf16.msra.mxu0 %v1323
    %1922 = vmatpush.bf16.msra.mxu0 %v1314
    %1923 = vmatpush.bf16.msra.mxu0 %v1305
    %1924 = vmatpush.bf16.msra.mxu0 %v1296
    %1925 = vmatpush.bf16.msra.mxu0 %v1287
    %1926 = vmatpush.bf16.msra.mxu0 %v1278
    %1927 = vmatpush.bf16.msra.mxu0 %v1269
    %1928 = vmatpush.bf16.msra.mxu0 %v1260
    %1929 = vmatmul.bf16.gmra.mxu0 %v477
    %v1930 = vpop.f32.mrf.mxu0
    %v1931 = vadd.f32 %v1917, %v1930
    %v1932 = vpop.f32.mrf.mxu0
    %v1933 = vadd.f32 %v1919, %v1932
    %1934 = vdwg.mxu0
    %1935 = vmatpush.bf16.msra.mxu0 %v1395
    %1936 = vmatpush.bf16.msra.mxu0 %v1386
    %1937 = vmatpush.bf16.msra.mxu0 %v1377
    %1938 = vmatpush.bf16.msra.mxu0 %v1368
    %1939 = vmatpush.bf16.msra.mxu0 %v1359
    %1940 = vmatpush.bf16.msra.mxu0 %v1350
    %1941 = vmatpush.bf16.msra.mxu0 %v1341
    %1942 = vmatpush.bf16.msra.mxu0 %v1332
    %1943 = vmatmul.bf16.gmra.mxu0 %v478
    %v1944 = vpop.f32.mrf.mxu0
    %v1945 = vadd.f32 %v1931, %v1944
    %v1946 = vpop.f32.mrf.mxu0
    %v1947 = vadd.f32 %v1933, %v1946
    %1948 = vdwg.mxu0
    %1949 = vmatpush.bf16.msra.mxu0 %v1252
    %1950 = vmatpush.bf16.msra.mxu0 %v1243
    %1951 = vmatpush.bf16.msra.mxu0 %v1234
    %1952 = vmatpush.bf16.msra.mxu0 %v1225
    %1953 = vmatpush.bf16.msra.mxu0 %v1216
    %1954 = vmatpush.bf16.msra.mxu0 %v1207
    %1955 = vmatpush.bf16.msra.mxu0 %v1198
    %1956 = vmatpush.bf16.msra.mxu0 %v1189
    %1957 = vmatmul.bf16.gmra.mxu0 %v476
    %v1958 = vpop.f32.mrf.mxu0
    %v1959 = vadd.f32 %v508, %v1958
    %v1960 = vpop.f32.mrf.mxu0
    %v1961 = vadd.f32 %v508, %v1960
    %1962 = vdwg.mxu0
    %1963 = vmatpush.bf16.msra.mxu0 %v1324
    %1964 = vmatpush.bf16.msra.mxu0 %v1315
    %1965 = vmatpush.bf16.msra.mxu0 %v1306
    %1966 = vmatpush.bf16.msra.mxu0 %v1297
    %1967 = vmatpush.bf16.msra.mxu0 %v1288
    %1968 = vmatpush.bf16.msra.mxu0 %v1279
    %1969 = vmatpush.bf16.msra.mxu0 %v1270
    %1970 = vmatpush.bf16.msra.mxu0 %v1261
    %1971 = vmatmul.bf16.gmra.mxu0 %v477
    %v1972 = vpop.f32.mrf.mxu0
    %v1973 = vadd.f32 %v1959, %v1972
    %v1974 = vpop.f32.mrf.mxu0
    %v1975 = vadd.f32 %v1961, %v1974
    %1976 = vdwg.mxu0
    %1977 = vmatpush.bf16.msra.mxu0 %v1396
    %1978 = vmatpush.bf16.msra.mxu0 %v1387
    %1979 = vmatpush.bf16.msra.mxu0 %v1378
    %1980 = vmatpush.bf16.msra.mxu0 %v1369
    %1981 = vmatpush.bf16.msra.mxu0 %v1360
    %1982 = vmatpush.bf16.msra.mxu0 %v1351
    %1983 = vmatpush.bf16.msra.mxu0 %v1342
    %1984 = vmatpush.bf16.msra.mxu0 %v1333
    %1985 = vmatmul.bf16.gmra.mxu0 %v478
    %v1986 = vpop.f32.mrf.mxu0
    %v1987 = vadd.f32 %v1973, %v1986
    %v1988 = vpop.f32.mrf.mxu0
    %v1989 = vadd.f32 %v1975, %v1988
    %1990 = vdwg.mxu0
    %v1991 = vld [vmem:[%s4] sm:$0xf]
    %v1992 = vld [vmem:[%s4 + $0x4] sm:$0xf]
    %v1993 = vld [vmem:[%s1] sm:$0xff]
    %v1994 = vld [vmem:[%s1 + $0x8] sm:$0xf]
    %v1995 = vld [vmem:[%s1 + $0xc] sm:$0xff]
    %v1996 = vld [vmem:[%s1 + $0x14] sm:$0xf]
    %v1997 = vld [vmem:[%s1 + $0x18] sm:$0xff]
    %v1998 = vld [vmem:[%s1 + $0x20] sm:$0xf]
    %v2001 = vunpack.c.l.b16 %v1991
    %v2002 = vunpack.c.l.b16 %v1992
    %v2003 = vpack.c.b16 %v2002, %v2001
    %v2010 = vunpack.c.l.b16 %v1993
    %v2011 = vunpack.c.h.b16 %v1993
    %v2012 = vunpack.c.l.b16 %v1994
    %v2013 = vunpack.c.l.b16 %v1995
    %v2014 = vunpack.c.h.b16 %v1995
    %v2015 = vunpack.c.l.b16 %v1996
    %v2016 = vunpack.c.l.b16 %v1997
    %v2017 = vunpack.c.h.b16 %v1997
    %v2018 = vunpack.c.l.b16 %v1998
    %v2019 = vpack.c.b16 %v2013, %v2010
    %v2020 = vpack.c.b16 %v2014, %v2011
    %v2021 = vpack.c.b16 %v2015, %v2012
    %v2022 = vpack.c.b16 %v2016, %v2016
    %v2023 = vpack.c.b16 %v2017, %v2017
    %v2024 = vpack.c.b16 %v2018, %v2018
    %vm2028 = vcmask 195584
    %v2030 = vsel %vm2028, %v2003, 0
    %vm2032 = vcmask 1043456
    %v2034 = vsel %vm2032, %v2022, 0
    %v2037 = vsel %vm2032, %v2023, 0
    %v2040 = vsel %vm2032, %v2024, 0
    %2042 = vmatpush.bf16.msra.mxu0 0
    %2043 = vmatpush.bf16.msra.mxu0 0
    %2044 = vmatpush.bf16.msra.mxu0 0
    %2045 = vmatpush.bf16.msra.mxu0 0
    %2046 = vmatpush.bf16.msra.mxu0 0
    %2047 = vmatpush.bf16.msra.mxu0 0
    %2048 = vmatpush.bf16.msra.mxu0 %v2034
    %2049 = vmatpush.bf16.msra.mxu0 %v2019
    %2050 = vmatmul.bf16.gmra.mxu0 %v2030
    %v2051 = vpop.f32.mrf.mxu0
    %v2052 = vadd.f32 0.0, %v2051
    %v2053 = vpop.f32.mrf.mxu0
    %v2054 = vadd.f32 0.0, %v2053
    %2055 = vdwg.mxu0
    %2056 = vmatpush.bf16.msra.mxu0 0
    %2057 = vmatpush.bf16.msra.mxu0 0
    %2058 = vmatpush.bf16.msra.mxu0 0
    %2059 = vmatpush.bf16.msra.mxu0 0
    %2060 = vmatpush.bf16.msra.mxu0 0
    %2061 = vmatpush.bf16.msra.mxu0 0
    %2062 = vmatpush.bf16.msra.mxu0 %v2037
    %2063 = vmatpush.bf16.msra.mxu0 %v2020
    %2064 = vmatmul.bf16.gmra.mxu0 %v2030
    %v2065 = vpop.f32.mrf.mxu0
    %v2066 = vadd.f32 0.0, %v2065
    %v2067 = vpop.f32.mrf.mxu0
    %v2068 = vadd.f32 0.0, %v2067
    %2069 = vdwg.mxu0
    %2070 = vmatpush.bf16.msra.mxu0 0
    %2071 = vmatpush.bf16.msra.mxu0 0
    %2072 = vmatpush.bf16.msra.mxu0 0
    %2073 = vmatpush.bf16.msra.mxu0 0
    %2074 = vmatpush.bf16.msra.mxu0 0
    %2075 = vmatpush.bf16.msra.mxu0 0
    %2076 = vmatpush.bf16.msra.mxu0 %v2040
    %2077 = vmatpush.bf16.msra.mxu0 %v2021
    %2078 = vmatmul.bf16.gmra.mxu0 %v2030
    %v2079 = vpop.f32.mrf.mxu0
    %v2080 = vadd.f32 0.0, %v2079
    %v2081 = vpop.f32.mrf.mxu0
    %v2082 = vadd.f32 0.0, %v2081
    %2083 = vdwg.mxu0
    %v2084 = vld [vmem:[#allocation4] sm:$0xff]
    %v2085 = vld [vmem:[#allocation4 + $0x8] sm:$0xf]
    %v2086 = vld [vmem:[#allocation4 + $0xc] sm:$0xff]
    %v2087 = vld [vmem:[#allocation4 + $0x14] sm:$0xf]
    %v2088 = vld [vmem:[#allocation4 + $0x18] sm:$0xff]
    %v2089 = vld [vmem:[#allocation4 + $0x20] sm:$0xf]
    %v2090 = vld [vmem:[#allocation4 + $0x24] sm:$0xff]
    %v2091 = vld [vmem:[#allocation4 + $0x2c] sm:$0xf]
    %v2092 = vld [vmem:[#allocation4 + $0x30] sm:$0xff]
    %v2093 = vld [vmem:[#allocation4 + $0x38] sm:$0xf]
    %v2094 = vld [vmem:[#allocation4 + $0x3c] sm:$0xff]
    %v2095 = vld [vmem:[#allocation4 + $0x44] sm:$0xf]
    %v2096 = vld [vmem:[#allocation4 + $0x48] sm:$0xff]
    %v2097 = vld [vmem:[#allocation4 + $0x50] sm:$0xf]
    %v2098 = vld [vmem:[#allocation4 + $0x54] sm:$0xff]
    %v2099 = vld [vmem:[#allocation4 + $0x5c] sm:$0xf]
    %v2100 = vld [vmem:[#allocation4 + $0x60] sm:$0xff]
    %v2101 = vld [vmem:[#allocation4 + $0x68] sm:$0xf]
    %v2102 = vld [vmem:[#allocation4 + $0x6c] sm:$0xff]
    %v2103 = vld [vmem:[#allocation4 + $0x74] sm:$0xf]
    %v2104 = vld [vmem:[#allocation4 + $0x78] sm:$0xff]
    %v2105 = vld [vmem:[#allocation4 + $0x80] sm:$0xf]
    %v2106 = vld [vmem:[#allocation4 + $0x84] sm:$0xff]
    %v2107 = vld [vmem:[#allocation4 + $0x8c] sm:$0xf]
    %v2108 = vld [vmem:[#allocation4 + $0x90] sm:$0xff]
    %v2109 = vld [vmem:[#allocation4 + $0x98] sm:$0xf]
    %v2110 = vld [vmem:[#allocation4 + $0x9c] sm:$0xff]
    %v2111 = vld [vmem:[#allocation4 + $0xa4] sm:$0xf]
    %v2112 = vld [vmem:[#allocation4 + $0xa8] sm:$0xff]
    %v2113 = vld [vmem:[#allocation4 + $0xb0] sm:$0xf]
    %v2114 = vld [vmem:[#allocation4 + $0xb4] sm:$0xff]
    %v2115 = vld [vmem:[#allocation4 + $0xbc] sm:$0xf]
    %v2116 = vld [vmem:[#allocation4 + $0xc0] sm:$0xff]
    %v2117 = vld [vmem:[#allocation4 + $0xc8] sm:$0xf]
    %v2118 = vld [vmem:[#allocation4 + $0xcc] sm:$0xff]
    %v2119 = vld [vmem:[#allocation4 + $0xd4] sm:$0xf]
    %v2120 = vld [vmem:[#allocation4 + $0xd8] sm:$0xff]
    %v2121 = vld [vmem:[#allocation4 + $0xe0] sm:$0xf]
    %v2122 = vld [vmem:[#allocation4 + $0xe4] sm:$0xff]
    %v2123 = vld [vmem:[#allocation4 + $0xec] sm:$0xf]
    %v2124 = vld [vmem:[#allocation4 + $0xf0] sm:$0xff]
    %v2125 = vld [vmem:[#allocation4 + $0xf8] sm:$0xf]
    %v2126 = vld [vmem:[#allocation4 + $0xfc] sm:$0xff]
    %v2127 = vld [vmem:[#allocation4 + $0x104] sm:$0xf]
    %v2128 = vld [vmem:[#allocation4 + $0x108] sm:$0xff]
    %v2129 = vld [vmem:[#allocation4 + $0x110] sm:$0xf]
    %v2130 = vld [vmem:[#allocation4 + $0x114] sm:$0xff]
    %v2131 = vld [vmem:[#allocation4 + $0x11c] sm:$0xf]
    %v2132 = vld [vmem:[#allocation4 + $0x120] sm:$0xff]
    %v2133 = vld [vmem:[#allocation4 + $0x128] sm:$0xf]
    %v2134 = vld [vmem:[#allocation4 + $0x12c] sm:$0xff]
    %v2135 = vld [vmem:[#allocation4 + $0x134] sm:$0xf]
    %v2136 = vld [vmem:[#allocation4 + $0x138] sm:$0xff]
    %v2137 = vld [vmem:[#allocation4 + $0x140] sm:$0xf]
    %v2138 = vld [vmem:[#allocation4 + $0x144] sm:$0xff]
    %v2139 = vld [vmem:[#allocation4 + $0x14c] sm:$0xf]
    %v2140 = vld [vmem:[#allocation4 + $0x150] sm:$0xff]
    %v2141 = vld [vmem:[#allocation4 + $0x158] sm:$0xf]
    %v2142 = vld [vmem:[#allocation4 + $0x15c] sm:$0xff]
    %v2143 = vld [vmem:[#allocation4 + $0x164] sm:$0xf]
    %v2144 = vld [vmem:[#allocation4 + $0x168] sm:$0xff]
    %v2145 = vld [vmem:[#allocation4 + $0x170] sm:$0xf]
    %v2146 = vld [vmem:[#allocation4 + $0x174] sm:$0xff]
    %v2147 = vld [vmem:[#allocation4 + $0x17c] sm:$0xf]
    %v2148 = vld [vmem:[#allocation4 + $0x180] sm:$0xff]
    %v2149 = vld [vmem:[#allocation4 + $0x188] sm:$0xf]
    %v2150 = vld [vmem:[#allocation4 + $0x18c] sm:$0xff]
    %v2151 = vld [vmem:[#allocation4 + $0x194] sm:$0xf]
    %v2152 = vld [vmem:[#allocation4 + $0x198] sm:$0xff]
    %v2153 = vld [vmem:[#allocation4 + $0x1a0] sm:$0xf]
    %v2154 = vld [vmem:[#allocation4 + $0x1a4] sm:$0xff]
    %v2155 = vld [vmem:[#allocation4 + $0x1ac] sm:$0xf]
    %v2156 = vld [vmem:[#allocation4 + $0x1b0] sm:$0xff]
    %v2157 = vld [vmem:[#allocation4 + $0x1b8] sm:$0xf]
    %v2158 = vld [vmem:[#allocation4 + $0x1bc] sm:$0xff]
    %v2159 = vld [vmem:[#allocation4 + $0x1c4] sm:$0xf]
    %v2160 = vld [vmem:[#allocation4 + $0x1c8] sm:$0xff]
    %v2161 = vld [vmem:[#allocation4 + $0x1d0] sm:$0xf]
    %v2162 = vld [vmem:[#allocation4 + $0x1d4] sm:$0xff]
    %v2163 = vld [vmem:[#allocation4 + $0x1dc] sm:$0xf]
    %v2164 = vld [vmem:[#allocation4 + $0x1e0] sm:$0xff]
    %v2165 = vld [vmem:[#allocation4 + $0x1e8] sm:$0xf]
    %v2166 = vld [vmem:[#allocation4 + $0x1ec] sm:$0xff]
    %v2167 = vld [vmem:[#allocation4 + $0x1f4] sm:$0xf]
    %v2168 = vld [vmem:[#allocation4 + $0x1f8] sm:$0xff]
    %v2169 = vld [vmem:[#allocation4 + $0x200] sm:$0xf]
    %v2170 = vld [vmem:[#allocation4 + $0x204] sm:$0xff]
    %v2171 = vld [vmem:[#allocation4 + $0x20c] sm:$0xf]
    %v2172 = vld [vmem:[#allocation4 + $0x210] sm:$0xff]
    %v2173 = vld [vmem:[#allocation4 + $0x218] sm:$0xf]
    %v2174 = vld [vmem:[#allocation4 + $0x21c] sm:$0xff]
    %v2175 = vld [vmem:[#allocation4 + $0x224] sm:$0xf]
    %v2176 = vld [vmem:[#allocation4 + $0x228] sm:$0xff]
    %v2177 = vld [vmem:[#allocation4 + $0x230] sm:$0xf]
    %v2178 = vld [vmem:[#allocation4 + $0x234] sm:$0xff]
    %v2179 = vld [vmem:[#allocation4 + $0x23c] sm:$0xf]
    %v2180 = vpack.c.bf16 %v2054, %v2052
    %v2181 = vpack.c.bf16 %v2068, %v2066
    %v2182 = vpack.c.bf16 %v2082, %v2080
    %v2279 = vunpack.c.l.b16 %v2084
    %v2280 = vunpack.c.h.b16 %v2084
    %v2281 = vunpack.c.l.b16 %v2085
    %v2282 = vunpack.c.l.b16 %v2086
    %v2283 = vunpack.c.h.b16 %v2086
    %v2284 = vunpack.c.l.b16 %v2087
    %v2285 = vunpack.c.l.b16 %v2088
    %v2286 = vunpack.c.h.b16 %v2088
    %v2287 = vunpack.c.l.b16 %v2089
    %v2288 = vunpack.c.l.b16 %v2090
    %v2289 = vunpack.c.h.b16 %v2090
    %v2290 = vunpack.c.l.b16 %v2091
    %v2291 = vunpack.c.l.b16 %v2092
    %v2292 = vunpack.c.h.b16 %v2092
    %v2293 = vunpack.c.l.b16 %v2093
    %v2294 = vunpack.c.l.b16 %v2094
    %v2295 = vunpack.c.h.b16 %v2094
    %v2296 = vunpack.c.l.b16 %v2095
    %v2297 = vunpack.c.l.b16 %v2096
    %v2298 = vunpack.c.h.b16 %v2096
    %v2299 = vunpack.c.l.b16 %v2097
    %v2300 = vunpack.c.l.b16 %v2098
    %v2301 = vunpack.c.h.b16 %v2098
    %v2302 = vunpack.c.l.b16 %v2099
    %v2303 = vunpack.c.l.b16 %v2100
    %v2304 = vunpack.c.h.b16 %v2100
    %v2305 = vunpack.c.l.b16 %v2101
    %v2306 = vunpack.c.l.b16 %v2102
    %v2307 = vunpack.c.h.b16 %v2102
    %v2308 = vunpack.c.l.b16 %v2103
    %v2309 = vunpack.c.l.b16 %v2104
    %v2310 = vunpack.c.h.b16 %v2104
    %v2311 = vunpack.c.l.b16 %v2105
    %v2312 = vunpack.c.l.b16 %v2106
    %v2313 = vunpack.c.h.b16 %v2106
    %v2314 = vunpack.c.l.b16 %v2107
    %v2315 = vunpack.c.l.b16 %v2108
    %v2316 = vunpack.c.h.b16 %v2108
    %v2317 = vunpack.c.l.b16 %v2109
    %v2318 = vunpack.c.l.b16 %v2110
    %v2319 = vunpack.c.h.b16 %v2110
    %v2320 = vunpack.c.l.b16 %v2111
    %v2321 = vunpack.c.l.b16 %v2112
    %v2322 = vunpack.c.h.b16 %v2112
    %v2323 = vunpack.c.l.b16 %v2113
    %v2324 = vunpack.c.l.b16 %v2114
    %v2325 = vunpack.c.h.b16 %v2114
    %v2326 = vunpack.c.l.b16 %v2115
    %v2327 = vunpack.c.l.b16 %v2116
    %v2328 = vunpack.c.h.b16 %v2116
    %v2329 = vunpack.c.l.b16 %v2117
    %v2330 = vunpack.c.l.b16 %v2118
    %v2331 = vunpack.c.h.b16 %v2118
    %v2332 = vunpack.c.l.b16 %v2119
    %v2333 = vunpack.c.l.b16 %v2120
    %v2334 = vunpack.c.h.b16 %v2120
    %v2335 = vunpack.c.l.b16 %v2121
    %v2336 = vunpack.c.l.b16 %v2122
    %v2337 = vunpack.c.h.b16 %v2122
    %v2338 = vunpack.c.l.b16 %v2123
    %v2339 = vunpack.c.l.b16 %v2124
    %v2340 = vunpack.c.h.b16 %v2124
    %v2341 = vunpack.c.l.b16 %v2125
    %v2342 = vunpack.c.l.b16 %v2126
    %v2343 = vunpack.c.h.b16 %v2126
    %v2344 = vunpack.c.l.b16 %v2127
    %v2345 = vunpack.c.l.b16 %v2128
    %v2346 = vunpack.c.h.b16 %v2128
    %v2347 = vunpack.c.l.b16 %v2129
    %v2348 = vunpack.c.l.b16 %v2130
    %v2349 = vunpack.c.h.b16 %v2130
    %v2350 = vunpack.c.l.b16 %v2131
    %v2351 = vunpack.c.l.b16 %v2132
    %v2352 = vunpack.c.h.b16 %v2132
    %v2353 = vunpack.c.l.b16 %v2133
    %v2354 = vunpack.c.l.b16 %v2134
    %v2355 = vunpack.c.h.b16 %v2134
    %v2356 = vunpack.c.l.b16 %v2135
    %v2357 = vunpack.c.l.b16 %v2136
    %v2358 = vunpack.c.h.b16 %v2136
    %v2359 = vunpack.c.l.b16 %v2137
    %v2360 = vunpack.c.l.b16 %v2138
    %v2361 = vunpack.c.h.b16 %v2138
    %v2362 = vunpack.c.l.b16 %v2139
    %v2363 = vunpack.c.l.b16 %v2140
    %v2364 = vunpack.c.h.b16 %v2140
    %v2365 = vunpack.c.l.b16 %v2141
    %v2366 = vunpack.c.l.b16 %v2142
    %v2367 = vunpack.c.h.b16 %v2142
    %v2368 = vunpack.c.l.b16 %v2143
    %v2369 = vunpack.c.l.b16 %v2144
    %v2370 = vunpack.c.h.b16 %v2144
    %v2371 = vunpack.c.l.b16 %v2145
    %v2372 = vunpack.c.l.b16 %v2146
    %v2373 = vunpack.c.h.b16 %v2146
    %v2374 = vunpack.c.l.b16 %v2147
    %v2375 = vunpack.c.l.b16 %v2148
    %v2376 = vunpack.c.h.b16 %v2148
    %v2377 = vunpack.c.l.b16 %v2149
    %v2378 = vunpack.c.l.b16 %v2150
    %v2379 = vunpack.c.h.b16 %v2150
    %v2380 = vunpack.c.l.b16 %v2151
    %v2381 = vunpack.c.l.b16 %v2152
    %v2382 = vunpack.c.h.b16 %v2152
    %v2383 = vunpack.c.l.b16 %v2153
    %v2384 = vunpack.c.l.b16 %v2154
    %v2385 = vunpack.c.h.b16 %v2154
    %v2386 = vunpack.c.l.b16 %v2155
    %v2387 = vunpack.c.l.b16 %v2156
    %v2388 = vunpack.c.h.b16 %v2156
    %v2389 = vunpack.c.l.b16 %v2157
    %v2390 = vunpack.c.l.b16 %v2158
    %v2391 = vunpack.c.h.b16 %v2158
    %v2392 = vunpack.c.l.b16 %v2159
    %v2393 = vunpack.c.l.b16 %v2160
    %v2394 = vunpack.c.h.b16 %v2160
    %v2395 = vunpack.c.l.b16 %v2161
    %v2396 = vunpack.c.l.b16 %v2162
    %v2397 = vunpack.c.h.b16 %v2162
    %v2398 = vunpack.c.l.b16 %v2163
    %v2399 = vunpack.c.l.b16 %v2164
    %v2400 = vunpack.c.h.b16 %v2164
    %v2401 = vunpack.c.l.b16 %v2165
    %v2402 = vunpack.c.l.b16 %v2166
    %v2403 = vunpack.c.h.b16 %v2166
    %v2404 = vunpack.c.l.b16 %v2167
    %v2405 = vunpack.c.l.b16 %v2168
    %v2406 = vunpack.c.h.b16 %v2168
    %v2407 = vunpack.c.l.b16 %v2169
    %v2408 = vunpack.c.l.b16 %v2170
    %v2409 = vunpack.c.h.b16 %v2170
    %v2410 = vunpack.c.l.b16 %v2171
    %v2411 = vunpack.c.l.b16 %v2172
    %v2412 = vunpack.c.h.b16 %v2172
    %v2413 = vunpack.c.l.b16 %v2173
    %v2414 = vunpack.c.l.b16 %v2174
    %v2415 = vunpack.c.h.b16 %v2174
    %v2416 = vunpack.c.l.b16 %v2175
    %v2417 = vunpack.c.l.b16 %v2176
    %v2418 = vunpack.c.h.b16 %v2176
    %v2419 = vunpack.c.l.b16 %v2177
    %v2420 = vunpack.c.l.b16 %v2178
    %v2421 = vunpack.c.h.b16 %v2178
    %v2422 = vunpack.c.l.b16 %v2179
    %v2423 = vpack.c.b16 %v2282, %v2279
    %v2424 = vpack.c.b16 %v2283, %v2280
    %v2425 = vpack.c.b16 %v2284, %v2281
    %v2426 = vpack.c.b16 %v2288, %v2285
    %v2427 = vpack.c.b16 %v2289, %v2286
    %v2428 = vpack.c.b16 %v2290, %v2287
    %v2429 = vpack.c.b16 %v2294, %v2291
    %v2430 = vpack.c.b16 %v2295, %v2292
    %v2431 = vpack.c.b16 %v2296, %v2293
    %v2432 = vpack.c.b16 %v2300, %v2297
    %v2433 = vpack.c.b16 %v2301, %v2298
    %v2434 = vpack.c.b16 %v2302, %v2299
    %v2435 = vpack.c.b16 %v2306, %v2303
    %v2436 = vpack.c.b16 %v2307, %v2304
    %v2437 = vpack.c.b16 %v2308, %v2305
    %v2438 = vpack.c.b16 %v2312, %v2309
    %v2439 = vpack.c.b16 %v2313, %v2310
    %v2440 = vpack.c.b16 %v2314, %v2311
    %v2441 = vpack.c.b16 %v2318, %v2315
    %v2442 = vpack.c.b16 %v2319, %v2316
    %v2443 = vpack.c.b16 %v2320, %v2317
    %v2444 = vpack.c.b16 %v2324, %v2321
    %v2445 = vpack.c.b16 %v2325, %v2322
    %v2446 = vpack.c.b16 %v2326, %v2323
    %v2447 = vpack.c.b16 %v2330, %v2327
    %v2448 = vpack.c.b16 %v2331, %v2328
    %v2449 = vpack.c.b16 %v2332, %v2329
    %v2450 = vpack.c.b16 %v2336, %v2333
    %v2451 = vpack.c.b16 %v2337, %v2334
    %v2452 = vpack.c.b16 %v2338, %v2335
    %v2453 = vpack.c.b16 %v2342, %v2339
    %v2454 = vpack.c.b16 %v2343, %v2340
    %v2455 = vpack.c.b16 %v2344, %v2341
    %v2456 = vpack.c.b16 %v2348, %v2345
    %v2457 = vpack.c.b16 %v2349, %v2346
    %v2458 = vpack.c.b16 %v2350, %v2347
    %v2459 = vpack.c.b16 %v2354, %v2351
    %v2460 = vpack.c.b16 %v2355, %v2352
    %v2461 = vpack.c.b16 %v2356, %v2353
    %v2462 = vpack.c.b16 %v2360, %v2357
    %v2463 = vpack.c.b16 %v2361, %v2358
    %v2464 = vpack.c.b16 %v2362, %v2359
    %v2465 = vpack.c.b16 %v2366, %v2363
    %v2466 = vpack.c.b16 %v2367, %v2364
    %v2467 = vpack.c.b16 %v2368, %v2365
    %v2468 = vpack.c.b16 %v2372, %v2369
    %v2469 = vpack.c.b16 %v2373, %v2370
    %v2470 = vpack.c.b16 %v2374, %v2371
    %v2471 = vpack.c.b16 %v2378, %v2375
    %v2472 = vpack.c.b16 %v2379, %v2376
    %v2473 = vpack.c.b16 %v2380, %v2377
    %v2474 = vpack.c.b16 %v2384, %v2381
    %v2475 = vpack.c.b16 %v2385, %v2382
    %v2476 = vpack.c.b16 %v2386, %v2383
    %v2477 = vpack.c.b16 %v2390, %v2387
    %v2478 = vpack.c.b16 %v2391, %v2388
    %v2479 = vpack.c.b16 %v2392, %v2389
    %v2480 = vpack.c.b16 %v2396, %v2393
    %v2481 = vpack.c.b16 %v2397, %v2394
    %v2482 = vpack.c.b16 %v2398, %v2395
    %v2483 = vpack.c.b16 %v2402, %v2399
    %v2484 = vpack.c.b16 %v2403, %v2400
    %v2485 = vpack.c.b16 %v2404, %v2401
    %v2486 = vpack.c.b16 %v2408, %v2405
    %v2487 = vpack.c.b16 %v2409, %v2406
    %v2488 = vpack.c.b16 %v2410, %v2407
    %v2489 = vpack.c.b16 %v2414, %v2411
    %v2490 = vpack.c.b16 %v2415, %v2412
    %v2491 = vpack.c.b16 %v2416, %v2413
    %v2492 = vpack.c.b16 %v2420, %v2417
    %v2493 = vpack.c.b16 %v2421, %v2418
    %v2494 = vpack.c.b16 %v2422, %v2419
    %2567 = vmatpush.bf16.msra.mxu0 %v2444
    %2568 = vmatpush.bf16.msra.mxu0 %v2441
    %2569 = vmatpush.bf16.msra.mxu0 %v2438
    %2570 = vmatpush.bf16.msra.mxu0 %v2435
    %2571 = vmatpush.bf16.msra.mxu0 %v2432
    %2572 = vmatpush.bf16.msra.mxu0 %v2429
    %2573 = vmatpush.bf16.msra.mxu0 %v2426
    %2574 = vmatpush.bf16.msra.mxu0 %v2423
    %2575 = vmatmul.bf16.gmra.mxu0 %v2180
    %v2576 = vpop.f32.mrf.mxu0
    %v2577 = vadd.f32 0.0, %v2576
    %v2578 = vpop.f32.mrf.mxu0
    %v2579 = vadd.f32 0.0, %v2578
    %2580 = vdwg.mxu0
    %2581 = vmatpush.bf16.msra.mxu0 %v2468
    %2582 = vmatpush.bf16.msra.mxu0 %v2465
    %2583 = vmatpush.bf16.msra.mxu0 %v2462
    %2584 = vmatpush.bf16.msra.mxu0 %v2459
    %2585 = vmatpush.bf16.msra.mxu0 %v2456
    %2586 = vmatpush.bf16.msra.mxu0 %v2453
    %2587 = vmatpush.bf16.msra.mxu0 %v2450
    %2588 = vmatpush.bf16.msra.mxu0 %v2447
    %2589 = vmatmul.bf16.gmra.mxu0 %v2181
    %v2590 = vpop.f32.mrf.mxu0
    %v2591 = vadd.f32 %v2577, %v2590
    %v2592 = vpop.f32.mrf.mxu0
    %v2593 = vadd.f32 %v2579, %v2592
    %2594 = vdwg.mxu0
    %2595 = vmatpush.bf16.msra.mxu0 %v2492
    %2596 = vmatpush.bf16.msra.mxu0 %v2489
    %2597 = vmatpush.bf16.msra.mxu0 %v2486
    %2598 = vmatpush.bf16.msra.mxu0 %v2483
    %2599 = vmatpush.bf16.msra.mxu0 %v2480
    %2600 = vmatpush.bf16.msra.mxu0 %v2477
    %2601 = vmatpush.bf16.msra.mxu0 %v2474
    %2602 = vmatpush.bf16.msra.mxu0 %v2471
    %2603 = vmatmul.bf16.gmra.mxu0 %v2182
    %v2604 = vpop.f32.mrf.mxu0
    %v2605 = vadd.f32 %v2591, %v2604
    %v2606 = vpop.f32.mrf.mxu0
    %v2607 = vadd.f32 %v2593, %v2606
    %2608 = vdwg.mxu0
    %2609 = vmatpush.bf16.msra.mxu0 %v2445
    %2610 = vmatpush.bf16.msra.mxu0 %v2442
    %2611 = vmatpush.bf16.msra.mxu0 %v2439
    %2612 = vmatpush.bf16.msra.mxu0 %v2436
    %2613 = vmatpush.bf16.msra.mxu0 %v2433
    %2614 = vmatpush.bf16.msra.mxu0 %v2430
    %2615 = vmatpush.bf16.msra.mxu0 %v2427
    %2616 = vmatpush.bf16.msra.mxu0 %v2424
    %2617 = vmatmul.bf16.gmra.mxu0 %v2180
    %v2618 = vpop.f32.mrf.mxu0
    %v2619 = vadd.f32 0.0, %v2618
    %v2620 = vpop.f32.mrf.mxu0
    %v2621 = vadd.f32 0.0, %v2620
    %2622 = vdwg.mxu0
    %2623 = vmatpush.bf16.msra.mxu0 %v2469
    %2624 = vmatpush.bf16.msra.mxu0 %v2466
    %2625 = vmatpush.bf16.msra.mxu0 %v2463
    %2626 = vmatpush.bf16.msra.mxu0 %v2460
    %2627 = vmatpush.bf16.msra.mxu0 %v2457
    %2628 = vmatpush.bf16.msra.mxu0 %v2454
    %2629 = vmatpush.bf16.msra.mxu0 %v2451
    %2630 = vmatpush.bf16.msra.mxu0 %v2448
    %2631 = vmatmul.bf16.gmra.mxu0 %v2181
    %v2632 = vpop.f32.mrf.mxu0
    %v2633 = vadd.f32 %v2619, %v2632
    %v2634 = vpop.f32.mrf.mxu0
    %v2635 = vadd.f32 %v2621, %v2634
    %2636 = vdwg.mxu0
    %2637 = vmatpush.bf16.msra.mxu0 %v2493
    %2638 = vmatpush.bf16.msra.mxu0 %v2490
    %2639 = vmatpush.bf16.msra.mxu0 %v2487
    %2640 = vmatpush.bf16.msra.mxu0 %v2484
    %2641 = vmatpush.bf16.msra.mxu0 %v2481
    %2642 = vmatpush.bf16.msra.mxu0 %v2478
    %2643 = vmatpush.bf16.msra.mxu0 %v2475
    %2644 = vmatpush.bf16.msra.mxu0 %v2472
    %2645 = vmatmul.bf16.gmra.mxu0 %v2182
    %v2646 = vpop.f32.mrf.mxu0
    %v2647 = vadd.f32 %v2633, %v2646
    %v2648 = vpop.f32.mrf.mxu0
    %v2649 = vadd.f32 %v2635, %v2648
    %2650 = vdwg.mxu0
    %2651 = vmatpush.bf16.msra.mxu0 %v2446
    %2652 = vmatpush.bf16.msra.mxu0 %v2443
    %2653 = vmatpush.bf16.msra.mxu0 %v2440
    %2654 = vmatpush.bf16.msra.mxu0 %v2437
    %2655 = vmatpush.bf16.msra.mxu0 %v2434
    %2656 = vmatpush.bf16.msra.mxu0 %v2431
    %2657 = vmatpush.bf16.msra.mxu0 %v2428
    %2658 = vmatpush.bf16.msra.mxu0 %v2425
    %2659 = vmatmul.bf16.gmra.mxu0 %v2180
    %v2660 = vpop.f32.mrf.mxu0
    %v2661 = vadd.f32 0.0, %v2660
    %v2662 = vpop.f32.mrf.mxu0
    %v2663 = vadd.f32 0.0, %v2662
    %2664 = vdwg.mxu0
    %2665 = vmatpush.bf16.msra.mxu0 %v2470
    %2666 = vmatpush.bf16.msra.mxu0 %v2467
    %2667 = vmatpush.bf16.msra.mxu0 %v2464
    %2668 = vmatpush.bf16.msra.mxu0 %v2461
    %2669 = vmatpush.bf16.msra.mxu0 %v2458
    %2670 = vmatpush.bf16.msra.mxu0 %v2455
    %2671 = vmatpush.bf16.msra.mxu0 %v2452
    %2672 = vmatpush.bf16.msra.mxu0 %v2449
    %2673 = vmatmul.bf16.gmra.mxu0 %v2181
    %v2674 = vpop.f32.mrf.mxu0
    %v2675 = vadd.f32 %v2661, %v2674
    %v2676 = vpop.f32.mrf.mxu0
    %v2677 = vadd.f32 %v2663, %v2676
    %2678 = vdwg.mxu0
    %2679 = vmatpush.bf16.msra.mxu0 %v2494
    %2680 = vmatpush.bf16.msra.mxu0 %v2491
    %2681 = vmatpush.bf16.msra.mxu0 %v2488
    %2682 = vmatpush.bf16.msra.mxu0 %v2485
    %2683 = vmatpush.bf16.msra.mxu0 %v2482
    %2684 = vmatpush.bf16.msra.mxu0 %v2479
    %2685 = vmatpush.bf16.msra.mxu0 %v2476
    %2686 = vmatpush.bf16.msra.mxu0 %v2473
    %2687 = vmatmul.bf16.gmra.mxu0 %v2182
    %v2688 = vpop.f32.mrf.mxu0
    %v2689 = vadd.f32 %v2675, %v2688
    %v2690 = vpop.f32.mrf.mxu0
    %v2691 = vadd.f32 %v2677, %v2690
    %2692 = vdwg.mxu0
    %v2693 = vadd.f32 %v1651, %v2605
    %v2694 = vadd.f32 %v1693, %v2647
    %v2695 = vadd.f32 %v1735, %v2689
    %v2696 = vadd.f32 %v1653, %v2607
    %v2697 = vadd.f32 %v1695, %v2649
    %v2698 = vadd.f32 %v1737, %v2691
    %v2699 = vld [vmem:[%s5] sm:$0xf]
    %v2700 = vld [vmem:[%s5 + $0x4] sm:$0xf]
    %v2701 = vld [vmem:[%s2] sm:$0xff]
    %v2702 = vld [vmem:[%s2 + $0x8] sm:$0xf]
    %v2703 = vld [vmem:[%s2 + $0xc] sm:$0xff]
    %v2704 = vld [vmem:[%s2 + $0x14] sm:$0xf]
    %v2705 = vld [vmem:[%s2 + $0x18] sm:$0xff]
    %v2706 = vld [vmem:[%s2 + $0x20] sm:$0xf]
    %v2709 = vunpack.c.l.b16 %v2699
    %v2710 = vunpack.c.l.b16 %v2700
    %v2711 = vpack.c.b16 %v2710, %v2709
    %v2718 = vunpack.c.l.b16 %v2701
    %v2719 = vunpack.c.h.b16 %v2701
    %v2720 = vunpack.c.l.b16 %v2702
    %v2721 = vunpack.c.l.b16 %v2703
    %v2722 = vunpack.c.h.b16 %v2703
    %v2723 = vunpack.c.l.b16 %v2704
    %v2724 = vunpack.c.l.b16 %v2705
    %v2725 = vunpack.c.h.b16 %v2705
    %v2726 = vunpack.c.l.b16 %v2706
    %v2727 = vpack.c.b16 %v2721, %v2718
    %v2728 = vpack.c.b16 %v2722, %v2719
    %v2729 = vpack.c.b16 %v2723, %v2720
    %v2730 = vpack.c.b16 %v2724, %v2724
    %v2731 = vpack.c.b16 %v2725, %v2725
    %v2732 = vpack.c.b16 %v2726, %v2726
    %v2737 = vsel %vm2028, %v2711, 0
    %v2740 = vsel %vm2032, %v2730, 0
    %v2743 = vsel %vm2032, %v2731, 0
    %v2746 = vsel %vm2032, %v2732, 0
    %2748 = vmatpush.bf16.msra.mxu0 0
    %2749 = vmatpush.bf16.msra.mxu0 0
    %2750 = vmatpush.bf16.msra.mxu0 0
    %2751 = vmatpush.bf16.msra.mxu0 0
    %2752 = vmatpush.bf16.msra.mxu0 0
    %2753 = vmatpush.bf16.msra.mxu0 0
    %2754 = vmatpush.bf16.msra.mxu0 %v2740
    %2755 = vmatpush.bf16.msra.mxu0 %v2727
    %2756 = vmatmul.bf16.gmra.mxu0 %v2737
    %v2757 = vpop.f32.mrf.mxu0
    %v2758 = vadd.f32 0.0, %v2757
    %v2759 = vpop.f32.mrf.mxu0
    %v2760 = vadd.f32 0.0, %v2759
    %2761 = vdwg.mxu0
    %2762 = vmatpush.bf16.msra.mxu0 0
    %2763 = vmatpush.bf16.msra.mxu0 0
    %2764 = vmatpush.bf16.msra.mxu0 0
    %2765 = vmatpush.bf16.msra.mxu0 0
    %2766 = vmatpush.bf16.msra.mxu0 0
    %2767 = vmatpush.bf16.msra.mxu0 0
    %2768 = vmatpush.bf16.msra.mxu0 %v2743
    %2769 = vmatpush.bf16.msra.mxu0 %v2728
    %2770 = vmatmul.bf16.gmra.mxu0 %v2737
    %v2771 = vpop.f32.mrf.mxu0
    %v2772 = vadd.f32 0.0, %v2771
    %v2773 = vpop.f32.mrf.mxu0
    %v2774 = vadd.f32 0.0, %v2773
    %2775 = vdwg.mxu0
    %2776 = vmatpush.bf16.msra.mxu0 0
    %2777 = vmatpush.bf16.msra.mxu0 0
    %2778 = vmatpush.bf16.msra.mxu0 0
    %2779 = vmatpush.bf16.msra.mxu0 0
    %2780 = vmatpush.bf16.msra.mxu0 0
    %2781 = vmatpush.bf16.msra.mxu0 0
    %2782 = vmatpush.bf16.msra.mxu0 %v2746
    %2783 = vmatpush.bf16.msra.mxu0 %v2729
    %2784 = vmatmul.bf16.gmra.mxu0 %v2737
    %v2785 = vpop.f32.mrf.mxu0
    %v2786 = vadd.f32 0.0, %v2785
    %v2787 = vpop.f32.mrf.mxu0
    %v2788 = vadd.f32 0.0, %v2787
    %2789 = vdwg.mxu0
    %v2790 = vld [vmem:[#allocation6] sm:$0xff]
    %v2791 = vld [vmem:[#allocation6 + $0x8] sm:$0xf]
    %v2792 = vld [vmem:[#allocation6 + $0xc] sm:$0xff]
    %v2793 = vld [vmem:[#allocation6 + $0x14] sm:$0xf]
    %v2794 = vld [vmem:[#allocation6 + $0x18] sm:$0xff]
    %v2795 = vld [vmem:[#allocation6 + $0x20] sm:$0xf]
    %v2796 = vld [vmem:[#allocation6 + $0x24] sm:$0xff]
    %v2797 = vld [vmem:[#allocation6 + $0x2c] sm:$0xf]
    %v2798 = vld [vmem:[#allocation6 + $0x30] sm:$0xff]
    %v2799 = vld [vmem:[#allocation6 + $0x38] sm:$0xf]
    %v2800 = vld [vmem:[#allocation6 + $0x3c] sm:$0xff]
    %v2801 = vld [vmem:[#allocation6 + $0x44] sm:$0xf]
    %v2802 = vld [vmem:[#allocation6 + $0x48] sm:$0xff]
    %v2803 = vld [vmem:[#allocation6 + $0x50] sm:$0xf]
    %v2804 = vld [vmem:[#allocation6 + $0x54] sm:$0xff]
    %v2805 = vld [vmem:[#allocation6 + $0x5c] sm:$0xf]
    %v2806 = vld [vmem:[#allocation6 + $0x60] sm:$0xff]
    %v2807 = vld [vmem:[#allocation6 + $0x68] sm:$0xf]
    %v2808 = vld [vmem:[#allocation6 + $0x6c] sm:$0xff]
    %v2809 = vld [vmem:[#allocation6 + $0x74] sm:$0xf]
    %v2810 = vld [vmem:[#allocation6 + $0x78] sm:$0xff]
    %v2811 = vld [vmem:[#allocation6 + $0x80] sm:$0xf]
    %v2812 = vld [vmem:[#allocation6 + $0x84] sm:$0xff]
    %v2813 = vld [vmem:[#allocation6 + $0x8c] sm:$0xf]
    %v2814 = vld [vmem:[#allocation6 + $0x90] sm:$0xff]
    %v2815 = vld [vmem:[#allocation6 + $0x98] sm:$0xf]
    %v2816 = vld [vmem:[#allocation6 + $0x9c] sm:$0xff]
    %v2817 = vld [vmem:[#allocation6 + $0xa4] sm:$0xf]
    %v2818 = vld [vmem:[#allocation6 + $0xa8] sm:$0xff]
    %v2819 = vld [vmem:[#allocation6 + $0xb0] sm:$0xf]
    %v2820 = vld [vmem:[#allocation6 + $0xb4] sm:$0xff]
    %v2821 = vld [vmem:[#allocation6 + $0xbc] sm:$0xf]
    %v2822 = vld [vmem:[#allocation6 + $0xc0] sm:$0xff]
    %v2823 = vld [vmem:[#allocation6 + $0xc8] sm:$0xf]
    %v2824 = vld [vmem:[#allocation6 + $0xcc] sm:$0xff]
    %v2825 = vld [vmem:[#allocation6 + $0xd4] sm:$0xf]
    %v2826 = vld [vmem:[#allocation6 + $0xd8] sm:$0xff]
    %v2827 = vld [vmem:[#allocation6 + $0xe0] sm:$0xf]
    %v2828 = vld [vmem:[#allocation6 + $0xe4] sm:$0xff]
    %v2829 = vld [vmem:[#allocation6 + $0xec] sm:$0xf]
    %v2830 = vld [vmem:[#allocation6 + $0xf0] sm:$0xff]
    %v2831 = vld [vmem:[#allocation6 + $0xf8] sm:$0xf]
    %v2832 = vld [vmem:[#allocation6 + $0xfc] sm:$0xff]
    %v2833 = vld [vmem:[#allocation6 + $0x104] sm:$0xf]
    %v2834 = vld [vmem:[#allocation6 + $0x108] sm:$0xff]
    %v2835 = vld [vmem:[#allocation6 + $0x110] sm:$0xf]
    %v2836 = vld [vmem:[#allocation6 + $0x114] sm:$0xff]
    %v2837 = vld [vmem:[#allocation6 + $0x11c] sm:$0xf]
    %v2838 = vld [vmem:[#allocation6 + $0x120] sm:$0xff]
    %v2839 = vld [vmem:[#allocation6 + $0x128] sm:$0xf]
    %v2840 = vld [vmem:[#allocation6 + $0x12c] sm:$0xff]
    %v2841 = vld [vmem:[#allocation6 + $0x134] sm:$0xf]
    %v2842 = vld [vmem:[#allocation6 + $0x138] sm:$0xff]
    %v2843 = vld [vmem:[#allocation6 + $0x140] sm:$0xf]
    %v2844 = vld [vmem:[#allocation6 + $0x144] sm:$0xff]
    %v2845 = vld [vmem:[#allocation6 + $0x14c] sm:$0xf]
    %v2846 = vld [vmem:[#allocation6 + $0x150] sm:$0xff]
    %v2847 = vld [vmem:[#allocation6 + $0x158] sm:$0xf]
    %v2848 = vld [vmem:[#allocation6 + $0x15c] sm:$0xff]
    %v2849 = vld [vmem:[#allocation6 + $0x164] sm:$0xf]
    %v2850 = vld [vmem:[#allocation6 + $0x168] sm:$0xff]
    %v2851 = vld [vmem:[#allocation6 + $0x170] sm:$0xf]
    %v2852 = vld [vmem:[#allocation6 + $0x174] sm:$0xff]
    %v2853 = vld [vmem:[#allocation6 + $0x17c] sm:$0xf]
    %v2854 = vld [vmem:[#allocation6 + $0x180] sm:$0xff]
    %v2855 = vld [vmem:[#allocation6 + $0x188] sm:$0xf]
    %v2856 = vld [vmem:[#allocation6 + $0x18c] sm:$0xff]
    %v2857 = vld [vmem:[#allocation6 + $0x194] sm:$0xf]
    %v2858 = vld [vmem:[#allocation6 + $0x198] sm:$0xff]
    %v2859 = vld [vmem:[#allocation6 + $0x1a0] sm:$0xf]
    %v2860 = vld [vmem:[#allocation6 + $0x1a4] sm:$0xff]
    %v2861 = vld [vmem:[#allocation6 + $0x1ac] sm:$0xf]
    %v2862 = vld [vmem:[#allocation6 + $0x1b0] sm:$0xff]
    %v2863 = vld [vmem:[#allocation6 + $0x1b8] sm:$0xf]
    %v2864 = vld [vmem:[#allocation6 + $0x1bc] sm:$0xff]
    %v2865 = vld [vmem:[#allocation6 + $0x1c4] sm:$0xf]
    %v2866 = vld [vmem:[#allocation6 + $0x1c8] sm:$0xff]
    %v2867 = vld [vmem:[#allocation6 + $0x1d0] sm:$0xf]
    %v2868 = vld [vmem:[#allocation6 + $0x1d4] sm:$0xff]
    %v2869 = vld [vmem:[#allocation6 + $0x1dc] sm:$0xf]
    %v2870 = vld [vmem:[#allocation6 + $0x1e0] sm:$0xff]
    %v2871 = vld [vmem:[#allocation6 + $0x1e8] sm:$0xf]
    %v2872 = vld [vmem:[#allocation6 + $0x1ec] sm:$0xff]
    %v2873 = vld [vmem:[#allocation6 + $0x1f4] sm:$0xf]
    %v2874 = vld [vmem:[#allocation6 + $0x1f8] sm:$0xff]
    %v2875 = vld [vmem:[#allocation6 + $0x200] sm:$0xf]
    %v2876 = vld [vmem:[#allocation6 + $0x204] sm:$0xff]
    %v2877 = vld [vmem:[#allocation6 + $0x20c] sm:$0xf]
    %v2878 = vld [vmem:[#allocation6 + $0x210] sm:$0xff]
    %v2879 = vld [vmem:[#allocation6 + $0x218] sm:$0xf]
    %v2880 = vld [vmem:[#allocation6 + $0x21c] sm:$0xff]
    %v2881 = vld [vmem:[#allocation6 + $0x224] sm:$0xf]
    %v2882 = vld [vmem:[#allocation6 + $0x228] sm:$0xff]
    %v2883 = vld [vmem:[#allocation6 + $0x230] sm:$0xf]
    %v2884 = vld [vmem:[#allocation6 + $0x234] sm:$0xff]
    %v2885 = vld [vmem:[#allocation6 + $0x23c] sm:$0xf]
    %v2886 = vpack.c.bf16 %v2760, %v2758
    %v2887 = vpack.c.bf16 %v2774, %v2772
    %v2888 = vpack.c.bf16 %v2788, %v2786
    %v2985 = vunpack.c.l.b16 %v2790
    %v2986 = vunpack.c.h.b16 %v2790
    %v2987 = vunpack.c.l.b16 %v2791
    %v2988 = vunpack.c.l.b16 %v2792
    %v2989 = vunpack.c.h.b16 %v2792
    %v2990 = vunpack.c.l.b16 %v2793
    %v2991 = vunpack.c.l.b16 %v2794
    %v2992 = vunpack.c.h.b16 %v2794
    %v2993 = vunpack.c.l.b16 %v2795
    %v2994 = vunpack.c.l.b16 %v2796
    %v2995 = vunpack.c.h.b16 %v2796
    %v2996 = vunpack.c.l.b16 %v2797
    %v2997 = vunpack.c.l.b16 %v2798
    %v2998 = vunpack.c.h.b16 %v2798
    %v2999 = vunpack.c.l.b16 %v2799
    %v3000 = vunpack.c.l.b16 %v2800
    %v3001 = vunpack.c.h.b16 %v2800
    %v3002 = vunpack.c.l.b16 %v2801
    %v3003 = vunpack.c.l.b16 %v2802
    %v3004 = vunpack.c.h.b16 %v2802
    %v3005 = vunpack.c.l.b16 %v2803
    %v3006 = vunpack.c.l.b16 %v2804
    %v3007 = vunpack.c.h.b16 %v2804
    %v3008 = vunpack.c.l.b16 %v2805
    %v3009 = vunpack.c.l.b16 %v2806
    %v3010 = vunpack.c.h.b16 %v2806
    %v3011 = vunpack.c.l.b16 %v2807
    %v3012 = vunpack.c.l.b16 %v2808
    %v3013 = vunpack.c.h.b16 %v2808
    %v3014 = vunpack.c.l.b16 %v2809
    %v3015 = vunpack.c.l.b16 %v2810
    %v3016 = vunpack.c.h.b16 %v2810
    %v3017 = vunpack.c.l.b16 %v2811
    %v3018 = vunpack.c.l.b16 %v2812
    %v3019 = vunpack.c.h.b16 %v2812
    %v3020 = vunpack.c.l.b16 %v2813
    %v3021 = vunpack.c.l.b16 %v2814
    %v3022 = vunpack.c.h.b16 %v2814
    %v3023 = vunpack.c.l.b16 %v2815
    %v3024 = vunpack.c.l.b16 %v2816
    %v3025 = vunpack.c.h.b16 %v2816
    %v3026 = vunpack.c.l.b16 %v2817
    %v3027 = vunpack.c.l.b16 %v2818
    %v3028 = vunpack.c.h.b16 %v2818
    %v3029 = vunpack.c.l.b16 %v2819
    %v3030 = vunpack.c.l.b16 %v2820
    %v3031 = vunpack.c.h.b16 %v2820
    %v3032 = vunpack.c.l.b16 %v2821
    %v3033 = vunpack.c.l.b16 %v2822
    %v3034 = vunpack.c.h.b16 %v2822
    %v3035 = vunpack.c.l.b16 %v2823
    %v3036 = vunpack.c.l.b16 %v2824
    %v3037 = vunpack.c.h.b16 %v2824
    %v3038 = vunpack.c.l.b16 %v2825
    %v3039 = vunpack.c.l.b16 %v2826
    %v3040 = vunpack.c.h.b16 %v2826
    %v3041 = vunpack.c.l.b16 %v2827
    %v3042 = vunpack.c.l.b16 %v2828
    %v3043 = vunpack.c.h.b16 %v2828
    %v3044 = vunpack.c.l.b16 %v2829
    %v3045 = vunpack.c.l.b16 %v2830
    %v3046 = vunpack.c.h.b16 %v2830
    %v3047 = vunpack.c.l.b16 %v2831
    %v3048 = vunpack.c.l.b16 %v2832
    %v3049 = vunpack.c.h.b16 %v2832
    %v3050 = vunpack.c.l.b16 %v2833
    %v3051 = vunpack.c.l.b16 %v2834
    %v3052 = vunpack.c.h.b16 %v2834
    %v3053 = vunpack.c.l.b16 %v2835
    %v3054 = vunpack.c.l.b16 %v2836
    %v3055 = vunpack.c.h.b16 %v2836
    %v3056 = vunpack.c.l.b16 %v2837
    %v3057 = vunpack.c.l.b16 %v2838
    %v3058 = vunpack.c.h.b16 %v2838
    %v3059 = vunpack.c.l.b16 %v2839
    %v3060 = vunpack.c.l.b16 %v2840
    %v3061 = vunpack.c.h.b16 %v2840
    %v3062 = vunpack.c.l.b16 %v2841
    %v3063 = vunpack.c.l.b16 %v2842
    %v3064 = vunpack.c.h.b16 %v2842
    %v3065 = vunpack.c.l.b16 %v2843
    %v3066 = vunpack.c.l.b16 %v2844
    %v3067 = vunpack.c.h.b16 %v2844
    %v3068 = vunpack.c.l.b16 %v2845
    %v3069 = vunpack.c.l.b16 %v2846
    %v3070 = vunpack.c.h.b16 %v2846
    %v3071 = vunpack.c.l.b16 %v2847
    %v3072 = vunpack.c.l.b16 %v2848
    %v3073 = vunpack.c.h.b16 %v2848
    %v3074 = vunpack.c.l.b16 %v2849
    %v3075 = vunpack.c.l.b16 %v2850
    %v3076 = vunpack.c.h.b16 %v2850
    %v3077 = vunpack.c.l.b16 %v2851
    %v3078 = vunpack.c.l.b16 %v2852
    %v3079 = vunpack.c.h.b16 %v2852
    %v3080 = vunpack.c.l.b16 %v2853
    %v3081 = vunpack.c.l.b16 %v2854
    %v3082 = vunpack.c.h.b16 %v2854
    %v3083 = vunpack.c.l.b16 %v2855
    %v3084 = vunpack.c.l.b16 %v2856
    %v3085 = vunpack.c.h.b16 %v2856
    %v3086 = vunpack.c.l.b16 %v2857
    %v3087 = vunpack.c.l.b16 %v2858
    %v3088 = vunpack.c.h.b16 %v2858
    %v3089 = vunpack.c.l.b16 %v2859
    %v3090 = vunpack.c.l.b16 %v2860
    %v3091 = vunpack.c.h.b16 %v2860
    %v3092 = vunpack.c.l.b16 %v2861
    %v3093 = vunpack.c.l.b16 %v2862
    %v3094 = vunpack.c.h.b16 %v2862
    %v3095 = vunpack.c.l.b16 %v2863
    %v3096 = vunpack.c.l.b16 %v2864
    %v3097 = vunpack.c.h.b16 %v2864
    %v3098 = vunpack.c.l.b16 %v2865
    %v3099 = vunpack.c.l.b16 %v2866
    %v3100 = vunpack.c.h.b16 %v2866
    %v3101 = vunpack.c.l.b16 %v2867
    %v3102 = vunpack.c.l.b16 %v2868
    %v3103 = vunpack.c.h.b16 %v2868
    %v3104 = vunpack.c.l.b16 %v2869
    %v3105 = vunpack.c.l.b16 %v2870
    %v3106 = vunpack.c.h.b16 %v2870
    %v3107 = vunpack.c.l.b16 %v2871
    %v3108 = vunpack.c.l.b16 %v2872
    %v3109 = vunpack.c.h.b16 %v2872
    %v3110 = vunpack.c.l.b16 %v2873
    %v3111 = vunpack.c.l.b16 %v2874
    %v3112 = vunpack.c.h.b16 %v2874
    %v3113 = vunpack.c.l.b16 %v2875
    %v3114 = vunpack.c.l.b16 %v2876
    %v3115 = vunpack.c.h.b16 %v2876
    %v3116 = vunpack.c.l.b16 %v2877
    %v3117 = vunpack.c.l.b16 %v2878
    %v3118 = vunpack.c.h.b16 %v2878
    %v3119 = vunpack.c.l.b16 %v2879
    %v3120 = vunpack.c.l.b16 %v2880
    %v3121 = vunpack.c.h.b16 %v2880
    %v3122 = vunpack.c.l.b16 %v2881
    %v3123 = vunpack.c.l.b16 %v2882
    %v3124 = vunpack.c.h.b16 %v2882
    %v3125 = vunpack.c.l.b16 %v2883
    %v3126 = vunpack.c.l.b16 %v2884
    %v3127 = vunpack.c.h.b16 %v2884
    %v3128 = vunpack.c.l.b16 %v2885
    %v3129 = vpack.c.b16 %v2988, %v2985
    %v3130 = vpack.c.b16 %v2989, %v2986
    %v3131 = vpack.c.b16 %v2990, %v2987
    %v3132 = vpack.c.b16 %v2994, %v2991
    %v3133 = vpack.c.b16 %v2995, %v2992
    %v3134 = vpack.c.b16 %v2996, %v2993
    %v3135 = vpack.c.b16 %v3000, %v2997
    %v3136 = vpack.c.b16 %v3001, %v2998
    %v3137 = vpack.c.b16 %v3002, %v2999
    %v3138 = vpack.c.b16 %v3006, %v3003
    %v3139 = vpack.c.b16 %v3007, %v3004
    %v3140 = vpack.c.b16 %v3008, %v3005
    %v3141 = vpack.c.b16 %v3012, %v3009
    %v3142 = vpack.c.b16 %v3013, %v3010
    %v3143 = vpack.c.b16 %v3014, %v3011
    %v3144 = vpack.c.b16 %v3018, %v3015
    %v3145 = vpack.c.b16 %v3019, %v3016
    %v3146 = vpack.c.b16 %v3020, %v3017
    %v3147 = vpack.c.b16 %v3024, %v3021
    %v3148 = vpack.c.b16 %v3025, %v3022
    %v3149 = vpack.c.b16 %v3026, %v3023
    %v3150 = vpack.c.b16 %v3030, %v3027
    %v3151 = vpack.c.b16 %v3031, %v3028
    %v3152 = vpack.c.b16 %v3032, %v3029
    %v3153 = vpack.c.b16 %v3036, %v3033
    %v3154 = vpack.c.b16 %v3037, %v3034
    %v3155 = vpack.c.b16 %v3038, %v3035
    %v3156 = vpack.c.b16 %v3042, %v3039
    %v3157 = vpack.c.b16 %v3043, %v3040
    %v3158 = vpack.c.b16 %v3044, %v3041
    %v3159 = vpack.c.b16 %v3048, %v3045
    %v3160 = vpack.c.b16 %v3049, %v3046
    %v3161 = vpack.c.b16 %v3050, %v3047
    %v3162 = vpack.c.b16 %v3054, %v3051
    %v3163 = vpack.c.b16 %v3055, %v3052
    %v3164 = vpack.c.b16 %v3056, %v3053
    %v3165 = vpack.c.b16 %v3060, %v3057
    %v3166 = vpack.c.b16 %v3061, %v3058
    %v3167 = vpack.c.b16 %v3062, %v3059
    %v3168 = vpack.c.b16 %v3066, %v3063
    %v3169 = vpack.c.b16 %v3067, %v3064
    %v3170 = vpack.c.b16 %v3068, %v3065
    %v3171 = vpack.c.b16 %v3072, %v3069
    %v3172 = vpack.c.b16 %v3073, %v3070
    %v3173 = vpack.c.b16 %v3074, %v3071
    %v3174 = vpack.c.b16 %v3078, %v3075
    %v3175 = vpack.c.b16 %v3079, %v3076
    %v3176 = vpack.c.b16 %v3080, %v3077
    %v3177 = vpack.c.b16 %v3084, %v3081
    %v3178 = vpack.c.b16 %v3085, %v3082
    %v3179 = vpack.c.b16 %v3086, %v3083
    %v3180 = vpack.c.b16 %v3090, %v3087
    %v3181 = vpack.c.b16 %v3091, %v3088
    %v3182 = vpack.c.b16 %v3092, %v3089
    %v3183 = vpack.c.b16 %v3096, %v3093
    %v3184 = vpack.c.b16 %v3097, %v3094
    %v3185 = vpack.c.b16 %v3098, %v3095
    %v3186 = vpack.c.b16 %v3102, %v3099
    %v3187 = vpack.c.b16 %v3103, %v3100
    %v3188 = vpack.c.b16 %v3104, %v3101
    %v3189 = vpack.c.b16 %v3108, %v3105
    %v3190 = vpack.c.b16 %v3109, %v3106
    %v3191 = vpack.c.b16 %v3110, %v3107
    %v3192 = vpack.c.b16 %v3114, %v3111
    %v3193 = vpack.c.b16 %v3115, %v3112
    %v3194 = vpack.c.b16 %v3116, %v3113
    %v3195 = vpack.c.b16 %v3120, %v3117
    %v3196 = vpack.c.b16 %v3121, %v3118
    %v3197 = vpack.c.b16 %v3122, %v3119
    %v3198 = vpack.c.b16 %v3126, %v3123
    %v3199 = vpack.c.b16 %v3127, %v3124
    %v3200 = vpack.c.b16 %v3128, %v3125
    %3273 = vmatpush.bf16.msra.mxu0 %v3150
    %3274 = vmatpush.bf16.msra.mxu0 %v3147
    %3275 = vmatpush.bf16.msra.mxu0 %v3144
    %3276 = vmatpush.bf16.msra.mxu0 %v3141
    %3277 = vmatpush.bf16.msra.mxu0 %v3138
    %3278 = vmatpush.bf16.msra.mxu0 %v3135
    %3279 = vmatpush.bf16.msra.mxu0 %v3132
    %3280 = vmatpush.bf16.msra.mxu0 %v3129
    %3281 = vmatmul.bf16.gmra.mxu0 %v2886
    %v3282 = vpop.f32.mrf.mxu0
    %v3283 = vadd.f32 0.0, %v3282
    %v3284 = vpop.f32.mrf.mxu0
    %v3285 = vadd.f32 0.0, %v3284
    %3286 = vdwg.mxu0
    %3287 = vmatpush.bf16.msra.mxu0 %v3174
    %3288 = vmatpush.bf16.msra.mxu0 %v3171
    %3289 = vmatpush.bf16.msra.mxu0 %v3168
    %3290 = vmatpush.bf16.msra.mxu0 %v3165
    %3291 = vmatpush.bf16.msra.mxu0 %v3162
    %3292 = vmatpush.bf16.msra.mxu0 %v3159
    %3293 = vmatpush.bf16.msra.mxu0 %v3156
    %3294 = vmatpush.bf16.msra.mxu0 %v3153
    %3295 = vmatmul.bf16.gmra.mxu0 %v2887
    %v3296 = vpop.f32.mrf.mxu0
    %v3297 = vadd.f32 %v3283, %v3296
    %v3298 = vpop.f32.mrf.mxu0
    %v3299 = vadd.f32 %v3285, %v3298
    %3300 = vdwg.mxu0
    %3301 = vmatpush.bf16.msra.mxu0 %v3198
    %3302 = vmatpush.bf16.msra.mxu0 %v3195
    %3303 = vmatpush.bf16.msra.mxu0 %v3192
    %3304 = vmatpush.bf16.msra.mxu0 %v3189
    %3305 = vmatpush.bf16.msra.mxu0 %v3186
    %3306 = vmatpush.bf16.msra.mxu0 %v3183
    %3307 = vmatpush.bf16.msra.mxu0 %v3180
    %3308 = vmatpush.bf16.msra.mxu0 %v3177
    %3309 = vmatmul.bf16.gmra.mxu0 %v2888
    %v3310 = vpop.f32.mrf.mxu0
    %v3311 = vadd.f32 %v3297, %v3310
    %v3312 = vpop.f32.mrf.mxu0
    %v3313 = vadd.f32 %v3299, %v3312
    %3314 = vdwg.mxu0
    %3315 = vmatpush.bf16.msra.mxu0 %v3151
    %3316 = vmatpush.bf16.msra.mxu0 %v3148
    %3317 = vmatpush.bf16.msra.mxu0 %v3145
    %3318 = vmatpush.bf16.msra.mxu0 %v3142
    %3319 = vmatpush.bf16.msra.mxu0 %v3139
    %3320 = vmatpush.bf16.msra.mxu0 %v3136
    %3321 = vmatpush.bf16.msra.mxu0 %v3133
    %3322 = vmatpush.bf16.msra.mxu0 %v3130
    %3323 = vmatmul.bf16.gmra.mxu0 %v2886
    %v3324 = vpop.f32.mrf.mxu0
    %v3325 = vadd.f32 0.0, %v3324
    %v3326 = vpop.f32.mrf.mxu0
    %v3327 = vadd.f32 0.0, %v3326
    %3328 = vdwg.mxu0
    %3329 = vmatpush.bf16.msra.mxu0 %v3175
    %3330 = vmatpush.bf16.msra.mxu0 %v3172
    %3331 = vmatpush.bf16.msra.mxu0 %v3169
    %3332 = vmatpush.bf16.msra.mxu0 %v3166
    %3333 = vmatpush.bf16.msra.mxu0 %v3163
    %3334 = vmatpush.bf16.msra.mxu0 %v3160
    %3335 = vmatpush.bf16.msra.mxu0 %v3157
    %3336 = vmatpush.bf16.msra.mxu0 %v3154
    %3337 = vmatmul.bf16.gmra.mxu0 %v2887
    %v3338 = vpop.f32.mrf.mxu0
    %v3339 = vadd.f32 %v3325, %v3338
    %v3340 = vpop.f32.mrf.mxu0
    %v3341 = vadd.f32 %v3327, %v3340
    %3342 = vdwg.mxu0
    %3343 = vmatpush.bf16.msra.mxu0 %v3199
    %3344 = vmatpush.bf16.msra.mxu0 %v3196
    %3345 = vmatpush.bf16.msra.mxu0 %v3193
    %3346 = vmatpush.bf16.msra.mxu0 %v3190
    %3347 = vmatpush.bf16.msra.mxu0 %v3187
    %3348 = vmatpush.bf16.msra.mxu0 %v3184
    %3349 = vmatpush.bf16.msra.mxu0 %v3181
    %3350 = vmatpush.bf16.msra.mxu0 %v3178
    %3351 = vmatmul.bf16.gmra.mxu0 %v2888
    %v3352 = vpop.f32.mrf.mxu0
    %v3353 = vadd.f32 %v3339, %v3352
    %v3354 = vpop.f32.mrf.mxu0
    %v3355 = vadd.f32 %v3341, %v3354
    %3356 = vdwg.mxu0
    %3357 = vmatpush.bf16.msra.mxu0 %v3152
    %3358 = vmatpush.bf16.msra.mxu0 %v3149
    %3359 = vmatpush.bf16.msra.mxu0 %v3146
    %3360 = vmatpush.bf16.msra.mxu0 %v3143
    %3361 = vmatpush.bf16.msra.mxu0 %v3140
    %3362 = vmatpush.bf16.msra.mxu0 %v3137
    %3363 = vmatpush.bf16.msra.mxu0 %v3134
    %3364 = vmatpush.bf16.msra.mxu0 %v3131
    %3365 = vmatmul.bf16.gmra.mxu0 %v2886
    %v3366 = vpop.f32.mrf.mxu0
    %v3367 = vadd.f32 0.0, %v3366
    %v3368 = vpop.f32.mrf.mxu0
    %v3369 = vadd.f32 0.0, %v3368
    %3370 = vdwg.mxu0
    %3371 = vmatpush.bf16.msra.mxu0 %v3176
    %3372 = vmatpush.bf16.msra.mxu0 %v3173
    %3373 = vmatpush.bf16.msra.mxu0 %v3170
    %3374 = vmatpush.bf16.msra.mxu0 %v3167
    %3375 = vmatpush.bf16.msra.mxu0 %v3164
    %3376 = vmatpush.bf16.msra.mxu0 %v3161
    %3377 = vmatpush.bf16.msra.mxu0 %v3158
    %3378 = vmatpush.bf16.msra.mxu0 %v3155
    %3379 = vmatmul.bf16.gmra.mxu0 %v2887
    %v3380 = vpop.f32.mrf.mxu0
    %v3381 = vadd.f32 %v3367, %v3380
    %v3382 = vpop.f32.mrf.mxu0
    %v3383 = vadd.f32 %v3369, %v3382
    %3384 = vdwg.mxu0
    %3385 = vmatpush.bf16.msra.mxu0 %v3200
    %3386 = vmatpush.bf16.msra.mxu0 %v3197
    %3387 = vmatpush.bf16.msra.mxu0 %v3194
    %3388 = vmatpush.bf16.msra.mxu0 %v3191
    %3389 = vmatpush.bf16.msra.mxu0 %v3188
    %3390 = vmatpush.bf16.msra.mxu0 %v3185
    %3391 = vmatpush.bf16.msra.mxu0 %v3182
    %3392 = vmatpush.bf16.msra.mxu0 %v3179
    %3393 = vmatmul.bf16.gmra.mxu0 %v2888
    %v3394 = vpop.f32.mrf.mxu0
    %v3395 = vadd.f32 %v3381, %v3394
    %v3396 = vpop.f32.mrf.mxu0
    %v3397 = vadd.f32 %v3383, %v3396
    %3398 = vdwg.mxu0
    %v3399 = vadd.f32 %v1777, %v3311
    %v3400 = vadd.f32 %v1819, %v3353
    %v3401 = vadd.f32 %v1861, %v3395
    %v3402 = vadd.f32 %v1779, %v3313
    %v3403 = vadd.f32 %v1821, %v3355
    %v3404 = vadd.f32 %v1863, %v3397
    %v3405 = vld [vmem:[%s6] sm:$0xf]
    %v3406 = vld [vmem:[%s6 + $0x4] sm:$0xf]
    %v3407 = vld [vmem:[%s3] sm:$0xff]
    %v3408 = vld [vmem:[%s3 + $0x8] sm:$0xf]
    %v3409 = vld [vmem:[%s3 + $0xc] sm:$0xff]
    %v3410 = vld [vmem:[%s3 + $0x14] sm:$0xf]
    %v3411 = vld [vmem:[%s3 + $0x18] sm:$0xff]
    %v3412 = vld [vmem:[%s3 + $0x20] sm:$0xf]
    %v3415 = vunpack.c.l.b16 %v3405
    %v3416 = vunpack.c.l.b16 %v3406
    %v3417 = vpack.c.b16 %v3416, %v3415
    %v3424 = vunpack.c.l.b16 %v3407
    %v3425 = vunpack.c.h.b16 %v3407
    %v3426 = vunpack.c.l.b16 %v3408
    %v3427 = vunpack.c.l.b16 %v3409
    %v3428 = vunpack.c.h.b16 %v3409
    %v3429 = vunpack.c.l.b16 %v3410
    %v3430 = vunpack.c.l.b16 %v3411
    %v3431 = vunpack.c.h.b16 %v3411
    %v3432 = vunpack.c.l.b16 %v3412
    %v3433 = vpack.c.b16 %v3427, %v3424
    %v3434 = vpack.c.b16 %v3428, %v3425
    %v3435 = vpack.c.b16 %v3429, %v3426
    %v3436 = vpack.c.b16 %v3430, %v3430
    %v3437 = vpack.c.b16 %v3431, %v3431
    %v3438 = vpack.c.b16 %v3432, %v3432
    %v3443 = vsel %vm2028, %v3417, 0
    %v3446 = vsel %vm2032, %v3436, 0
    %v3449 = vsel %vm2032, %v3437, 0
    %v3452 = vsel %vm2032, %v3438, 0
    %3454 = vmatpush.bf16.msra.mxu0 0
    %3455 = vmatpush.bf16.msra.mxu0 0
    %3456 = vmatpush.bf16.msra.mxu0 0
    %3457 = vmatpush.bf16.msra.mxu0 0
    %3458 = vmatpush.bf16.msra.mxu0 0
    %3459 = vmatpush.bf16.msra.mxu0 0
    %3460 = vmatpush.bf16.msra.mxu0 %v3446
    %3461 = vmatpush.bf16.msra.mxu0 %v3433
    %3462 = vmatmul.bf16.gmra.mxu0 %v3443
    %v3463 = vpop.f32.mrf.mxu0
    %v3464 = vadd.f32 0.0, %v3463
    %v3465 = vpop.f32.mrf.mxu0
    %v3466 = vadd.f32 0.0, %v3465
    %3467 = vdwg.mxu0
    %3468 = vmatpush.bf16.msra.mxu0 0
    %3469 = vmatpush.bf16.msra.mxu0 0
    %3470 = vmatpush.bf16.msra.mxu0 0
    %3471 = vmatpush.bf16.msra.mxu0 0
    %3472 = vmatpush.bf16.msra.mxu0 0
    %3473 = vmatpush.bf16.msra.mxu0 0
    %3474 = vmatpush.bf16.msra.mxu0 %v3449
    %3475 = vmatpush.bf16.msra.mxu0 %v3434
    %3476 = vmatmul.bf16.gmra.mxu0 %v3443
    %v3477 = vpop.f32.mrf.mxu0
    %v3478 = vadd.f32 0.0, %v3477
    %v3479 = vpop.f32.mrf.mxu0
    %v3480 = vadd.f32 0.0, %v3479
    %3481 = vdwg.mxu0
    %3482 = vmatpush.bf16.msra.mxu0 0
    %3483 = vmatpush.bf16.msra.mxu0 0
    %3484 = vmatpush.bf16.msra.mxu0 0
    %3485 = vmatpush.bf16.msra.mxu0 0
    %3486 = vmatpush.bf16.msra.mxu0 0
    %3487 = vmatpush.bf16.msra.mxu0 0
    %3488 = vmatpush.bf16.msra.mxu0 %v3452
    %3489 = vmatpush.bf16.msra.mxu0 %v3435
    %3490 = vmatmul.bf16.gmra.mxu0 %v3443
    %v3491 = vpop.f32.mrf.mxu0
    %v3492 = vadd.f32 0.0, %v3491
    %v3493 = vpop.f32.mrf.mxu0
    %v3494 = vadd.f32 0.0, %v3493
    %3495 = vdwg.mxu0
    %v3496 = vld [vmem:[#allocation7] sm:$0xff]
    %v3497 = vld [vmem:[#allocation7 + $0x8] sm:$0xf]
    %v3498 = vld [vmem:[#allocation7 + $0xc] sm:$0xff]
    %v3499 = vld [vmem:[#allocation7 + $0x14] sm:$0xf]
    %v3500 = vld [vmem:[#allocation7 + $0x18] sm:$0xff]
    %v3501 = vld [vmem:[#allocation7 + $0x20] sm:$0xf]
    %v3502 = vld [vmem:[#allocation7 + $0x24] sm:$0xff]
    %v3503 = vld [vmem:[#allocation7 + $0x2c] sm:$0xf]
    %v3504 = vld [vmem:[#allocation7 + $0x30] sm:$0xff]
    %v3505 = vld [vmem:[#allocation7 + $0x38] sm:$0xf]
    %v3506 = vld [vmem:[#allocation7 + $0x3c] sm:$0xff]
    %v3507 = vld [vmem:[#allocation7 + $0x44] sm:$0xf]
    %v3508 = vld [vmem:[#allocation7 + $0x48] sm:$0xff]
    %v3509 = vld [vmem:[#allocation7 + $0x50] sm:$0xf]
    %v3510 = vld [vmem:[#allocation7 + $0x54] sm:$0xff]
    %v3511 = vld [vmem:[#allocation7 + $0x5c] sm:$0xf]
    %v3512 = vld [vmem:[#allocation7 + $0x60] sm:$0xff]
    %v3513 = vld [vmem:[#allocation7 + $0x68] sm:$0xf]
    %v3514 = vld [vmem:[#allocation7 + $0x6c] sm:$0xff]
    %v3515 = vld [vmem:[#allocation7 + $0x74] sm:$0xf]
    %v3516 = vld [vmem:[#allocation7 + $0x78] sm:$0xff]
    %v3517 = vld [vmem:[#allocation7 + $0x80] sm:$0xf]
    %v3518 = vld [vmem:[#allocation7 + $0x84] sm:$0xff]
    %v3519 = vld [vmem:[#allocation7 + $0x8c] sm:$0xf]
    %v3520 = vld [vmem:[#allocation7 + $0x90] sm:$0xff]
    %v3521 = vld [vmem:[#allocation7 + $0x98] sm:$0xf]
    %v3522 = vld [vmem:[#allocation7 + $0x9c] sm:$0xff]
    %v3523 = vld [vmem:[#allocation7 + $0xa4] sm:$0xf]
    %v3524 = vld [vmem:[#allocation7 + $0xa8] sm:$0xff]
    %v3525 = vld [vmem:[#allocation7 + $0xb0] sm:$0xf]
    %v3526 = vld [vmem:[#allocation7 + $0xb4] sm:$0xff]
    %v3527 = vld [vmem:[#allocation7 + $0xbc] sm:$0xf]
    %v3528 = vld [vmem:[#allocation7 + $0xc0] sm:$0xff]
    %v3529 = vld [vmem:[#allocation7 + $0xc8] sm:$0xf]
    %v3530 = vld [vmem:[#allocation7 + $0xcc] sm:$0xff]
    %v3531 = vld [vmem:[#allocation7 + $0xd4] sm:$0xf]
    %v3532 = vld [vmem:[#allocation7 + $0xd8] sm:$0xff]
    %v3533 = vld [vmem:[#allocation7 + $0xe0] sm:$0xf]
    %v3534 = vld [vmem:[#allocation7 + $0xe4] sm:$0xff]
    %v3535 = vld [vmem:[#allocation7 + $0xec] sm:$0xf]
    %v3536 = vld [vmem:[#allocation7 + $0xf0] sm:$0xff]
    %v3537 = vld [vmem:[#allocation7 + $0xf8] sm:$0xf]
    %v3538 = vld [vmem:[#allocation7 + $0xfc] sm:$0xff]
    %v3539 = vld [vmem:[#allocation7 + $0x104] sm:$0xf]
    %v3540 = vld [vmem:[#allocation7 + $0x108] sm:$0xff]
    %v3541 = vld [vmem:[#allocation7 + $0x110] sm:$0xf]
    %v3542 = vld [vmem:[#allocation7 + $0x114] sm:$0xff]
    %v3543 = vld [vmem:[#allocation7 + $0x11c] sm:$0xf]
    %v3544 = vld [vmem:[#allocation7 + $0x120] sm:$0xff]
    %v3545 = vld [vmem:[#allocation7 + $0x128] sm:$0xf]
    %v3546 = vld [vmem:[#allocation7 + $0x12c] sm:$0xff]
    %v3547 = vld [vmem:[#allocation7 + $0x134] sm:$0xf]
    %v3548 = vld [vmem:[#allocation7 + $0x138] sm:$0xff]
    %v3549 = vld [vmem:[#allocation7 + $0x140] sm:$0xf]
    %v3550 = vld [vmem:[#allocation7 + $0x144] sm:$0xff]
    %v3551 = vld [vmem:[#allocation7 + $0x14c] sm:$0xf]
    %v3552 = vld [vmem:[#allocation7 + $0x150] sm:$0xff]
    %v3553 = vld [vmem:[#allocation7 + $0x158] sm:$0xf]
    %v3554 = vld [vmem:[#allocation7 + $0x15c] sm:$0xff]
    %v3555 = vld [vmem:[#allocation7 + $0x164] sm:$0xf]
    %v3556 = vld [vmem:[#allocation7 + $0x168] sm:$0xff]
    %v3557 = vld [vmem:[#allocation7 + $0x170] sm:$0xf]
    %v3558 = vld [vmem:[#allocation7 + $0x174] sm:$0xff]
    %v3559 = vld [vmem:[#allocation7 + $0x17c] sm:$0xf]
    %v3560 = vld [vmem:[#allocation7 + $0x180] sm:$0xff]
    %v3561 = vld [vmem:[#allocation7 + $0x188] sm:$0xf]
    %v3562 = vld [vmem:[#allocation7 + $0x18c] sm:$0xff]
    %v3563 = vld [vmem:[#allocation7 + $0x194] sm:$0xf]
    %v3564 = vld [vmem:[#allocation7 + $0x198] sm:$0xff]
    %v3565 = vld [vmem:[#allocation7 + $0x1a0] sm:$0xf]
    %v3566 = vld [vmem:[#allocation7 + $0x1a4] sm:$0xff]
    %v3567 = vld [vmem:[#allocation7 + $0x1ac] sm:$0xf]
    %v3568 = vld [vmem:[#allocation7 + $0x1b0] sm:$0xff]
    %v3569 = vld [vmem:[#allocation7 + $0x1b8] sm:$0xf]
    %v3570 = vld [vmem:[#allocation7 + $0x1bc] sm:$0xff]
    %v3571 = vld [vmem:[#allocation7 + $0x1c4] sm:$0xf]
    %v3572 = vld [vmem:[#allocation7 + $0x1c8] sm:$0xff]
    %v3573 = vld [vmem:[#allocation7 + $0x1d0] sm:$0xf]
    %v3574 = vld [vmem:[#allocation7 + $0x1d4] sm:$0xff]
    %v3575 = vld [vmem:[#allocation7 + $0x1dc] sm:$0xf]
    %v3576 = vld [vmem:[#allocation7 + $0x1e0] sm:$0xff]
    %v3577 = vld [vmem:[#allocation7 + $0x1e8] sm:$0xf]
    %v3578 = vld [vmem:[#allocation7 + $0x1ec] sm:$0xff]
    %v3579 = vld [vmem:[#allocation7 + $0x1f4] sm:$0xf]
    %v3580 = vld [vmem:[#allocation7 + $0x1f8] sm:$0xff]
    %v3581 = vld [vmem:[#allocation7 + $0x200] sm:$0xf]
    %v3582 = vld [vmem:[#allocation7 + $0x204] sm:$0xff]
    %v3583 = vld [vmem:[#allocation7 + $0x20c] sm:$0xf]
    %v3584 = vld [vmem:[#allocation7 + $0x210] sm:$0xff]
    %v3585 = vld [vmem:[#allocation7 + $0x218] sm:$0xf]
    %v3586 = vld [vmem:[#allocation7 + $0x21c] sm:$0xff]
    %v3587 = vld [vmem:[#allocation7 + $0x224] sm:$0xf]
    %v3588 = vld [vmem:[#allocation7 + $0x228] sm:$0xff]
    %v3589 = vld [vmem:[#allocation7 + $0x230] sm:$0xf]
    %v3590 = vld [vmem:[#allocation7 + $0x234] sm:$0xff]
    %v3591 = vld [vmem:[#allocation7 + $0x23c] sm:$0xf]
    %v3592 = vpack.c.bf16 %v3466, %v3464
    %v3593 = vpack.c.bf16 %v3480, %v3478
    %v3594 = vpack.c.bf16 %v3494, %v3492
    %v3691 = vunpack.c.l.b16 %v3496
    %v3692 = vunpack.c.h.b16 %v3496
    %v3693 = vunpack.c.l.b16 %v3497
    %v3694 = vunpack.c.l.b16 %v3498
    %v3695 = vunpack.c.h.b16 %v3498
    %v3696 = vunpack.c.l.b16 %v3499
    %v3697 = vunpack.c.l.b16 %v3500
    %v3698 = vunpack.c.h.b16 %v3500
    %v3699 = vunpack.c.l.b16 %v3501
    %v3700 = vunpack.c.l.b16 %v3502
    %v3701 = vunpack.c.h.b16 %v3502
    %v3702 = vunpack.c.l.b16 %v3503
    %v3703 = vunpack.c.l.b16 %v3504
    %v3704 = vunpack.c.h.b16 %v3504
    %v3705 = vunpack.c.l.b16 %v3505
    %v3706 = vunpack.c.l.b16 %v3506
    %v3707 = vunpack.c.h.b16 %v3506
    %v3708 = vunpack.c.l.b16 %v3507
    %v3709 = vunpack.c.l.b16 %v3508
    %v3710 = vunpack.c.h.b16 %v3508
    %v3711 = vunpack.c.l.b16 %v3509
    %v3712 = vunpack.c.l.b16 %v3510
    %v3713 = vunpack.c.h.b16 %v3510
    %v3714 = vunpack.c.l.b16 %v3511
    %v3715 = vunpack.c.l.b16 %v3512
    %v3716 = vunpack.c.h.b16 %v3512
    %v3717 = vunpack.c.l.b16 %v3513
    %v3718 = vunpack.c.l.b16 %v3514
    %v3719 = vunpack.c.h.b16 %v3514
    %v3720 = vunpack.c.l.b16 %v3515
    %v3721 = vunpack.c.l.b16 %v3516
    %v3722 = vunpack.c.h.b16 %v3516
    %v3723 = vunpack.c.l.b16 %v3517
    %v3724 = vunpack.c.l.b16 %v3518
    %v3725 = vunpack.c.h.b16 %v3518
    %v3726 = vunpack.c.l.b16 %v3519
    %v3727 = vunpack.c.l.b16 %v3520
    %v3728 = vunpack.c.h.b16 %v3520
    %v3729 = vunpack.c.l.b16 %v3521
    %v3730 = vunpack.c.l.b16 %v3522
    %v3731 = vunpack.c.h.b16 %v3522
    %v3732 = vunpack.c.l.b16 %v3523
    %v3733 = vunpack.c.l.b16 %v3524
    %v3734 = vunpack.c.h.b16 %v3524
    %v3735 = vunpack.c.l.b16 %v3525
    %v3736 = vunpack.c.l.b16 %v3526
    %v3737 = vunpack.c.h.b16 %v3526
    %v3738 = vunpack.c.l.b16 %v3527
    %v3739 = vunpack.c.l.b16 %v3528
    %v3740 = vunpack.c.h.b16 %v3528
    %v3741 = vunpack.c.l.b16 %v3529
    %v3742 = vunpack.c.l.b16 %v3530
    %v3743 = vunpack.c.h.b16 %v3530
    %v3744 = vunpack.c.l.b16 %v3531
    %v3745 = vunpack.c.l.b16 %v3532
    %v3746 = vunpack.c.h.b16 %v3532
    %v3747 = vunpack.c.l.b16 %v3533
    %v3748 = vunpack.c.l.b16 %v3534
    %v3749 = vunpack.c.h.b16 %v3534
    %v3750 = vunpack.c.l.b16 %v3535
    %v3751 = vunpack.c.l.b16 %v3536
    %v3752 = vunpack.c.h.b16 %v3536
    %v3753 = vunpack.c.l.b16 %v3537
    %v3754 = vunpack.c.l.b16 %v3538
    %v3755 = vunpack.c.h.b16 %v3538
    %v3756 = vunpack.c.l.b16 %v3539
    %v3757 = vunpack.c.l.b16 %v3540
    %v3758 = vunpack.c.h.b16 %v3540
    %v3759 = vunpack.c.l.b16 %v3541
    %v3760 = vunpack.c.l.b16 %v3542
    %v3761 = vunpack.c.h.b16 %v3542
    %v3762 = vunpack.c.l.b16 %v3543
    %v3763 = vunpack.c.l.b16 %v3544
    %v3764 = vunpack.c.h.b16 %v3544
    %v3765 = vunpack.c.l.b16 %v3545
    %v3766 = vunpack.c.l.b16 %v3546
    %v3767 = vunpack.c.h.b16 %v3546
    %v3768 = vunpack.c.l.b16 %v3547
    %v3769 = vunpack.c.l.b16 %v3548
    %v3770 = vunpack.c.h.b16 %v3548
    %v3771 = vunpack.c.l.b16 %v3549
    %v3772 = vunpack.c.l.b16 %v3550
    %v3773 = vunpack.c.h.b16 %v3550
    %v3774 = vunpack.c.l.b16 %v3551
    %v3775 = vunpack.c.l.b16 %v3552
    %v3776 = vunpack.c.h.b16 %v3552
    %v3777 = vunpack.c.l.b16 %v3553
    %v3778 = vunpack.c.l.b16 %v3554
    %v3779 = vunpack.c.h.b16 %v3554
    %v3780 = vunpack.c.l.b16 %v3555
    %v3781 = vunpack.c.l.b16 %v3556
    %v3782 = vunpack.c.h.b16 %v3556
    %v3783 = vunpack.c.l.b16 %v3557
    %v3784 = vunpack.c.l.b16 %v3558
    %v3785 = vunpack.c.h.b16 %v3558
    %v3786 = vunpack.c.l.b16 %v3559
    %v3787 = vunpack.c.l.b16 %v3560
    %v3788 = vunpack.c.h.b16 %v3560
    %v3789 = vunpack.c.l.b16 %v3561
    %v3790 = vunpack.c.l.b16 %v3562
    %v3791 = vunpack.c.h.b16 %v3562
    %v3792 = vunpack.c.l.b16 %v3563
    %v3793 = vunpack.c.l.b16 %v3564
    %v3794 = vunpack.c.h.b16 %v3564
    %v3795 = vunpack.c.l.b16 %v3565
    %v3796 = vunpack.c.l.b16 %v3566
    %v3797 = vunpack.c.h.b16 %v3566
    %v3798 = vunpack.c.l.b16 %v3567
    %v3799 = vunpack.c.l.b16 %v3568
    %v3800 = vunpack.c.h.b16 %v3568
    %v3801 = vunpack.c.l.b16 %v3569
    %v3802 = vunpack.c.l.b16 %v3570
    %v3803 = vunpack.c.h.b16 %v3570
    %v3804 = vunpack.c.l.b16 %v3571
    %v3805 = vunpack.c.l.b16 %v3572
    %v3806 = vunpack.c.h.b16 %v3572
    %v3807 = vunpack.c.l.b16 %v3573
    %v3808 = vunpack.c.l.b16 %v3574
    %v3809 = vunpack.c.h.b16 %v3574
    %v3810 = vunpack.c.l.b16 %v3575
    %v3811 = vunpack.c.l.b16 %v3576
    %v3812 = vunpack.c.h.b16 %v3576
    %v3813 = vunpack.c.l.b16 %v3577
    %v3814 = vunpack.c.l.b16 %v3578
    %v3815 = vunpack.c.h.b16 %v3578
    %v3816 = vunpack.c.l.b16 %v3579
    %v3817 = vunpack.c.l.b16 %v3580
    %v3818 = vunpack.c.h.b16 %v3580
    %v3819 = vunpack.c.l.b16 %v3581
    %v3820 = vunpack.c.l.b16 %v3582
    %v3821 = vunpack.c.h.b16 %v3582
    %v3822 = vunpack.c.l.b16 %v3583
    %v3823 = vunpack.c.l.b16 %v3584
    %v3824 = vunpack.c.h.b16 %v3584
    %v3825 = vunpack.c.l.b16 %v3585
    %v3826 = vunpack.c.l.b16 %v3586
    %v3827 = vunpack.c.h.b16 %v3586
    %v3828 = vunpack.c.l.b16 %v3587
    %v3829 = vunpack.c.l.b16 %v3588
    %v3830 = vunpack.c.h.b16 %v3588
    %v3831 = vunpack.c.l.b16 %v3589
    %v3832 = vunpack.c.l.b16 %v3590
    %v3833 = vunpack.c.h.b16 %v3590
    %v3834 = vunpack.c.l.b16 %v3591
    %v3835 = vpack.c.b16 %v3694, %v3691
    %v3836 = vpack.c.b16 %v3695, %v3692
    %v3837 = vpack.c.b16 %v3696, %v3693
    %v3838 = vpack.c.b16 %v3700, %v3697
    %v3839 = vpack.c.b16 %v3701, %v3698
    %v3840 = vpack.c.b16 %v3702, %v3699
    %v3841 = vpack.c.b16 %v3706, %v3703
    %v3842 = vpack.c.b16 %v3707, %v3704
    %v3843 = vpack.c.b16 %v3708, %v3705
    %v3844 = vpack.c.b16 %v3712, %v3709
    %v3845 = vpack.c.b16 %v3713, %v3710
    %v3846 = vpack.c.b16 %v3714, %v3711
    %v3847 = vpack.c.b16 %v3718, %v3715
    %v3848 = vpack.c.b16 %v3719, %v3716
    %v3849 = vpack.c.b16 %v3720, %v3717
    %v3850 = vpack.c.b16 %v3724, %v3721
    %v3851 = vpack.c.b16 %v3725, %v3722
    %v3852 = vpack.c.b16 %v3726, %v3723
    %v3853 = vpack.c.b16 %v3730, %v3727
    %v3854 = vpack.c.b16 %v3731, %v3728
    %v3855 = vpack.c.b16 %v3732, %v3729
    %v3856 = vpack.c.b16 %v3736, %v3733
    %v3857 = vpack.c.b16 %v3737, %v3734
    %v3858 = vpack.c.b16 %v3738, %v3735
    %v3859 = vpack.c.b16 %v3742, %v3739
    %v3860 = vpack.c.b16 %v3743, %v3740
    %v3861 = vpack.c.b16 %v3744, %v3741
    %v3862 = vpack.c.b16 %v3748, %v3745
    %v3863 = vpack.c.b16 %v3749, %v3746
    %v3864 = vpack.c.b16 %v3750, %v3747
    %v3865 = vpack.c.b16 %v3754, %v3751
    %v3866 = vpack.c.b16 %v3755, %v3752
    %v3867 = vpack.c.b16 %v3756, %v3753
    %v3868 = vpack.c.b16 %v3760, %v3757
    %v3869 = vpack.c.b16 %v3761, %v3758
    %v3870 = vpack.c.b16 %v3762, %v3759
    %v3871 = vpack.c.b16 %v3766, %v3763
    %v3872 = vpack.c.b16 %v3767, %v3764
    %v3873 = vpack.c.b16 %v3768, %v3765
    %v3874 = vpack.c.b16 %v3772, %v3769
    %v3875 = vpack.c.b16 %v3773, %v3770
    %v3876 = vpack.c.b16 %v3774, %v3771
    %v3877 = vpack.c.b16 %v3778, %v3775
    %v3878 = vpack.c.b16 %v3779, %v3776
    %v3879 = vpack.c.b16 %v3780, %v3777
    %v3880 = vpack.c.b16 %v3784, %v3781
    %v3881 = vpack.c.b16 %v3785, %v3782
    %v3882 = vpack.c.b16 %v3786, %v3783
    %v3883 = vpack.c.b16 %v3790, %v3787
    %v3884 = vpack.c.b16 %v3791, %v3788
    %v3885 = vpack.c.b16 %v3792, %v3789
    %v3886 = vpack.c.b16 %v3796, %v3793
    %v3887 = vpack.c.b16 %v3797, %v3794
    %v3888 = vpack.c.b16 %v3798, %v3795
    %v3889 = vpack.c.b16 %v3802, %v3799
    %v3890 = vpack.c.b16 %v3803, %v3800
    %v3891 = vpack.c.b16 %v3804, %v3801
    %v3892 = vpack.c.b16 %v3808, %v3805
    %v3893 = vpack.c.b16 %v3809, %v3806
    %v3894 = vpack.c.b16 %v3810, %v3807
    %v3895 = vpack.c.b16 %v3814, %v3811
    %v3896 = vpack.c.b16 %v3815, %v3812
    %v3897 = vpack.c.b16 %v3816, %v3813
    %v3898 = vpack.c.b16 %v3820, %v3817
    %v3899 = vpack.c.b16 %v3821, %v3818
    %v3900 = vpack.c.b16 %v3822, %v3819
    %v3901 = vpack.c.b16 %v3826, %v3823
    %v3902 = vpack.c.b16 %v3827, %v3824
    %v3903 = vpack.c.b16 %v3828, %v3825
    %v3904 = vpack.c.b16 %v3832, %v3829
    %v3905 = vpack.c.b16 %v3833, %v3830
    %v3906 = vpack.c.b16 %v3834, %v3831
    %3979 = vmatpush.bf16.msra.mxu0 %v3856
    %3980 = vmatpush.bf16.msra.mxu0 %v3853
    %3981 = vmatpush.bf16.msra.mxu0 %v3850
    %3982 = vmatpush.bf16.msra.mxu0 %v3847
    %3983 = vmatpush.bf16.msra.mxu0 %v3844
    %3984 = vmatpush.bf16.msra.mxu0 %v3841
    %3985 = vmatpush.bf16.msra.mxu0 %v3838
    %3986 = vmatpush.bf16.msra.mxu0 %v3835
    %3987 = vmatmul.bf16.gmra.mxu0 %v3592
    %v3988 = vpop.f32.mrf.mxu0
    %v3989 = vadd.f32 0.0, %v3988
    %v3990 = vpop.f32.mrf.mxu0
    %v3991 = vadd.f32 0.0, %v3990
    %3992 = vdwg.mxu0
    %3993 = vmatpush.bf16.msra.mxu0 %v3880
    %3994 = vmatpush.bf16.msra.mxu0 %v3877
    %3995 = vmatpush.bf16.msra.mxu0 %v3874
    %3996 = vmatpush.bf16.msra.mxu0 %v3871
    %3997 = vmatpush.bf16.msra.mxu0 %v3868
    %3998 = vmatpush.bf16.msra.mxu0 %v3865
    %3999 = vmatpush.bf16.msra.mxu0 %v3862
    %4000 = vmatpush.bf16.msra.mxu0 %v3859
    %4001 = vmatmul.bf16.gmra.mxu0 %v3593
    %v4002 = vpop.f32.mrf.mxu0
    %v4003 = vadd.f32 %v3989, %v4002
    %v4004 = vpop.f32.mrf.mxu0
    %v4005 = vadd.f32 %v3991, %v4004
    %4006 = vdwg.mxu0
    %4007 = vmatpush.bf16.msra.mxu0 %v3904
    %4008 = vmatpush.bf16.msra.mxu0 %v3901
    %4009 = vmatpush.bf16.msra.mxu0 %v3898
    %4010 = vmatpush.bf16.msra.mxu0 %v3895
    %4011 = vmatpush.bf16.msra.mxu0 %v3892
    %4012 = vmatpush.bf16.msra.mxu0 %v3889
    %4013 = vmatpush.bf16.msra.mxu0 %v3886
    %4014 = vmatpush.bf16.msra.mxu0 %v3883
    %4015 = vmatmul.bf16.gmra.mxu0 %v3594
    %v4016 = vpop.f32.mrf.mxu0
    %v4017 = vadd.f32 %v4003, %v4016
    %v4018 = vpop.f32.mrf.mxu0
    %v4019 = vadd.f32 %v4005, %v4018
    %4020 = vdwg.mxu0
    %4021 = vmatpush.bf16.msra.mxu0 %v3857
    %4022 = vmatpush.bf16.msra.mxu0 %v3854
    %4023 = vmatpush.bf16.msra.mxu0 %v3851
    %4024 = vmatpush.bf16.msra.mxu0 %v3848
    %4025 = vmatpush.bf16.msra.mxu0 %v3845
    %4026 = vmatpush.bf16.msra.mxu0 %v3842
    %4027 = vmatpush.bf16.msra.mxu0 %v3839
    %4028 = vmatpush.bf16.msra.mxu0 %v3836
    %4029 = vmatmul.bf16.gmra.mxu0 %v3592
    %v4030 = vpop.f32.mrf.mxu0
    %v4031 = vadd.f32 0.0, %v4030
    %v4032 = vpop.f32.mrf.mxu0
    %v4033 = vadd.f32 0.0, %v4032
    %4034 = vdwg.mxu0
    %4035 = vmatpush.bf16.msra.mxu0 %v3881
    %4036 = vmatpush.bf16.msra.mxu0 %v3878
    %4037 = vmatpush.bf16.msra.mxu0 %v3875
    %4038 = vmatpush.bf16.msra.mxu0 %v3872
    %4039 = vmatpush.bf16.msra.mxu0 %v3869
    %4040 = vmatpush.bf16.msra.mxu0 %v3866
    %4041 = vmatpush.bf16.msra.mxu0 %v3863
    %4042 = vmatpush.bf16.msra.mxu0 %v3860
    %4043 = vmatmul.bf16.gmra.mxu0 %v3593
    %v4044 = vpop.f32.mrf.mxu0
    %v4045 = vadd.f32 %v4031, %v4044
    %v4046 = vpop.f32.mrf.mxu0
    %v4047 = vadd.f32 %v4033, %v4046
    %4048 = vdwg.mxu0
    %4049 = vmatpush.bf16.msra.mxu0 %v3905
    %4050 = vmatpush.bf16.msra.mxu0 %v3902
    %4051 = vmatpush.bf16.msra.mxu0 %v3899
    %4052 = vmatpush.bf16.msra.mxu0 %v3896
    %4053 = vmatpush.bf16.msra.mxu0 %v3893
    %4054 = vmatpush.bf16.msra.mxu0 %v3890
    %4055 = vmatpush.bf16.msra.mxu0 %v3887
    %4056 = vmatpush.bf16.msra.mxu0 %v3884
    %4057 = vmatmul.bf16.gmra.mxu0 %v3594
    %v4058 = vpop.f32.mrf.mxu0
    %v4059 = vadd.f32 %v4045, %v4058
    %v4060 = vpop.f32.mrf.mxu0
    %v4061 = vadd.f32 %v4047, %v4060
    %4062 = vdwg.mxu0
    %4063 = vmatpush.bf16.msra.mxu0 %v3858
    %4064 = vmatpush.bf16.msra.mxu0 %v3855
    %4065 = vmatpush.bf16.msra.mxu0 %v3852
    %4066 = vmatpush.bf16.msra.mxu0 %v3849
    %4067 = vmatpush.bf16.msra.mxu0 %v3846
    %4068 = vmatpush.bf16.msra.mxu0 %v3843
    %4069 = vmatpush.bf16.msra.mxu0 %v3840
    %4070 = vmatpush.bf16.msra.mxu0 %v3837
    %4071 = vmatmul.bf16.gmra.mxu0 %v3592
    %v4072 = vpop.f32.mrf.mxu0
    %v4073 = vadd.f32 0.0, %v4072
    %v4074 = vpop.f32.mrf.mxu0
    %v4075 = vadd.f32 0.0, %v4074
    %4076 = vdwg.mxu0
    %4077 = vmatpush.bf16.msra.mxu0 %v3882
    %4078 = vmatpush.bf16.msra.mxu0 %v3879
    %4079 = vmatpush.bf16.msra.mxu0 %v3876
    %4080 = vmatpush.bf16.msra.mxu0 %v3873
    %4081 = vmatpush.bf16.msra.mxu0 %v3870
    %4082 = vmatpush.bf16.msra.mxu0 %v3867
    %4083 = vmatpush.bf16.msra.mxu0 %v3864
    %4084 = vmatpush.bf16.msra.mxu0 %v3861
    %4085 = vmatmul.bf16.gmra.mxu0 %v3593
    %v4086 = vpop.f32.mrf.mxu0
    %v4087 = vadd.f32 %v4073, %v4086
    %v4088 = vpop.f32.mrf.mxu0
    %v4089 = vadd.f32 %v4075, %v4088
    %4090 = vdwg.mxu0
    %4091 = vmatpush.bf16.msra.mxu0 %v3906
    %4092 = vmatpush.bf16.msra.mxu0 %v3903
    %4093 = vmatpush.bf16.msra.mxu0 %v3900
    %4094 = vmatpush.bf16.msra.mxu0 %v3897
    %4095 = vmatpush.bf16.msra.mxu0 %v3894
    %4096 = vmatpush.bf16.msra.mxu0 %v3891
    %4097 = vmatpush.bf16.msra.mxu0 %v3888
    %4098 = vmatpush.bf16.msra.mxu0 %v3885
    %4099 = vmatmul.bf16.gmra.mxu0 %v3594
    %v4100 = vpop.f32.mrf.mxu0
    %v4101 = vadd.f32 %v4087, %v4100
    %v4102 = vpop.f32.mrf.mxu0
    %v4103 = vadd.f32 %v4089, %v4102
    %4104 = vdwg.mxu0
    %v4105 = vadd.f32 %v1903, %v4017
    %v4106 = vadd.f32 %v1945, %v4059
    %v4107 = vadd.f32 %v1987, %v4101
    %v4108 = vadd.f32 %v1905, %v4019
    %v4109 = vadd.f32 %v1947, %v4061
    %v4110 = vadd.f32 %v1989, %v4103
    %v4111 = vmul.f32 %v2693, %v2693
    %v4112 = vmul.f32 %v2694, %v2694
    %v4113 = vmul.f32 %v2695, %v2695
    %v4114 = vmul.f32 %v2696, %v2696
    %v4115 = vmul.f32 %v2697, %v2697
    %v4116 = vmul.f32 %v2698, %v2698
    %v4117 = vadd.f32 %v4111, %v4112
    %v4118 = vadd.f32 %v4117, %v4113
    %4119 = vadd.xlane.f32.xlu0 %v4118
    %v4120 = vpop.xlane.xlu0 %4119
    %v4121 = vadd.f32 %v4114, %v4115
    %v4122 = vadd.f32 %v4121, %v4116
    %4123 = vadd.xlane.f32.xlu0 %v4122
    %v4124 = vpop.xlane.xlu0 %4123
    %v4125 = vmul.f32 %v4120, 0.057735026
    %v4126 = vmul.f32 %v4124, 0.057735026
    %v4127 = vmul.f32 %v2693, %v3399
    %v4128 = vmul.f32 %v2694, %v3400
    %v4129 = vmul.f32 %v2695, %v3401
    %v4130 = vmul.f32 %v2696, %v3402
    %v4131 = vmul.f32 %v2697, %v3403
    %v4132 = vmul.f32 %v2698, %v3404
    %v4133 = vadd.f32 %v4127, %v4128
    %v4134 = vadd.f32 %v4133, %v4129
    %4135 = vadd.xlane.f32.xlu0 %v4134
    %v4136 = vpop.xlane.xlu0 %4135
    %v4137 = vadd.f32 %v4130, %v4131
    %v4138 = vadd.f32 %v4137, %v4132
    %4139 = vadd.xlane.f32.xlu0 %v4138
    %v4140 = vpop.xlane.xlu0 %4139
    %v4141 = vmul.f32 %v4136, 0.057735026
    %v4142 = vmul.f32 %v4140, 0.057735026
    %v4143 = vmul.f32 %v2693, %v4105
    %v4144 = vmul.f32 %v2694, %v4106
    %v4145 = vmul.f32 %v2695, %v4107
    %v4146 = vmul.f32 %v2696, %v4108
    %v4147 = vmul.f32 %v2697, %v4109
    %v4148 = vmul.f32 %v2698, %v4110
    %v4149 = vadd.f32 %v4143, %v4144
    %v4150 = vadd.f32 %v4149, %v4145
    %4151 = vadd.xlane.f32.xlu0 %v4150
    %v4152 = vpop.xlane.xlu0 %4151
    %v4153 = vadd.f32 %v4146, %v4147
    %v4154 = vadd.f32 %v4153, %v4148
    %4155 = vadd.xlane.f32.xlu0 %v4154
    %v4156 = vpop.xlane.xlu0 %4155
    %v4157 = vmul.f32 %v4152, 0.057735026
    %v4158 = vmul.f32 %v4156, 0.057735026
    %v4159 = vmul.f32 %v3399, %v3399
    %v4160 = vmul.f32 %v3400, %v3400
    %v4161 = vmul.f32 %v3401, %v3401
    %v4162 = vmul.f32 %v3402, %v3402
    %v4163 = vmul.f32 %v3403, %v3403
    %v4164 = vmul.f32 %v3404, %v3404
    %v4165 = vadd.f32 %v4159, %v4160
    %v4166 = vadd.f32 %v4165, %v4161
    %4167 = vadd.xlane.f32.xlu0 %v4166
    %v4168 = vpop.xlane.xlu0 %4167
    %v4169 = vadd.f32 %v4162, %v4163
    %v4170 = vadd.f32 %v4169, %v4164
    %4171 = vadd.xlane.f32.xlu0 %v4170
    %v4172 = vpop.xlane.xlu0 %4171
    %v4173 = vmul.f32 %v4168, 0.057735026
    %v4174 = vmul.f32 %v4172, 0.057735026
    %v4175 = vmul.f32 %v3399, %v4105
    %v4176 = vmul.f32 %v3400, %v4106
    %v4177 = vmul.f32 %v3401, %v4107
    %v4178 = vmul.f32 %v3402, %v4108
    %v4179 = vmul.f32 %v3403, %v4109
    %v4180 = vmul.f32 %v3404, %v4110
    %v4181 = vadd.f32 %v4175, %v4176
    %v4182 = vadd.f32 %v4181, %v4177
    %4183 = vadd.xlane.f32.xlu0 %v4182
    %v4184 = vpop.xlane.xlu0 %4183
    %v4185 = vadd.f32 %v4178, %v4179
    %v4186 = vadd.f32 %v4185, %v4180
    %4187 = vadd.xlane.f32.xlu0 %v4186
    %v4188 = vpop.xlane.xlu0 %4187
    %v4189 = vmul.f32 %v4184, 0.057735026
    %v4190 = vmul.f32 %v4188, 0.057735026
    %v4191 = vmul.f32 %v4105, %v4105
    %v4192 = vmul.f32 %v4106, %v4106
    %v4193 = vmul.f32 %v4107, %v4107
    %v4194 = vmul.f32 %v4108, %v4108
    %v4195 = vmul.f32 %v4109, %v4109
    %v4196 = vmul.f32 %v4110, %v4110
    %v4197 = vadd.f32 %v4191, %v4192
    %v4198 = vadd.f32 %v4197, %v4193
    %4199 = vadd.xlane.f32.xlu0 %v4198
    %v4200 = vpop.xlane.xlu0 %4199
    %v4201 = vadd.f32 %v4194, %v4195
    %v4202 = vadd.f32 %v4201, %v4196
    %4203 = vadd.xlane.f32.xlu0 %v4202
    %v4204 = vpop.xlane.xlu0 %4203
    %v4205 = vmul.f32 %v4200, 0.057735026
    %v4206 = vmul.f32 %v4204, 0.057735026
    %v4207 = vmax.f32 %v4125, %v4141
    %v4208 = vmax.f32 %v4126, %v4142
    %v4209 = vmax.f32 %v4207, %v4157
    %v4210 = vmax.f32 %v4208, %v4158
    %v4211 = vsub.f32 %v4125, %v4209
    %v4212 = vsub.f32 %v4126, %v4210
    %v4213 = vmul.f32 %v4211, 1.442695
    %v4214 = vpow.pop %v4213
    %v4215 = vmul.f32 %v4212, 1.442695
    %v4216 = vpow.pop %v4215
    %v4217 = vsub.f32 %v4141, %v4209
    %v4218 = vsub.f32 %v4142, %v4210
    %v4219 = vmul.f32 %v4217, 1.442695
    %v4220 = vpow.pop %v4219
    %v4221 = vmul.f32 %v4218, 1.442695
    %v4222 = vpow.pop %v4221
    %v4223 = vsub.f32 %v4157, %v4209
    %v4224 = vsub.f32 %v4158, %v4210
    %v4225 = vmul.f32 %v4223, 1.442695
    %v4226 = vpow.pop %v4225
    %v4227 = vmul.f32 %v4224, 1.442695
    %v4228 = vpow.pop %v4227
    %v4229 = vadd.f32 %v4214, %v4220
    %v4230 = vadd.f32 %v4216, %v4222
    %v4231 = vadd.f32 %v4229, %v4226
    %v4232 = vadd.f32 %v4230, %v4228
    %v4233 = vrcp.pop %v4231
    %v4234 = vrcp.pop %v4232
    %v4235 = vmul.f32 %v4214, %v4233
    %v4236 = vmul.f32 %v4216, %v4234
    %v4237 = vmul.f32 %v4235, %v2693
    %v4238 = vmul.f32 %v4235, %v2694
    %v4239 = vmul.f32 %v4235, %v2695
    %v4240 = vmul.f32 %v4236, %v2696
    %v4241 = vmul.f32 %v4236, %v2697
    %v4242 = vmul.f32 %v4236, %v2698
    %v4243 = vmul.f32 %v4220, %v4233
    %v4244 = vmul.f32 %v4222, %v4234
    %v4245 = vmul.f32 %v4243, %v3399
    %v4246 = vmul.f32 %v4243, %v3400
    %v4247 = vmul.f32 %v4243, %v3401
    %v4248 = vmul.f32 %v4244, %v3402
    %v4249 = vmul.f32 %v4244, %v3403
    %v4250 = vmul.f32 %v4244, %v3404
    %v4251 = vadd.f32 %v4237, %v4245
    %v4252 = vadd.f32 %v4238, %v4246
    %v4253 = vadd.f32 %v4239, %v4247
    %v4254 = vadd.f32 %v4240, %v4248
    %v4255 = vadd.f32 %v4241, %v4249
    %v4256 = vadd.f32 %v4242, %v4250
    %v4257 = vmul.f32 %v4226, %v4233
    %v4258 = vmul.f32 %v4228, %v4234
    %v4259 = vmul.f32 %v4257, %v4105
    %v4260 = vmul.f32 %v4257, %v4106
    %v4261 = vmul.f32 %v4257, %v4107
    %v4262 = vmul.f32 %v4258, %v4108
    %v4263 = vmul.f32 %v4258, %v4109
    %v4264 = vmul.f32 %v4258, %v4110
    %v4265 = vadd.f32 %v4251, %v4259
    %v4266 = vadd.f32 %v4252, %v4260
    %v4267 = vadd.f32 %v4253, %v4261
    %v4268 = vadd.f32 %v4254, %v4262
    %v4269 = vadd.f32 %v4255, %v4263
    %v4270 = vadd.f32 %v4256, %v4264
    %v4271 = vmax.f32 %v4141, %v4173
    %v4272 = vmax.f32 %v4142, %v4174
    %v4273 = vmax.f32 %v4271, %v4189
    %v4274 = vmax.f32 %v4272, %v4190
    %v4275 = vsub.f32 %v4141, %v4273
    %v4276 = vsub.f32 %v4142, %v4274
    %v4277 = vmul.f32 %v4275, 1.442695
    %v4278 = vpow.pop %v4277
    %v4279 = vmul.f32 %v4276, 1.442695
    %v4280 = vpow.pop %v4279
    %v4281 = vsub.f32 %v4173, %v4273
    %v4282 = vsub.f32 %v4174, %v4274
    %v4283 = vmul.f32 %v4281, 1.442695
    %v4284 = vpow.pop %v4283
    %v4285 = vmul.f32 %v4282, 1.442695
    %v4286 = vpow.pop %v4285
    %v4287 = vsub.f32 %v4189, %v4273
    %v4288 = vsub.f32 %v4190, %v4274
    %v4289 = vmul.f32 %v4287, 1.442695
    %v4290 = vpow.pop %v4289
    %v4291 = vmul.f32 %v4288, 1.442695
    %v4292 = vpow.pop %v4291
    %v4293 = vadd.f32 %v4278, %v4284
    %v4294 = vadd.f32 %v4280, %v4286
    %v4295 = vadd.f32 %v4293, %v4290
    %v4296 = vadd.f32 %v4294, %v4292
    %v4297 = vrcp.pop %v4295
    %v4298 = vrcp.pop %v4296
    %v4299 = vmul.f32 %v4278, %v4297
    %v4300 = vmul.f32 %v4280, %v4298
    %v4301 = vmul.f32 %v4299, %v2693
    %v4302 = vmul.f32 %v4299, %v2694
    %v4303 = vmul.f32 %v4299, %v2695
    %v4304 = vmul.f32 %v4300, %v2696
    %v4305 = vmul.f32 %v4300, %v2697
    %v4306 = vmul.f32 %v4300, %v2698
    %v4307 = vmul.f32 %v4284, %v4297
    %v4308 = vmul.f32 %v4286, %v4298
    %v4309 = vmul.f32 %v4307, %v3399
    %v4310 = vmul.f32 %v4307, %v3400
    %v4311 = vmul.f32 %v4307, %v3401
    %v4312 = vmul.f32 %v4308, %v3402
    %v4313 = vmul.f32 %v4308, %v3403
    %v4314 = vmul.f32 %v4308, %v3404
    %v4315 = vadd.f32 %v4301, %v4309
    %v4316 = vadd.f32 %v4302, %v4310
    %v4317 = vadd.f32 %v4303, %v4311
    %v4318 = vadd.f32 %v4304, %v4312
    %v4319 = vadd.f32 %v4305, %v4313
    %v4320 = vadd.f32 %v4306, %v4314
    %v4321 = vmul.f32 %v4290, %v4297
    %v4322 = vmul.f32 %v4292, %v4298
    %v4323 = vmul.f32 %v4321, %v4105
    %v4324 = vmul.f32 %v4321, %v4106
    %v4325 = vmul.f32 %v4321, %v4107
    %v4326 = vmul.f32 %v4322, %v4108
    %v4327 = vmul.f32 %v4322, %v4109
    %v4328 = vmul.f32 %v4322, %v4110
    %v4329 = vadd.f32 %v4315, %v4323
    %v4330 = vadd.f32 %v4316, %v4324
    %v4331 = vadd.f32 %v4317, %v4325
    %v4332 = vadd.f32 %v4318, %v4326
    %v4333 = vadd.f32 %v4319, %v4327
    %v4334 = vadd.f32 %v4320, %v4328
    %v4335 = vadd.f32 %v4265, %v4329
    %v4336 = vadd.f32 %v4266, %v4330
    %v4337 = vadd.f32 %v4267, %v4331
    %v4338 = vadd.f32 %v4268, %v4332
    %v4339 = vadd.f32 %v4269, %v4333
    %v4340 = vadd.f32 %v4270, %v4334
    %v4341 = vmax.f32 %v4157, %v4189
    %v4342 = vmax.f32 %v4158, %v4190
    %v4343 = vmax.f32 %v4341, %v4205
    %v4344 = vmax.f32 %v4342, %v4206
    %v4345 = vsub.f32 %v4157, %v4343
    %v4346 = vsub.f32 %v4158, %v4344
    %v4347 = vmul.f32 %v4345, 1.442695
    %v4348 = vpow.pop %v4347
    %v4349 = vmul.f32 %v4346, 1.442695
    %v4350 = vpow.pop %v4349
    %v4351 = vsub.f32 %v4189, %v4343
    %v4352 = vsub.f32 %v4190, %v4344
    %v4353 = vmul.f32 %v4351, 1.442695
    %v4354 = vpow.pop %v4353
    %v4355 = vmul.f32 %v4352, 1.442695
    %v4356 = vpow.pop %v4355
    %v4357 = vsub.f32 %v4205, %v4343
    %v4358 = vsub.f32 %v4206, %v4344
    %v4359 = vmul.f32 %v4357, 1.442695
    %v4360 = vpow.pop %v4359
    %v4361 = vmul.f32 %v4358, 1.442695
    %v4362 = vpow.pop %v4361
    %v4363 = vadd.f32 %v4348, %v4354
    %v4364 = vadd.f32 %v4350, %v4356
    %v4365 = vadd.f32 %v4363, %v4360
    %v4366 = vadd.f32 %v4364, %v4362
    %v4367 = vrcp.pop %v4365
    %v4368 = vrcp.pop %v4366
    %v4369 = vmul.f32 %v4348, %v4367
    %v4370 = vmul.f32 %v4350, %v4368
    %v4371 = vmul.f32 %v4369, %v2693
    %v4372 = vmul.f32 %v4369, %v2694
    %v4373 = vmul.f32 %v4369, %v2695
    %v4374 = vmul.f32 %v4370, %v2696
    %v4375 = vmul.f32 %v4370, %v2697
    %v4376 = vmul.f32 %v4370, %v2698
    %v4377 = vmul.f32 %v4354, %v4367
    %v4378 = vmul.f32 %v4356, %v4368
    %v4379 = vmul.f32 %v4377, %v3399
    %v4380 = vmul.f32 %v4377, %v3400
    %v4381 = vmul.f32 %v4377, %v3401
    %v4382 = vmul.f32 %v4378, %v3402
    %v4383 = vmul.f32 %v4378, %v3403
    %v4384 = vmul.f32 %v4378, %v3404
    %v4385 = vadd.f32 %v4371, %v4379
    %v4386 = vadd.f32 %v4372, %v4380
    %v4387 = vadd.f32 %v4373, %v4381
    %v4388 = vadd.f32 %v4374, %v4382
    %v4389 = vadd.f32 %v4375, %v4383
    %v4390 = vadd.f32 %v4376, %v4384
    %v4391 = vmul.f32 %v4360, %v4367
    %v4392 = vmul.f32 %v4362, %v4368
    %v4393 = vmul.f32 %v4391, %v4105
    %v4394 = vmul.f32 %v4391, %v4106
    %v4395 = vmul.f32 %v4391, %v4107
    %v4396 = vmul.f32 %v4392, %v4108
    %v4397 = vmul.f32 %v4392, %v4109
    %v4398 = vmul.f32 %v4392, %v4110
    %v4399 = vadd.f32 %v4385, %v4393
    %v4400 = vadd.f32 %v4386, %v4394
    %v4401 = vadd.f32 %v4387, %v4395
    %v4402 = vadd.f32 %v4388, %v4396
    %v4403 = vadd.f32 %v4389, %v4397
    %v4404 = vadd.f32 %v4390, %v4398
    %v4405 = vadd.f32 %v4335, %v4399
    %v4406 = vadd.f32 %v4336, %v4400
    %v4407 = vadd.f32 %v4337, %v4401
    %v4408 = vadd.f32 %v4338, %v4402
    %v4409 = vadd.f32 %v4339, %v4403
    %v4410 = vadd.f32 %v4340, %v4404
    %v4411 = vmul.f32 %v4405, 0.33333334
    %v4412 = vmul.f32 %v4406, 0.33333334
    %v4413 = vmul.f32 %v4407, 0.33333334
    %v4414 = vmul.f32 %v4408, 0.33333334
    %v4415 = vmul.f32 %v4409, 0.33333334
    %v4416 = vmul.f32 %v4410, 0.33333334
    %v4417 = vadd.f32 %v4411, %v230
    %v4418 = vadd.f32 %v4412, %v231
    %v4419 = vadd.f32 %v4413, %v232
    %v4420 = vadd.f32 %v4414, %v233
    %v4421 = vadd.f32 %v4415, %v234
    %v4422 = vadd.f32 %v4416, %v235
    %v4423 = vld [vmem:[%s12] sm:$0xff]
    %v4424 = vpack.c.bf16 %v4423, %v4423
    %v4425 = vpack.c.bf16 %v4420, %v4417
    %v4426 = vpack.c.bf16 %v4421, %v4418
    %v4427 = vpack.c.bf16 %v4422, %v4419
    %vm4428 = vcmask 130048
    %v4430 = vsel %vm4428, %v4424, 0
    %4432 = vmatpush.bf16.msra.mxu0 0
    %4433 = vmatpush.bf16.msra.mxu0 0
    %4434 = vmatpush.bf16.msra.mxu0 0
    %4435 = vmatpush.bf16.msra.mxu0 0
    %4436 = vmatpush.bf16.msra.mxu0 0
    %4437 = vmatpush.bf16.msra.mxu0 0
    %4438 = vmatpush.bf16.msra.mxu0 0
    %4439 = vmatpush.bf16.msra.mxu0 %v4425
    %4440 = vmatmul.bf16.gmra.mxu0 %v4430
    %v4441 = vpop.f32.mrf.mxu0
    %v4442 = vadd.f32 0.0, %v4441
    %v4443 = vpop.f32.mrf.mxu0
    %4444 = vdwg.mxu0
    %4445 = vmatpush.bf16.msra.mxu0 0
    %4446 = vmatpush.bf16.msra.mxu0 0
    %4447 = vmatpush.bf16.msra.mxu0 0
    %4448 = vmatpush.bf16.msra.mxu0 0
    %4449 = vmatpush.bf16.msra.mxu0 0
    %4450 = vmatpush.bf16.msra.mxu0 0
    %4451 = vmatpush.bf16.msra.mxu0 0
    %4452 = vmatpush.bf16.msra.mxu0 %v4426
    %4453 = vmatmul.bf16.gmra.mxu0 %v4430
    %v4454 = vpop.f32.mrf.mxu0
    %v4455 = vadd.f32 0.0, %v4454
    %v4456 = vpop.f32.mrf.mxu0
    %4457 = vdwg.mxu0
    %4458 = vmatpush.bf16.msra.mxu0 0
    %4459 = vmatpush.bf16.msra.mxu0 0
    %4460 = vmatpush.bf16.msra.mxu0 0
    %4461 = vmatpush.bf16.msra.mxu0 0
    %4462 = vmatpush.bf16.msra.mxu0 0
    %4463 = vmatpush.bf16.msra.mxu0 0
    %4464 = vmatpush.bf16.msra.mxu0 0
    %4465 = vmatpush.bf16.msra.mxu0 %v4427
    %4466 = vmatmul.bf16.gmra.mxu0 %v4430
    %v4467 = vpop.f32.mrf.mxu0
    %v4468 = vadd.f32 0.0, %v4467
    %v4469 = vpop.f32.mrf.mxu0
    %4470 = vdwg.mxu0
    %v4471 = vld [vmem:[#allocation9] sm:$0xff]
    %v4472 = vld [vmem:[#allocation9 + $0x8] sm:$0xf]
    %v4473 = vld [vmem:[#allocation9 + $0xc] sm:$0xff]
    %v4474 = vld [vmem:[#allocation9 + $0x14] sm:$0xf]
    %v4475 = vld [vmem:[#allocation9 + $0x18] sm:$0xff]
    %v4476 = vld [vmem:[#allocation9 + $0x20] sm:$0xf]
    %v4477 = vld [vmem:[#allocation9 + $0x24] sm:$0xff]
    %v4478 = vld [vmem:[#allocation9 + $0x2c] sm:$0xf]
    %v4479 = vld [vmem:[#allocation9 + $0x30] sm:$0xff]
    %v4480 = vld [vmem:[#allocation9 + $0x38] sm:$0xf]
    %v4481 = vld [vmem:[#allocation9 + $0x3c] sm:$0xff]
    %v4482 = vld [vmem:[#allocation9 + $0x44] sm:$0xf]
    %v4483 = vld [vmem:[#allocation9 + $0x48] sm:$0xff]
    %v4484 = vld [vmem:[#allocation9 + $0x50] sm:$0xf]
    %v4485 = vld [vmem:[#allocation9 + $0x54] sm:$0xff]
    %v4486 = vld [vmem:[#allocation9 + $0x5c] sm:$0xf]
    %v4487 = vld [vmem:[#allocation9 + $0x60] sm:$0xff]
    %v4488 = vld [vmem:[#allocation9 + $0x68] sm:$0xf]
    %v4489 = vld [vmem:[#allocation9 + $0x6c] sm:$0xff]
    %v4490 = vld [vmem:[#allocation9 + $0x74] sm:$0xf]
    %v4491 = vld [vmem:[#allocation9 + $0x78] sm:$0xff]
    %v4492 = vld [vmem:[#allocation9 + $0x80] sm:$0xf]
    %v4493 = vld [vmem:[#allocation9 + $0x84] sm:$0xff]
    %v4494 = vld [vmem:[#allocation9 + $0x8c] sm:$0xf]
    %v4495 = vld [vmem:[#allocation9 + $0x90] sm:$0xff]
    %v4496 = vld [vmem:[#allocation9 + $0x98] sm:$0xf]
    %v4497 = vld [vmem:[#allocation9 + $0x9c] sm:$0xff]
    %v4498 = vld [vmem:[#allocation9 + $0xa4] sm:$0xf]
    %v4499 = vld [vmem:[#allocation9 + $0xa8] sm:$0xff]
    %v4500 = vld [vmem:[#allocation9 + $0xb0] sm:$0xf]
    %v4501 = vld [vmem:[#allocation9 + $0xb4] sm:$0xff]
    %v4502 = vld [vmem:[#allocation9 + $0xbc] sm:$0xf]
    %v4503 = vld [vmem:[#allocation9 + $0xc0] sm:$0xff]
    %v4504 = vld [vmem:[#allocation9 + $0xc8] sm:$0xf]
    %v4505 = vld [vmem:[#allocation9 + $0xcc] sm:$0xff]
    %v4506 = vld [vmem:[#allocation9 + $0xd4] sm:$0xf]
    %v4507 = vld [vmem:[#allocation9 + $0xd8] sm:$0xff]
    %v4508 = vld [vmem:[#allocation9 + $0xe0] sm:$0xf]
    %v4509 = vld [vmem:[#allocation9 + $0xe4] sm:$0xff]
    %v4510 = vld [vmem:[#allocation9 + $0xec] sm:$0xf]
    %v4511 = vld [vmem:[#allocation9 + $0xf0] sm:$0xff]
    %v4512 = vld [vmem:[#allocation9 + $0xf8] sm:$0xf]
    %v4513 = vld [vmem:[#allocation9 + $0xfc] sm:$0xff]
    %v4514 = vld [vmem:[#allocation9 + $0x104] sm:$0xf]
    %v4515 = vld [vmem:[#allocation9 + $0x108] sm:$0xff]
    %v4516 = vld [vmem:[#allocation9 + $0x110] sm:$0xf]
    %v4517 = vld [vmem:[#allocation9 + $0x114] sm:$0xff]
    %v4518 = vld [vmem:[#allocation9 + $0x11c] sm:$0xf]
    %v4519 = vld [vmem:[#allocation9 + $0x120] sm:$0xff]
    %v4520 = vld [vmem:[#allocation9 + $0x128] sm:$0xf]
    %v4521 = vld [vmem:[#allocation9 + $0x12c] sm:$0xff]
    %v4522 = vld [vmem:[#allocation9 + $0x134] sm:$0xf]
    %v4523 = vld [vmem:[#allocation9 + $0x138] sm:$0xff]
    %v4524 = vld [vmem:[#allocation9 + $0x140] sm:$0xf]
    %v4525 = vld [vmem:[#allocation9 + $0x144] sm:$0xff]
    %v4526 = vld [vmem:[#allocation9 + $0x14c] sm:$0xf]
    %v4527 = vld [vmem:[#allocation9 + $0x150] sm:$0xff]
    %v4528 = vld [vmem:[#allocation9 + $0x158] sm:$0xf]
    %v4529 = vld [vmem:[#allocation9 + $0x15c] sm:$0xff]
    %v4530 = vld [vmem:[#allocation9 + $0x164] sm:$0xf]
    %v4531 = vld [vmem:[#allocation9 + $0x168] sm:$0xff]
    %v4532 = vld [vmem:[#allocation9 + $0x170] sm:$0xf]
    %v4533 = vld [vmem:[#allocation9 + $0x174] sm:$0xff]
    %v4534 = vld [vmem:[#allocation9 + $0x17c] sm:$0xf]
    %v4535 = vld [vmem:[#allocation9 + $0x180] sm:$0xff]
    %v4536 = vld [vmem:[#allocation9 + $0x188] sm:$0xf]
    %v4537 = vld [vmem:[#allocation9 + $0x18c] sm:$0xff]
    %v4538 = vld [vmem:[#allocation9 + $0x194] sm:$0xf]
    %v4539 = vld [vmem:[#allocation9 + $0x198] sm:$0xff]
    %v4540 = vld [vmem:[#allocation9 + $0x1a0] sm:$0xf]
    %v4541 = vld [vmem:[#allocation9 + $0x1a4] sm:$0xff]
    %v4542 = vld [vmem:[#allocation9 + $0x1ac] sm:$0xf]
    %v4543 = vld [vmem:[#allocation9 + $0x1b0] sm:$0xff]
    %v4544 = vld [vmem:[#allocation9 + $0x1b8] sm:$0xf]
    %v4545 = vld [vmem:[#allocation9 + $0x1bc] sm:$0xff]
    %v4546 = vld [vmem:[#allocation9 + $0x1c4] sm:$0xf]
    %v4547 = vld [vmem:[#allocation9 + $0x1c8] sm:$0xff]
    %v4548 = vld [vmem:[#allocation9 + $0x1d0] sm:$0xf]
    %v4549 = vld [vmem:[#allocation9 + $0x1d4] sm:$0xff]
    %v4550 = vld [vmem:[#allocation9 + $0x1dc] sm:$0xf]
    %v4551 = vld [vmem:[#allocation9 + $0x1e0] sm:$0xff]
    %v4552 = vld [vmem:[#allocation9 + $0x1e8] sm:$0xf]
    %v4553 = vld [vmem:[#allocation9 + $0x1ec] sm:$0xff]
    %v4554 = vld [vmem:[#allocation9 + $0x1f4] sm:$0xf]
    %v4555 = vld [vmem:[#allocation9 + $0x1f8] sm:$0xff]
    %v4556 = vld [vmem:[#allocation9 + $0x200] sm:$0xf]
    %v4557 = vld [vmem:[#allocation9 + $0x204] sm:$0xff]
    %v4558 = vld [vmem:[#allocation9 + $0x20c] sm:$0xf]
    %v4559 = vld [vmem:[#allocation9 + $0x210] sm:$0xff]
    %v4560 = vld [vmem:[#allocation9 + $0x218] sm:$0xf]
    %v4561 = vld [vmem:[#allocation9 + $0x21c] sm:$0xff]
    %v4562 = vld [vmem:[#allocation9 + $0x224] sm:$0xf]
    %v4563 = vld [vmem:[#allocation9 + $0x228] sm:$0xff]
    %v4564 = vld [vmem:[#allocation9 + $0x230] sm:$0xf]
    %v4565 = vld [vmem:[#allocation9 + $0x234] sm:$0xff]
    %v4566 = vld [vmem:[#allocation9 + $0x23c] sm:$0xf]
    %v4567 = vpack.c.bf16 %v4442, %v4442
    %v4568 = vpack.c.bf16 %v4455, %v4455
    %v4569 = vpack.c.bf16 %v4468, %v4468
    %v4570 = vld [vmem:[%s14] sm:$0x7]
    %v4572 = vperm.slane %v4570, 0
    %v4573 = vperm.slane %v4570, 1
    %v4574 = vperm.slane %v4570, 2
    %v4674 = vunpack.c.l.b16 %v4471
    %v4675 = vunpack.c.h.b16 %v4471
    %v4676 = vunpack.c.l.b16 %v4472
    %v4677 = vunpack.c.l.b16 %v4473
    %v4678 = vunpack.c.h.b16 %v4473
    %v4679 = vunpack.c.l.b16 %v4474
    %v4680 = vunpack.c.l.b16 %v4475
    %v4681 = vunpack.c.h.b16 %v4475
    %v4682 = vunpack.c.l.b16 %v4476
    %v4683 = vunpack.c.l.b16 %v4477
    %v4684 = vunpack.c.h.b16 %v4477
    %v4685 = vunpack.c.l.b16 %v4478
    %v4686 = vunpack.c.l.b16 %v4479
    %v4687 = vunpack.c.h.b16 %v4479
    %v4688 = vunpack.c.l.b16 %v4480
    %v4689 = vunpack.c.l.b16 %v4481
    %v4690 = vunpack.c.h.b16 %v4481
    %v4691 = vunpack.c.l.b16 %v4482
    %v4692 = vunpack.c.l.b16 %v4483
    %v4693 = vunpack.c.h.b16 %v4483
    %v4694 = vunpack.c.l.b16 %v4484
    %v4695 = vunpack.c.l.b16 %v4485
    %v4696 = vunpack.c.h.b16 %v4485
    %v4697 = vunpack.c.l.b16 %v4486
    %v4698 = vunpack.c.l.b16 %v4487
    %v4699 = vunpack.c.h.b16 %v4487
    %v4700 = vunpack.c.l.b16 %v4488
    %v4701 = vunpack.c.l.b16 %v4489
    %v4702 = vunpack.c.h.b16 %v4489
    %v4703 = vunpack.c.l.b16 %v4490
    %v4704 = vunpack.c.l.b16 %v4491
    %v4705 = vunpack.c.h.b16 %v4491
    %v4706 = vunpack.c.l.b16 %v4492
    %v4707 = vunpack.c.l.b16 %v4493
    %v4708 = vunpack.c.h.b16 %v4493
    %v4709 = vunpack.c.l.b16 %v4494
    %v4710 = vunpack.c.l.b16 %v4495
    %v4711 = vunpack.c.h.b16 %v4495
    %v4712 = vunpack.c.l.b16 %v4496
    %v4713 = vunpack.c.l.b16 %v4497
    %v4714 = vunpack.c.h.b16 %v4497
    %v4715 = vunpack.c.l.b16 %v4498
    %v4716 = vunpack.c.l.b16 %v4499
    %v4717 = vunpack.c.h.b16 %v4499
    %v4718 = vunpack.c.l.b16 %v4500
    %v4719 = vunpack.c.l.b16 %v4501
    %v4720 = vunpack.c.h.b16 %v4501
    %v4721 = vunpack.c.l.b16 %v4502
    %v4722 = vunpack.c.l.b16 %v4503
    %v4723 = vunpack.c.h.b16 %v4503
    %v4724 = vunpack.c.l.b16 %v4504
    %v4725 = vunpack.c.l.b16 %v4505
    %v4726 = vunpack.c.h.b16 %v4505
    %v4727 = vunpack.c.l.b16 %v4506
    %v4728 = vunpack.c.l.b16 %v4507
    %v4729 = vunpack.c.h.b16 %v4507
    %v4730 = vunpack.c.l.b16 %v4508
    %v4731 = vunpack.c.l.b16 %v4509
    %v4732 = vunpack.c.h.b16 %v4509
    %v4733 = vunpack.c.l.b16 %v4510
    %v4734 = vunpack.c.l.b16 %v4511
    %v4735 = vunpack.c.h.b16 %v4511
    %v4736 = vunpack.c.l.b16 %v4512
    %v4737 = vunpack.c.l.b16 %v4513
    %v4738 = vunpack.c.h.b16 %v4513
    %v4739 = vunpack.c.l.b16 %v4514
    %v4740 = vunpack.c.l.b16 %v4515
    %v4741 = vunpack.c.h.b16 %v4515
    %v4742 = vunpack.c.l.b16 %v4516
    %v4743 = vunpack.c.l.b16 %v4517
    %v4744 = vunpack.c.h.b16 %v4517
    %v4745 = vunpack.c.l.b16 %v4518
    %v4746 = vunpack.c.l.b16 %v4519
    %v4747 = vunpack.c.h.b16 %v4519
    %v4748 = vunpack.c.l.b16 %v4520
    %v4749 = vunpack.c.l.b16 %v4521
    %v4750 = vunpack.c.h.b16 %v4521
    %v4751 = vunpack.c.l.b16 %v4522
    %v4752 = vunpack.c.l.b16 %v4523
    %v4753 = vunpack.c.h.b16 %v4523
    %v4754 = vunpack.c.l.b16 %v4524
    %v4755 = vunpack.c.l.b16 %v4525
    %v4756 = vunpack.c.h.b16 %v4525
    %v4757 = vunpack.c.l.b16 %v4526
    %v4758 = vunpack.c.l.b16 %v4527
    %v4759 = vunpack.c.h.b16 %v4527
    %v4760 = vunpack.c.l.b16 %v4528
    %v4761 = vunpack.c.l.b16 %v4529
    %v4762 = vunpack.c.h.b16 %v4529
    %v4763 = vunpack.c.l.b16 %v4530
    %v4764 = vunpack.c.l.b16 %v4531
    %v4765 = vunpack.c.h.b16 %v4531
    %v4766 = vunpack.c.l.b16 %v4532
    %v4767 = vunpack.c.l.b16 %v4533
    %v4768 = vunpack.c.h.b16 %v4533
    %v4769 = vunpack.c.l.b16 %v4534
    %v4770 = vunpack.c.l.b16 %v4535
    %v4771 = vunpack.c.h.b16 %v4535
    %v4772 = vunpack.c.l.b16 %v4536
    %v4773 = vunpack.c.l.b16 %v4537
    %v4774 = vunpack.c.h.b16 %v4537
    %v4775 = vunpack.c.l.b16 %v4538
    %v4776 = vunpack.c.l.b16 %v4539
    %v4777 = vunpack.c.h.b16 %v4539
    %v4778 = vunpack.c.l.b16 %v4540
    %v4779 = vunpack.c.l.b16 %v4541
    %v4780 = vunpack.c.h.b16 %v4541
    %v4781 = vunpack.c.l.b16 %v4542
    %v4782 = vunpack.c.l.b16 %v4543
    %v4783 = vunpack.c.h.b16 %v4543
    %v4784 = vunpack.c.l.b16 %v4544
    %v4785 = vunpack.c.l.b16 %v4545
    %v4786 = vunpack.c.h.b16 %v4545
    %v4787 = vunpack.c.l.b16 %v4546
    %v4788 = vunpack.c.l.b16 %v4547
    %v4789 = vunpack.c.h.b16 %v4547
    %v4790 = vunpack.c.l.b16 %v4548
    %v4791 = vunpack.c.l.b16 %v4549
    %v4792 = vunpack.c.h.b16 %v4549
    %v4793 = vunpack.c.l.b16 %v4550
    %v4794 = vunpack.c.l.b16 %v4551
    %v4795 = vunpack.c.h.b16 %v4551
    %v4796 = vunpack.c.l.b16 %v4552
    %v4797 = vunpack.c.l.b16 %v4553
    %v4798 = vunpack.c.h.b16 %v4553
    %v4799 = vunpack.c.l.b16 %v4554
    %v4800 = vunpack.c.l.b16 %v4555
    %v4801 = vunpack.c.h.b16 %v4555
    %v4802 = vunpack.c.l.b16 %v4556
    %v4803 = vunpack.c.l.b16 %v4557
    %v4804 = vunpack.c.h.b16 %v4557
    %v4805 = vunpack.c.l.b16 %v4558
    %v4806 = vunpack.c.l.b16 %v4559
    %v4807 = vunpack.c.h.b16 %v4559
    %v4808 = vunpack.c.l.b16 %v4560
    %v4809 = vunpack.c.l.b16 %v4561
    %v4810 = vunpack.c.h.b16 %v4561
    %v4811 = vunpack.c.l.b16 %v4562
    %v4812 = vunpack.c.l.b16 %v4563
    %v4813 = vunpack.c.h.b16 %v4563
    %v4814 = vunpack.c.l.b16 %v4564
    %v4815 = vunpack.c.l.b16 %v4565
    %v4816 = vunpack.c.h.b16 %v4565
    %v4817 = vunpack.c.l.b16 %v4566
    %v4818 = vpack.c.b16 %v4677, %v4674
    %v4819 = vpack.c.b16 %v4678, %v4675
    %v4820 = vpack.c.b16 %v4679, %v4676
    %v4821 = vpack.c.b16 %v4683, %v4680
    %v4822 = vpack.c.b16 %v4684, %v4681
    %v4823 = vpack.c.b16 %v4685, %v4682
    %v4824 = vpack.c.b16 %v4689, %v4686
    %v4825 = vpack.c.b16 %v4690, %v4687
    %v4826 = vpack.c.b16 %v4691, %v4688
    %v4827 = vpack.c.b16 %v4695, %v4692
    %v4828 = vpack.c.b16 %v4696, %v4693
    %v4829 = vpack.c.b16 %v4697, %v4694
    %v4830 = vpack.c.b16 %v4701, %v4698
    %v4831 = vpack.c.b16 %v4702, %v4699
    %v4832 = vpack.c.b16 %v4703, %v4700
    %v4833 = vpack.c.b16 %v4707, %v4704
    %v4834 = vpack.c.b16 %v4708, %v4705
    %v4835 = vpack.c.b16 %v4709, %v4706
    %v4836 = vpack.c.b16 %v4713, %v4710
    %v4837 = vpack.c.b16 %v4714, %v4711
    %v4838 = vpack.c.b16 %v4715, %v4712
    %v4839 = vpack.c.b16 %v4719, %v4716
    %v4840 = vpack.c.b16 %v4720, %v4717
    %v4841 = vpack.c.b16 %v4721, %v4718
    %v4842 = vpack.c.b16 %v4725, %v4722
    %v4843 = vpack.c.b16 %v4726, %v4723
    %v4844 = vpack.c.b16 %v4727, %v4724
    %v4845 = vpack.c.b16 %v4731, %v4728
    %v4846 = vpack.c.b16 %v4732, %v4729
    %v4847 = vpack.c.b16 %v4733, %v4730
    %v4848 = vpack.c.b16 %v4737, %v4734
    %v4849 = vpack.c.b16 %v4738, %v4735
    %v4850 = vpack.c.b16 %v4739, %v4736
    %v4851 = vpack.c.b16 %v4743, %v4740
    %v4852 = vpack.c.b16 %v4744, %v4741
    %v4853 = vpack.c.b16 %v4745, %v4742
    %v4854 = vpack.c.b16 %v4749, %v4746
    %v4855 = vpack.c.b16 %v4750, %v4747
    %v4856 = vpack.c.b16 %v4751, %v4748
    %v4857 = vpack.c.b16 %v4755, %v4752
    %v4858 = vpack.c.b16 %v4756, %v4753
    %v4859 = vpack.c.b16 %v4757, %v4754
    %v4860 = vpack.c.b16 %v4761, %v4758
    %v4861 = vpack.c.b16 %v4762, %v4759
    %v4862 = vpack.c.b16 %v4763, %v4760
    %v4863 = vpack.c.b16 %v4767, %v4764
    %v4864 = vpack.c.b16 %v4768, %v4765
    %v4865 = vpack.c.b16 %v4769, %v4766
    %v4866 = vpack.c.b16 %v4773, %v4770
    %v4867 = vpack.c.b16 %v4774, %v4771
    %v4868 = vpack.c.b16 %v4775, %v4772
    %v4869 = vpack.c.b16 %v4779, %v4776
    %v4870 = vpack.c.b16 %v4780, %v4777
    %v4871 = vpack.c.b16 %v4781, %v4778
    %v4872 = vpack.c.b16 %v4785, %v4782
    %v4873 = vpack.c.b16 %v4786, %v4783
    %v4874 = vpack.c.b16 %v4787, %v4784
    %v4875 = vpack.c.b16 %v4791, %v4788
    %v4876 = vpack.c.b16 %v4792, %v4789
    %v4877 = vpack.c.b16 %v4793, %v4790
    %v4878 = vpack.c.b16 %v4797, %v4794
    %v4879 = vpack.c.b16 %v4798, %v4795
    %v4880 = vpack.c.b16 %v4799, %v4796
    %v4881 = vpack.c.b16 %v4803, %v4800
    %v4882 = vpack.c.b16 %v4804, %v4801
    %v4883 = vpack.c.b16 %v4805, %v4802
    %v4884 = vpack.c.b16 %v4809, %v4806
    %v4885 = vpack.c.b16 %v4810, %v4807
    %v4886 = vpack.c.b16 %v4811, %v4808
    %v4887 = vpack.c.b16 %v4815, %v4812
    %v4888 = vpack.c.b16 %v4816, %v4813
    %v4889 = vpack.c.b16 %v4817, %v4814
    %4962 = vmatpush.bf16.msra.mxu0 %v4839
    %4963 = vmatpush.bf16.msra.mxu0 %v4836
    %4964 = vmatpush.bf16.msra.mxu0 %v4833
    %4965 = vmatpush.bf16.msra.mxu0 %v4830
    %4966 = vmatpush.bf16.msra.mxu0 %v4827
    %4967 = vmatpush.bf16.msra.mxu0 %v4824
    %4968 = vmatpush.bf16.msra.mxu0 %v4821
    %4969 = vmatpush.bf16.msra.mxu0 %v4818
    %4970 = vmatmul.bf16.gmra.mxu0 %v4567
    %v4971 = vpop.f32.mrf.mxu0
    %v4972 = vadd.f32 %v4572, %v4971
    %v4973 = vpop.f32.mrf.mxu0
    %4974 = vdwg.mxu0
    %4975 = vmatpush.bf16.msra.mxu0 %v4863
    %4976 = vmatpush.bf16.msra.mxu0 %v4860
    %4977 = vmatpush.bf16.msra.mxu0 %v4857
    %4978 = vmatpush.bf16.msra.mxu0 %v4854
    %4979 = vmatpush.bf16.msra.mxu0 %v4851
    %4980 = vmatpush.bf16.msra.mxu0 %v4848
    %4981 = vmatpush.bf16.msra.mxu0 %v4845
    %4982 = vmatpush.bf16.msra.mxu0 %v4842
    %4983 = vmatmul.bf16.gmra.mxu0 %v4568
    %v4984 = vpop.f32.mrf.mxu0
    %v4985 = vadd.f32 %v4972, %v4984
    %v4986 = vpop.f32.mrf.mxu0
    %4987 = vdwg.mxu0
    %4988 = vmatpush.bf16.msra.mxu0 %v4887
    %4989 = vmatpush.bf16.msra.mxu0 %v4884
    %4990 = vmatpush.bf16.msra.mxu0 %v4881
    %4991 = vmatpush.bf16.msra.mxu0 %v4878
    %4992 = vmatpush.bf16.msra.mxu0 %v4875
    %4993 = vmatpush.bf16.msra.mxu0 %v4872
    %4994 = vmatpush.bf16.msra.mxu0 %v4869
    %4995 = vmatpush.bf16.msra.mxu0 %v4866
    %4996 = vmatmul.bf16.gmra.mxu0 %v4569
    %v4997 = vpop.f32.mrf.mxu0
    %v4998 = vadd.f32 %v4985, %v4997
    %v4999 = vpop.f32.mrf.mxu0
    %5000 = vdwg.mxu0
    %5001 = vmatpush.bf16.msra.mxu0 %v4840
    %5002 = vmatpush.bf16.msra.mxu0 %v4837
    %5003 = vmatpush.bf16.msra.mxu0 %v4834
    %5004 = vmatpush.bf16.msra.mxu0 %v4831
    %5005 = vmatpush.bf16.msra.mxu0 %v4828
    %5006 = vmatpush.bf16.msra.mxu0 %v4825
    %5007 = vmatpush.bf16.msra.mxu0 %v4822
    %5008 = vmatpush.bf16.msra.mxu0 %v4819
    %5009 = vmatmul.bf16.gmra.mxu0 %v4567
    %v5010 = vpop.f32.mrf.mxu0
    %v5011 = vadd.f32 %v4573, %v5010
    %v5012 = vpop.f32.mrf.mxu0
    %5013 = vdwg.mxu0
    %5014 = vmatpush.bf16.msra.mxu0 %v4864
    %5015 = vmatpush.bf16.msra.mxu0 %v4861
    %5016 = vmatpush.bf16.msra.mxu0 %v4858
    %5017 = vmatpush.bf16.msra.mxu0 %v4855
    %5018 = vmatpush.bf16.msra.mxu0 %v4852
    %5019 = vmatpush.bf16.msra.mxu0 %v4849
    %5020 = vmatpush.bf16.msra.mxu0 %v4846
    %5021 = vmatpush.bf16.msra.mxu0 %v4843
    %5022 = vmatmul.bf16.gmra.mxu0 %v4568
    %v5023 = vpop.f32.mrf.mxu0
    %v5024 = vadd.f32 %v5011, %v5023
    %v5025 = vpop.f32.mrf.mxu0
    %5026 = vdwg.mxu0
    %5027 = vmatpush.bf16.msra.mxu0 %v4888
    %5028 = vmatpush.bf16.msra.mxu0 %v4885
    %5029 = vmatpush.bf16.msra.mxu0 %v4882
    %5030 = vmatpush.bf16.msra.mxu0 %v4879
    %5031 = vmatpush.bf16.msra.mxu0 %v4876
    %5032 = vmatpush.bf16.msra.mxu0 %v4873
    %5033 = vmatpush.bf16.msra.mxu0 %v4870
    %5034 = vmatpush.bf16.msra.mxu0 %v4867
    %5035 = vmatmul.bf16.gmra.mxu0 %v4569
    %v5036 = vpop.f32.mrf.mxu0
    %v5037 = vadd.f32 %v5024, %v5036
    %v5038 = vpop.f32.mrf.mxu0
    %5039 = vdwg.mxu0
    %5040 = vmatpush.bf16.msra.mxu0 %v4841
    %5041 = vmatpush.bf16.msra.mxu0 %v4838
    %5042 = vmatpush.bf16.msra.mxu0 %v4835
    %5043 = vmatpush.bf16.msra.mxu0 %v4832
    %5044 = vmatpush.bf16.msra.mxu0 %v4829
    %5045 = vmatpush.bf16.msra.mxu0 %v4826
    %5046 = vmatpush.bf16.msra.mxu0 %v4823
    %5047 = vmatpush.bf16.msra.mxu0 %v4820
    %5048 = vmatmul.bf16.gmra.mxu0 %v4567
    %v5049 = vpop.f32.mrf.mxu0
    %v5050 = vadd.f32 %v4574, %v5049
    %v5051 = vpop.f32.mrf.mxu0
    %5052 = vdwg.mxu0
    %5053 = vmatpush.bf16.msra.mxu0 %v4865
    %5054 = vmatpush.bf16.msra.mxu0 %v4862
    %5055 = vmatpush.bf16.msra.mxu0 %v4859
    %5056 = vmatpush.bf16.msra.mxu0 %v4856
    %5057 = vmatpush.bf16.msra.mxu0 %v4853
    %5058 = vmatpush.bf16.msra.mxu0 %v4850
    %5059 = vmatpush.bf16.msra.mxu0 %v4847
    %5060 = vmatpush.bf16.msra.mxu0 %v4844
    %5061 = vmatmul.bf16.gmra.mxu0 %v4568
    %v5062 = vpop.f32.mrf.mxu0
    %v5063 = vadd.f32 %v5050, %v5062
    %v5064 = vpop.f32.mrf.mxu0
    %5065 = vdwg.mxu0
    %5066 = vmatpush.bf16.msra.mxu0 %v4889
    %5067 = vmatpush.bf16.msra.mxu0 %v4886
    %5068 = vmatpush.bf16.msra.mxu0 %v4883
    %5069 = vmatpush.bf16.msra.mxu0 %v4880
    %5070 = vmatpush.bf16.msra.mxu0 %v4877
    %5071 = vmatpush.bf16.msra.mxu0 %v4874
    %5072 = vmatpush.bf16.msra.mxu0 %v4871
    %5073 = vmatpush.bf16.msra.mxu0 %v4868
    %5074 = vmatmul.bf16.gmra.mxu0 %v4569
    %v5075 = vpop.f32.mrf.mxu0
    %v5076 = vadd.f32 %v5063, %v5075
    %v5077 = vpop.f32.mrf.mxu0
    %5078 = vdwg.mxu0
    %v5079 = vld [vmem:[#allocation10] sm:$0xff]
    %v5080 = vld [vmem:[#allocation10 + $0x8] sm:$0xff]
    %v5081 = vld [vmem:[#allocation10 + $0x10] sm:$0xff]
    %v5082 = vld [vmem:[#allocation10 + $0x18] sm:$0xff]
    %v5083 = vld [vmem:[#allocation10 + $0x20] sm:$0xf]
    %v5084 = vld [vmem:[#allocation10 + $0x24] sm:$0xff]
    %v5085 = vld [vmem:[#allocation10 + $0x2c] sm:$0xff]
    %v5086 = vld [vmem:[#allocation10 + $0x34] sm:$0xff]
    %v5087 = vld [vmem:[#allocation10 + $0x3c] sm:$0xff]
    %v5088 = vld [vmem:[#allocation10 + $0x44] sm:$0xf]
    %v5089 = vld [vmem:[#allocation10 + $0x48] sm:$0xff]
    %v5090 = vld [vmem:[#allocation10 + $0x50] sm:$0xff]
    %v5091 = vld [vmem:[#allocation10 + $0x58] sm:$0xff]
    %v5092 = vld [vmem:[#allocation10 + $0x60] sm:$0xff]
    %v5093 = vld [vmem:[#allocation10 + $0x68] sm:$0xf]
    %v5094 = vld [vmem:[#allocation10 + $0x6c] sm:$0xff]
    %v5095 = vld [vmem:[#allocation10 + $0x74] sm:$0xff]
    %v5096 = vld [vmem:[#allocation10 + $0x7c] sm:$0xff]
    %v5097 = vld [vmem:[#allocation10 + $0x84] sm:$0xff]
    %v5098 = vld [vmem:[#allocation10 + $0x8c] sm:$0xf]
    %v5099 = vld [vmem:[#allocation10 + $0x90] sm:$0xff]
    %v5100 = vld [vmem:[#allocation10 + $0x98] sm:$0xff]
    %v5101 = vld [vmem:[#allocation10 + $0xa0] sm:$0xff]
    %v5102 = vld [vmem:[#allocation10 + $0xa8] sm:$0xff]
    %v5103 = vld [vmem:[#allocation10 + $0xb0] sm:$0xf]
    %v5104 = vld [vmem:[#allocation10 + $0xb4] sm:$0xff]
    %v5105 = vld [vmem:[#allocation10 + $0xbc] sm:$0xff]
    %v5106 = vld [vmem:[#allocation10 + $0xc4] sm:$0xff]
    %v5107 = vld [vmem:[#allocation10 + $0xcc] sm:$0xff]
    %v5108 = vld [vmem:[#allocation10 + $0xd4] sm:$0xf]
    %v5109 = vld [vmem:[#allocation10 + $0xd8] sm:$0xff]
    %v5110 = vld [vmem:[#allocation10 + $0xe0] sm:$0xff]
    %v5111 = vld [vmem:[#allocation10 + $0xe8] sm:$0xff]
    %v5112 = vld [vmem:[#allocation10 + $0xf0] sm:$0xff]
    %v5113 = vld [vmem:[#allocation10 + $0xf8] sm:$0xf]
    %v5114 = vld [vmem:[#allocation10 + $0xfc] sm:$0xff]
    %v5115 = vld [vmem:[#allocation10 + $0x104] sm:$0xff]
    %v5116 = vld [vmem:[#allocation10 + $0x10c] sm:$0xff]
    %v5117 = vld [vmem:[#allocation10 + $0x114] sm:$0xff]
    %v5118 = vld [vmem:[#allocation10 + $0x11c] sm:$0xf]
    %v5119 = vld [vmem:[#allocation10 + $0x120] sm:$0xff]
    %v5120 = vld [vmem:[#allocation10 + $0x128] sm:$0xff]
    %v5121 = vld [vmem:[#allocation10 + $0x130] sm:$0xff]
    %v5122 = vld [vmem:[#allocation10 + $0x138] sm:$0xff]
    %v5123 = vld [vmem:[#allocation10 + $0x140] sm:$0xf]
    %v5124 = vld [vmem:[#allocation10 + $0x144] sm:$0xff]
    %v5125 = vld [vmem:[#allocation10 + $0x14c] sm:$0xff]
    %v5126 = vld [vmem:[#allocation10 + $0x154] sm:$0xff]
    %v5127 = vld [vmem:[#allocation10 + $0x15c] sm:$0xff]
    %v5128 = vld [vmem:[#allocation10 + $0x164] sm:$0xf]
    %v5129 = vld [vmem:[#allocation10 + $0x168] sm:$0xff]
    %v5130 = vld [vmem:[#allocation10 + $0x170] sm:$0xff]
    %v5131 = vld [vmem:[#allocation10 + $0x178] sm:$0xff]
    %v5132 = vld [vmem:[#allocation10 + $0x180] sm:$0xff]
    %v5133 = vld [vmem:[#allocation10 + $0x188] sm:$0xf]
    %v5134 = vld [vmem:[#allocation10 + $0x18c] sm:$0xff]
    %v5135 = vld [vmem:[#allocation10 + $0x194] sm:$0xff]
    %v5136 = vld [vmem:[#allocation10 + $0x19c] sm:$0xff]
    %v5137 = vld [vmem:[#allocation10 + $0x1a4] sm:$0xff]
    %v5138 = vld [vmem:[#allocation10 + $0x1ac] sm:$0xf]
    %v5139 = vld [vmem:[#allocation10 + $0x1b0] sm:$0xff]
    %v5140 = vld [vmem:[#allocation10 + $0x1b8] sm:$0xff]
    %v5141 = vld [vmem:[#allocation10 + $0x1c0] sm:$0xff]
    %v5142 = vld [vmem:[#allocation10 + $0x1c8] sm:$0xff]
    %v5143 = vld [vmem:[#allocation10 + $0x1d0] sm:$0xf]
    %v5144 = vld [vmem:[#allocation10 + $0x1d4] sm:$0xff]
    %v5145 = vld [vmem:[#allocation10 + $0x1dc] sm:$0xff]
    %v5146 = vld [vmem:[#allocation10 + $0x1e4] sm:$0xff]
    %v5147 = vld [vmem:[#allocation10 + $0x1ec] sm:$0xff]
    %v5148 = vld [vmem:[#allocation10 + $0x1f4] sm:$0xf]
    %v5149 = vld [vmem:[#allocation10 + $0x1f8] sm:$0xff]
    %v5150 = vld [vmem:[#allocation10 + $0x200] sm:$0xff]
    %v5151 = vld [vmem:[#allocation10 + $0x208] sm:$0xff]
    %v5152 = vld [vmem:[#allocation10 + $0x210] sm:$0xff]
    %v5153 = vld [vmem:[#allocation10 + $0x218] sm:$0xf]
    %v5154 = vld [vmem:[#allocation10 + $0x21c] sm:$0xff]
    %v5155 = vld [vmem:[#allocation10 + $0x224] sm:$0xff]
    %v5156 = vld [vmem:[#allocation10 + $0x22c] sm:$0xff]
    %v5157 = vld [vmem:[#allocation10 + $0x234] sm:$0xff]
    %v5158 = vld [vmem:[#allocation10 + $0x23c] sm:$0xf]
    %v5159 = vld [vmem:[#allocation10 + $0x240] sm:$0xff]
    %v5160 = vld [vmem:[#allocation10 + $0x248] sm:$0xff]
    %v5161 = vld [vmem:[#allocation10 + $0x250] sm:$0xff]
    %v5162 = vld [vmem:[#allocation10 + $0x258] sm:$0xff]
    %v5163 = vld [vmem:[#allocation10 + $0x260] sm:$0xf]
    %v5164 = vld [vmem:[#allocation10 + $0x264] sm:$0xff]
    %v5165 = vld [vmem:[#allocation10 + $0x26c] sm:$0xff]
    %v5166 = vld [vmem:[#allocation10 + $0x274] sm:$0xff]
    %v5167 = vld [vmem:[#allocation10 + $0x27c] sm:$0xff]
    %v5168 = vld [vmem:[#allocation10 + $0x284] sm:$0xf]
    %v5169 = vld [vmem:[#allocation10 + $0x288] sm:$0xff]
    %v5170 = vld [vmem:[#allocation10 + $0x290] sm:$0xff]
    %v5171 = vld [vmem:[#allocation10 + $0x298] sm:$0xff]
    %v5172 = vld [vmem:[#allocation10 + $0x2a0] sm:$0xff]
    %v5173 = vld [vmem:[#allocation10 + $0x2a8] sm:$0xf]
    %v5174 = vld [vmem:[#allocation10 + $0x2ac] sm:$0xff]
    %v5175 = vld [vmem:[#allocation10 + $0x2b4] sm:$0xff]
    %v5176 = vld [vmem:[#allocation10 + $0x2bc] sm:$0xff]
    %v5177 = vld [vmem:[#allocation10 + $0x2c4] sm:$0xff]
    %v5178 = vld [vmem:[#allocation10 + $0x2cc] sm:$0xf]
    %v5179 = vld [vmem:[#allocation10 + $0x2d0] sm:$0xff]
    %v5180 = vld [vmem:[#allocation10 + $0x2d8] sm:$0xff]
    %v5181 = vld [vmem:[#allocation10 + $0x2e0] sm:$0xff]
    %v5182 = vld [vmem:[#allocation10 + $0x2e8] sm:$0xff]
    %v5183 = vld [vmem:[#allocation10 + $0x2f0] sm:$0xf]
    %v5184 = vld [vmem:[#allocation10 + $0x2f4] sm:$0xff]
    %v5185 = vld [vmem:[#allocation10 + $0x2fc] sm:$0xff]
    %v5186 = vld [vmem:[#allocation10 + $0x304] sm:$0xff]
    %v5187 = vld [vmem:[#allocation10 + $0x30c] sm:$0xff]
    %v5188 = vld [vmem:[#allocation10 + $0x314] sm:$0xf]
    %v5189 = vld [vmem:[#allocation10 + $0x318] sm:$0xff]
    %v5190 = vld [vmem:[#allocation10 + $0x320] sm:$0xff]
    %v5191 = vld [vmem:[#allocation10 + $0x328] sm:$0xff]
    %v5192 = vld [vmem:[#allocation10 + $0x330] sm:$0xff]
    %v5193 = vld [vmem:[#allocation10 + $0x338] sm:$0xf]
    %v5194 = vld [vmem:[#allocation10 + $0x33c] sm:$0xff]
    %v5195 = vld [vmem:[#allocation10 + $0x344] sm:$0xff]
    %v5196 = vld [vmem:[#allocation10 + $0x34c] sm:$0xff]
    %v5197 = vld [vmem:[#allocation10 + $0x354] sm:$0xff]
    %v5198 = vld [vmem:[#allocation10 + $0x35c] sm:$0xf]
    %v5199 = vld [vmem:[#allocation10 + $0x360] sm:$0xff]
    %v5200 = vld [vmem:[#allocation10 + $0x368] sm:$0xff]
    %v5201 = vld [vmem:[#allocation10 + $0x370] sm:$0xff]
    %v5202 = vld [vmem:[#allocation10 + $0x378] sm:$0xff]
    %v5203 = vld [vmem:[#allocation10 + $0x380] sm:$0xf]
    %v5204 = vld [vmem:[#allocation10 + $0x384] sm:$0xff]
    %v5205 = vld [vmem:[#allocation10 + $0x38c] sm:$0xff]
    %v5206 = vld [vmem:[#allocation10 + $0x394] sm:$0xff]
    %v5207 = vld [vmem:[#allocation10 + $0x39c] sm:$0xff]
    %v5208 = vld [vmem:[#allocation10 + $0x3a4] sm:$0xf]
    %v5209 = vld [vmem:[#allocation10 + $0x3a8] sm:$0xff]
    %v5210 = vld [vmem:[#allocation10 + $0x3b0] sm:$0xff]
    %v5211 = vld [vmem:[#allocation10 + $0x3b8] sm:$0xff]
    %v5212 = vld [vmem:[#allocation10 + $0x3c0] sm:$0xff]
    %v5213 = vld [vmem:[#allocation10 + $0x3c8] sm:$0xf]
    %v5214 = vld [vmem:[#allocation10 + $0x3cc] sm:$0xff]
    %v5215 = vld [vmem:[#allocation10 + $0x3d4] sm:$0xff]
    %v5216 = vld [vmem:[#allocation10 + $0x3dc] sm:$0xff]
    %v5217 = vld [vmem:[#allocation10 + $0x3e4] sm:$0xff]
    %v5218 = vld [vmem:[#allocation10 + $0x3ec] sm:$0xf]
    %v5219 = vld [vmem:[#allocation10 + $0x3f0] sm:$0xff]
    %v5220 = vld [vmem:[#allocation10 + $0x3f8] sm:$0xff]
    %v5221 = vld [vmem:[#allocation10 + $0x400] sm:$0xff]
    %v5222 = vld [vmem:[#allocation10 + $0x408] sm:$0xff]
    %v5223 = vld [vmem:[#allocation10 + $0x410] sm:$0xf]
    %v5224 = vld [vmem:[#allocation10 + $0x414] sm:$0xff]
    %v5225 = vld [vmem:[#allocation10 + $0x41c] sm:$0xff]
    %v5226 = vld [vmem:[#allocation10 + $0x424] sm:$0xff]
    %v5227 = vld [vmem:[#allocation10 + $0x42c] sm:$0xff]
    %v5228 = vld [vmem:[#allocation10 + $0x434] sm:$0xf]
    %v5229 = vld [vmem:[#allocation10 + $0x438] sm:$0xff]
    %v5230 = vld [vmem:[#allocation10 + $0x440] sm:$0xff]
    %v5231 = vld [vmem:[#allocation10 + $0x448] sm:$0xff]
    %v5232 = vld [vmem:[#allocation10 + $0x450] sm:$0xff]
    %v5233 = vld [vmem:[#allocation10 + $0x458] sm:$0xf]
    %v5234 = vld [vmem:[#allocation10 + $0x45c] sm:$0xff]
    %v5235 = vld [vmem:[#allocation10 + $0x464] sm:$0xff]
    %v5236 = vld [vmem:[#allocation10 + $0x46c] sm:$0xff]
    %v5237 = vld [vmem:[#allocation10 + $0x474] sm:$0xff]
    %v5238 = vld [vmem:[#allocation10 + $0x47c] sm:$0xf]
    %v5239 = vld [vmem:[#allocation10 + $0x480] sm:$0xff]
    %v5240 = vld [vmem:[#allocation10 + $0x488] sm:$0xff]
    %v5241 = vld [vmem:[#allocation10 + $0x490] sm:$0xff]
    %v5242 = vld [vmem:[#allocation10 + $0x498] sm:$0xff]
    %v5243 = vld [vmem:[#allocation10 + $0x4a0] sm:$0xf]
    %v5244 = vld [vmem:[#allocation10 + $0x4a4] sm:$0xff]
    %v5245 = vld [vmem:[#allocation10 + $0x4ac] sm:$0xff]
    %v5246 = vld [vmem:[#allocation10 + $0x4b4] sm:$0xff]
    %v5247 = vld [vmem:[#allocation10 + $0x4bc] sm:$0xff]
    %v5248 = vld [vmem:[#allocation10 + $0x4c4] sm:$0xf]
    %v5249 = vld [vmem:[#allocation10 + $0x4c8] sm:$0xff]
    %v5250 = vld [vmem:[#allocation10 + $0x4d0] sm:$0xff]
    %v5251 = vld [vmem:[#allocation10 + $0x4d8] sm:$0xff]
    %v5252 = vld [vmem:[#allocation10 + $0x4e0] sm:$0xff]
    %v5253 = vld [vmem:[#allocation10 + $0x4e8] sm:$0xf]
    %v5254 = vld [vmem:[#allocation10 + $0x4ec] sm:$0xff]
    %v5255 = vld [vmem:[#allocation10 + $0x4f4] sm:$0xff]
    %v5256 = vld [vmem:[#allocation10 + $0x4fc] sm:$0xff]
    %v5257 = vld [vmem:[#allocation10 + $0x504] sm:$0xff]
    %v5258 = vld [vmem:[#allocation10 + $0x50c] sm:$0xf]
    %v5259 = vld [vmem:[#allocation10 + $0x510] sm:$0xff]
    %v5260 = vld [vmem:[#allocation10 + $0x518] sm:$0xff]
    %v5261 = vld [vmem:[#allocation10 + $0x520] sm:$0xff]
    %v5262 = vld [vmem:[#allocation10 + $0x528] sm:$0xff]
    %v5263 = vld [vmem:[#allocation10 + $0x530] sm:$0xf]
    %v5264 = vld [vmem:[#allocation10 + $0x534] sm:$0xff]
    %v5265 = vld [vmem:[#allocation10 + $0x53c] sm:$0xff]
    %v5266 = vld [vmem:[#allocation10 + $0x544] sm:$0xff]
    %v5267 = vld [vmem:[#allocation10 + $0x54c] sm:$0xff]
    %v5268 = vld [vmem:[#allocation10 + $0x554] sm:$0xf]
    %v5269 = vld [vmem:[#allocation10 + $0x558] sm:$0xff]
    %v5270 = vld [vmem:[#allocation10 + $0x560] sm:$0xff]
    %v5271 = vld [vmem:[#allocation10 + $0x568] sm:$0xff]
    %v5272 = vld [vmem:[#allocation10 + $0x570] sm:$0xff]
    %v5273 = vld [vmem:[#allocation10 + $0x578] sm:$0xf]
    %v5274 = vld [vmem:[#allocation10 + $0x57c] sm:$0xff]
    %v5275 = vld [vmem:[#allocation10 + $0x584] sm:$0xff]
    %v5276 = vld [vmem:[#allocation10 + $0x58c] sm:$0xff]
    %v5277 = vld [vmem:[#allocation10 + $0x594] sm:$0xff]
    %v5278 = vld [vmem:[#allocation10 + $0x59c] sm:$0xf]
    %v5279 = vld [vmem:[#allocation10 + $0x5a0] sm:$0xff]
    %v5280 = vld [vmem:[#allocation10 + $0x5a8] sm:$0xff]
    %v5281 = vld [vmem:[#allocation10 + $0x5b0] sm:$0xff]
    %v5282 = vld [vmem:[#allocation10 + $0x5b8] sm:$0xff]
    %v5283 = vld [vmem:[#allocation10 + $0x5c0] sm:$0xf]
    %v5284 = vld [vmem:[#allocation10 + $0x5c4] sm:$0xff]
    %v5285 = vld [vmem:[#allocation10 + $0x5cc] sm:$0xff]
    %v5286 = vld [vmem:[#allocation10 + $0x5d4] sm:$0xff]
    %v5287 = vld [vmem:[#allocation10 + $0x5dc] sm:$0xff]
    %v5288 = vld [vmem:[#allocation10 + $0x5e4] sm:$0xf]
    %v5289 = vld [vmem:[#allocation10 + $0x5e8] sm:$0xff]
    %v5290 = vld [vmem:[#allocation10 + $0x5f0] sm:$0xff]
    %v5291 = vld [vmem:[#allocation10 + $0x5f8] sm:$0xff]
    %v5292 = vld [vmem:[#allocation10 + $0x600] sm:$0xff]
    %v5293 = vld [vmem:[#allocation10 + $0x608] sm:$0xf]
    %v5294 = vld [vmem:[#allocation10 + $0x60c] sm:$0xff]
    %v5295 = vld [vmem:[#allocation10 + $0x614] sm:$0xff]
    %v5296 = vld [vmem:[#allocation10 + $0x61c] sm:$0xff]
    %v5297 = vld [vmem:[#allocation10 + $0x624] sm:$0xff]
    %v5298 = vld [vmem:[#allocation10 + $0x62c] sm:$0xf]
    %v5299 = vld [vmem:[#allocation10 + $0x630] sm:$0xff]
    %v5300 = vld [vmem:[#allocation10 + $0x638] sm:$0xff]
    %v5301 = vld [vmem:[#allocation10 + $0x640] sm:$0xff]
    %v5302 = vld [vmem:[#allocation10 + $0x648] sm:$0xff]
    %v5303 = vld [vmem:[#allocation10 + $0x650] sm:$0xf]
    %v5304 = vld [vmem:[#allocation10 + $0x654] sm:$0xff]
    %v5305 = vld [vmem:[#allocation10 + $0x65c] sm:$0xff]
    %v5306 = vld [vmem:[#allocation10 + $0x664] sm:$0xff]
    %v5307 = vld [vmem:[#allocation10 + $0x66c] sm:$0xff]
    %v5308 = vld [vmem:[#allocation10 + $0x674] sm:$0xf]
    %v5309 = vld [vmem:[#allocation10 + $0x678] sm:$0xff]
    %v5310 = vld [vmem:[#allocation10 + $0x680] sm:$0xff]
    %v5311 = vld [vmem:[#allocation10 + $0x688] sm:$0xff]
    %v5312 = vld [vmem:[#allocation10 + $0x690] sm:$0xff]
    %v5313 = vld [vmem:[#allocation10 + $0x698] sm:$0xf]
    %v5314 = vld [vmem:[#allocation10 + $0x69c] sm:$0xff]
    %v5315 = vld [vmem:[#allocation10 + $0x6a4] sm:$0xff]
    %v5316 = vld [vmem:[#allocation10 + $0x6ac] sm:$0xff]
    %v5317 = vld [vmem:[#allocation10 + $0x6b4] sm:$0xff]
    %v5318 = vld [vmem:[#allocation10 + $0x6bc] sm:$0xf]
    %v5319 = vpack.c.bf16 %v4998, %v4998
    %v5320 = vpack.c.bf16 %v5037, %v5037
    %v5321 = vpack.c.bf16 %v5076, %v5076
    %v5322 = vperm.slane %v227, 1
    %v5323 = vperm.slane %v227, 3
    %v5324 = vperm.slane %v227, 5
    %v5325 = vperm.slane %v227, 7
    %v5326 = vperm.slane %v228, 1
    %v5327 = vperm.slane %v228, 3
    %v5328 = vperm.slane %v228, 5
    %v5329 = vperm.slane %v228, 7
    %v5330 = vperm.slane %v229, 1
    %v5340 = vperm.slane %v5322, 1
    %v5341 = vperm.slane %v5323, 1
    %v5342 = vperm.slane %v5324, 1
    %v5343 = vperm.slane %v5325, 1
    %v5344 = vperm.slane %v5326, 1
    %v5345 = vperm.slane %v5327, 1
    %v5346 = vperm.slane %v5328, 1
    %v5347 = vperm.slane %v5329, 1
    %v5348 = vperm.slane %v5330, 1
    %v5589 = vunpack.c.l.b16 %v5079
    %v5590 = vunpack.c.h.b16 %v5079
    %v5591 = vunpack.c.l.b16 %v5080
    %v5592 = vunpack.c.h.b16 %v5080
    %v5593 = vunpack.c.l.b16 %v5081
    %v5594 = vunpack.c.h.b16 %v5081
    %v5595 = vunpack.c.l.b16 %v5082
    %v5596 = vunpack.c.h.b16 %v5082
    %v5597 = vunpack.c.l.b16 %v5083
    %v5598 = vunpack.c.l.b16 %v5084
    %v5599 = vunpack.c.h.b16 %v5084
    %v5600 = vunpack.c.l.b16 %v5085
    %v5601 = vunpack.c.h.b16 %v5085
    %v5602 = vunpack.c.l.b16 %v5086
    %v5603 = vunpack.c.h.b16 %v5086
    %v5604 = vunpack.c.l.b16 %v5087
    %v5605 = vunpack.c.h.b16 %v5087
    %v5606 = vunpack.c.l.b16 %v5088
    %v5607 = vunpack.c.l.b16 %v5089
    %v5608 = vunpack.c.h.b16 %v5089
    %v5609 = vunpack.c.l.b16 %v5090
    %v5610 = vunpack.c.h.b16 %v5090
    %v5611 = vunpack.c.l.b16 %v5091
    %v5612 = vunpack.c.h.b16 %v5091
    %v5613 = vunpack.c.l.b16 %v5092
    %v5614 = vunpack.c.h.b16 %v5092
    %v5615 = vunpack.c.l.b16 %v5093
    %v5616 = vunpack.c.l.b16 %v5094
    %v5617 = vunpack.c.h.b16 %v5094
    %v5618 = vunpack.c.l.b16 %v5095
    %v5619 = vunpack.c.h.b16 %v5095
    %v5620 = vunpack.c.l.b16 %v5096
    %v5621 = vunpack.c.h.b16 %v5096
    %v5622 = vunpack.c.l.b16 %v5097
    %v5623 = vunpack.c.h.b16 %v5097
    %v5624 = vunpack.c.l.b16 %v5098
    %v5625 = vunpack.c.l.b16 %v5099
    %v5626 = vunpack.c.h.b16 %v5099
    %v5627 = vunpack.c.l.b16 %v5100
    %v5628 = vunpack.c.h.b16 %v5100
    %v5629 = vunpack.c.l.b16 %v5101
    %v5630 = vunpack.c.h.b16 %v5101
    %v5631 = vunpack.c.l.b16 %v5102
    %v5632 = vunpack.c.h.b16 %v5102
    %v5633 = vunpack.c.l.b16 %v5103
    %v5634 = vunpack.c.l.b16 %v5104
    %v5635 = vunpack.c.h.b16 %v5104
    %v5636 = vunpack.c.l.b16 %v5105
    %v5637 = vunpack.c.h.b16 %v5105
    %v5638 = vunpack.c.l.b16 %v5106
    %v5639 = vunpack.c.h.b16 %v5106
    %v5640 = vunpack.c.l.b16 %v5107
    %v5641 = vunpack.c.h.b16 %v5107
    %v5642 = vunpack.c.l.b16 %v5108
    %v5643 = vunpack.c.l.b16 %v5109
    %v5644 = vunpack.c.h.b16 %v5109
    %v5645 = vunpack.c.l.b16 %v5110
    %v5646 = vunpack.c.h.b16 %v5110
    %v5647 = vunpack.c.l.b16 %v5111
    %v5648 = vunpack.c.h.b16 %v5111
    %v5649 = vunpack.c.l.b16 %v5112
    %v5650 = vunpack.c.h.b16 %v5112
    %v5651 = vunpack.c.l.b16 %v5113
    %v5652 = vunpack.c.l.b16 %v5114
    %v5653 = vunpack.c.h.b16 %v5114
    %v5654 = vunpack.c.l.b16 %v5115
    %v5655 = vunpack.c.h.b16 %v5115
    %v5656 = vunpack.c.l.b16 %v5116
    %v5657 = vunpack.c.h.b16 %v5116
    %v5658 = vunpack.c.l.b16 %v5117
    %v5659 = vunpack.c.h.b16 %v5117
    %v5660 = vunpack.c.l.b16 %v5118
    %v5661 = vunpack.c.l.b16 %v5119
    %v5662 = vunpack.c.h.b16 %v5119
    %v5663 = vunpack.c.l.b16 %v5120
    %v5664 = vunpack.c.h.b16 %v5120
    %v5665 = vunpack.c.l.b16 %v5121
    %v5666 = vunpack.c.h.b16 %v5121
    %v5667 = vunpack.c.l.b16 %v5122
    %v5668 = vunpack.c.h.b16 %v5122
    %v5669 = vunpack.c.l.b16 %v5123
    %v5670 = vunpack.c.l.b16 %v5124
    %v5671 = vunpack.c.h.b16 %v5124
    %v5672 = vunpack.c.l.b16 %v5125
    %v5673 = vunpack.c.h.b16 %v5125
    %v5674 = vunpack.c.l.b16 %v5126
    %v5675 = vunpack.c.h.b16 %v5126
    %v5676 = vunpack.c.l.b16 %v5127
    %v5677 = vunpack.c.h.b16 %v5127
    %v5678 = vunpack.c.l.b16 %v5128
    %v5679 = vunpack.c.l.b16 %v5129
    %v5680 = vunpack.c.h.b16 %v5129
    %v5681 = vunpack.c.l.b16 %v5130
    %v5682 = vunpack.c.h.b16 %v5130
    %v5683 = vunpack.c.l.b16 %v5131
    %v5684 = vunpack.c.h.b16 %v5131
    %v5685 = vunpack.c.l.b16 %v5132
    %v5686 = vunpack.c.h.b16 %v5132
    %v5687 = vunpack.c.l.b16 %v5133
    %v5688 = vunpack.c.l.b16 %v5134
    %v5689 = vunpack.c.h.b16 %v5134
    %v5690 = vunpack.c.l.b16 %v5135
    %v5691 = vunpack.c.h.b16 %v5135
    %v5692 = vunpack.c.l.b16 %v5136
    %v5693 = vunpack.c.h.b16 %v5136
    %v5694 = vunpack.c.l.b16 %v5137
    %v5695 = vunpack.c.h.b16 %v5137
    %v5696 = vunpack.c.l.b16 %v5138
    %v5697 = vunpack.c.l.b16 %v5139
    %v5698 = vunpack.c.h.b16 %v5139
    %v5699 = vunpack.c.l.b16 %v5140
    %v5700 = vunpack.c.h.b16 %v5140
    %v5701 = vunpack.c.l.b16 %v5141
    %v5702 = vunpack.c.h.b16 %v5141
    %v5703 = vunpack.c.l.b16 %v5142
    %v5704 = vunpack.c.h.b16 %v5142
    %v5705 = vunpack.c.l.b16 %v5143
    %v5706 = vunpack.c.l.b16 %v5144
    %v5707 = vunpack.c.h.b16 %v5144
    %v5708 = vunpack.c.l.b16 %v5145
    %v5709 = vunpack.c.h.b16 %v5145
    %v5710 = vunpack.c.l.b16 %v5146
    %v5711 = vunpack.c.h.b16 %v5146
    %v5712 = vunpack.c.l.b16 %v5147
    %v5713 = vunpack.c.h.b16 %v5147
    %v5714 = vunpack.c.l.b16 %v5148
    %v5715 = vunpack.c.l.b16 %v5149
    %v5716 = vunpack.c.h.b16 %v5149
    %v5717 = vunpack.c.l.b16 %v5150
    %v5718 = vunpack.c.h.b16 %v5150
    %v5719 = vunpack.c.l.b16 %v5151
    %v5720 = vunpack.c.h.b16 %v5151
    %v5721 = vunpack.c.l.b16 %v5152
    %v5722 = vunpack.c.h.b16 %v5152
    %v5723 = vunpack.c.l.b16 %v5153
    %v5724 = vunpack.c.l.b16 %v5154
    %v5725 = vunpack.c.h.b16 %v5154
    %v5726 = vunpack.c.l.b16 %v5155
    %v5727 = vunpack.c.h.b16 %v5155
    %v5728 = vunpack.c.l.b16 %v5156
    %v5729 = vunpack.c.h.b16 %v5156
    %v5730 = vunpack.c.l.b16 %v5157
    %v5731 = vunpack.c.h.b16 %v5157
    %v5732 = vunpack.c.l.b16 %v5158
    %v5733 = vunpack.c.l.b16 %v5159
    %v5734 = vunpack.c.h.b16 %v5159
    %v5735 = vunpack.c.l.b16 %v5160
    %v5736 = vunpack.c.h.b16 %v5160
    %v5737 = vunpack.c.l.b16 %v5161
    %v5738 = vunpack.c.h.b16 %v5161
    %v5739 = vunpack.c.l.b16 %v5162
    %v5740 = vunpack.c.h.b16 %v5162
    %v5741 = vunpack.c.l.b16 %v5163
    %v5742 = vunpack.c.l.b16 %v5164
    %v5743 = vunpack.c.h.b16 %v5164
    %v5744 = vunpack.c.l.b16 %v5165
    %v5745 = vunpack.c.h.b16 %v5165
    %v5746 = vunpack.c.l.b16 %v5166
    %v5747 = vunpack.c.h.b16 %v5166
    %v5748 = vunpack.c.l.b16 %v5167
    %v5749 = vunpack.c.h.b16 %v5167
    %v5750 = vunpack.c.l.b16 %v5168
    %v5751 = vunpack.c.l.b16 %v5169
    %v5752 = vunpack.c.h.b16 %v5169
    %v5753 = vunpack.c.l.b16 %v5170
    %v5754 = vunpack.c.h.b16 %v5170
    %v5755 = vunpack.c.l.b16 %v5171
    %v5756 = vunpack.c.h.b16 %v5171
    %v5757 = vunpack.c.l.b16 %v5172
    %v5758 = vunpack.c.h.b16 %v5172
    %v5759 = vunpack.c.l.b16 %v5173
    %v5760 = vunpack.c.l.b16 %v5174
    %v5761 = vunpack.c.h.b16 %v5174
    %v5762 = vunpack.c.l.b16 %v5175
    %v5763 = vunpack.c.h.b16 %v5175
    %v5764 = vunpack.c.l.b16 %v5176
    %v5765 = vunpack.c.h.b16 %v5176
    %v5766 = vunpack.c.l.b16 %v5177
    %v5767 = vunpack.c.h.b16 %v5177
    %v5768 = vunpack.c.l.b16 %v5178
    %v5769 = vunpack.c.l.b16 %v5179
    %v5770 = vunpack.c.h.b16 %v5179
    %v5771 = vunpack.c.l.b16 %v5180
    %v5772 = vunpack.c.h.b16 %v5180
    %v5773 = vunpack.c.l.b16 %v5181
    %v5774 = vunpack.c.h.b16 %v5181
    %v5775 = vunpack.c.l.b16 %v5182
    %v5776 = vunpack.c.h.b16 %v5182
    %v5777 = vunpack.c.l.b16 %v5183
    %v5778 = vunpack.c.l.b16 %v5184
    %v5779 = vunpack.c.h.b16 %v5184
    %v5780 = vunpack.c.l.b16 %v5185
    %v5781 = vunpack.c.h.b16 %v5185
    %v5782 = vunpack.c.l.b16 %v5186
    %v5783 = vunpack.c.h.b16 %v5186
    %v5784 = vunpack.c.l.b16 %v5187
    %v5785 = vunpack.c.h.b16 %v5187
    %v5786 = vunpack.c.l.b16 %v5188
    %v5787 = vunpack.c.l.b16 %v5189
    %v5788 = vunpack.c.h.b16 %v5189
    %v5789 = vunpack.c.l.b16 %v5190
    %v5790 = vunpack.c.h.b16 %v5190
    %v5791 = vunpack.c.l.b16 %v5191
    %v5792 = vunpack.c.h.b16 %v5191
    %v5793 = vunpack.c.l.b16 %v5192
    %v5794 = vunpack.c.h.b16 %v5192
    %v5795 = vunpack.c.l.b16 %v5193
    %v5796 = vunpack.c.l.b16 %v5194
    %v5797 = vunpack.c.h.b16 %v5194
    %v5798 = vunpack.c.l.b16 %v5195
    %v5799 = vunpack.c.h.b16 %v5195
    %v5800 = vunpack.c.l.b16 %v5196
    %v5801 = vunpack.c.h.b16 %v5196
    %v5802 = vunpack.c.l.b16 %v5197
    %v5803 = vunpack.c.h.b16 %v5197
    %v5804 = vunpack.c.l.b16 %v5198
    %v5805 = vunpack.c.l.b16 %v5199
    %v5806 = vunpack.c.h.b16 %v5199
    %v5807 = vunpack.c.l.b16 %v5200
    %v5808 = vunpack.c.h.b16 %v5200
    %v5809 = vunpack.c.l.b16 %v5201
    %v5810 = vunpack.c.h.b16 %v5201
    %v5811 = vunpack.c.l.b16 %v5202
    %v5812 = vunpack.c.h.b16 %v5202
    %v5813 = vunpack.c.l.b16 %v5203
    %v5814 = vunpack.c.l.b16 %v5204
    %v5815 = vunpack.c.h.b16 %v5204
    %v5816 = vunpack.c.l.b16 %v5205
    %v5817 = vunpack.c.h.b16 %v5205
    %v5818 = vunpack.c.l.b16 %v5206
    %v5819 = vunpack.c.h.b16 %v5206
    %v5820 = vunpack.c.l.b16 %v5207
    %v5821 = vunpack.c.h.b16 %v5207
    %v5822 = vunpack.c.l.b16 %v5208
    %v5823 = vunpack.c.l.b16 %v5209
    %v5824 = vunpack.c.h.b16 %v5209
    %v5825 = vunpack.c.l.b16 %v5210
    %v5826 = vunpack.c.h.b16 %v5210
    %v5827 = vunpack.c.l.b16 %v5211
    %v5828 = vunpack.c.h.b16 %v5211
    %v5829 = vunpack.c.l.b16 %v5212
    %v5830 = vunpack.c.h.b16 %v5212
    %v5831 = vunpack.c.l.b16 %v5213
    %v5832 = vunpack.c.l.b16 %v5214
    %v5833 = vunpack.c.h.b16 %v5214
    %v5834 = vunpack.c.l.b16 %v5215
    %v5835 = vunpack.c.h.b16 %v5215
    %v5836 = vunpack.c.l.b16 %v5216
    %v5837 = vunpack.c.h.b16 %v5216
    %v5838 = vunpack.c.l.b16 %v5217
    %v5839 = vunpack.c.h.b16 %v5217
    %v5840 = vunpack.c.l.b16 %v5218
    %v5841 = vunpack.c.l.b16 %v5219
    %v5842 = vunpack.c.h.b16 %v5219
    %v5843 = vunpack.c.l.b16 %v5220
    %v5844 = vunpack.c.h.b16 %v5220
    %v5845 = vunpack.c.l.b16 %v5221
    %v5846 = vunpack.c.h.b16 %v5221
    %v5847 = vunpack.c.l.b16 %v5222
    %v5848 = vunpack.c.h.b16 %v5222
    %v5849 = vunpack.c.l.b16 %v5223
    %v5850 = vunpack.c.l.b16 %v5224
    %v5851 = vunpack.c.h.b16 %v5224
    %v5852 = vunpack.c.l.b16 %v5225
    %v5853 = vunpack.c.h.b16 %v5225
    %v5854 = vunpack.c.l.b16 %v5226
    %v5855 = vunpack.c.h.b16 %v5226
    %v5856 = vunpack.c.l.b16 %v5227
    %v5857 = vunpack.c.h.b16 %v5227
    %v5858 = vunpack.c.l.b16 %v5228
    %v5859 = vunpack.c.l.b16 %v5229
    %v5860 = vunpack.c.h.b16 %v5229
    %v5861 = vunpack.c.l.b16 %v5230
    %v5862 = vunpack.c.h.b16 %v5230
    %v5863 = vunpack.c.l.b16 %v5231
    %v5864 = vunpack.c.h.b16 %v5231
    %v5865 = vunpack.c.l.b16 %v5232
    %v5866 = vunpack.c.h.b16 %v5232
    %v5867 = vunpack.c.l.b16 %v5233
    %v5868 = vunpack.c.l.b16 %v5234
    %v5869 = vunpack.c.h.b16 %v5234
    %v5870 = vunpack.c.l.b16 %v5235
    %v5871 = vunpack.c.h.b16 %v5235
    %v5872 = vunpack.c.l.b16 %v5236
    %v5873 = vunpack.c.h.b16 %v5236
    %v5874 = vunpack.c.l.b16 %v5237
    %v5875 = vunpack.c.h.b16 %v5237
    %v5876 = vunpack.c.l.b16 %v5238
    %v5877 = vunpack.c.l.b16 %v5239
    %v5878 = vunpack.c.h.b16 %v5239
    %v5879 = vunpack.c.l.b16 %v5240
    %v5880 = vunpack.c.h.b16 %v5240
    %v5881 = vunpack.c.l.b16 %v5241
    %v5882 = vunpack.c.h.b16 %v5241
    %v5883 = vunpack.c.l.b16 %v5242
    %v5884 = vunpack.c.h.b16 %v5242
    %v5885 = vunpack.c.l.b16 %v5243
    %v5886 = vunpack.c.l.b16 %v5244
    %v5887 = vunpack.c.h.b16 %v5244
    %v5888 = vunpack.c.l.b16 %v5245
    %v5889 = vunpack.c.h.b16 %v5245
    %v5890 = vunpack.c.l.b16 %v5246
    %v5891 = vunpack.c.h.b16 %v5246
    %v5892 = vunpack.c.l.b16 %v5247
    %v5893 = vunpack.c.h.b16 %v5247
    %v5894 = vunpack.c.l.b16 %v5248
    %v5895 = vunpack.c.l.b16 %v5249
    %v5896 = vunpack.c.h.b16 %v5249
    %v5897 = vunpack.c.l.b16 %v5250
    %v5898 = vunpack.c.h.b16 %v5250
    %v5899 = vunpack.c.l.b16 %v5251
    %v5900 = vunpack.c.h.b16 %v5251
    %v5901 = vunpack.c.l.b16 %v5252
    %v5902 = vunpack.c.h.b16 %v5252
    %v5903 = vunpack.c.l.b16 %v5253
    %v5904 = vunpack.c.l.b16 %v5254
    %v5905 = vunpack.c.h.b16 %v5254
    %v5906 = vunpack.c.l.b16 %v5255
    %v5907 = vunpack.c.h.b16 %v5255
    %v5908 = vunpack.c.l.b16 %v5256
    %v5909 = vunpack.c.h.b16 %v5256
    %v5910 = vunpack.c.l.b16 %v5257
    %v5911 = vunpack.c.h.b16 %v5257
    %v5912 = vunpack.c.l.b16 %v5258
    %v5913 = vunpack.c.l.b16 %v5259
    %v5914 = vunpack.c.h.b16 %v5259
    %v5915 = vunpack.c.l.b16 %v5260
    %v5916 = vunpack.c.h.b16 %v5260
    %v5917 = vunpack.c.l.b16 %v5261
    %v5918 = vunpack.c.h.b16 %v5261
    %v5919 = vunpack.c.l.b16 %v5262
    %v5920 = vunpack.c.h.b16 %v5262
    %v5921 = vunpack.c.l.b16 %v5263
    %v5922 = vunpack.c.l.b16 %v5264
    %v5923 = vunpack.c.h.b16 %v5264
    %v5924 = vunpack.c.l.b16 %v5265
    %v5925 = vunpack.c.h.b16 %v5265
    %v5926 = vunpack.c.l.b16 %v5266
    %v5927 = vunpack.c.h.b16 %v5266
    %v5928 = vunpack.c.l.b16 %v5267
    %v5929 = vunpack.c.h.b16 %v5267
    %v5930 = vunpack.c.l.b16 %v5268
    %v5931 = vunpack.c.l.b16 %v5269
    %v5932 = vunpack.c.h.b16 %v5269
    %v5933 = vunpack.c.l.b16 %v5270
    %v5934 = vunpack.c.h.b16 %v5270
    %v5935 = vunpack.c.l.b16 %v5271
    %v5936 = vunpack.c.h.b16 %v5271
    %v5937 = vunpack.c.l.b16 %v5272
    %v5938 = vunpack.c.h.b16 %v5272
    %v5939 = vunpack.c.l.b16 %v5273
    %v5940 = vunpack.c.l.b16 %v5274
    %v5941 = vunpack.c.h.b16 %v5274
    %v5942 = vunpack.c.l.b16 %v5275
    %v5943 = vunpack.c.h.b16 %v5275
    %v5944 = vunpack.c.l.b16 %v5276
    %v5945 = vunpack.c.h.b16 %v5276
    %v5946 = vunpack.c.l.b16 %v5277
    %v5947 = vunpack.c.h.b16 %v5277
    %v5948 = vunpack.c.l.b16 %v5278
    %v5949 = vunpack.c.l.b16 %v5279
    %v5950 = vunpack.c.h.b16 %v5279
    %v5951 = vunpack.c.l.b16 %v5280
    %v5952 = vunpack.c.h.b16 %v5280
    %v5953 = vunpack.c.l.b16 %v5281
    %v5954 = vunpack.c.h.b16 %v5281
    %v5955 = vunpack.c.l.b16 %v5282
    %v5956 = vunpack.c.h.b16 %v5282
    %v5957 = vunpack.c.l.b16 %v5283
    %v5958 = vunpack.c.l.b16 %v5284
    %v5959 = vunpack.c.h.b16 %v5284
    %v5960 = vunpack.c.l.b16 %v5285
    %v5961 = vunpack.c.h.b16 %v5285
    %v5962 = vunpack.c.l.b16 %v5286
    %v5963 = vunpack.c.h.b16 %v5286
    %v5964 = vunpack.c.l.b16 %v5287
    %v5965 = vunpack.c.h.b16 %v5287
    %v5966 = vunpack.c.l.b16 %v5288
    %v5967 = vunpack.c.l.b16 %v5289
    %v5968 = vunpack.c.h.b16 %v5289
    %v5969 = vunpack.c.l.b16 %v5290
    %v5970 = vunpack.c.h.b16 %v5290
    %v5971 = vunpack.c.l.b16 %v5291
    %v5972 = vunpack.c.h.b16 %v5291
    %v5973 = vunpack.c.l.b16 %v5292
    %v5974 = vunpack.c.h.b16 %v5292
    %v5975 = vunpack.c.l.b16 %v5293
    %v5976 = vunpack.c.l.b16 %v5294
    %v5977 = vunpack.c.h.b16 %v5294
    %v5978 = vunpack.c.l.b16 %v5295
    %v5979 = vunpack.c.h.b16 %v5295
    %v5980 = vunpack.c.l.b16 %v5296
    %v5981 = vunpack.c.h.b16 %v5296
    %v5982 = vunpack.c.l.b16 %v5297
    %v5983 = vunpack.c.h.b16 %v5297
    %v5984 = vunpack.c.l.b16 %v5298
    %v5985 = vunpack.c.l.b16 %v5299
    %v5986 = vunpack.c.h.b16 %v5299
    %v5987 = vunpack.c.l.b16 %v5300
    %v5988 = vunpack.c.h.b16 %v5300
    %v5989 = vunpack.c.l.b16 %v5301
    %v5990 = vunpack.c.h.b16 %v5301
    %v5991 = vunpack.c.l.b16 %v5302
    %v5992 = vunpack.c.h.b16 %v5302
    %v5993 = vunpack.c.l.b16 %v5303
    %v5994 = vunpack.c.l.b16 %v5304
    %v5995 = vunpack.c.h.b16 %v5304
    %v5996 = vunpack.c.l.b16 %v5305
    %v5997 = vunpack.c.h.b16 %v5305
    %v5998 = vunpack.c.l.b16 %v5306
    %v5999 = vunpack.c.h.b16 %v5306
    %v6000 = vunpack.c.l.b16 %v5307
    %v6001 = vunpack.c.h.b16 %v5307
    %v6002 = vunpack.c.l.b16 %v5308
    %v6003 = vunpack.c.l.b16 %v5309
    %v6004 = vunpack.c.h.b16 %v5309
    %v6005 = vunpack.c.l.b16 %v5310
    %v6006 = vunpack.c.h.b16 %v5310
    %v6007 = vunpack.c.l.b16 %v5311
    %v6008 = vunpack.c.h.b16 %v5311
    %v6009 = vunpack.c.l.b16 %v5312
    %v6010 = vunpack.c.h.b16 %v5312
    %v6011 = vunpack.c.l.b16 %v5313
    %v6012 = vunpack.c.l.b16 %v5314
    %v6013 = vunpack.c.h.b16 %v5314
    %v6014 = vunpack.c.l.b16 %v5315
    %v6015 = vunpack.c.h.b16 %v5315
    %v6016 = vunpack.c.l.b16 %v5316
    %v6017 = vunpack.c.h.b16 %v5316
    %v6018 = vunpack.c.l.b16 %v5317
    %v6019 = vunpack.c.h.b16 %v5317
    %v6020 = vunpack.c.l.b16 %v5318
    %v6021 = vpack.c.b16 %v5598, %v5589
    %v6022 = vpack.c.b16 %v5599, %v5590
    %v6023 = vpack.c.b16 %v5600, %v5591
    %v6024 = vpack.c.b16 %v5601, %v5592
    %v6025 = vpack.c.b16 %v5602, %v5593
    %v6026 = vpack.c.b16 %v5603, %v5594
    %v6027 = vpack.c.b16 %v5604, %v5595
    %v6028 = vpack.c.b16 %v5605, %v5596
    %v6029 = vpack.c.b16 %v5606, %v5597
    %v6030 = vpack.c.b16 %v5616, %v5607
    %v6031 = vpack.c.b16 %v5617, %v5608
    %v6032 = vpack.c.b16 %v5618, %v5609
    %v6033 = vpack.c.b16 %v5619, %v5610
    %v6034 = vpack.c.b16 %v5620, %v5611
    %v6035 = vpack.c.b16 %v5621, %v5612
    %v6036 = vpack.c.b16 %v5622, %v5613
    %v6037 = vpack.c.b16 %v5623, %v5614
    %v6038 = vpack.c.b16 %v5624, %v5615
    %v6039 = vpack.c.b16 %v5634, %v5625
    %v6040 = vpack.c.b16 %v5635, %v5626
    %v6041 = vpack.c.b16 %v5636, %v5627
    %v6042 = vpack.c.b16 %v5637, %v5628
    %v6043 = vpack.c.b16 %v5638, %v5629
    %v6044 = vpack.c.b16 %v5639, %v5630
    %v6045 = vpack.c.b16 %v5640, %v5631
    %v6046 = vpack.c.b16 %v5641, %v5632
    %v6047 = vpack.c.b16 %v5642, %v5633
    %v6048 = vpack.c.b16 %v5652, %v5643
    %v6049 = vpack.c.b16 %v5653, %v5644
    %v6050 = vpack.c.b16 %v5654, %v5645
    %v6051 = vpack.c.b16 %v5655, %v5646
    %v6052 = vpack.c.b16 %v5656, %v5647
    %v6053 = vpack.c.b16 %v5657, %v5648
    %v6054 = vpack.c.b16 %v5658, %v5649
    %v6055 = vpack.c.b16 %v5659, %v5650
    %v6056 = vpack.c.b16 %v5660, %v5651
    %v6057 = vpack.c.b16 %v5670, %v5661
    %v6058 = vpack.c.b16 %v5671, %v5662
    %v6059 = vpack.c.b16 %v5672, %v5663
    %v6060 = vpack.c.b16 %v5673, %v5664
    %v6061 = vpack.c.b16 %v5674, %v5665
    %v6062 = vpack.c.b16 %v5675, %v5666
    %v6063 = vpack.c.b16 %v5676, %v5667
    %v6064 = vpack.c.b16 %v5677, %v5668
    %v6065 = vpack.c.b16 %v5678, %v5669
    %v6066 = vpack.c.b16 %v5688, %v5679
    %v6067 = vpack.c.b16 %v5689, %v5680
    %v6068 = vpack.c.b16 %v5690, %v5681
    %v6069 = vpack.c.b16 %v5691, %v5682
    %v6070 = vpack.c.b16 %v5692, %v5683
    %v6071 = vpack.c.b16 %v5693, %v5684
    %v6072 = vpack.c.b16 %v5694, %v5685
    %v6073 = vpack.c.b16 %v5695, %v5686
    %v6074 = vpack.c.b16 %v5696, %v5687
    %v6075 = vpack.c.b16 %v5706, %v5697
    %v6076 = vpack.c.b16 %v5707, %v5698
    %v6077 = vpack.c.b16 %v5708, %v5699
    %v6078 = vpack.c.b16 %v5709, %v5700
    %v6079 = vpack.c.b16 %v5710, %v5701
    %v6080 = vpack.c.b16 %v5711, %v5702
    %v6081 = vpack.c.b16 %v5712, %v5703
    %v6082 = vpack.c.b16 %v5713, %v5704
    %v6083 = vpack.c.b16 %v5714, %v5705
    %v6084 = vpack.c.b16 %v5724, %v5715
    %v6085 = vpack.c.b16 %v5725, %v5716
    %v6086 = vpack.c.b16 %v5726, %v5717
    %v6087 = vpack.c.b16 %v5727, %v5718
    %v6088 = vpack.c.b16 %v5728, %v5719
    %v6089 = vpack.c.b16 %v5729, %v5720
    %v6090 = vpack.c.b16 %v5730, %v5721
    %v6091 = vpack.c.b16 %v5731, %v5722
    %v6092 = vpack.c.b16 %v5732, %v5723
    %v6093 = vpack.c.b16 %v5742, %v5733
    %v6094 = vpack.c.b16 %v5743, %v5734
    %v6095 = vpack.c.b16 %v5744, %v5735
    %v6096 = vpack.c.b16 %v5745, %v5736
    %v6097 = vpack.c.b16 %v5746, %v5737
    %v6098 = vpack.c.b16 %v5747, %v5738
    %v6099 = vpack.c.b16 %v5748, %v5739
    %v6100 = vpack.c.b16 %v5749, %v5740
    %v6101 = vpack.c.b16 %v5750, %v5741
    %v6102 = vpack.c.b16 %v5760, %v5751
    %v6103 = vpack.c.b16 %v5761, %v5752
    %v6104 = vpack.c.b16 %v5762, %v5753
    %v6105 = vpack.c.b16 %v5763, %v5754
    %v6106 = vpack.c.b16 %v5764, %v5755
    %v6107 = vpack.c.b16 %v5765, %v5756
    %v6108 = vpack.c.b16 %v5766, %v5757
    %v6109 = vpack.c.b16 %v5767, %v5758
    %v6110 = vpack.c.b16 %v5768, %v5759
    %v6111 = vpack.c.b16 %v5778, %v5769
    %v6112 = vpack.c.b16 %v5779, %v5770
    %v6113 = vpack.c.b16 %v5780, %v5771
    %v6114 = vpack.c.b16 %v5781, %v5772
    %v6115 = vpack.c.b16 %v5782, %v5773
    %v6116 = vpack.c.b16 %v5783, %v5774
    %v6117 = vpack.c.b16 %v5784, %v5775
    %v6118 = vpack.c.b16 %v5785, %v5776
    %v6119 = vpack.c.b16 %v5786, %v5777
    %v6120 = vpack.c.b16 %v5796, %v5787
    %v6121 = vpack.c.b16 %v5797, %v5788
    %v6122 = vpack.c.b16 %v5798, %v5789
    %v6123 = vpack.c.b16 %v5799, %v5790
    %v6124 = vpack.c.b16 %v5800, %v5791
    %v6125 = vpack.c.b16 %v5801, %v5792
    %v6126 = vpack.c.b16 %v5802, %v5793
    %v6127 = vpack.c.b16 %v5803, %v5794
    %v6128 = vpack.c.b16 %v5804, %v5795
    %v6129 = vpack.c.b16 %v5814, %v5805
    %v6130 = vpack.c.b16 %v5815, %v5806
    %v6131 = vpack.c.b16 %v5816, %v5807
    %v6132 = vpack.c.b16 %v5817, %v5808
    %v6133 = vpack.c.b16 %v5818, %v5809
    %v6134 = vpack.c.b16 %v5819, %v5810
    %v6135 = vpack.c.b16 %v5820, %v5811
    %v6136 = vpack.c.b16 %v5821, %v5812
    %v6137 = vpack.c.b16 %v5822, %v5813
    %v6138 = vpack.c.b16 %v5832, %v5823
    %v6139 = vpack.c.b16 %v5833, %v5824
    %v6140 = vpack.c.b16 %v5834, %v5825
    %v6141 = vpack.c.b16 %v5835, %v5826
    %v6142 = vpack.c.b16 %v5836, %v5827
    %v6143 = vpack.c.b16 %v5837, %v5828
    %v6144 = vpack.c.b16 %v5838, %v5829
    %v6145 = vpack.c.b16 %v5839, %v5830
    %v6146 = vpack.c.b16 %v5840, %v5831
    %v6147 = vpack.c.b16 %v5850, %v5841
    %v6148 = vpack.c.b16 %v5851, %v5842
    %v6149 = vpack.c.b16 %v5852, %v5843
    %v6150 = vpack.c.b16 %v5853, %v5844
    %v6151 = vpack.c.b16 %v5854, %v5845
    %v6152 = vpack.c.b16 %v5855, %v5846
    %v6153 = vpack.c.b16 %v5856, %v5847
    %v6154 = vpack.c.b16 %v5857, %v5848
    %v6155 = vpack.c.b16 %v5858, %v5849
    %v6156 = vpack.c.b16 %v5868, %v5859
    %v6157 = vpack.c.b16 %v5869, %v5860
    %v6158 = vpack.c.b16 %v5870, %v5861
    %v6159 = vpack.c.b16 %v5871, %v5862
    %v6160 = vpack.c.b16 %v5872, %v5863
    %v6161 = vpack.c.b16 %v5873, %v5864
    %v6162 = vpack.c.b16 %v5874, %v5865
    %v6163 = vpack.c.b16 %v5875, %v5866
    %v6164 = vpack.c.b16 %v5876, %v5867
    %v6165 = vpack.c.b16 %v5886, %v5877
    %v6166 = vpack.c.b16 %v5887, %v5878
    %v6167 = vpack.c.b16 %v5888, %v5879
    %v6168 = vpack.c.b16 %v5889, %v5880
    %v6169 = vpack.c.b16 %v5890, %v5881
    %v6170 = vpack.c.b16 %v5891, %v5882
    %v6171 = vpack.c.b16 %v5892, %v5883
    %v6172 = vpack.c.b16 %v5893, %v5884
    %v6173 = vpack.c.b16 %v5894, %v5885
    %v6174 = vpack.c.b16 %v5904, %v5895
    %v6175 = vpack.c.b16 %v5905, %v5896
    %v6176 = vpack.c.b16 %v5906, %v5897
    %v6177 = vpack.c.b16 %v5907, %v5898
    %v6178 = vpack.c.b16 %v5908, %v5899
    %v6179 = vpack.c.b16 %v5909, %v5900
    %v6180 = vpack.c.b16 %v5910, %v5901
    %v6181 = vpack.c.b16 %v5911, %v5902
    %v6182 = vpack.c.b16 %v5912, %v5903
    %v6183 = vpack.c.b16 %v5922, %v5913
    %v6184 = vpack.c.b16 %v5923, %v5914
    %v6185 = vpack.c.b16 %v5924, %v5915
    %v6186 = vpack.c.b16 %v5925, %v5916
    %v6187 = vpack.c.b16 %v5926, %v5917
    %v6188 = vpack.c.b16 %v5927, %v5918
    %v6189 = vpack.c.b16 %v5928, %v5919
    %v6190 = vpack.c.b16 %v5929, %v5920
    %v6191 = vpack.c.b16 %v5930, %v5921
    %v6192 = vpack.c.b16 %v5940, %v5931
    %v6193 = vpack.c.b16 %v5941, %v5932
    %v6194 = vpack.c.b16 %v5942, %v5933
    %v6195 = vpack.c.b16 %v5943, %v5934
    %v6196 = vpack.c.b16 %v5944, %v5935
    %v6197 = vpack.c.b16 %v5945, %v5936
    %v6198 = vpack.c.b16 %v5946, %v5937
    %v6199 = vpack.c.b16 %v5947, %v5938
    %v6200 = vpack.c.b16 %v5948, %v5939
    %v6201 = vpack.c.b16 %v5958, %v5949
    %v6202 = vpack.c.b16 %v5959, %v5950
    %v6203 = vpack.c.b16 %v5960, %v5951
    %v6204 = vpack.c.b16 %v5961, %v5952
    %v6205 = vpack.c.b16 %v5962, %v5953
    %v6206 = vpack.c.b16 %v5963, %v5954
    %v6207 = vpack.c.b16 %v5964, %v5955
    %v6208 = vpack.c.b16 %v5965, %v5956
    %v6209 = vpack.c.b16 %v5966, %v5957
    %v6210 = vpack.c.b16 %v5976, %v5967
    %v6211 = vpack.c.b16 %v5977, %v5968
    %v6212 = vpack.c.b16 %v5978, %v5969
    %v6213 = vpack.c.b16 %v5979, %v5970
    %v6214 = vpack.c.b16 %v5980, %v5971
    %v6215 = vpack.c.b16 %v5981, %v5972
    %v6216 = vpack.c.b16 %v5982, %v5973
    %v6217 = vpack.c.b16 %v5983, %v5974
    %v6218 = vpack.c.b16 %v5984, %v5975
    %v6219 = vpack.c.b16 %v5994, %v5985
    %v6220 = vpack.c.b16 %v5995, %v5986
    %v6221 = vpack.c.b16 %v5996, %v5987
    %v6222 = vpack.c.b16 %v5997, %v5988
    %v6223 = vpack.c.b16 %v5998, %v5989
    %v6224 = vpack.c.b16 %v5999, %v5990
    %v6225 = vpack.c.b16 %v6000, %v5991
    %v6226 = vpack.c.b16 %v6001, %v5992
    %v6227 = vpack.c.b16 %v6002, %v5993
    %v6228 = vpack.c.b16 %v6012, %v6003
    %v6229 = vpack.c.b16 %v6013, %v6004
    %v6230 = vpack.c.b16 %v6014, %v6005
    %v6231 = vpack.c.b16 %v6015, %v6006
    %v6232 = vpack.c.b16 %v6016, %v6007
    %v6233 = vpack.c.b16 %v6017, %v6008
    %v6234 = vpack.c.b16 %v6018, %v6009
    %v6235 = vpack.c.b16 %v6019, %v6010
    %v6236 = vpack.c.b16 %v6020, %v6011
    %6453 = vmatpush.bf16.msra.mxu0 %v6084
    %6454 = vmatpush.bf16.msra.mxu0 %v6075
    %6455 = vmatpush.bf16.msra.mxu0 %v6066
    %6456 = vmatpush.bf16.msra.mxu0 %v6057
    %6457 = vmatpush.bf16.msra.mxu0 %v6048
    %6458 = vmatpush.bf16.msra.mxu0 %v6039
    %6459 = vmatpush.bf16.msra.mxu0 %v6030
    %6460 = vmatpush.bf16.msra.mxu0 %v6021
    %6461 = vmatmul.bf16.gmra.mxu0 %v5319
    %v6462 = vpop.f32.mrf.mxu0
    %v6463 = vadd.f32 %v5340, %v6462
    %v6464 = vpop.f32.mrf.mxu0
    %6465 = vdwg.mxu0
    %6466 = vmatpush.bf16.msra.mxu0 %v6156
    %6467 = vmatpush.bf16.msra.mxu0 %v6147
    %6468 = vmatpush.bf16.msra.mxu0 %v6138
    %6469 = vmatpush.bf16.msra.mxu0 %v6129
    %6470 = vmatpush.bf16.msra.mxu0 %v6120
    %6471 = vmatpush.bf16.msra.mxu0 %v6111
    %6472 = vmatpush.bf16.msra.mxu0 %v6102
    %6473 = vmatpush.bf16.msra.mxu0 %v6093
    %6474 = vmatmul.bf16.gmra.mxu0 %v5320
    %v6475 = vpop.f32.mrf.mxu0
    %v6476 = vadd.f32 %v6463, %v6475
    %v6477 = vpop.f32.mrf.mxu0
    %6478 = vdwg.mxu0
    %6479 = vmatpush.bf16.msra.mxu0 %v6228
    %6480 = vmatpush.bf16.msra.mxu0 %v6219
    %6481 = vmatpush.bf16.msra.mxu0 %v6210
    %6482 = vmatpush.bf16.msra.mxu0 %v6201
    %6483 = vmatpush.bf16.msra.mxu0 %v6192
    %6484 = vmatpush.bf16.msra.mxu0 %v6183
    %6485 = vmatpush.bf16.msra.mxu0 %v6174
    %6486 = vmatpush.bf16.msra.mxu0 %v6165
    %6487 = vmatmul.bf16.gmra.mxu0 %v5321
    %v6488 = vpop.f32.mrf.mxu0
    %v6489 = vadd.f32 %v6476, %v6488
    %v6490 = vpop.f32.mrf.mxu0
    %6491 = vdwg.mxu0
    %6492 = vmatpush.bf16.msra.mxu0 %v6085
    %6493 = vmatpush.bf16.msra.mxu0 %v6076
    %6494 = vmatpush.bf16.msra.mxu0 %v6067
    %6495 = vmatpush.bf16.msra.mxu0 %v6058
    %6496 = vmatpush.bf16.msra.mxu0 %v6049
    %6497 = vmatpush.bf16.msra.mxu0 %v6040
    %6498 = vmatpush.bf16.msra.mxu0 %v6031
    %6499 = vmatpush.bf16.msra.mxu0 %v6022
    %6500 = vmatmul.bf16.gmra.mxu0 %v5319
    %v6501 = vpop.f32.mrf.mxu0
    %v6502 = vadd.f32 %v5341, %v6501
    %v6503 = vpop.f32.mrf.mxu0
    %6504 = vdwg.mxu0
    %6505 = vmatpush.bf16.msra.mxu0 %v6157
    %6506 = vmatpush.bf16.msra.mxu0 %v6148
    %6507 = vmatpush.bf16.msra.mxu0 %v6139
    %6508 = vmatpush.bf16.msra.mxu0 %v6130
    %6509 = vmatpush.bf16.msra.mxu0 %v6121
    %6510 = vmatpush.bf16.msra.mxu0 %v6112
    %6511 = vmatpush.bf16.msra.mxu0 %v6103
    %6512 = vmatpush.bf16.msra.mxu0 %v6094
    %6513 = vmatmul.bf16.gmra.mxu0 %v5320
    %v6514 = vpop.f32.mrf.mxu0
    %v6515 = vadd.f32 %v6502, %v6514
    %v6516 = vpop.f32.mrf.mxu0
    %6517 = vdwg.mxu0
    %6518 = vmatpush.bf16.msra.mxu0 %v6229
    %6519 = vmatpush.bf16.msra.mxu0 %v6220
    %6520 = vmatpush.bf16.msra.mxu0 %v6211
    %6521 = vmatpush.bf16.msra.mxu0 %v6202
    %6522 = vmatpush.bf16.msra.mxu0 %v6193
    %6523 = vmatpush.bf16.msra.mxu0 %v6184
    %6524 = vmatpush.bf16.msra.mxu0 %v6175
    %6525 = vmatpush.bf16.msra.mxu0 %v6166
    %6526 = vmatmul.bf16.gmra.mxu0 %v5321
    %v6527 = vpop.f32.mrf.mxu0
    %v6528 = vadd.f32 %v6515, %v6527
    %v6529 = vpop.f32.mrf.mxu0
    %6530 = vdwg.mxu0
    %6531 = vmatpush.bf16.msra.mxu0 %v6086
    %6532 = vmatpush.bf16.msra.mxu0 %v6077
    %6533 = vmatpush.bf16.msra.mxu0 %v6068
    %6534 = vmatpush.bf16.msra.mxu0 %v6059
    %6535 = vmatpush.bf16.msra.mxu0 %v6050
    %6536 = vmatpush.bf16.msra.mxu0 %v6041
    %6537 = vmatpush.bf16.msra.mxu0 %v6032
    %6538 = vmatpush.bf16.msra.mxu0 %v6023
    %6539 = vmatmul.bf16.gmra.mxu0 %v5319
    %v6540 = vpop.f32.mrf.mxu0
    %v6541 = vadd.f32 %v5342, %v6540
    %v6542 = vpop.f32.mrf.mxu0
    %6543 = vdwg.mxu0
    %6544 = vmatpush.bf16.msra.mxu0 %v6158
    %6545 = vmatpush.bf16.msra.mxu0 %v6149
    %6546 = vmatpush.bf16.msra.mxu0 %v6140
    %6547 = vmatpush.bf16.msra.mxu0 %v6131
    %6548 = vmatpush.bf16.msra.mxu0 %v6122
    %6549 = vmatpush.bf16.msra.mxu0 %v6113
    %6550 = vmatpush.bf16.msra.mxu0 %v6104
    %6551 = vmatpush.bf16.msra.mxu0 %v6095
    %6552 = vmatmul.bf16.gmra.mxu0 %v5320
    %v6553 = vpop.f32.mrf.mxu0
    %v6554 = vadd.f32 %v6541, %v6553
    %v6555 = vpop.f32.mrf.mxu0
    %6556 = vdwg.mxu0
    %6557 = vmatpush.bf16.msra.mxu0 %v6230
    %6558 = vmatpush.bf16.msra.mxu0 %v6221
    %6559 = vmatpush.bf16.msra.mxu0 %v6212
    %6560 = vmatpush.bf16.msra.mxu0 %v6203
    %6561 = vmatpush.bf16.msra.mxu0 %v6194
    %6562 = vmatpush.bf16.msra.mxu0 %v6185
    %6563 = vmatpush.bf16.msra.mxu0 %v6176
    %6564 = vmatpush.bf16.msra.mxu0 %v6167
    %6565 = vmatmul.bf16.gmra.mxu0 %v5321
    %v6566 = vpop.f32.mrf.mxu0
    %v6567 = vadd.f32 %v6554, %v6566
    %v6568 = vpop.f32.mrf.mxu0
    %6569 = vdwg.mxu0
    %6570 = vmatpush.bf16.msra.mxu0 %v6087
    %6571 = vmatpush.bf16.msra.mxu0 %v6078
    %6572 = vmatpush.bf16.msra.mxu0 %v6069
    %6573 = vmatpush.bf16.msra.mxu0 %v6060
    %6574 = vmatpush.bf16.msra.mxu0 %v6051
    %6575 = vmatpush.bf16.msra.mxu0 %v6042
    %6576 = vmatpush.bf16.msra.mxu0 %v6033
    %6577 = vmatpush.bf16.msra.mxu0 %v6024
    %6578 = vmatmul.bf16.gmra.mxu0 %v5319
    %v6579 = vpop.f32.mrf.mxu0
    %v6580 = vadd.f32 %v5343, %v6579
    %v6581 = vpop.f32.mrf.mxu0
    %6582 = vdwg.mxu0
    %6583 = vmatpush.bf16.msra.mxu0 %v6159
    %6584 = vmatpush.bf16.msra.mxu0 %v6150
    %6585 = vmatpush.bf16.msra.mxu0 %v6141
    %6586 = vmatpush.bf16.msra.mxu0 %v6132
    %6587 = vmatpush.bf16.msra.mxu0 %v6123
    %6588 = vmatpush.bf16.msra.mxu0 %v6114
    %6589 = vmatpush.bf16.msra.mxu0 %v6105
    %6590 = vmatpush.bf16.msra.mxu0 %v6096
    %6591 = vmatmul.bf16.gmra.mxu0 %v5320
    %v6592 = vpop.f32.mrf.mxu0
    %v6593 = vadd.f32 %v6580, %v6592
    %v6594 = vpop.f32.mrf.mxu0
    %6595 = vdwg.mxu0
    %6596 = vmatpush.bf16.msra.mxu0 %v6231
    %6597 = vmatpush.bf16.msra.mxu0 %v6222
    %6598 = vmatpush.bf16.msra.mxu0 %v6213
    %6599 = vmatpush.bf16.msra.mxu0 %v6204
    %6600 = vmatpush.bf16.msra.mxu0 %v6195
    %6601 = vmatpush.bf16.msra.mxu0 %v6186
    %6602 = vmatpush.bf16.msra.mxu0 %v6177
    %6603 = vmatpush.bf16.msra.mxu0 %v6168
    %6604 = vmatmul.bf16.gmra.mxu0 %v5321
    %v6605 = vpop.f32.mrf.mxu0
    %v6606 = vadd.f32 %v6593, %v6605
    %v6607 = vpop.f32.mrf.mxu0
    %6608 = vdwg.mxu0
    %6609 = vmatpush.bf16.msra.mxu0 %v6088
    %6610 = vmatpush.bf16.msra.mxu0 %v6079
    %6611 = vmatpush.bf16.msra.mxu0 %v6070
    %6612 = vmatpush.bf16.msra.mxu0 %v6061
    %6613 = vmatpush.bf16.msra.mxu0 %v6052
    %6614 = vmatpush.bf16.msra.mxu0 %v6043
    %6615 = vmatpush.bf16.msra.mxu0 %v6034
    %6616 = vmatpush.bf16.msra.mxu0 %v6025
    %6617 = vmatmul.bf16.gmra.mxu0 %v5319
    %v6618 = vpop.f32.mrf.mxu0
    %v6619 = vadd.f32 %v5344, %v6618
    %v6620 = vpop.f32.mrf.mxu0
    %6621 = vdwg.mxu0
    %6622 = vmatpush.bf16.msra.mxu0 %v6160
    %6623 = vmatpush.bf16.msra.mxu0 %v6151
    %6624 = vmatpush.bf16.msra.mxu0 %v6142
    %6625 = vmatpush.bf16.msra.mxu0 %v6133
    %6626 = vmatpush.bf16.msra.mxu0 %v6124
    %6627 = vmatpush.bf16.msra.mxu0 %v6115
    %6628 = vmatpush.bf16.msra.mxu0 %v6106
    %6629 = vmatpush.bf16.msra.mxu0 %v6097
    %6630 = vmatmul.bf16.gmra.mxu0 %v5320
    %v6631 = vpop.f32.mrf.mxu0
    %v6632 = vadd.f32 %v6619, %v6631
    %v6633 = vpop.f32.mrf.mxu0
    %6634 = vdwg.mxu0
    %6635 = vmatpush.bf16.msra.mxu0 %v6232
    %6636 = vmatpush.bf16.msra.mxu0 %v6223
    %6637 = vmatpush.bf16.msra.mxu0 %v6214
    %6638 = vmatpush.bf16.msra.mxu0 %v6205
    %6639 = vmatpush.bf16.msra.mxu0 %v6196
    %6640 = vmatpush.bf16.msra.mxu0 %v6187
    %6641 = vmatpush.bf16.msra.mxu0 %v6178
    %6642 = vmatpush.bf16.msra.mxu0 %v6169
    %6643 = vmatmul.bf16.gmra.mxu0 %v5321
    %v6644 = vpop.f32.mrf.mxu0
    %v6645 = vadd.f32 %v6632, %v6644
    %v6646 = vpop.f32.mrf.mxu0
    %6647 = vdwg.mxu0
    %6648 = vmatpush.bf16.msra.mxu0 %v6089
    %6649 = vmatpush.bf16.msra.mxu0 %v6080
    %6650 = vmatpush.bf16.msra.mxu0 %v6071
    %6651 = vmatpush.bf16.msra.mxu0 %v6062
    %6652 = vmatpush.bf16.msra.mxu0 %v6053
    %6653 = vmatpush.bf16.msra.mxu0 %v6044
    %6654 = vmatpush.bf16.msra.mxu0 %v6035
    %6655 = vmatpush.bf16.msra.mxu0 %v6026
    %6656 = vmatmul.bf16.gmra.mxu0 %v5319
    %v6657 = vpop.f32.mrf.mxu0
    %v6658 = vadd.f32 %v5345, %v6657
    %v6659 = vpop.f32.mrf.mxu0
    %6660 = vdwg.mxu0
    %6661 = vmatpush.bf16.msra.mxu0 %v6161
    %6662 = vmatpush.bf16.msra.mxu0 %v6152
    %6663 = vmatpush.bf16.msra.mxu0 %v6143
    %6664 = vmatpush.bf16.msra.mxu0 %v6134
    %6665 = vmatpush.bf16.msra.mxu0 %v6125
    %6666 = vmatpush.bf16.msra.mxu0 %v6116
    %6667 = vmatpush.bf16.msra.mxu0 %v6107
    %6668 = vmatpush.bf16.msra.mxu0 %v6098
    %6669 = vmatmul.bf16.gmra.mxu0 %v5320
    %v6670 = vpop.f32.mrf.mxu0
    %v6671 = vadd.f32 %v6658, %v6670
    %v6672 = vpop.f32.mrf.mxu0
    %6673 = vdwg.mxu0
    %6674 = vmatpush.bf16.msra.mxu0 %v6233
    %6675 = vmatpush.bf16.msra.mxu0 %v6224
    %6676 = vmatpush.bf16.msra.mxu0 %v6215
    %6677 = vmatpush.bf16.msra.mxu0 %v6206
    %6678 = vmatpush.bf16.msra.mxu0 %v6197
    %6679 = vmatpush.bf16.msra.mxu0 %v6188
    %6680 = vmatpush.bf16.msra.mxu0 %v6179
    %6681 = vmatpush.bf16.msra.mxu0 %v6170
    %6682 = vmatmul.bf16.gmra.mxu0 %v5321
    %v6683 = vpop.f32.mrf.mxu0
    %v6684 = vadd.f32 %v6671, %v6683
    %v6685 = vpop.f32.mrf.mxu0
    %6686 = vdwg.mxu0
    %6687 = vmatpush.bf16.msra.mxu0 %v6090
    %6688 = vmatpush.bf16.msra.mxu0 %v6081
    %6689 = vmatpush.bf16.msra.mxu0 %v6072
    %6690 = vmatpush.bf16.msra.mxu0 %v6063
    %6691 = vmatpush.bf16.msra.mxu0 %v6054
    %6692 = vmatpush.bf16.msra.mxu0 %v6045
    %6693 = vmatpush.bf16.msra.mxu0 %v6036
    %6694 = vmatpush.bf16.msra.mxu0 %v6027
    %6695 = vmatmul.bf16.gmra.mxu0 %v5319
    %v6696 = vpop.f32.mrf.mxu0
    %v6697 = vadd.f32 %v5346, %v6696
    %v6698 = vpop.f32.mrf.mxu0
    %6699 = vdwg.mxu0
    %6700 = vmatpush.bf16.msra.mxu0 %v6162
    %6701 = vmatpush.bf16.msra.mxu0 %v6153
    %6702 = vmatpush.bf16.msra.mxu0 %v6144
    %6703 = vmatpush.bf16.msra.mxu0 %v6135
    %6704 = vmatpush.bf16.msra.mxu0 %v6126
    %6705 = vmatpush.bf16.msra.mxu0 %v6117
    %6706 = vmatpush.bf16.msra.mxu0 %v6108
    %6707 = vmatpush.bf16.msra.mxu0 %v6099
    %6708 = vmatmul.bf16.gmra.mxu0 %v5320
    %v6709 = vpop.f32.mrf.mxu0
    %v6710 = vadd.f32 %v6697, %v6709
    %v6711 = vpop.f32.mrf.mxu0
    %6712 = vdwg.mxu0
    %6713 = vmatpush.bf16.msra.mxu0 %v6234
    %6714 = vmatpush.bf16.msra.mxu0 %v6225
    %6715 = vmatpush.bf16.msra.mxu0 %v6216
    %6716 = vmatpush.bf16.msra.mxu0 %v6207
    %6717 = vmatpush.bf16.msra.mxu0 %v6198
    %6718 = vmatpush.bf16.msra.mxu0 %v6189
    %6719 = vmatpush.bf16.msra.mxu0 %v6180
    %6720 = vmatpush.bf16.msra.mxu0 %v6171
    %6721 = vmatmul.bf16.gmra.mxu0 %v5321
    %v6722 = vpop.f32.mrf.mxu0
    %v6723 = vadd.f32 %v6710, %v6722
    %v6724 = vpop.f32.mrf.mxu0
    %6725 = vdwg.mxu0
    %6726 = vmatpush.bf16.msra.mxu0 %v6091
    %6727 = vmatpush.bf16.msra.mxu0 %v6082
    %6728 = vmatpush.bf16.msra.mxu0 %v6073
    %6729 = vmatpush.bf16.msra.mxu0 %v6064
    %6730 = vmatpush.bf16.msra.mxu0 %v6055
    %6731 = vmatpush.bf16.msra.mxu0 %v6046
    %6732 = vmatpush.bf16.msra.mxu0 %v6037
    %6733 = vmatpush.bf16.msra.mxu0 %v6028
    %6734 = vmatmul.bf16.gmra.mxu0 %v5319
    %v6735 = vpop.f32.mrf.mxu0
    %v6736 = vadd.f32 %v5347, %v6735
    %v6737 = vpop.f32.mrf.mxu0
    %6738 = vdwg.mxu0
    %6739 = vmatpush.bf16.msra.mxu0 %v6163
    %6740 = vmatpush.bf16.msra.mxu0 %v6154
    %6741 = vmatpush.bf16.msra.mxu0 %v6145
    %6742 = vmatpush.bf16.msra.mxu0 %v6136
    %6743 = vmatpush.bf16.msra.mxu0 %v6127
    %6744 = vmatpush.bf16.msra.mxu0 %v6118
    %6745 = vmatpush.bf16.msra.mxu0 %v6109
    %6746 = vmatpush.bf16.msra.mxu0 %v6100
    %6747 = vmatmul.bf16.gmra.mxu0 %v5320
    %v6748 = vpop.f32.mrf.mxu0
    %v6749 = vadd.f32 %v6736, %v6748
    %v6750 = vpop.f32.mrf.mxu0
    %6751 = vdwg.mxu0
    %6752 = vmatpush.bf16.msra.mxu0 %v6235
    %6753 = vmatpush.bf16.msra.mxu0 %v6226
    %6754 = vmatpush.bf16.msra.mxu0 %v6217
    %6755 = vmatpush.bf16.msra.mxu0 %v6208
    %6756 = vmatpush.bf16.msra.mxu0 %v6199
    %6757 = vmatpush.bf16.msra.mxu0 %v6190
    %6758 = vmatpush.bf16.msra.mxu0 %v6181
    %6759 = vmatpush.bf16.msra.mxu0 %v6172
    %6760 = vmatmul.bf16.gmra.mxu0 %v5321
    %v6761 = vpop.f32.mrf.mxu0
    %v6762 = vadd.f32 %v6749, %v6761
    %v6763 = vpop.f32.mrf.mxu0
    %6764 = vdwg.mxu0
    %6765 = vmatpush.bf16.msra.mxu0 %v6092
    %6766 = vmatpush.bf16.msra.mxu0 %v6083
    %6767 = vmatpush.bf16.msra.mxu0 %v6074
    %6768 = vmatpush.bf16.msra.mxu0 %v6065
    %6769 = vmatpush.bf16.msra.mxu0 %v6056
    %6770 = vmatpush.bf16.msra.mxu0 %v6047
    %6771 = vmatpush.bf16.msra.mxu0 %v6038
    %6772 = vmatpush.bf16.msra.mxu0 %v6029
    %6773 = vmatmul.bf16.gmra.mxu0 %v5319
    %v6774 = vpop.f32.mrf.mxu0
    %v6775 = vadd.f32 %v5348, %v6774
    %v6776 = vpop.f32.mrf.mxu0
    %6777 = vdwg.mxu0
    %6778 = vmatpush.bf16.msra.mxu0 %v6164
    %6779 = vmatpush.bf16.msra.mxu0 %v6155
    %6780 = vmatpush.bf16.msra.mxu0 %v6146
    %6781 = vmatpush.bf16.msra.mxu0 %v6137
    %6782 = vmatpush.bf16.msra.mxu0 %v6128
    %6783 = vmatpush.bf16.msra.mxu0 %v6119
    %6784 = vmatpush.bf16.msra.mxu0 %v6110
    %6785 = vmatpush.bf16.msra.mxu0 %v6101
    %6786 = vmatmul.bf16.gmra.mxu0 %v5320
    %v6787 = vpop.f32.mrf.mxu0
    %v6788 = vadd.f32 %v6775, %v6787
    %v6789 = vpop.f32.mrf.mxu0
    %6790 = vdwg.mxu0
    %6791 = vmatpush.bf16.msra.mxu0 %v6236
    %6792 = vmatpush.bf16.msra.mxu0 %v6227
    %6793 = vmatpush.bf16.msra.mxu0 %v6218
    %6794 = vmatpush.bf16.msra.mxu0 %v6209
    %6795 = vmatpush.bf16.msra.mxu0 %v6200
    %6796 = vmatpush.bf16.msra.mxu0 %v6191
    %6797 = vmatpush.bf16.msra.mxu0 %v6182
    %6798 = vmatpush.bf16.msra.mxu0 %v6173
    %6799 = vmatmul.bf16.gmra.mxu0 %v5321
    %v6800 = vpop.f32.mrf.mxu0
    %v6801 = vadd.f32 %v6788, %v6800
    %v6802 = vpop.f32.mrf.mxu0
    %6803 = vdwg.mxu0
    %v6804 = vld [vmem:[%s18] sm:$0xf]
    %v6805 = vld [vmem:[%s15] sm:$0xff]
    %v6806 = vld [vmem:[%s15 + $0x8] sm:$0xf]
    %v6807 = vld [vmem:[%s15 + $0xc] sm:$0xff]
    %v6808 = vld [vmem:[%s15 + $0x14] sm:$0xf]
    %v6809 = vld [vmem:[%s15 + $0x18] sm:$0x33]
    %v6810 = vld [vmem:[%s15 + $0x20] sm:$0x3]
    %v6817 = vunpack.c.l.b16 %v6805
    %v6818 = vunpack.c.h.b16 %v6805
    %v6819 = vunpack.c.l.b16 %v6806
    %v6820 = vunpack.c.l.b16 %v6807
    %v6821 = vunpack.c.h.b16 %v6807
    %v6822 = vunpack.c.l.b16 %v6808
    %v6823 = vunpack.c.l.b16 %v6809
    %v6824 = vunpack.c.h.b16 %v6809
    %v6825 = vunpack.c.l.b16 %v6810
    %v6826 = vpack.c.b16 %v6820, %v6817
    %v6827 = vpack.c.b16 %v6821, %v6818
    %v6828 = vpack.c.b16 %v6822, %v6819
    %v6829 = vpack.c.b16 %v6823, %v6823
    %v6830 = vpack.c.b16 %v6824, %v6824
    %v6831 = vpack.c.b16 %v6825, %v6825
    %vm6835 = vcmask 162816
    %v6837 = vsel %vm6835, %v6804, 0
    %vm6839 = vcmask 1041408
    %v6841 = vsel %vm6839, %v6829, 0
    %v6844 = vsel %vm6839, %v6830, 0
    %v6847 = vsel %vm6839, %v6831, 0
    %6849 = vmatpush.bf16.msra.mxu0 0
    %6850 = vmatpush.bf16.msra.mxu0 0
    %6851 = vmatpush.bf16.msra.mxu0 0
    %6852 = vmatpush.bf16.msra.mxu0 0
    %6853 = vmatpush.bf16.msra.mxu0 0
    %6854 = vmatpush.bf16.msra.mxu0 0
    %6855 = vmatpush.bf16.msra.mxu0 %v6841
    %6856 = vmatpush.bf16.msra.mxu0 %v6826
    %6857 = vmatmul.bf16.gmra.mxu0 %v6837
    %v6858 = vpop.f32.mrf.mxu0
    %v6859 = vadd.f32 0.0, %v6858
    %v6860 = vpop.f32.mrf.mxu0
    %6861 = vdwg.mxu0
    %6862 = vmatpush.bf16.msra.mxu0 0
    %6863 = vmatpush.bf16.msra.mxu0 0
    %6864 = vmatpush.bf16.msra.mxu0 0
    %6865 = vmatpush.bf16.msra.mxu0 0
    %6866 = vmatpush.bf16.msra.mxu0 0
    %6867 = vmatpush.bf16.msra.mxu0 0
    %6868 = vmatpush.bf16.msra.mxu0 %v6844
    %6869 = vmatpush.bf16.msra.mxu0 %v6827
    %6870 = vmatmul.bf16.gmra.mxu0 %v6837
    %v6871 = vpop.f32.mrf.mxu0
    %v6872 = vadd.f32 0.0, %v6871
    %v6873 = vpop.f32.mrf.mxu0
    %6874 = vdwg.mxu0
    %6875 = vmatpush.bf16.msra.mxu0 0
    %6876 = vmatpush.bf16.msra.mxu0 0
    %6877 = vmatpush.bf16.msra.mxu0 0
    %6878 = vmatpush.bf16.msra.mxu0 0
    %6879 = vmatpush.bf16.msra.mxu0 0
    %6880 = vmatpush.bf16.msra.mxu0 0
    %6881 = vmatpush.bf16.msra.mxu0 %v6847
    %6882 = vmatpush.bf16.msra.mxu0 %v6828
    %6883 = vmatmul.bf16.gmra.mxu0 %v6837
    %v6884 = vpop.f32.mrf.mxu0
    %v6885 = vadd.f32 0.0, %v6884
    %v6886 = vpop.f32.mrf.mxu0
    %6887 = vdwg.mxu0
    %v6888 = vld [vmem:[#allocation12] sm:$0xff]
    %v6889 = vld [vmem:[#allocation12 + $0x8] sm:$0xf]
    %v6890 = vld [vmem:[#allocation12 + $0xc] sm:$0xff]
    %v6891 = vld [vmem:[#allocation12 + $0x14] sm:$0xf]
    %v6892 = vld [vmem:[#allocation12 + $0x18] sm:$0xff]
    %v6893 = vld [vmem:[#allocation12 + $0x20] sm:$0xf]
    %v6894 = vld [vmem:[#allocation12 + $0x24] sm:$0xff]
    %v6895 = vld [vmem:[#allocation12 + $0x2c] sm:$0xf]
    %v6896 = vld [vmem:[#allocation12 + $0x30] sm:$0xff]
    %v6897 = vld [vmem:[#allocation12 + $0x38] sm:$0xf]
    %v6898 = vld [vmem:[#allocation12 + $0x3c] sm:$0xff]
    %v6899 = vld [vmem:[#allocation12 + $0x44] sm:$0xf]
    %v6900 = vld [vmem:[#allocation12 + $0x48] sm:$0xff]
    %v6901 = vld [vmem:[#allocation12 + $0x50] sm:$0xf]
    %v6902 = vld [vmem:[#allocation12 + $0x54] sm:$0xff]
    %v6903 = vld [vmem:[#allocation12 + $0x5c] sm:$0xf]
    %v6904 = vld [vmem:[#allocation12 + $0x60] sm:$0xff]
    %v6905 = vld [vmem:[#allocation12 + $0x68] sm:$0xf]
    %v6906 = vld [vmem:[#allocation12 + $0x6c] sm:$0xff]
    %v6907 = vld [vmem:[#allocation12 + $0x74] sm:$0xf]
    %v6908 = vld [vmem:[#allocation12 + $0x78] sm:$0xff]
    %v6909 = vld [vmem:[#allocation12 + $0x80] sm:$0xf]
    %v6910 = vld [vmem:[#allocation12 + $0x84] sm:$0xff]
    %v6911 = vld [vmem:[#allocation12 + $0x8c] sm:$0xf]
    %v6912 = vld [vmem:[#allocation12 + $0x90] sm:$0xff]
    %v6913 = vld [vmem:[#allocation12 + $0x98] sm:$0xf]
    %v6914 = vld [vmem:[#allocation12 + $0x9c] sm:$0xff]
    %v6915 = vld [vmem:[#allocation12 + $0xa4] sm:$0xf]
    %v6916 = vld [vmem:[#allocation12 + $0xa8] sm:$0xff]
    %v6917 = vld [vmem:[#allocation12 + $0xb0] sm:$0xf]
    %v6918 = vld [vmem:[#allocation12 + $0xb4] sm:$0xff]
    %v6919 = vld [vmem:[#allocation12 + $0xbc] sm:$0xf]
    %v6920 = vld [vmem:[#allocation12 + $0xc0] sm:$0xff]
    %v6921 = vld [vmem:[#allocation12 + $0xc8] sm:$0xf]
    %v6922 = vld [vmem:[#allocation12 + $0xcc] sm:$0xff]
    %v6923 = vld [vmem:[#allocation12 + $0xd4] sm:$0xf]
    %v6924 = vld [vmem:[#allocation12 + $0xd8] sm:$0xff]
    %v6925 = vld [vmem:[#allocation12 + $0xe0] sm:$0xf]
    %v6926 = vld [vmem:[#allocation12 + $0xe4] sm:$0xff]
    %v6927 = vld [vmem:[#allocation12 + $0xec] sm:$0xf]
    %v6928 = vld [vmem:[#allocation12 + $0xf0] sm:$0xff]
    %v6929 = vld [vmem:[#allocation12 + $0xf8] sm:$0xf]
    %v6930 = vld [vmem:[#allocation12 + $0xfc] sm:$0xff]
    %v6931 = vld [vmem:[#allocation12 + $0x104] sm:$0xf]
    %v6932 = vld [vmem:[#allocation12 + $0x108] sm:$0xff]
    %v6933 = vld [vmem:[#allocation12 + $0x110] sm:$0xf]
    %v6934 = vld [vmem:[#allocation12 + $0x114] sm:$0xff]
    %v6935 = vld [vmem:[#allocation12 + $0x11c] sm:$0xf]
    %v6936 = vld [vmem:[#allocation12 + $0x120] sm:$0xff]
    %v6937 = vld [vmem:[#allocation12 + $0x128] sm:$0xf]
    %v6938 = vld [vmem:[#allocation12 + $0x12c] sm:$0xff]
    %v6939 = vld [vmem:[#allocation12 + $0x134] sm:$0xf]
    %v6940 = vld [vmem:[#allocation12 + $0x138] sm:$0xff]
    %v6941 = vld [vmem:[#allocation12 + $0x140] sm:$0xf]
    %v6942 = vld [vmem:[#allocation12 + $0x144] sm:$0xff]
    %v6943 = vld [vmem:[#allocation12 + $0x14c] sm:$0xf]
    %v6944 = vld [vmem:[#allocation12 + $0x150] sm:$0xff]
    %v6945 = vld [vmem:[#allocation12 + $0x158] sm:$0xf]
    %v6946 = vld [vmem:[#allocation12 + $0x15c] sm:$0xff]
    %v6947 = vld [vmem:[#allocation12 + $0x164] sm:$0xf]
    %v6948 = vld [vmem:[#allocation12 + $0x168] sm:$0xff]
    %v6949 = vld [vmem:[#allocation12 + $0x170] sm:$0xf]
    %v6950 = vld [vmem:[#allocation12 + $0x174] sm:$0xff]
    %v6951 = vld [vmem:[#allocation12 + $0x17c] sm:$0xf]
    %v6952 = vld [vmem:[#allocation12 + $0x180] sm:$0xff]
    %v6953 = vld [vmem:[#allocation12 + $0x188] sm:$0xf]
    %v6954 = vld [vmem:[#allocation12 + $0x18c] sm:$0xff]
    %v6955 = vld [vmem:[#allocation12 + $0x194] sm:$0xf]
    %v6956 = vld [vmem:[#allocation12 + $0x198] sm:$0xff]
    %v6957 = vld [vmem:[#allocation12 + $0x1a0] sm:$0xf]
    %v6958 = vld [vmem:[#allocation12 + $0x1a4] sm:$0xff]
    %v6959 = vld [vmem:[#allocation12 + $0x1ac] sm:$0xf]
    %v6960 = vld [vmem:[#allocation12 + $0x1b0] sm:$0xff]
    %v6961 = vld [vmem:[#allocation12 + $0x1b8] sm:$0xf]
    %v6962 = vld [vmem:[#allocation12 + $0x1bc] sm:$0xff]
    %v6963 = vld [vmem:[#allocation12 + $0x1c4] sm:$0xf]
    %v6964 = vld [vmem:[#allocation12 + $0x1c8] sm:$0xff]
    %v6965 = vld [vmem:[#allocation12 + $0x1d0] sm:$0xf]
    %v6966 = vld [vmem:[#allocation12 + $0x1d4] sm:$0xff]
    %v6967 = vld [vmem:[#allocation12 + $0x1dc] sm:$0xf]
    %v6968 = vld [vmem:[#allocation12 + $0x1e0] sm:$0xff]
    %v6969 = vld [vmem:[#allocation12 + $0x1e8] sm:$0xf]
    %v6970 = vld [vmem:[#allocation12 + $0x1ec] sm:$0xff]
    %v6971 = vld [vmem:[#allocation12 + $0x1f4] sm:$0xf]
    %v6972 = vld [vmem:[#allocation12 + $0x1f8] sm:$0xff]
    %v6973 = vld [vmem:[#allocation12 + $0x200] sm:$0xf]
    %v6974 = vld [vmem:[#allocation12 + $0x204] sm:$0xff]
    %v6975 = vld [vmem:[#allocation12 + $0x20c] sm:$0xf]
    %v6976 = vld [vmem:[#allocation12 + $0x210] sm:$0xff]
    %v6977 = vld [vmem:[#allocation12 + $0x218] sm:$0xf]
    %v6978 = vld [vmem:[#allocation12 + $0x21c] sm:$0xff]
    %v6979 = vld [vmem:[#allocation12 + $0x224] sm:$0xf]
    %v6980 = vld [vmem:[#allocation12 + $0x228] sm:$0xff]
    %v6981 = vld [vmem:[#allocation12 + $0x230] sm:$0xf]
    %v6982 = vld [vmem:[#allocation12 + $0x234] sm:$0xff]
    %v6983 = vld [vmem:[#allocation12 + $0x23c] sm:$0xf]
    %v6984 = vpack.c.bf16 %v6859, %v6859
    %v6985 = vpack.c.bf16 %v6872, %v6872
    %v6986 = vpack.c.bf16 %v6885, %v6885
    %v7083 = vunpack.c.l.b16 %v6888
    %v7084 = vunpack.c.h.b16 %v6888
    %v7085 = vunpack.c.l.b16 %v6889
    %v7086 = vunpack.c.l.b16 %v6890
    %v7087 = vunpack.c.h.b16 %v6890
    %v7088 = vunpack.c.l.b16 %v6891
    %v7089 = vunpack.c.l.b16 %v6892
    %v7090 = vunpack.c.h.b16 %v6892
    %v7091 = vunpack.c.l.b16 %v6893
    %v7092 = vunpack.c.l.b16 %v6894
    %v7093 = vunpack.c.h.b16 %v6894
    %v7094 = vunpack.c.l.b16 %v6895
    %v7095 = vunpack.c.l.b16 %v6896
    %v7096 = vunpack.c.h.b16 %v6896
    %v7097 = vunpack.c.l.b16 %v6897
    %v7098 = vunpack.c.l.b16 %v6898
    %v7099 = vunpack.c.h.b16 %v6898
    %v7100 = vunpack.c.l.b16 %v6899
    %v7101 = vunpack.c.l.b16 %v6900
    %v7102 = vunpack.c.h.b16 %v6900
    %v7103 = vunpack.c.l.b16 %v6901
    %v7104 = vunpack.c.l.b16 %v6902
    %v7105 = vunpack.c.h.b16 %v6902
    %v7106 = vunpack.c.l.b16 %v6903
    %v7107 = vunpack.c.l.b16 %v6904
    %v7108 = vunpack.c.h.b16 %v6904
    %v7109 = vunpack.c.l.b16 %v6905
    %v7110 = vunpack.c.l.b16 %v6906
    %v7111 = vunpack.c.h.b16 %v6906
    %v7112 = vunpack.c.l.b16 %v6907
    %v7113 = vunpack.c.l.b16 %v6908
    %v7114 = vunpack.c.h.b16 %v6908
    %v7115 = vunpack.c.l.b16 %v6909
    %v7116 = vunpack.c.l.b16 %v6910
    %v7117 = vunpack.c.h.b16 %v6910
    %v7118 = vunpack.c.l.b16 %v6911
    %v7119 = vunpack.c.l.b16 %v6912
    %v7120 = vunpack.c.h.b16 %v6912
    %v7121 = vunpack.c.l.b16 %v6913
    %v7122 = vunpack.c.l.b16 %v6914
    %v7123 = vunpack.c.h.b16 %v6914
    %v7124 = vunpack.c.l.b16 %v6915
    %v7125 = vunpack.c.l.b16 %v6916
    %v7126 = vunpack.c.h.b16 %v6916
    %v7127 = vunpack.c.l.b16 %v6917
    %v7128 = vunpack.c.l.b16 %v6918
    %v7129 = vunpack.c.h.b16 %v6918
    %v7130 = vunpack.c.l.b16 %v6919
    %v7131 = vunpack.c.l.b16 %v6920
    %v7132 = vunpack.c.h.b16 %v6920
    %v7133 = vunpack.c.l.b16 %v6921
    %v7134 = vunpack.c.l.b16 %v6922
    %v7135 = vunpack.c.h.b16 %v6922
    %v7136 = vunpack.c.l.b16 %v6923
    %v7137 = vunpack.c.l.b16 %v6924
    %v7138 = vunpack.c.h.b16 %v6924
    %v7139 = vunpack.c.l.b16 %v6925
    %v7140 = vunpack.c.l.b16 %v6926
    %v7141 = vunpack.c.h.b16 %v6926
    %v7142 = vunpack.c.l.b16 %v6927
    %v7143 = vunpack.c.l.b16 %v6928
    %v7144 = vunpack.c.h.b16 %v6928
    %v7145 = vunpack.c.l.b16 %v6929
    %v7146 = vunpack.c.l.b16 %v6930
    %v7147 = vunpack.c.h.b16 %v6930
    %v7148 = vunpack.c.l.b16 %v6931
    %v7149 = vunpack.c.l.b16 %v6932
    %v7150 = vunpack.c.h.b16 %v6932
    %v7151 = vunpack.c.l.b16 %v6933
    %v7152 = vunpack.c.l.b16 %v6934
    %v7153 = vunpack.c.h.b16 %v6934
    %v7154 = vunpack.c.l.b16 %v6935
    %v7155 = vunpack.c.l.b16 %v6936
    %v7156 = vunpack.c.h.b16 %v6936
    %v7157 = vunpack.c.l.b16 %v6937
    %v7158 = vunpack.c.l.b16 %v6938
    %v7159 = vunpack.c.h.b16 %v6938
    %v7160 = vunpack.c.l.b16 %v6939
    %v7161 = vunpack.c.l.b16 %v6940
    %v7162 = vunpack.c.h.b16 %v6940
    %v7163 = vunpack.c.l.b16 %v6941
    %v7164 = vunpack.c.l.b16 %v6942
    %v7165 = vunpack.c.h.b16 %v6942
    %v7166 = vunpack.c.l.b16 %v6943
    %v7167 = vunpack.c.l.b16 %v6944
    %v7168 = vunpack.c.h.b16 %v6944
    %v7169 = vunpack.c.l.b16 %v6945
    %v7170 = vunpack.c.l.b16 %v6946
    %v7171 = vunpack.c.h.b16 %v6946
    %v7172 = vunpack.c.l.b16 %v6947
    %v7173 = vunpack.c.l.b16 %v6948
    %v7174 = vunpack.c.h.b16 %v6948
    %v7175 = vunpack.c.l.b16 %v6949
    %v7176 = vunpack.c.l.b16 %v6950
    %v7177 = vunpack.c.h.b16 %v6950
    %v7178 = vunpack.c.l.b16 %v6951
    %v7179 = vunpack.c.l.b16 %v6952
    %v7180 = vunpack.c.h.b16 %v6952
    %v7181 = vunpack.c.l.b16 %v6953
    %v7182 = vunpack.c.l.b16 %v6954
    %v7183 = vunpack.c.h.b16 %v6954
    %v7184 = vunpack.c.l.b16 %v6955
    %v7185 = vunpack.c.l.b16 %v6956
    %v7186 = vunpack.c.h.b16 %v6956
    %v7187 = vunpack.c.l.b16 %v6957
    %v7188 = vunpack.c.l.b16 %v6958
    %v7189 = vunpack.c.h.b16 %v6958
    %v7190 = vunpack.c.l.b16 %v6959
    %v7191 = vunpack.c.l.b16 %v6960
    %v7192 = vunpack.c.h.b16 %v6960
    %v7193 = vunpack.c.l.b16 %v6961
    %v7194 = vunpack.c.l.b16 %v6962
    %v7195 = vunpack.c.h.b16 %v6962
    %v7196 = vunpack.c.l.b16 %v6963
    %v7197 = vunpack.c.l.b16 %v6964
    %v7198 = vunpack.c.h.b16 %v6964
    %v7199 = vunpack.c.l.b16 %v6965
    %v7200 = vunpack.c.l.b16 %v6966
    %v7201 = vunpack.c.h.b16 %v6966
    %v7202 = vunpack.c.l.b16 %v6967
    %v7203 = vunpack.c.l.b16 %v6968
    %v7204 = vunpack.c.h.b16 %v6968
    %v7205 = vunpack.c.l.b16 %v6969
    %v7206 = vunpack.c.l.b16 %v6970
    %v7207 = vunpack.c.h.b16 %v6970
    %v7208 = vunpack.c.l.b16 %v6971
    %v7209 = vunpack.c.l.b16 %v6972
    %v7210 = vunpack.c.h.b16 %v6972
    %v7211 = vunpack.c.l.b16 %v6973
    %v7212 = vunpack.c.l.b16 %v6974
    %v7213 = vunpack.c.h.b16 %v6974
    %v7214 = vunpack.c.l.b16 %v6975
    %v7215 = vunpack.c.l.b16 %v6976
    %v7216 = vunpack.c.h.b16 %v6976
    %v7217 = vunpack.c.l.b16 %v6977
    %v7218 = vunpack.c.l.b16 %v6978
    %v7219 = vunpack.c.h.b16 %v6978
    %v7220 = vunpack.c.l.b16 %v6979
    %v7221 = vunpack.c.l.b16 %v6980
    %v7222 = vunpack.c.h.b16 %v6980
    %v7223 = vunpack.c.l.b16 %v6981
    %v7224 = vunpack.c.l.b16 %v6982
    %v7225 = vunpack.c.h.b16 %v6982
    %v7226 = vunpack.c.l.b16 %v6983
    %v7227 = vpack.c.b16 %v7086, %v7083
    %v7228 = vpack.c.b16 %v7087, %v7084
    %v7229 = vpack.c.b16 %v7088, %v7085
    %v7230 = vpack.c.b16 %v7092, %v7089
    %v7231 = vpack.c.b16 %v7093, %v7090
    %v7232 = vpack.c.b16 %v7094, %v7091
    %v7233 = vpack.c.b16 %v7098, %v7095
    %v7234 = vpack.c.b16 %v7099, %v7096
    %v7235 = vpack.c.b16 %v7100, %v7097
    %v7236 = vpack.c.b16 %v7104, %v7101
    %v7237 = vpack.c.b16 %v7105, %v7102
    %v7238 = vpack.c.b16 %v7106, %v7103
    %v7239 = vpack.c.b16 %v7110, %v7107
    %v7240 = vpack.c.b16 %v7111, %v7108
    %v7241 = vpack.c.b16 %v7112, %v7109
    %v7242 = vpack.c.b16 %v7116, %v7113
    %v7243 = vpack.c.b16 %v7117, %v7114
    %v7244 = vpack.c.b16 %v7118, %v7115
    %v7245 = vpack.c.b16 %v7122, %v7119
    %v7246 = vpack.c.b16 %v7123, %v7120
    %v7247 = vpack.c.b16 %v7124, %v7121
    %v7248 = vpack.c.b16 %v7128, %v7125
    %v7249 = vpack.c.b16 %v7129, %v7126
    %v7250 = vpack.c.b16 %v7130, %v7127
    %v7251 = vpack.c.b16 %v7134, %v7131
    %v7252 = vpack.c.b16 %v7135, %v7132
    %v7253 = vpack.c.b16 %v7136, %v7133
    %v7254 = vpack.c.b16 %v7140, %v7137
    %v7255 = vpack.c.b16 %v7141, %v7138
    %v7256 = vpack.c.b16 %v7142, %v7139
    %v7257 = vpack.c.b16 %v7146, %v7143
    %v7258 = vpack.c.b16 %v7147, %v7144
    %v7259 = vpack.c.b16 %v7148, %v7145
    %v7260 = vpack.c.b16 %v7152, %v7149
    %v7261 = vpack.c.b16 %v7153, %v7150
    %v7262 = vpack.c.b16 %v7154, %v7151
    %v7263 = vpack.c.b16 %v7158, %v7155
    %v7264 = vpack.c.b16 %v7159, %v7156
    %v7265 = vpack.c.b16 %v7160, %v7157
    %v7266 = vpack.c.b16 %v7164, %v7161
    %v7267 = vpack.c.b16 %v7165, %v7162
    %v7268 = vpack.c.b16 %v7166, %v7163
    %v7269 = vpack.c.b16 %v7170, %v7167
    %v7270 = vpack.c.b16 %v7171, %v7168
    %v7271 = vpack.c.b16 %v7172, %v7169
    %v7272 = vpack.c.b16 %v7176, %v7173
    %v7273 = vpack.c.b16 %v7177, %v7174
    %v7274 = vpack.c.b16 %v7178, %v7175
    %v7275 = vpack.c.b16 %v7182, %v7179
    %v7276 = vpack.c.b16 %v7183, %v7180
    %v7277 = vpack.c.b16 %v7184, %v7181
    %v7278 = vpack.c.b16 %v7188, %v7185
    %v7279 = vpack.c.b16 %v7189, %v7186
    %v7280 = vpack.c.b16 %v7190, %v7187
    %v7281 = vpack.c.b16 %v7194, %v7191
    %v7282 = vpack.c.b16 %v7195, %v7192
    %v7283 = vpack.c.b16 %v7196, %v7193
    %v7284 = vpack.c.b16 %v7200, %v7197
    %v7285 = vpack.c.b16 %v7201, %v7198
    %v7286 = vpack.c.b16 %v7202, %v7199
    %v7287 = vpack.c.b16 %v7206, %v7203
    %v7288 = vpack.c.b16 %v7207, %v7204
    %v7289 = vpack.c.b16 %v7208, %v7205
    %v7290 = vpack.c.b16 %v7212, %v7209
    %v7291 = vpack.c.b16 %v7213, %v7210
    %v7292 = vpack.c.b16 %v7214, %v7211
    %v7293 = vpack.c.b16 %v7218, %v7215
    %v7294 = vpack.c.b16 %v7219, %v7216
    %v7295 = vpack.c.b16 %v7220, %v7217
    %v7296 = vpack.c.b16 %v7224, %v7221
    %v7297 = vpack.c.b16 %v7225, %v7222
    %v7298 = vpack.c.b16 %v7226, %v7223
    %7371 = vmatpush.bf16.msra.mxu0 %v7248
    %7372 = vmatpush.bf16.msra.mxu0 %v7245
    %7373 = vmatpush.bf16.msra.mxu0 %v7242
    %7374 = vmatpush.bf16.msra.mxu0 %v7239
    %7375 = vmatpush.bf16.msra.mxu0 %v7236
    %7376 = vmatpush.bf16.msra.mxu0 %v7233
    %7377 = vmatpush.bf16.msra.mxu0 %v7230
    %7378 = vmatpush.bf16.msra.mxu0 %v7227
    %7379 = vmatmul.bf16.gmra.mxu0 %v6984
    %v7380 = vpop.f32.mrf.mxu0
    %v7381 = vadd.f32 0.0, %v7380
    %v7382 = vpop.f32.mrf.mxu0
    %7383 = vdwg.mxu0
    %7384 = vmatpush.bf16.msra.mxu0 %v7272
    %7385 = vmatpush.bf16.msra.mxu0 %v7269
    %7386 = vmatpush.bf16.msra.mxu0 %v7266
    %7387 = vmatpush.bf16.msra.mxu0 %v7263
    %7388 = vmatpush.bf16.msra.mxu0 %v7260
    %7389 = vmatpush.bf16.msra.mxu0 %v7257
    %7390 = vmatpush.bf16.msra.mxu0 %v7254
    %7391 = vmatpush.bf16.msra.mxu0 %v7251
    %7392 = vmatmul.bf16.gmra.mxu0 %v6985
    %v7393 = vpop.f32.mrf.mxu0
    %v7394 = vadd.f32 %v7381, %v7393
    %v7395 = vpop.f32.mrf.mxu0
    %7396 = vdwg.mxu0
    %7397 = vmatpush.bf16.msra.mxu0 %v7296
    %7398 = vmatpush.bf16.msra.mxu0 %v7293
    %7399 = vmatpush.bf16.msra.mxu0 %v7290
    %7400 = vmatpush.bf16.msra.mxu0 %v7287
    %7401 = vmatpush.bf16.msra.mxu0 %v7284
    %7402 = vmatpush.bf16.msra.mxu0 %v7281
    %7403 = vmatpush.bf16.msra.mxu0 %v7278
    %7404 = vmatpush.bf16.msra.mxu0 %v7275
    %7405 = vmatmul.bf16.gmra.mxu0 %v6986
    %v7406 = vpop.f32.mrf.mxu0
    %v7407 = vadd.f32 %v7394, %v7406
    %v7408 = vpop.f32.mrf.mxu0
    %7409 = vdwg.mxu0
    %7410 = vmatpush.bf16.msra.mxu0 %v7249
    %7411 = vmatpush.bf16.msra.mxu0 %v7246
    %7412 = vmatpush.bf16.msra.mxu0 %v7243
    %7413 = vmatpush.bf16.msra.mxu0 %v7240
    %7414 = vmatpush.bf16.msra.mxu0 %v7237
    %7415 = vmatpush.bf16.msra.mxu0 %v7234
    %7416 = vmatpush.bf16.msra.mxu0 %v7231
    %7417 = vmatpush.bf16.msra.mxu0 %v7228
    %7418 = vmatmul.bf16.gmra.mxu0 %v6984
    %v7419 = vpop.f32.mrf.mxu0
    %v7420 = vadd.f32 0.0, %v7419
    %v7421 = vpop.f32.mrf.mxu0
    %7422 = vdwg.mxu0
    %7423 = vmatpush.bf16.msra.mxu0 %v7273
    %7424 = vmatpush.bf16.msra.mxu0 %v7270
    %7425 = vmatpush.bf16.msra.mxu0 %v7267
    %7426 = vmatpush.bf16.msra.mxu0 %v7264
    %7427 = vmatpush.bf16.msra.mxu0 %v7261
    %7428 = vmatpush.bf16.msra.mxu0 %v7258
    %7429 = vmatpush.bf16.msra.mxu0 %v7255
    %7430 = vmatpush.bf16.msra.mxu0 %v7252
    %7431 = vmatmul.bf16.gmra.mxu0 %v6985
    %v7432 = vpop.f32.mrf.mxu0
    %v7433 = vadd.f32 %v7420, %v7432
    %v7434 = vpop.f32.mrf.mxu0
    %7435 = vdwg.mxu0
    %7436 = vmatpush.bf16.msra.mxu0 %v7297
    %7437 = vmatpush.bf16.msra.mxu0 %v7294
    %7438 = vmatpush.bf16.msra.mxu0 %v7291
    %7439 = vmatpush.bf16.msra.mxu0 %v7288
    %7440 = vmatpush.bf16.msra.mxu0 %v7285
    %7441 = vmatpush.bf16.msra.mxu0 %v7282
    %7442 = vmatpush.bf16.msra.mxu0 %v7279
    %7443 = vmatpush.bf16.msra.mxu0 %v7276
    %7444 = vmatmul.bf16.gmra.mxu0 %v6986
    %v7445 = vpop.f32.mrf.mxu0
    %v7446 = vadd.f32 %v7433, %v7445
    %v7447 = vpop.f32.mrf.mxu0
    %7448 = vdwg.mxu0
    %7449 = vmatpush.bf16.msra.mxu0 %v7250
    %7450 = vmatpush.bf16.msra.mxu0 %v7247
    %7451 = vmatpush.bf16.msra.mxu0 %v7244
    %7452 = vmatpush.bf16.msra.mxu0 %v7241
    %7453 = vmatpush.bf16.msra.mxu0 %v7238
    %7454 = vmatpush.bf16.msra.mxu0 %v7235
    %7455 = vmatpush.bf16.msra.mxu0 %v7232
    %7456 = vmatpush.bf16.msra.mxu0 %v7229
    %7457 = vmatmul.bf16.gmra.mxu0 %v6984
    %v7458 = vpop.f32.mrf.mxu0
    %v7459 = vadd.f32 0.0, %v7458
    %v7460 = vpop.f32.mrf.mxu0
    %7461 = vdwg.mxu0
    %7462 = vmatpush.bf16.msra.mxu0 %v7274
    %7463 = vmatpush.bf16.msra.mxu0 %v7271
    %7464 = vmatpush.bf16.msra.mxu0 %v7268
    %7465 = vmatpush.bf16.msra.mxu0 %v7265
    %7466 = vmatpush.bf16.msra.mxu0 %v7262
    %7467 = vmatpush.bf16.msra.mxu0 %v7259
    %7468 = vmatpush.bf16.msra.mxu0 %v7256
    %7469 = vmatpush.bf16.msra.mxu0 %v7253
    %7470 = vmatmul.bf16.gmra.mxu0 %v6985
    %v7471 = vpop.f32.mrf.mxu0
    %v7472 = vadd.f32 %v7459, %v7471
    %v7473 = vpop.f32.mrf.mxu0
    %7474 = vdwg.mxu0
    %7475 = vmatpush.bf16.msra.mxu0 %v7298
    %7476 = vmatpush.bf16.msra.mxu0 %v7295
    %7477 = vmatpush.bf16.msra.mxu0 %v7292
    %7478 = vmatpush.bf16.msra.mxu0 %v7289
    %7479 = vmatpush.bf16.msra.mxu0 %v7286
    %7480 = vmatpush.bf16.msra.mxu0 %v7283
    %7481 = vmatpush.bf16.msra.mxu0 %v7280
    %7482 = vmatpush.bf16.msra.mxu0 %v7277
    %7483 = vmatmul.bf16.gmra.mxu0 %v6986
    %v7484 = vpop.f32.mrf.mxu0
    %v7485 = vadd.f32 %v7472, %v7484
    %v7486 = vpop.f32.mrf.mxu0
    %7487 = vdwg.mxu0
    %v7488 = vadd.f32 %v6489, %v7407
    %v7489 = vadd.f32 %v6528, %v7446
    %v7490 = vadd.f32 %v6567, %v7485
    %v7491 = vld [vmem:[%s19] sm:$0xf]
    %v7492 = vld [vmem:[%s16] sm:$0xff]
    %v7493 = vld [vmem:[%s16 + $0x8] sm:$0xf]
    %v7494 = vld [vmem:[%s16 + $0xc] sm:$0xff]
    %v7495 = vld [vmem:[%s16 + $0x14] sm:$0xf]
    %v7496 = vld [vmem:[%s16 + $0x18] sm:$0x33]
    %v7497 = vld [vmem:[%s16 + $0x20] sm:$0x3]
    %v7504 = vunpack.c.l.b16 %v7492
    %v7505 = vunpack.c.h.b16 %v7492
    %v7506 = vunpack.c.l.b16 %v7493
    %v7507 = vunpack.c.l.b16 %v7494
    %v7508 = vunpack.c.h.b16 %v7494
    %v7509 = vunpack.c.l.b16 %v7495
    %v7510 = vunpack.c.l.b16 %v7496
    %v7511 = vunpack.c.h.b16 %v7496
    %v7512 = vunpack.c.l.b16 %v7497
    %v7513 = vpack.c.b16 %v7507, %v7504
    %v7514 = vpack.c.b16 %v7508, %v7505
    %v7515 = vpack.c.b16 %v7509, %v7506
    %v7516 = vpack.c.b16 %v7510, %v7510
    %v7517 = vpack.c.b16 %v7511, %v7511
    %v7518 = vpack.c.b16 %v7512, %v7512
    %v7523 = vsel %vm6835, %v7491, 0
    %v7526 = vsel %vm6839, %v7516, 0
    %v7529 = vsel %vm6839, %v7517, 0
    %v7532 = vsel %vm6839, %v7518, 0
    %7534 = vmatpush.bf16.msra.mxu0 0
    %7535 = vmatpush.bf16.msra.mxu0 0
    %7536 = vmatpush.bf16.msra.mxu0 0
    %7537 = vmatpush.bf16.msra.mxu0 0
    %7538 = vmatpush.bf16.msra.mxu0 0
    %7539 = vmatpush.bf16.msra.mxu0 0
    %7540 = vmatpush.bf16.msra.mxu0 %v7526
    %7541 = vmatpush.bf16.msra.mxu0 %v7513
    %7542 = vmatmul.bf16.gmra.mxu0 %v7523
    %v7543 = vpop.f32.mrf.mxu0
    %v7544 = vadd.f32 0.0, %v7543
    %v7545 = vpop.f32.mrf.mxu0
    %7546 = vdwg.mxu0
    %7547 = vmatpush.bf16.msra.mxu0 0
    %7548 = vmatpush.bf16.msra.mxu0 0
    %7549 = vmatpush.bf16.msra.mxu0 0
    %7550 = vmatpush.bf16.msra.mxu0 0
    %7551 = vmatpush.bf16.msra.mxu0 0
    %7552 = vmatpush.bf16.msra.mxu0 0
    %7553 = vmatpush.bf16.msra.mxu0 %v7529
    %7554 = vmatpush.bf16.msra.mxu0 %v7514
    %7555 = vmatmul.bf16.gmra.mxu0 %v7523
    %v7556 = vpop.f32.mrf.mxu0
    %v7557 = vadd.f32 0.0, %v7556
    %v7558 = vpop.f32.mrf.mxu0
    %7559 = vdwg.mxu0
    %7560 = vmatpush.bf16.msra.mxu0 0
    %7561 = vmatpush.bf16.msra.mxu0 0
    %7562 = vmatpush.bf16.msra.mxu0 0
    %7563 = vmatpush.bf16.msra.mxu0 0
    %7564 = vmatpush.bf16.msra.mxu0 0
    %7565 = vmatpush.bf16.msra.mxu0 0
    %7566 = vmatpush.bf16.msra.mxu0 %v7532
    %7567 = vmatpush.bf16.msra.mxu0 %v7515
    %7568 = vmatmul.bf16.gmra.mxu0 %v7523
    %v7569 = vpop.f32.mrf.mxu0
    %v7570 = vadd.f32 0.0, %v7569
    %v7571 = vpop.f32.mrf.mxu0
    %7572 = vdwg.mxu0
    %v7573 = vld [vmem:[#allocation13] sm:$0xff]
    %v7574 = vld [vmem:[#allocation13 + $0x8] sm:$0xf]
    %v7575 = vld [vmem:[#allocation13 + $0xc] sm:$0xff]
    %v7576 = vld [vmem:[#allocation13 + $0x14] sm:$0xf]
    %v7577 = vld [vmem:[#allocation13 + $0x18] sm:$0xff]
    %v7578 = vld [vmem:[#allocation13 + $0x20] sm:$0xf]
    %v7579 = vld [vmem:[#allocation13 + $0x24] sm:$0xff]
    %v7580 = vld [vmem:[#allocation13 + $0x2c] sm:$0xf]
    %v7581 = vld [vmem:[#allocation13 + $0x30] sm:$0xff]
    %v7582 = vld [vmem:[#allocation13 + $0x38] sm:$0xf]
    %v7583 = vld [vmem:[#allocation13 + $0x3c] sm:$0xff]
    %v7584 = vld [vmem:[#allocation13 + $0x44] sm:$0xf]
    %v7585 = vld [vmem:[#allocation13 + $0x48] sm:$0xff]
    %v7586 = vld [vmem:[#allocation13 + $0x50] sm:$0xf]
    %v7587 = vld [vmem:[#allocation13 + $0x54] sm:$0xff]
    %v7588 = vld [vmem:[#allocation13 + $0x5c] sm:$0xf]
    %v7589 = vld [vmem:[#allocation13 + $0x60] sm:$0xff]
    %v7590 = vld [vmem:[#allocation13 + $0x68] sm:$0xf]
    %v7591 = vld [vmem:[#allocation13 + $0x6c] sm:$0xff]
    %v7592 = vld [vmem:[#allocation13 + $0x74] sm:$0xf]
    %v7593 = vld [vmem:[#allocation13 + $0x78] sm:$0xff]
    %v7594 = vld [vmem:[#allocation13 + $0x80] sm:$0xf]
    %v7595 = vld [vmem:[#allocation13 + $0x84] sm:$0xff]
    %v7596 = vld [vmem:[#allocation13 + $0x8c] sm:$0xf]
    %v7597 = vld [vmem:[#allocation13 + $0x90] sm:$0xff]
    %v7598 = vld [vmem:[#allocation13 + $0x98] sm:$0xf]
    %v7599 = vld [vmem:[#allocation13 + $0x9c] sm:$0xff]
    %v7600 = vld [vmem:[#allocation13 + $0xa4] sm:$0xf]
    %v7601 = vld [vmem:[#allocation13 + $0xa8] sm:$0xff]
    %v7602 = vld [vmem:[#allocation13 + $0xb0] sm:$0xf]
    %v7603 = vld [vmem:[#allocation13 + $0xb4] sm:$0xff]
    %v7604 = vld [vmem:[#allocation13 + $0xbc] sm:$0xf]
    %v7605 = vld [vmem:[#allocation13 + $0xc0] sm:$0xff]
    %v7606 = vld [vmem:[#allocation13 + $0xc8] sm:$0xf]
    %v7607 = vld [vmem:[#allocation13 + $0xcc] sm:$0xff]
    %v7608 = vld [vmem:[#allocation13 + $0xd4] sm:$0xf]
    %v7609 = vld [vmem:[#allocation13 + $0xd8] sm:$0xff]
    %v7610 = vld [vmem:[#allocation13 + $0xe0] sm:$0xf]
    %v7611 = vld [vmem:[#allocation13 + $0xe4] sm:$0xff]
    %v7612 = vld [vmem:[#allocation13 + $0xec] sm:$0xf]
    %v7613 = vld [vmem:[#allocation13 + $0xf0] sm:$0xff]
    %v7614 = vld [vmem:[#allocation13 + $0xf8] sm:$0xf]
    %v7615 = vld [vmem:[#allocation13 + $0xfc] sm:$0xff]
    %v7616 = vld [vmem:[#allocation13 + $0x104] sm:$0xf]
    %v7617 = vld [vmem:[#allocation13 + $0x108] sm:$0xff]
    %v7618 = vld [vmem:[#allocation13 + $0x110] sm:$0xf]
    %v7619 = vld [vmem:[#allocation13 + $0x114] sm:$0xff]
    %v7620 = vld [vmem:[#allocation13 + $0x11c] sm:$0xf]
    %v7621 = vld [vmem:[#allocation13 + $0x120] sm:$0xff]
    %v7622 = vld [vmem:[#allocation13 + $0x128] sm:$0xf]
    %v7623 = vld [vmem:[#allocation13 + $0x12c] sm:$0xff]
    %v7624 = vld [vmem:[#allocation13 + $0x134] sm:$0xf]
    %v7625 = vld [vmem:[#allocation13 + $0x138] sm:$0xff]
    %v7626 = vld [vmem:[#allocation13 + $0x140] sm:$0xf]
    %v7627 = vld [vmem:[#allocation13 + $0x144] sm:$0xff]
    %v7628 = vld [vmem:[#allocation13 + $0x14c] sm:$0xf]
    %v7629 = vld [vmem:[#allocation13 + $0x150] sm:$0xff]
    %v7630 = vld [vmem:[#allocation13 + $0x158] sm:$0xf]
    %v7631 = vld [vmem:[#allocation13 + $0x15c] sm:$0xff]
    %v7632 = vld [vmem:[#allocation13 + $0x164] sm:$0xf]
    %v7633 = vld [vmem:[#allocation13 + $0x168] sm:$0xff]
    %v7634 = vld [vmem:[#allocation13 + $0x170] sm:$0xf]
    %v7635 = vld [vmem:[#allocation13 + $0x174] sm:$0xff]
    %v7636 = vld [vmem:[#allocation13 + $0x17c] sm:$0xf]
    %v7637 = vld [vmem:[#allocation13 + $0x180] sm:$0xff]
    %v7638 = vld [vmem:[#allocation13 + $0x188] sm:$0xf]
    %v7639 = vld [vmem:[#allocation13 + $0x18c] sm:$0xff]
    %v7640 = vld [vmem:[#allocation13 + $0x194] sm:$0xf]
    %v7641 = vld [vmem:[#allocation13 + $0x198] sm:$0xff]
    %v7642 = vld [vmem:[#allocation13 + $0x1a0] sm:$0xf]
    %v7643 = vld [vmem:[#allocation13 + $0x1a4] sm:$0xff]
    %v7644 = vld [vmem:[#allocation13 + $0x1ac] sm:$0xf]
    %v7645 = vld [vmem:[#allocation13 + $0x1b0] sm:$0xff]
    %v7646 = vld [vmem:[#allocation13 + $0x1b8] sm:$0xf]
    %v7647 = vld [vmem:[#allocation13 + $0x1bc] sm:$0xff]
    %v7648 = vld [vmem:[#allocation13 + $0x1c4] sm:$0xf]
    %v7649 = vld [vmem:[#allocation13 + $0x1c8] sm:$0xff]
    %v7650 = vld [vmem:[#allocation13 + $0x1d0] sm:$0xf]
    %v7651 = vld [vmem:[#allocation13 + $0x1d4] sm:$0xff]
    %v7652 = vld [vmem:[#allocation13 + $0x1dc] sm:$0xf]
    %v7653 = vld [vmem:[#allocation13 + $0x1e0] sm:$0xff]
    %v7654 = vld [vmem:[#allocation13 + $0x1e8] sm:$0xf]
    %v7655 = vld [vmem:[#allocation13 + $0x1ec] sm:$0xff]
    %v7656 = vld [vmem:[#allocation13 + $0x1f4] sm:$0xf]
    %v7657 = vld [vmem:[#allocation13 + $0x1f8] sm:$0xff]
    %v7658 = vld [vmem:[#allocation13 + $0x200] sm:$0xf]
    %v7659 = vld [vmem:[#allocation13 + $0x204] sm:$0xff]
    %v7660 = vld [vmem:[#allocation13 + $0x20c] sm:$0xf]
    %v7661 = vld [vmem:[#allocation13 + $0x210] sm:$0xff]
    %v7662 = vld [vmem:[#allocation13 + $0x218] sm:$0xf]
    %v7663 = vld [vmem:[#allocation13 + $0x21c] sm:$0xff]
    %v7664 = vld [vmem:[#allocation13 + $0x224] sm:$0xf]
    %v7665 = vld [vmem:[#allocation13 + $0x228] sm:$0xff]
    %v7666 = vld [vmem:[#allocation13 + $0x230] sm:$0xf]
    %v7667 = vld [vmem:[#allocation13 + $0x234] sm:$0xff]
    %v7668 = vld [vmem:[#allocation13 + $0x23c] sm:$0xf]
    %v7669 = vpack.c.bf16 %v7544, %v7544
    %v7670 = vpack.c.bf16 %v7557, %v7557
    %v7671 = vpack.c.bf16 %v7570, %v7570
    %v7768 = vunpack.c.l.b16 %v7573
    %v7769 = vunpack.c.h.b16 %v7573
    %v7770 = vunpack.c.l.b16 %v7574
    %v7771 = vunpack.c.l.b16 %v7575
    %v7772 = vunpack.c.h.b16 %v7575
    %v7773 = vunpack.c.l.b16 %v7576
    %v7774 = vunpack.c.l.b16 %v7577
    %v7775 = vunpack.c.h.b16 %v7577
    %v7776 = vunpack.c.l.b16 %v7578
    %v7777 = vunpack.c.l.b16 %v7579
    %v7778 = vunpack.c.h.b16 %v7579
    %v7779 = vunpack.c.l.b16 %v7580
    %v7780 = vunpack.c.l.b16 %v7581
    %v7781 = vunpack.c.h.b16 %v7581
    %v7782 = vunpack.c.l.b16 %v7582
    %v7783 = vunpack.c.l.b16 %v7583
    %v7784 = vunpack.c.h.b16 %v7583
    %v7785 = vunpack.c.l.b16 %v7584
    %v7786 = vunpack.c.l.b16 %v7585
    %v7787 = vunpack.c.h.b16 %v7585
    %v7788 = vunpack.c.l.b16 %v7586
    %v7789 = vunpack.c.l.b16 %v7587
    %v7790 = vunpack.c.h.b16 %v7587
    %v7791 = vunpack.c.l.b16 %v7588
    %v7792 = vunpack.c.l.b16 %v7589
    %v7793 = vunpack.c.h.b16 %v7589
    %v7794 = vunpack.c.l.b16 %v7590
    %v7795 = vunpack.c.l.b16 %v7591
    %v7796 = vunpack.c.h.b16 %v7591
    %v7797 = vunpack.c.l.b16 %v7592
    %v7798 = vunpack.c.l.b16 %v7593
    %v7799 = vunpack.c.h.b16 %v7593
    %v7800 = vunpack.c.l.b16 %v7594
    %v7801 = vunpack.c.l.b16 %v7595
    %v7802 = vunpack.c.h.b16 %v7595
    %v7803 = vunpack.c.l.b16 %v7596
    %v7804 = vunpack.c.l.b16 %v7597
    %v7805 = vunpack.c.h.b16 %v7597
    %v7806 = vunpack.c.l.b16 %v7598
    %v7807 = vunpack.c.l.b16 %v7599
    %v7808 = vunpack.c.h.b16 %v7599
    %v7809 = vunpack.c.l.b16 %v7600
    %v7810 = vunpack.c.l.b16 %v7601
    %v7811 = vunpack.c.h.b16 %v7601
    %v7812 = vunpack.c.l.b16 %v7602
    %v7813 = vunpack.c.l.b16 %v7603
    %v7814 = vunpack.c.h.b16 %v7603
    %v7815 = vunpack.c.l.b16 %v7604
    %v7816 = vunpack.c.l.b16 %v7605
    %v7817 = vunpack.c.h.b16 %v7605
    %v7818 = vunpack.c.l.b16 %v7606
    %v7819 = vunpack.c.l.b16 %v7607
    %v7820 = vunpack.c.h.b16 %v7607
    %v7821 = vunpack.c.l.b16 %v7608
    %v7822 = vunpack.c.l.b16 %v7609
    %v7823 = vunpack.c.h.b16 %v7609
    %v7824 = vunpack.c.l.b16 %v7610
    %v7825 = vunpack.c.l.b16 %v7611
    %v7826 = vunpack.c.h.b16 %v7611
    %v7827 = vunpack.c.l.b16 %v7612
    %v7828 = vunpack.c.l.b16 %v7613
    %v7829 = vunpack.c.h.b16 %v7613
    %v7830 = vunpack.c.l.b16 %v7614
    %v7831 = vunpack.c.l.b16 %v7615
    %v7832 = vunpack.c.h.b16 %v7615
    %v7833 = vunpack.c.l.b16 %v7616
    %v7834 = vunpack.c.l.b16 %v7617
    %v7835 = vunpack.c.h.b16 %v7617
    %v7836 = vunpack.c.l.b16 %v7618
    %v7837 = vunpack.c.l.b16 %v7619
    %v7838 = vunpack.c.h.b16 %v7619
    %v7839 = vunpack.c.l.b16 %v7620
    %v7840 = vunpack.c.l.b16 %v7621
    %v7841 = vunpack.c.h.b16 %v7621
    %v7842 = vunpack.c.l.b16 %v7622
    %v7843 = vunpack.c.l.b16 %v7623
    %v7844 = vunpack.c.h.b16 %v7623
    %v7845 = vunpack.c.l.b16 %v7624
    %v7846 = vunpack.c.l.b16 %v7625
    %v7847 = vunpack.c.h.b16 %v7625
    %v7848 = vunpack.c.l.b16 %v7626
    %v7849 = vunpack.c.l.b16 %v7627
    %v7850 = vunpack.c.h.b16 %v7627
    %v7851 = vunpack.c.l.b16 %v7628
    %v7852 = vunpack.c.l.b16 %v7629
    %v7853 = vunpack.c.h.b16 %v7629
    %v7854 = vunpack.c.l.b16 %v7630
    %v7855 = vunpack.c.l.b16 %v7631
    %v7856 = vunpack.c.h.b16 %v7631
    %v7857 = vunpack.c.l.b16 %v7632
    %v7858 = vunpack.c.l.b16 %v7633
    %v7859 = vunpack.c.h.b16 %v7633
    %v7860 = vunpack.c.l.b16 %v7634
    %v7861 = vunpack.c.l.b16 %v7635
    %v7862 = vunpack.c.h.b16 %v7635
    %v7863 = vunpack.c.l.b16 %v7636
    %v7864 = vunpack.c.l.b16 %v7637
    %v7865 = vunpack.c.h.b16 %v7637
    %v7866 = vunpack.c.l.b16 %v7638
    %v7867 = vunpack.c.l.b16 %v7639
    %v7868 = vunpack.c.h.b16 %v7639
    %v7869 = vunpack.c.l.b16 %v7640
    %v7870 = vunpack.c.l.b16 %v7641
    %v7871 = vunpack.c.h.b16 %v7641
    %v7872 = vunpack.c.l.b16 %v7642
    %v7873 = vunpack.c.l.b16 %v7643
    %v7874 = vunpack.c.h.b16 %v7643
    %v7875 = vunpack.c.l.b16 %v7644
    %v7876 = vunpack.c.l.b16 %v7645
    %v7877 = vunpack.c.h.b16 %v7645
    %v7878 = vunpack.c.l.b16 %v7646
    %v7879 = vunpack.c.l.b16 %v7647
    %v7880 = vunpack.c.h.b16 %v7647
    %v7881 = vunpack.c.l.b16 %v7648
    %v7882 = vunpack.c.l.b16 %v7649
    %v7883 = vunpack.c.h.b16 %v7649
    %v7884 = vunpack.c.l.b16 %v7650
    %v7885 = vunpack.c.l.b16 %v7651
    %v7886 = vunpack.c.h.b16 %v7651
    %v7887 = vunpack.c.l.b16 %v7652
    %v7888 = vunpack.c.l.b16 %v7653
    %v7889 = vunpack.c.h.b16 %v7653
    %v7890 = vunpack.c.l.b16 %v7654
    %v7891 = vunpack.c.l.b16 %v7655
    %v7892 = vunpack.c.h.b16 %v7655
    %v7893 = vunpack.c.l.b16 %v7656
    %v7894 = vunpack.c.l.b16 %v7657
    %v7895 = vunpack.c.h.b16 %v7657
    %v7896 = vunpack.c.l.b16 %v7658
    %v7897 = vunpack.c.l.b16 %v7659
    %v7898 = vunpack.c.h.b16 %v7659
    %v7899 = vunpack.c.l.b16 %v7660
    %v7900 = vunpack.c.l.b16 %v7661
    %v7901 = vunpack.c.h.b16 %v7661
    %v7902 = vunpack.c.l.b16 %v7662
    %v7903 = vunpack.c.l.b16 %v7663
    %v7904 = vunpack.c.h.b16 %v7663
    %v7905 = vunpack.c.l.b16 %v7664
    %v7906 = vunpack.c.l.b16 %v7665
    %v7907 = vunpack.c.h.b16 %v7665
    %v7908 = vunpack.c.l.b16 %v7666
    %v7909 = vunpack.c.l.b16 %v7667
    %v7910 = vunpack.c.h.b16 %v7667
    %v7911 = vunpack.c.l.b16 %v7668
    %v7912 = vpack.c.b16 %v7771, %v7768
    %v7913 = vpack.c.b16 %v7772, %v7769
    %v7914 = vpack.c.b16 %v7773, %v7770
    %v7915 = vpack.c.b16 %v7777, %v7774
    %v7916 = vpack.c.b16 %v7778, %v7775
    %v7917 = vpack.c.b16 %v7779, %v7776
    %v7918 = vpack.c.b16 %v7783, %v7780
    %v7919 = vpack.c.b16 %v7784, %v7781
    %v7920 = vpack.c.b16 %v7785, %v7782
    %v7921 = vpack.c.b16 %v7789, %v7786
    %v7922 = vpack.c.b16 %v7790, %v7787
    %v7923 = vpack.c.b16 %v7791, %v7788
    %v7924 = vpack.c.b16 %v7795, %v7792
    %v7925 = vpack.c.b16 %v7796, %v7793
    %v7926 = vpack.c.b16 %v7797, %v7794
    %v7927 = vpack.c.b16 %v7801, %v7798
    %v7928 = vpack.c.b16 %v7802, %v7799
    %v7929 = vpack.c.b16 %v7803, %v7800
    %v7930 = vpack.c.b16 %v7807, %v7804
    %v7931 = vpack.c.b16 %v7808, %v7805
    %v7932 = vpack.c.b16 %v7809, %v7806
    %v7933 = vpack.c.b16 %v7813, %v7810
    %v7934 = vpack.c.b16 %v7814, %v7811
    %v7935 = vpack.c.b16 %v7815, %v7812
    %v7936 = vpack.c.b16 %v7819, %v7816
    %v7937 = vpack.c.b16 %v7820, %v7817
    %v7938 = vpack.c.b16 %v7821, %v7818
    %v7939 = vpack.c.b16 %v7825, %v7822
    %v7940 = vpack.c.b16 %v7826, %v7823
    %v7941 = vpack.c.b16 %v7827, %v7824
    %v7942 = vpack.c.b16 %v7831, %v7828
    %v7943 = vpack.c.b16 %v7832, %v7829
    %v7944 = vpack.c.b16 %v7833, %v7830
    %v7945 = vpack.c.b16 %v7837, %v7834
    %v7946 = vpack.c.b16 %v7838, %v7835
    %v7947 = vpack.c.b16 %v7839, %v7836
    %v7948 = vpack.c.b16 %v7843, %v7840
    %v7949 = vpack.c.b16 %v7844, %v7841
    %v7950 = vpack.c.b16 %v7845, %v7842
    %v7951 = vpack.c.b16 %v7849, %v7846
    %v7952 = vpack.c.b16 %v7850, %v7847
    %v7953 = vpack.c.b16 %v7851, %v7848
    %v7954 = vpack.c.b16 %v7855, %v7852
    %v7955 = vpack.c.b16 %v7856, %v7853
    %v7956 = vpack.c.b16 %v7857, %v7854
    %v7957 = vpack.c.b16 %v7861, %v7858
    %v7958 = vpack.c.b16 %v7862, %v7859
    %v7959 = vpack.c.b16 %v7863, %v7860
    %v7960 = vpack.c.b16 %v7867, %v7864
    %v7961 = vpack.c.b16 %v7868, %v7865
    %v7962 = vpack.c.b16 %v7869, %v7866
    %v7963 = vpack.c.b16 %v7873, %v7870
    %v7964 = vpack.c.b16 %v7874, %v7871
    %v7965 = vpack.c.b16 %v7875, %v7872
    %v7966 = vpack.c.b16 %v7879, %v7876
    %v7967 = vpack.c.b16 %v7880, %v7877
    %v7968 = vpack.c.b16 %v7881, %v7878
    %v7969 = vpack.c.b16 %v7885, %v7882
    %v7970 = vpack.c.b16 %v7886, %v7883
    %v7971 = vpack.c.b16 %v7887, %v7884
    %v7972 = vpack.c.b16 %v7891, %v7888
    %v7973 = vpack.c.b16 %v7892, %v7889
    %v7974 = vpack.c.b16 %v7893, %v7890
    %v7975 = vpack.c.b16 %v7897, %v7894
    %v7976 = vpack.c.b16 %v7898, %v7895
    %v7977 = vpack.c.b16 %v7899, %v7896
    %v7978 = vpack.c.b16 %v7903, %v7900
    %v7979 = vpack.c.b16 %v7904, %v7901
    %v7980 = vpack.c.b16 %v7905, %v7902
    %v7981 = vpack.c.b16 %v7909, %v7906
    %v7982 = vpack.c.b16 %v7910, %v7907
    %v7983 = vpack.c.b16 %v7911, %v7908
    %8056 = vmatpush.bf16.msra.mxu0 %v7933
    %8057 = vmatpush.bf16.msra.mxu0 %v7930
    %8058 = vmatpush.bf16.msra.mxu0 %v7927
    %8059 = vmatpush.bf16.msra.mxu0 %v7924
    %8060 = vmatpush.bf16.msra.mxu0 %v7921
    %8061 = vmatpush.bf16.msra.mxu0 %v7918
    %8062 = vmatpush.bf16.msra.mxu0 %v7915
    %8063 = vmatpush.bf16.msra.mxu0 %v7912
    %8064 = vmatmul.bf16.gmra.mxu0 %v7669
    %v8065 = vpop.f32.mrf.mxu0
    %v8066 = vadd.f32 0.0, %v8065
    %v8067 = vpop.f32.mrf.mxu0
    %8068 = vdwg.mxu0
    %8069 = vmatpush.bf16.msra.mxu0 %v7957
    %8070 = vmatpush.bf16.msra.mxu0 %v7954
    %8071 = vmatpush.bf16.msra.mxu0 %v7951
    %8072 = vmatpush.bf16.msra.mxu0 %v7948
    %8073 = vmatpush.bf16.msra.mxu0 %v7945
    %8074 = vmatpush.bf16.msra.mxu0 %v7942
    %8075 = vmatpush.bf16.msra.mxu0 %v7939
    %8076 = vmatpush.bf16.msra.mxu0 %v7936
    %8077 = vmatmul.bf16.gmra.mxu0 %v7670
    %v8078 = vpop.f32.mrf.mxu0
    %v8079 = vadd.f32 %v8066, %v8078
    %v8080 = vpop.f32.mrf.mxu0
    %8081 = vdwg.mxu0
    %8082 = vmatpush.bf16.msra.mxu0 %v7981
    %8083 = vmatpush.bf16.msra.mxu0 %v7978
    %8084 = vmatpush.bf16.msra.mxu0 %v7975
    %8085 = vmatpush.bf16.msra.mxu0 %v7972
    %8086 = vmatpush.bf16.msra.mxu0 %v7969
    %8087 = vmatpush.bf16.msra.mxu0 %v7966
    %8088 = vmatpush.bf16.msra.mxu0 %v7963
    %8089 = vmatpush.bf16.msra.mxu0 %v7960
    %8090 = vmatmul.bf16.gmra.mxu0 %v7671
    %v8091 = vpop.f32.mrf.mxu0
    %v8092 = vadd.f32 %v8079, %v8091
    %v8093 = vpop.f32.mrf.mxu0
    %8094 = vdwg.mxu0
    %8095 = vmatpush.bf16.msra.mxu0 %v7934
    %8096 = vmatpush.bf16.msra.mxu0 %v7931
    %8097 = vmatpush.bf16.msra.mxu0 %v7928
    %8098 = vmatpush.bf16.msra.mxu0 %v7925
    %8099 = vmatpush.bf16.msra.mxu0 %v7922
    %8100 = vmatpush.bf16.msra.mxu0 %v7919
    %8101 = vmatpush.bf16.msra.mxu0 %v7916
    %8102 = vmatpush.bf16.msra.mxu0 %v7913
    %8103 = vmatmul.bf16.gmra.mxu0 %v7669
    %v8104 = vpop.f32.mrf.mxu0
    %v8105 = vadd.f32 0.0, %v8104
    %v8106 = vpop.f32.mrf.mxu0
    %8107 = vdwg.mxu0
    %8108 = vmatpush.bf16.msra.mxu0 %v7958
    %8109 = vmatpush.bf16.msra.mxu0 %v7955
    %8110 = vmatpush.bf16.msra.mxu0 %v7952
    %8111 = vmatpush.bf16.msra.mxu0 %v7949
    %8112 = vmatpush.bf16.msra.mxu0 %v7946
    %8113 = vmatpush.bf16.msra.mxu0 %v7943
    %8114 = vmatpush.bf16.msra.mxu0 %v7940
    %8115 = vmatpush.bf16.msra.mxu0 %v7937
    %8116 = vmatmul.bf16.gmra.mxu0 %v7670
    %v8117 = vpop.f32.mrf.mxu0
    %v8118 = vadd.f32 %v8105, %v8117
    %v8119 = vpop.f32.mrf.mxu0
    %8120 = vdwg.mxu0
    %8121 = vmatpush.bf16.msra.mxu0 %v7982
    %8122 = vmatpush.bf16.msra.mxu0 %v7979
    %8123 = vmatpush.bf16.msra.mxu0 %v7976
    %8124 = vmatpush.bf16.msra.mxu0 %v7973
    %8125 = vmatpush.bf16.msra.mxu0 %v7970
    %8126 = vmatpush.bf16.msra.mxu0 %v7967
    %8127 = vmatpush.bf16.msra.mxu0 %v7964
    %8128 = vmatpush.bf16.msra.mxu0 %v7961
    %8129 = vmatmul.bf16.gmra.mxu0 %v7671
    %v8130 = vpop.f32.mrf.mxu0
    %v8131 = vadd.f32 %v8118, %v8130
    %v8132 = vpop.f32.mrf.mxu0
    %8133 = vdwg.mxu0
    %8134 = vmatpush.bf16.msra.mxu0 %v7935
    %8135 = vmatpush.bf16.msra.mxu0 %v7932
    %8136 = vmatpush.bf16.msra.mxu0 %v7929
    %8137 = vmatpush.bf16.msra.mxu0 %v7926
    %8138 = vmatpush.bf16.msra.mxu0 %v7923
    %8139 = vmatpush.bf16.msra.mxu0 %v7920
    %8140 = vmatpush.bf16.msra.mxu0 %v7917
    %8141 = vmatpush.bf16.msra.mxu0 %v7914
    %8142 = vmatmul.bf16.gmra.mxu0 %v7669
    %v8143 = vpop.f32.mrf.mxu0
    %v8144 = vadd.f32 0.0, %v8143
    %v8145 = vpop.f32.mrf.mxu0
    %8146 = vdwg.mxu0
    %8147 = vmatpush.bf16.msra.mxu0 %v7959
    %8148 = vmatpush.bf16.msra.mxu0 %v7956
    %8149 = vmatpush.bf16.msra.mxu0 %v7953
    %8150 = vmatpush.bf16.msra.mxu0 %v7950
    %8151 = vmatpush.bf16.msra.mxu0 %v7947
    %8152 = vmatpush.bf16.msra.mxu0 %v7944
    %8153 = vmatpush.bf16.msra.mxu0 %v7941
    %8154 = vmatpush.bf16.msra.mxu0 %v7938
    %8155 = vmatmul.bf16.gmra.mxu0 %v7670
    %v8156 = vpop.f32.mrf.mxu0
    %v8157 = vadd.f32 %v8144, %v8156
    %v8158 = vpop.f32.mrf.mxu0
    %8159 = vdwg.mxu0
    %8160 = vmatpush.bf16.msra.mxu0 %v7983
    %8161 = vmatpush.bf16.msra.mxu0 %v7980
    %8162 = vmatpush.bf16.msra.mxu0 %v7977
    %8163 = vmatpush.bf16.msra.mxu0 %v7974
    %8164 = vmatpush.bf16.msra.mxu0 %v7971
    %8165 = vmatpush.bf16.msra.mxu0 %v7968
    %8166 = vmatpush.bf16.msra.mxu0 %v7965
    %8167 = vmatpush.bf16.msra.mxu0 %v7962
    %8168 = vmatmul.bf16.gmra.mxu0 %v7671
    %v8169 = vpop.f32.mrf.mxu0
    %v8170 = vadd.f32 %v8157, %v8169
    %v8171 = vpop.f32.mrf.mxu0
    %8172 = vdwg.mxu0
    %v8173 = vadd.f32 %v6606, %v8092
    %v8174 = vadd.f32 %v6645, %v8131
    %v8175 = vadd.f32 %v6684, %v8170
    %v8176 = vld [vmem:[%s20] sm:$0xf]
    %v8177 = vld [vmem:[%s17] sm:$0xff]
    %v8178 = vld [vmem:[%s17 + $0x8] sm:$0xf]
    %v8179 = vld [vmem:[%s17 + $0xc] sm:$0xff]
    %v8180 = vld [vmem:[%s17 + $0x14] sm:$0xf]
    %v8181 = vld [vmem:[%s17 + $0x18] sm:$0x33]
    %v8182 = vld [vmem:[%s17 + $0x20] sm:$0x3]
    %v8189 = vunpack.c.l.b16 %v8177
    %v8190 = vunpack.c.h.b16 %v8177
    %v8191 = vunpack.c.l.b16 %v8178
    %v8192 = vunpack.c.l.b16 %v8179
    %v8193 = vunpack.c.h.b16 %v8179
    %v8194 = vunpack.c.l.b16 %v8180
    %v8195 = vunpack.c.l.b16 %v8181
    %v8196 = vunpack.c.h.b16 %v8181
    %v8197 = vunpack.c.l.b16 %v8182
    %v8198 = vpack.c.b16 %v8192, %v8189
    %v8199 = vpack.c.b16 %v8193, %v8190
    %v8200 = vpack.c.b16 %v8194, %v8191
    %v8201 = vpack.c.b16 %v8195, %v8195
    %v8202 = vpack.c.b16 %v8196, %v8196
    %v8203 = vpack.c.b16 %v8197, %v8197
    %v8208 = vsel %vm6835, %v8176, 0
    %v8211 = vsel %vm6839, %v8201, 0
    %v8214 = vsel %vm6839, %v8202, 0
    %v8217 = vsel %vm6839, %v8203, 0
    %8219 = vmatpush.bf16.msra.mxu0 0
    %8220 = vmatpush.bf16.msra.mxu0 0
    %8221 = vmatpush.bf16.msra.mxu0 0
    %8222 = vmatpush.bf16.msra.mxu0 0
    %8223 = vmatpush.bf16.msra.mxu0 0
    %8224 = vmatpush.bf16.msra.mxu0 0
    %8225 = vmatpush.bf16.msra.mxu0 %v8211
    %8226 = vmatpush.bf16.msra.mxu0 %v8198
    %8227 = vmatmul.bf16.gmra.mxu0 %v8208
    %v8228 = vpop.f32.mrf.mxu0
    %v8229 = vadd.f32 0.0, %v8228
    %v8230 = vpop.f32.mrf.mxu0
    %8231 = vdwg.mxu0
    %8232 = vmatpush.bf16.msra.mxu0 0
    %8233 = vmatpush.bf16.msra.mxu0 0
    %8234 = vmatpush.bf16.msra.mxu0 0
    %8235 = vmatpush.bf16.msra.mxu0 0
    %8236 = vmatpush.bf16.msra.mxu0 0
    %8237 = vmatpush.bf16.msra.mxu0 0
    %8238 = vmatpush.bf16.msra.mxu0 %v8214
    %8239 = vmatpush.bf16.msra.mxu0 %v8199
    %8240 = vmatmul.bf16.gmra.mxu0 %v8208
    %v8241 = vpop.f32.mrf.mxu0
    %v8242 = vadd.f32 0.0, %v8241
    %v8243 = vpop.f32.mrf.mxu0
    %8244 = vdwg.mxu0
    %8245 = vmatpush.bf16.msra.mxu0 0
    %8246 = vmatpush.bf16.msra.mxu0 0
    %8247 = vmatpush.bf16.msra.mxu0 0
    %8248 = vmatpush.bf16.msra.mxu0 0
    %8249 = vmatpush.bf16.msra.mxu0 0
    %8250 = vmatpush.bf16.msra.mxu0 0
    %8251 = vmatpush.bf16.msra.mxu0 %v8217
    %8252 = vmatpush.bf16.msra.mxu0 %v8200
    %8253 = vmatmul.bf16.gmra.mxu0 %v8208
    %v8254 = vpop.f32.mrf.mxu0
    %v8255 = vadd.f32 0.0, %v8254
    %v8256 = vpop.f32.mrf.mxu0
    %8257 = vdwg.mxu0
    %v8258 = vld [vmem:[#allocation15] sm:$0xff]
    %v8259 = vld [vmem:[#allocation15 + $0x8] sm:$0xf]
    %v8260 = vld [vmem:[#allocation15 + $0xc] sm:$0xff]
    %v8261 = vld [vmem:[#allocation15 + $0x14] sm:$0xf]
    %v8262 = vld [vmem:[#allocation15 + $0x18] sm:$0xff]
    %v8263 = vld [vmem:[#allocation15 + $0x20] sm:$0xf]
    %v8264 = vld [vmem:[#allocation15 + $0x24] sm:$0xff]
    %v8265 = vld [vmem:[#allocation15 + $0x2c] sm:$0xf]
    %v8266 = vld [vmem:[#allocation15 + $0x30] sm:$0xff]
    %v8267 = vld [vmem:[#allocation15 + $0x38] sm:$0xf]
    %v8268 = vld [vmem:[#allocation15 + $0x3c] sm:$0xff]
    %v8269 = vld [vmem:[#allocation15 + $0x44] sm:$0xf]
    %v8270 = vld [vmem:[#allocation15 + $0x48] sm:$0xff]
    %v8271 = vld [vmem:[#allocation15 + $0x50] sm:$0xf]
    %v8272 = vld [vmem:[#allocation15 + $0x54] sm:$0xff]
    %v8273 = vld [vmem:[#allocation15 + $0x5c] sm:$0xf]
    %v8274 = vld [vmem:[#allocation15 + $0x60] sm:$0xff]
    %v8275 = vld [vmem:[#allocation15 + $0x68] sm:$0xf]
    %v8276 = vld [vmem:[#allocation15 + $0x6c] sm:$0xff]
    %v8277 = vld [vmem:[#allocation15 + $0x74] sm:$0xf]
    %v8278 = vld [vmem:[#allocation15 + $0x78] sm:$0xff]
    %v8279 = vld [vmem:[#allocation15 + $0x80] sm:$0xf]
    %v8280 = vld [vmem:[#allocation15 + $0x84] sm:$0xff]
    %v8281 = vld [vmem:[#allocation15 + $0x8c] sm:$0xf]
    %v8282 = vld [vmem:[#allocation15 + $0x90] sm:$0xff]
    %v8283 = vld [vmem:[#allocation15 + $0x98] sm:$0xf]
    %v8284 = vld [vmem:[#allocation15 + $0x9c] sm:$0xff]
    %v8285 = vld [vmem:[#allocation15 + $0xa4] sm:$0xf]
    %v8286 = vld [vmem:[#allocation15 + $0xa8] sm:$0xff]
    %v8287 = vld [vmem:[#allocation15 + $0xb0] sm:$0xf]
    %v8288 = vld [vmem:[#allocation15 + $0xb4] sm:$0xff]
    %v8289 = vld [vmem:[#allocation15 + $0xbc] sm:$0xf]
    %v8290 = vld [vmem:[#allocation15 + $0xc0] sm:$0xff]
    %v8291 = vld [vmem:[#allocation15 + $0xc8] sm:$0xf]
    %v8292 = vld [vmem:[#allocation15 + $0xcc] sm:$0xff]
    %v8293 = vld [vmem:[#allocation15 + $0xd4] sm:$0xf]
    %v8294 = vld [vmem:[#allocation15 + $0xd8] sm:$0xff]
    %v8295 = vld [vmem:[#allocation15 + $0xe0] sm:$0xf]
    %v8296 = vld [vmem:[#allocation15 + $0xe4] sm:$0xff]
    %v8297 = vld [vmem:[#allocation15 + $0xec] sm:$0xf]
    %v8298 = vld [vmem:[#allocation15 + $0xf0] sm:$0xff]
    %v8299 = vld [vmem:[#allocation15 + $0xf8] sm:$0xf]
    %v8300 = vld [vmem:[#allocation15 + $0xfc] sm:$0xff]
    %v8301 = vld [vmem:[#allocation15 + $0x104] sm:$0xf]
    %v8302 = vld [vmem:[#allocation15 + $0x108] sm:$0xff]
    %v8303 = vld [vmem:[#allocation15 + $0x110] sm:$0xf]
    %v8304 = vld [vmem:[#allocation15 + $0x114] sm:$0xff]
    %v8305 = vld [vmem:[#allocation15 + $0x11c] sm:$0xf]
    %v8306 = vld [vmem:[#allocation15 + $0x120] sm:$0xff]
    %v8307 = vld [vmem:[#allocation15 + $0x128] sm:$0xf]
    %v8308 = vld [vmem:[#allocation15 + $0x12c] sm:$0xff]
    %v8309 = vld [vmem:[#allocation15 + $0x134] sm:$0xf]
    %v8310 = vld [vmem:[#allocation15 + $0x138] sm:$0xff]
    %v8311 = vld [vmem:[#allocation15 + $0x140] sm:$0xf]
    %v8312 = vld [vmem:[#allocation15 + $0x144] sm:$0xff]
    %v8313 = vld [vmem:[#allocation15 + $0x14c] sm:$0xf]
    %v8314 = vld [vmem:[#allocation15 + $0x150] sm:$0xff]
    %v8315 = vld [vmem:[#allocation15 + $0x158] sm:$0xf]
    %v8316 = vld [vmem:[#allocation15 + $0x15c] sm:$0xff]
    %v8317 = vld [vmem:[#allocation15 + $0x164] sm:$0xf]
    %v8318 = vld [vmem:[#allocation15 + $0x168] sm:$0xff]
    %v8319 = vld [vmem:[#allocation15 + $0x170] sm:$0xf]
    %v8320 = vld [vmem:[#allocation15 + $0x174] sm:$0xff]
    %v8321 = vld [vmem:[#allocation15 + $0x17c] sm:$0xf]
    %v8322 = vld [vmem:[#allocation15 + $0x180] sm:$0xff]
    %v8323 = vld [vmem:[#allocation15 + $0x188] sm:$0xf]
    %v8324 = vld [vmem:[#allocation15 + $0x18c] sm:$0xff]
    %v8325 = vld [vmem:[#allocation15 + $0x194] sm:$0xf]
    %v8326 = vld [vmem:[#allocation15 + $0x198] sm:$0xff]
    %v8327 = vld [vmem:[#allocation15 + $0x1a0] sm:$0xf]
    %v8328 = vld [vmem:[#allocation15 + $0x1a4] sm:$0xff]
    %v8329 = vld [vmem:[#allocation15 + $0x1ac] sm:$0xf]
    %v8330 = vld [vmem:[#allocation15 + $0x1b0] sm:$0xff]
    %v8331 = vld [vmem:[#allocation15 + $0x1b8] sm:$0xf]
    %v8332 = vld [vmem:[#allocation15 + $0x1bc] sm:$0xff]
    %v8333 = vld [vmem:[#allocation15 + $0x1c4] sm:$0xf]
    %v8334 = vld [vmem:[#allocation15 + $0x1c8] sm:$0xff]
    %v8335 = vld [vmem:[#allocation15 + $0x1d0] sm:$0xf]
    %v8336 = vld [vmem:[#allocation15 + $0x1d4] sm:$0xff]
    %v8337 = vld [vmem:[#allocation15 + $0x1dc] sm:$0xf]
    %v8338 = vld [vmem:[#allocation15 + $0x1e0] sm:$0xff]
    %v8339 = vld [vmem:[#allocation15 + $0x1e8] sm:$0xf]
    %v8340 = vld [vmem:[#allocation15 + $0x1ec] sm:$0xff]
    %v8341 = vld [vmem:[#allocation15 + $0x1f4] sm:$0xf]
    %v8342 = vld [vmem:[#allocation15 + $0x1f8] sm:$0xff]
    %v8343 = vld [vmem:[#allocation15 + $0x200] sm:$0xf]
    %v8344 = vld [vmem:[#allocation15 + $0x204] sm:$0xff]
    %v8345 = vld [vmem:[#allocation15 + $0x20c] sm:$0xf]
    %v8346 = vld [vmem:[#allocation15 + $0x210] sm:$0xff]
    %v8347 = vld [vmem:[#allocation15 + $0x218] sm:$0xf]
    %v8348 = vld [vmem:[#allocation15 + $0x21c] sm:$0xff]
    %v8349 = vld [vmem:[#allocation15 + $0x224] sm:$0xf]
    %v8350 = vld [vmem:[#allocation15 + $0x228] sm:$0xff]
    %v8351 = vld [vmem:[#allocation15 + $0x230] sm:$0xf]
    %v8352 = vld [vmem:[#allocation15 + $0x234] sm:$0xff]
    %v8353 = vld [vmem:[#allocation15 + $0x23c] sm:$0xf]
    %v8354 = vpack.c.bf16 %v8229, %v8229
    %v8355 = vpack.c.bf16 %v8242, %v8242
    %v8356 = vpack.c.bf16 %v8255, %v8255
    %v8453 = vunpack.c.l.b16 %v8258
    %v8454 = vunpack.c.h.b16 %v8258
    %v8455 = vunpack.c.l.b16 %v8259
    %v8456 = vunpack.c.l.b16 %v8260
    %v8457 = vunpack.c.h.b16 %v8260
    %v8458 = vunpack.c.l.b16 %v8261
    %v8459 = vunpack.c.l.b16 %v8262
    %v8460 = vunpack.c.h.b16 %v8262
    %v8461 = vunpack.c.l.b16 %v8263
    %v8462 = vunpack.c.l.b16 %v8264
    %v8463 = vunpack.c.h.b16 %v8264
    %v8464 = vunpack.c.l.b16 %v8265
    %v8465 = vunpack.c.l.b16 %v8266
    %v8466 = vunpack.c.h.b16 %v8266
    %v8467 = vunpack.c.l.b16 %v8267
    %v8468 = vunpack.c.l.b16 %v8268
    %v8469 = vunpack.c.h.b16 %v8268
    %v8470 = vunpack.c.l.b16 %v8269
    %v8471 = vunpack.c.l.b16 %v8270
    %v8472 = vunpack.c.h.b16 %v8270
    %v8473 = vunpack.c.l.b16 %v8271
    %v8474 = vunpack.c.l.b16 %v8272
    %v8475 = vunpack.c.h.b16 %v8272
    %v8476 = vunpack.c.l.b16 %v8273
    %v8477 = vunpack.c.l.b16 %v8274
    %v8478 = vunpack.c.h.b16 %v8274
    %v8479 = vunpack.c.l.b16 %v8275
    %v8480 = vunpack.c.l.b16 %v8276
    %v8481 = vunpack.c.h.b16 %v8276
    %v8482 = vunpack.c.l.b16 %v8277
    %v8483 = vunpack.c.l.b16 %v8278
    %v8484 = vunpack.c.h.b16 %v8278
    %v8485 = vunpack.c.l.b16 %v8279
    %v8486 = vunpack.c.l.b16 %v8280
    %v8487 = vunpack.c.h.b16 %v8280
    %v8488 = vunpack.c.l.b16 %v8281
    %v8489 = vunpack.c.l.b16 %v8282
    %v8490 = vunpack.c.h.b16 %v8282
    %v8491 = vunpack.c.l.b16 %v8283
    %v8492 = vunpack.c.l.b16 %v8284
    %v8493 = vunpack.c.h.b16 %v8284
    %v8494 = vunpack.c.l.b16 %v8285
    %v8495 = vunpack.c.l.b16 %v8286
    %v8496 = vunpack.c.h.b16 %v8286
    %v8497 = vunpack.c.l.b16 %v8287
    %v8498 = vunpack.c.l.b16 %v8288
    %v8499 = vunpack.c.h.b16 %v8288
    %v8500 = vunpack.c.l.b16 %v8289
    %v8501 = vunpack.c.l.b16 %v8290
    %v8502 = vunpack.c.h.b16 %v8290
    %v8503 = vunpack.c.l.b16 %v8291
    %v8504 = vunpack.c.l.b16 %v8292
    %v8505 = vunpack.c.h.b16 %v8292
    %v8506 = vunpack.c.l.b16 %v8293
    %v8507 = vunpack.c.l.b16 %v8294
    %v8508 = vunpack.c.h.b16 %v8294
    %v8509 = vunpack.c.l.b16 %v8295
    %v8510 = vunpack.c.l.b16 %v8296
    %v8511 = vunpack.c.h.b16 %v8296
    %v8512 = vunpack.c.l.b16 %v8297
    %v8513 = vunpack.c.l.b16 %v8298
    %v8514 = vunpack.c.h.b16 %v8298
    %v8515 = vunpack.c.l.b16 %v8299
    %v8516 = vunpack.c.l.b16 %v8300
    %v8517 = vunpack.c.h.b16 %v8300
    %v8518 = vunpack.c.l.b16 %v8301
    %v8519 = vunpack.c.l.b16 %v8302
    %v8520 = vunpack.c.h.b16 %v8302
    %v8521 = vunpack.c.l.b16 %v8303
    %v8522 = vunpack.c.l.b16 %v8304
    %v8523 = vunpack.c.h.b16 %v8304
    %v8524 = vunpack.c.l.b16 %v8305
    %v8525 = vunpack.c.l.b16 %v8306
    %v8526 = vunpack.c.h.b16 %v8306
    %v8527 = vunpack.c.l.b16 %v8307
    %v8528 = vunpack.c.l.b16 %v8308
    %v8529 = vunpack.c.h.b16 %v8308
    %v8530 = vunpack.c.l.b16 %v8309
    %v8531 = vunpack.c.l.b16 %v8310
    %v8532 = vunpack.c.h.b16 %v8310
    %v8533 = vunpack.c.l.b16 %v8311
    %v8534 = vunpack.c.l.b16 %v8312
    %v8535 = vunpack.c.h.b16 %v8312
    %v8536 = vunpack.c.l.b16 %v8313
    %v8537 = vunpack.c.l.b16 %v8314
    %v8538 = vunpack.c.h.b16 %v8314
    %v8539 = vunpack.c.l.b16 %v8315
    %v8540 = vunpack.c.l.b16 %v8316
    %v8541 = vunpack.c.h.b16 %v8316
    %v8542 = vunpack.c.l.b16 %v8317
    %v8543 = vunpack.c.l.b16 %v8318
    %v8544 = vunpack.c.h.b16 %v8318
    %v8545 = vunpack.c.l.b16 %v8319
    %v8546 = vunpack.c.l.b16 %v8320
    %v8547 = vunpack.c.h.b16 %v8320
    %v8548 = vunpack.c.l.b16 %v8321
    %v8549 = vunpack.c.l.b16 %v8322
    %v8550 = vunpack.c.h.b16 %v8322
    %v8551 = vunpack.c.l.b16 %v8323
    %v8552 = vunpack.c.l.b16 %v8324
    %v8553 = vunpack.c.h.b16 %v8324
    %v8554 = vunpack.c.l.b16 %v8325
    %v8555 = vunpack.c.l.b16 %v8326
    %v8556 = vunpack.c.h.b16 %v8326
    %v8557 = vunpack.c.l.b16 %v8327
    %v8558 = vunpack.c.l.b16 %v8328
    %v8559 = vunpack.c.h.b16 %v8328
    %v8560 = vunpack.c.l.b16 %v8329
    %v8561 = vunpack.c.l.b16 %v8330
    %v8562 = vunpack.c.h.b16 %v8330
    %v8563 = vunpack.c.l.b16 %v8331
    %v8564 = vunpack.c.l.b16 %v8332
    %v8565 = vunpack.c.h.b16 %v8332
    %v8566 = vunpack.c.l.b16 %v8333
    %v8567 = vunpack.c.l.b16 %v8334
    %v8568 = vunpack.c.h.b16 %v8334
    %v8569 = vunpack.c.l.b16 %v8335
    %v8570 = vunpack.c.l.b16 %v8336
    %v8571 = vunpack.c.h.b16 %v8336
    %v8572 = vunpack.c.l.b16 %v8337
    %v8573 = vunpack.c.l.b16 %v8338
    %v8574 = vunpack.c.h.b16 %v8338
    %v8575 = vunpack.c.l.b16 %v8339
    %v8576 = vunpack.c.l.b16 %v8340
    %v8577 = vunpack.c.h.b16 %v8340
    %v8578 = vunpack.c.l.b16 %v8341
    %v8579 = vunpack.c.l.b16 %v8342
    %v8580 = vunpack.c.h.b16 %v8342
    %v8581 = vunpack.c.l.b16 %v8343
    %v8582 = vunpack.c.l.b16 %v8344
    %v8583 = vunpack.c.h.b16 %v8344
    %v8584 = vunpack.c.l.b16 %v8345
    %v8585 = vunpack.c.l.b16 %v8346
    %v8586 = vunpack.c.h.b16 %v8346
    %v8587 = vunpack.c.l.b16 %v8347
    %v8588 = vunpack.c.l.b16 %v8348
    %v8589 = vunpack.c.h.b16 %v8348
    %v8590 = vunpack.c.l.b16 %v8349
    %v8591 = vunpack.c.l.b16 %v8350
    %v8592 = vunpack.c.h.b16 %v8350
    %v8593 = vunpack.c.l.b16 %v8351
    %v8594 = vunpack.c.l.b16 %v8352
    %v8595 = vunpack.c.h.b16 %v8352
    %v8596 = vunpack.c.l.b16 %v8353
    %v8597 = vpack.c.b16 %v8456, %v8453
    %v8598 = vpack.c.b16 %v8457, %v8454
    %v8599 = vpack.c.b16 %v8458, %v8455
    %v8600 = vpack.c.b16 %v8462, %v8459
    %v8601 = vpack.c.b16 %v8463, %v8460
    %v8602 = vpack.c.b16 %v8464, %v8461
    %v8603 = vpack.c.b16 %v8468, %v8465
    %v8604 = vpack.c.b16 %v8469, %v8466
    %v8605 = vpack.c.b16 %v8470, %v8467
    %v8606 = vpack.c.b16 %v8474, %v8471
    %v8607 = vpack.c.b16 %v8475, %v8472
    %v8608 = vpack.c.b16 %v8476, %v8473
    %v8609 = vpack.c.b16 %v8480, %v8477
    %v8610 = vpack.c.b16 %v8481, %v8478
    %v8611 = vpack.c.b16 %v8482, %v8479
    %v8612 = vpack.c.b16 %v8486, %v8483
    %v8613 = vpack.c.b16 %v8487, %v8484
    %v8614 = vpack.c.b16 %v8488, %v8485
    %v8615 = vpack.c.b16 %v8492, %v8489
    %v8616 = vpack.c.b16 %v8493, %v8490
    %v8617 = vpack.c.b16 %v8494, %v8491
    %v8618 = vpack.c.b16 %v8498, %v8495
    %v8619 = vpack.c.b16 %v8499, %v8496
    %v8620 = vpack.c.b16 %v8500, %v8497
    %v8621 = vpack.c.b16 %v8504, %v8501
    %v8622 = vpack.c.b16 %v8505, %v8502
    %v8623 = vpack.c.b16 %v8506, %v8503
    %v8624 = vpack.c.b16 %v8510, %v8507
    %v8625 = vpack.c.b16 %v8511, %v8508
    %v8626 = vpack.c.b16 %v8512, %v8509
    %v8627 = vpack.c.b16 %v8516, %v8513
    %v8628 = vpack.c.b16 %v8517, %v8514
    %v8629 = vpack.c.b16 %v8518, %v8515
    %v8630 = vpack.c.b16 %v8522, %v8519
    %v8631 = vpack.c.b16 %v8523, %v8520
    %v8632 = vpack.c.b16 %v8524, %v8521
    %v8633 = vpack.c.b16 %v8528, %v8525
    %v8634 = vpack.c.b16 %v8529, %v8526
    %v8635 = vpack.c.b16 %v8530, %v8527
    %v8636 = vpack.c.b16 %v8534, %v8531
    %v8637 = vpack.c.b16 %v8535, %v8532
    %v8638 = vpack.c.b16 %v8536, %v8533
    %v8639 = vpack.c.b16 %v8540, %v8537
    %v8640 = vpack.c.b16 %v8541, %v8538
    %v8641 = vpack.c.b16 %v8542, %v8539
    %v8642 = vpack.c.b16 %v8546, %v8543
    %v8643 = vpack.c.b16 %v8547, %v8544
    %v8644 = vpack.c.b16 %v8548, %v8545
    %v8645 = vpack.c.b16 %v8552, %v8549
    %v8646 = vpack.c.b16 %v8553, %v8550
    %v8647 = vpack.c.b16 %v8554, %v8551
    %v8648 = vpack.c.b16 %v8558, %v8555
    %v8649 = vpack.c.b16 %v8559, %v8556
    %v8650 = vpack.c.b16 %v8560, %v8557
    %v8651 = vpack.c.b16 %v8564, %v8561
    %v8652 = vpack.c.b16 %v8565, %v8562
    %v8653 = vpack.c.b16 %v8566, %v8563
    %v8654 = vpack.c.b16 %v8570, %v8567
    %v8655 = vpack.c.b16 %v8571, %v8568
    %v8656 = vpack.c.b16 %v8572, %v8569
    %v8657 = vpack.c.b16 %v8576, %v8573
    %v8658 = vpack.c.b16 %v8577, %v8574
    %v8659 = vpack.c.b16 %v8578, %v8575
    %v8660 = vpack.c.b16 %v8582, %v8579
    %v8661 = vpack.c.b16 %v8583, %v8580
    %v8662 = vpack.c.b16 %v8584, %v8581
    %v8663 = vpack.c.b16 %v8588, %v8585
    %v8664 = vpack.c.b16 %v8589, %v8586
    %v8665 = vpack.c.b16 %v8590, %v8587
    %v8666 = vpack.c.b16 %v8594, %v8591
    %v8667 = vpack.c.b16 %v8595, %v8592
    %v8668 = vpack.c.b16 %v8596, %v8593
    %8741 = vmatpush.bf16.msra.mxu0 %v8618
    %8742 = vmatpush.bf16.msra.mxu0 %v8615
    %8743 = vmatpush.bf16.msra.mxu0 %v8612
    %8744 = vmatpush.bf16.msra.mxu0 %v8609
    %8745 = vmatpush.bf16.msra.mxu0 %v8606
    %8746 = vmatpush.bf16.msra.mxu0 %v8603
    %8747 = vmatpush.bf16.msra.mxu0 %v8600
    %8748 = vmatpush.bf16.msra.mxu0 %v8597
    %8749 = vmatmul.bf16.gmra.mxu0 %v8354
    %v8750 = vpop.f32.mrf.mxu0
    %v8751 = vadd.f32 0.0, %v8750
    %v8752 = vpop.f32.mrf.mxu0
    %8753 = vdwg.mxu0
    %8754 = vmatpush.bf16.msra.mxu0 %v8642
    %8755 = vmatpush.bf16.msra.mxu0 %v8639
    %8756 = vmatpush.bf16.msra.mxu0 %v8636
    %8757 = vmatpush.bf16.msra.mxu0 %v8633
    %8758 = vmatpush.bf16.msra.mxu0 %v8630
    %8759 = vmatpush.bf16.msra.mxu0 %v8627
    %8760 = vmatpush.bf16.msra.mxu0 %v8624
    %8761 = vmatpush.bf16.msra.mxu0 %v8621
    %8762 = vmatmul.bf16.gmra.mxu0 %v8355
    %v8763 = vpop.f32.mrf.mxu0
    %v8764 = vadd.f32 %v8751, %v8763
    %v8765 = vpop.f32.mrf.mxu0
    %8766 = vdwg.mxu0
    %8767 = vmatpush.bf16.msra.mxu0 %v8666
    %8768 = vmatpush.bf16.msra.mxu0 %v8663
    %8769 = vmatpush.bf16.msra.mxu0 %v8660
    %8770 = vmatpush.bf16.msra.mxu0 %v8657
    %8771 = vmatpush.bf16.msra.mxu0 %v8654
    %8772 = vmatpush.bf16.msra.mxu0 %v8651
    %8773 = vmatpush.bf16.msra.mxu0 %v8648
    %8774 = vmatpush.bf16.msra.mxu0 %v8645
    %8775 = vmatmul.bf16.gmra.mxu0 %v8356
    %v8776 = vpop.f32.mrf.mxu0
    %v8777 = vadd.f32 %v8764, %v8776
    %v8778 = vpop.f32.mrf.mxu0
    %8779 = vdwg.mxu0
    %8780 = vmatpush.bf16.msra.mxu0 %v8619
    %8781 = vmatpush.bf16.msra.mxu0 %v8616
    %8782 = vmatpush.bf16.msra.mxu0 %v8613
    %8783 = vmatpush.bf16.msra.mxu0 %v8610
    %8784 = vmatpush.bf16.msra.mxu0 %v8607
    %8785 = vmatpush.bf16.msra.mxu0 %v8604
    %8786 = vmatpush.bf16.msra.mxu0 %v8601
    %8787 = vmatpush.bf16.msra.mxu0 %v8598
    %8788 = vmatmul.bf16.gmra.mxu0 %v8354
    %v8789 = vpop.f32.mrf.mxu0
    %v8790 = vadd.f32 0.0, %v8789
    %v8791 = vpop.f32.mrf.mxu0
    %8792 = vdwg.mxu0
    %8793 = vmatpush.bf16.msra.mxu0 %v8643
    %8794 = vmatpush.bf16.msra.mxu0 %v8640
    %8795 = vmatpush.bf16.msra.mxu0 %v8637
    %8796 = vmatpush.bf16.msra.mxu0 %v8634
    %8797 = vmatpush.bf16.msra.mxu0 %v8631
    %8798 = vmatpush.bf16.msra.mxu0 %v8628
    %8799 = vmatpush.bf16.msra.mxu0 %v8625
    %8800 = vmatpush.bf16.msra.mxu0 %v8622
    %8801 = vmatmul.bf16.gmra.mxu0 %v8355
    %v8802 = vpop.f32.mrf.mxu0
    %v8803 = vadd.f32 %v8790, %v8802
    %v8804 = vpop.f32.mrf.mxu0
    %8805 = vdwg.mxu0
    %8806 = vmatpush.bf16.msra.mxu0 %v8667
    %8807 = vmatpush.bf16.msra.mxu0 %v8664
    %8808 = vmatpush.bf16.msra.mxu0 %v8661
    %8809 = vmatpush.bf16.msra.mxu0 %v8658
    %8810 = vmatpush.bf16.msra.mxu0 %v8655
    %8811 = vmatpush.bf16.msra.mxu0 %v8652
    %8812 = vmatpush.bf16.msra.mxu0 %v8649
    %8813 = vmatpush.bf16.msra.mxu0 %v8646
    %8814 = vmatmul.bf16.gmra.mxu0 %v8356
    %v8815 = vpop.f32.mrf.mxu0
    %v8816 = vadd.f32 %v8803, %v8815
    %v8817 = vpop.f32.mrf.mxu0
    %8818 = vdwg.mxu0
    %8819 = vmatpush.bf16.msra.mxu0 %v8620
    %8820 = vmatpush.bf16.msra.mxu0 %v8617
    %8821 = vmatpush.bf16.msra.mxu0 %v8614
    %8822 = vmatpush.bf16.msra.mxu0 %v8611
    %8823 = vmatpush.bf16.msra.mxu0 %v8608
    %8824 = vmatpush.bf16.msra.mxu0 %v8605
    %8825 = vmatpush.bf16.msra.mxu0 %v8602
    %8826 = vmatpush.bf16.msra.mxu0 %v8599
    %8827 = vmatmul.bf16.gmra.mxu0 %v8354
    %v8828 = vpop.f32.mrf.mxu0
    %v8829 = vadd.f32 0.0, %v8828
    %v8830 = vpop.f32.mrf.mxu0
    %8831 = vdwg.mxu0
    %8832 = vmatpush.bf16.msra.mxu0 %v8644
    %8833 = vmatpush.bf16.msra.mxu0 %v8641
    %8834 = vmatpush.bf16.msra.mxu0 %v8638
    %8835 = vmatpush.bf16.msra.mxu0 %v8635
    %8836 = vmatpush.bf16.msra.mxu0 %v8632
    %8837 = vmatpush.bf16.msra.mxu0 %v8629
    %8838 = vmatpush.bf16.msra.mxu0 %v8626
    %8839 = vmatpush.bf16.msra.mxu0 %v8623
    %8840 = vmatmul.bf16.gmra.mxu0 %v8355
    %v8841 = vpop.f32.mrf.mxu0
    %v8842 = vadd.f32 %v8829, %v8841
    %v8843 = vpop.f32.mrf.mxu0
    %8844 = vdwg.mxu0
    %8845 = vmatpush.bf16.msra.mxu0 %v8668
    %8846 = vmatpush.bf16.msra.mxu0 %v8665
    %8847 = vmatpush.bf16.msra.mxu0 %v8662
    %8848 = vmatpush.bf16.msra.mxu0 %v8659
    %8849 = vmatpush.bf16.msra.mxu0 %v8656
    %8850 = vmatpush.bf16.msra.mxu0 %v8653
    %8851 = vmatpush.bf16.msra.mxu0 %v8650
    %8852 = vmatpush.bf16.msra.mxu0 %v8647
    %8853 = vmatmul.bf16.gmra.mxu0 %v8356
    %v8854 = vpop.f32.mrf.mxu0
    %v8855 = vadd.f32 %v8842, %v8854
    %v8856 = vpop.f32.mrf.mxu0
    %8857 = vdwg.mxu0
    %v8858 = vadd.f32 %v6723, %v8777
    %v8859 = vadd.f32 %v6762, %v8816
    %v8860 = vadd.f32 %v6801, %v8855
    %v8861 = vmul.f32 %v7488, %v7488
    %v8862 = vmul.f32 %v7489, %v7489
    %v8863 = vmul.f32 %v7490, %v7490
    %v8864 = vadd.f32 %v8861, %v8862
    %v8865 = vadd.f32 %v8864, %v8863
    %8866 = vadd.xlane.f32.xlu0 %v8865
    %v8867 = vpop.xlane.xlu0 %8866
    %v8868 = vmul.f32 %v8867, 0.057735026
    %v8869 = vmul.f32 %v7488, %v8173
    %v8870 = vmul.f32 %v7489, %v8174
    %v8871 = vmul.f32 %v7490, %v8175
    %v8872 = vadd.f32 %v8869, %v8870
    %v8873 = vadd.f32 %v8872, %v8871
    %8874 = vadd.xlane.f32.xlu0 %v8873
    %v8875 = vpop.xlane.xlu0 %8874
    %v8876 = vmul.f32 %v8875, 0.057735026
    %v8877 = vmul.f32 %v7488, %v8858
    %v8878 = vmul.f32 %v7489, %v8859
    %v8879 = vmul.f32 %v7490, %v8860
    %v8880 = vadd.f32 %v8877, %v8878
    %v8881 = vadd.f32 %v8880, %v8879
    %8882 = vadd.xlane.f32.xlu0 %v8881
    %v8883 = vpop.xlane.xlu0 %8882
    %v8884 = vmul.f32 %v8883, 0.057735026
    %v8885 = vmul.f32 %v8173, %v8173
    %v8886 = vmul.f32 %v8174, %v8174
    %v8887 = vmul.f32 %v8175, %v8175
    %v8888 = vadd.f32 %v8885, %v8886
    %v8889 = vadd.f32 %v8888, %v8887
    %8890 = vadd.xlane.f32.xlu0 %v8889
    %v8891 = vpop.xlane.xlu0 %8890
    %v8892 = vmul.f32 %v8891, 0.057735026
    %v8893 = vmul.f32 %v8173, %v8858
    %v8894 = vmul.f32 %v8174, %v8859
    %v8895 = vmul.f32 %v8175, %v8860
    %v8896 = vadd.f32 %v8893, %v8894
    %v8897 = vadd.f32 %v8896, %v8895
    %8898 = vadd.xlane.f32.xlu0 %v8897
    %v8899 = vpop.xlane.xlu0 %8898
    %v8900 = vmul.f32 %v8899, 0.057735026
    %v8901 = vmul.f32 %v8858, %v8858
    %v8902 = vmul.f32 %v8859, %v8859
    %v8903 = vmul.f32 %v8860, %v8860
    %v8904 = vadd.f32 %v8901, %v8902
    %v8905 = vadd.f32 %v8904, %v8903
    %8906 = vadd.xlane.f32.xlu0 %v8905
    %v8907 = vpop.xlane.xlu0 %8906
    %v8908 = vmul.f32 %v8907, 0.057735026
    %v8909 = vmax.f32 %v8868, %v8876
    %v8910 = vmax.f32 %v8909, %v8884
    %v8911 = vsub.f32 %v8868, %v8910
    %v8912 = vmul.f32 %v8911, 1.442695
    %v8913 = vpow.pop %v8912
    %v8914 = vsub.f32 %v8876, %v8910
    %v8915 = vmul.f32 %v8914, 1.442695
    %v8916 = vpow.pop %v8915
    %v8917 = vsub.f32 %v8884, %v8910
    %v8918 = vmul.f32 %v8917, 1.442695
    %v8919 = vpow.pop %v8918
    %v8920 = vadd.f32 %v8913, %v8916
    %v8921 = vadd.f32 %v8920, %v8919
    %v8922 = vrcp.pop %v8921
    %v8923 = vmul.f32 %v8913, %v8922
    %v8924 = vmul.f32 %v8923, %v7488
    %v8925 = vmul.f32 %v8923, %v7489
    %v8926 = vmul.f32 %v8923, %v7490
    %v8927 = vmul.f32 %v8916, %v8922
    %v8928 = vmul.f32 %v8927, %v8173
    %v8929 = vmul.f32 %v8927, %v8174
    %v8930 = vmul.f32 %v8927, %v8175
    %v8931 = vadd.f32 %v8924, %v8928
    %v8932 = vadd.f32 %v8925, %v8929
    %v8933 = vadd.f32 %v8926, %v8930
    %v8934 = vmul.f32 %v8919, %v8922
    %v8935 = vmul.f32 %v8934, %v8858
    %v8936 = vmul.f32 %v8934, %v8859
    %v8937 = vmul.f32 %v8934, %v8860
    %v8938 = vadd.f32 %v8931, %v8935
    %v8939 = vadd.f32 %v8932, %v8936
    %v8940 = vadd.f32 %v8933, %v8937
    %v8941 = vmax.f32 %v8876, %v8892
    %v8942 = vmax.f32 %v8941, %v8900
    %v8943 = vsub.f32 %v8876, %v8942
    %v8944 = vmul.f32 %v8943, 1.442695
    %v8945 = vpow.pop %v8944
    %v8946 = vsub.f32 %v8892, %v8942
    %v8947 = vmul.f32 %v8946, 1.442695
    %v8948 = vpow.pop %v8947
    %v8949 = vsub.f32 %v8900, %v8942
    %v8950 = vmul.f32 %v8949, 1.442695
    %v8951 = vpow.pop %v8950
    %v8952 = vadd.f32 %v8945, %v8948
    %v8953 = vadd.f32 %v8952, %v8951
    %v8954 = vrcp.pop %v8953
    %v8955 = vmul.f32 %v8945, %v8954
    %v8956 = vmul.f32 %v8955, %v7488
    %v8957 = vmul.f32 %v8955, %v7489
    %v8958 = vmul.f32 %v8955, %v7490
    %v8959 = vmul.f32 %v8948, %v8954
    %v8960 = vmul.f32 %v8959, %v8173
    %v8961 = vmul.f32 %v8959, %v8174
    %v8962 = vmul.f32 %v8959, %v8175
    %v8963 = vadd.f32 %v8956, %v8960
    %v8964 = vadd.f32 %v8957, %v8961
    %v8965 = vadd.f32 %v8958, %v8962
    %v8966 = vmul.f32 %v8951, %v8954
    %v8967 = vmul.f32 %v8966, %v8858
    %v8968 = vmul.f32 %v8966, %v8859
    %v8969 = vmul.f32 %v8966, %v8860
    %v8970 = vadd.f32 %v8963, %v8967
    %v8971 = vadd.f32 %v8964, %v8968
    %v8972 = vadd.f32 %v8965, %v8969
    %v8973 = vadd.f32 %v8938, %v8970
    %v8974 = vadd.f32 %v8939, %v8971
    %v8975 = vadd.f32 %v8940, %v8972
    %v8976 = vmax.f32 %v8884, %v8900
    %v8977 = vmax.f32 %v8976, %v8908
    %v8978 = vsub.f32 %v8884, %v8977
    %v8979 = vmul.f32 %v8978, 1.442695
    %v8980 = vpow.pop %v8979
    %v8981 = vsub.f32 %v8900, %v8977
    %v8982 = vmul.f32 %v8981, 1.442695
    %v8983 = vpow.pop %v8982
    %v8984 = vsub.f32 %v8908, %v8977
    %v8985 = vmul.f32 %v8984, 1.442695
    %v8986 = vpow.pop %v8985
    %v8987 = vadd.f32 %v8980, %v8983
    %v8988 = vadd.f32 %v8987, %v8986
    %v8989 = vrcp.pop %v8988
    %v8990 = vmul.f32 %v8980, %v8989
    %v8991 = vmul.f32 %v8990, %v7488
    %v8992 = vmul.f32 %v8990, %v7489
    %v8993 = vmul.f32 %v8990, %v7490
    %v8994 = vmul.f32 %v8983, %v8989
    %v8995 = vmul.f32 %v8994, %v8173
    %v8996 = vmul.f32 %v8994, %v8174
    %v8997 = vmul.f32 %v8994, %v8175
    %v8998 = vadd.f32 %v8991, %v8995
    %v8999 = vadd.f32 %v8992, %v8996
    %v9000 = vadd.f32 %v8993, %v8997
    %v9001 = vmul.f32 %v8986, %v8989
    %v9002 = vmul.f32 %v9001, %v8858
    %v9003 = vmul.f32 %v9001, %v8859
    %v9004 = vmul.f32 %v9001, %v8860
    %v9005 = vadd.f32 %v8998, %v9002
    %v9006 = vadd.f32 %v8999, %v9003
    %v9007 = vadd.f32 %v9000, %v9004
    %v9008 = vadd.f32 %v8973, %v9005
    %v9009 = vadd.f32 %v8974, %v9006
    %v9010 = vadd.f32 %v8975, %v9007
    %v9011 = vmul.f32 %v9008, 0.33333334
    %v9012 = vmul.f32 %v9009, 0.33333334
    %v9013 = vmul.f32 %v9010, 0.33333334
    %v9014 = vadd.f32 %v9011, %v4998
    %v9015 = vadd.f32 %v9012, %v5037
    %v9016 = vadd.f32 %v9013, %v5076
    %v9017 = vld [vmem:[%s25] sm:$0xf]
    %v9018 = vld [vmem:[%s25 + $0x4] sm:$0xf]
    %v9019 = vld [vmem:[%s25 + $0x8] sm:$0xf]
    %v9020 = vld [vmem:[%s25 + $0xc] sm:$0xf]
    %v9021 = vld [vmem:[%s25 + $0x10] sm:$0xf]
    %v9022 = vld [vmem:[%s25 + $0x14] sm:$0xf]
    %v9023 = vld [vmem:[%s25 + $0x18] sm:$0xf]
    %v9024 = vld [vmem:[%s25 + $0x1c] sm:$0xf]
    %v9025 = vld [vmem:[%s25 + $0x20] sm:$0xf]
    %v9026 = vld [vmem:[%s25 + $0x24] sm:$0xf]
    %v9027 = vld [vmem:[%s25 + $0x28] sm:$0xf]
    %v9028 = vld [vmem:[%s25 + $0x2c] sm:$0xf]
    %v9029 = vld [vmem:[%s25 + $0x30] sm:$0xf]
    %v9030 = vld [vmem:[%s25 + $0x34] sm:$0xf]
    %v9031 = vld [vmem:[%s25 + $0x38] sm:$0xf]
    %v9032 = vld [vmem:[%s25 + $0x3c] sm:$0xf]
    %v9033 = vld [vmem:[%s25 + $0x40] sm:$0xf]
    %v9034 = vld [vmem:[%s25 + $0x44] sm:$0xf]
    %v9035 = vld [vmem:[%s25 + $0x48] sm:$0xf]
    %v9036 = vld [vmem:[%s25 + $0x4c] sm:$0xf]
    %v9037 = vld [vmem:[%s25 + $0x50] sm:$0xf]
    %v9038 = vld [vmem:[%s25 + $0x54] sm:$0xf]
    %v9039 = vld [vmem:[%s25 + $0x58] sm:$0xf]
    %v9040 = vld [vmem:[%s25 + $0x5c] sm:$0xf]
    %v9041 = vld [vmem:[%s25 + $0x60] sm:$0xf]
    %v9042 = vld [vmem:[%s25 + $0x64] sm:$0xf]
    %v9043 = vld [vmem:[%s25 + $0x68] sm:$0xf]
    %v9044 = vld [vmem:[%s25 + $0x6c] sm:$0xf]
    %v9045 = vld [vmem:[%s25 + $0x70] sm:$0xf]
    %v9046 = vld [vmem:[%s25 + $0x74] sm:$0xf]
    %v9047 = vld [vmem:[%s25 + $0x78] sm:$0xf]
    %v9048 = vld [vmem:[%s25 + $0x7c] sm:$0xf]
    %v9049 = vld [vmem:[%s25 + $0x80] sm:$0xf]
    %v9050 = vld [vmem:[%s25 + $0x84] sm:$0xf]
    %v9051 = vld [vmem:[%s25 + $0x88] sm:$0xf]
    %v9052 = vld [vmem:[%s25 + $0x8c] sm:$0xf]
    %v9053 = vld [vmem:[%s25 + $0x90] sm:$0xf]
    %v9054 = vld [vmem:[%s25 + $0x94] sm:$0xf]
    %v9055 = vld [vmem:[%s25 + $0x98] sm:$0xf]
    %v9056 = vld [vmem:[%s25 + $0x9c] sm:$0xf]
    %v9057 = vld [vmem:[%s25 + $0xa0] sm:$0xf]
    %v9058 = vld [vmem:[%s25 + $0xa4] sm:$0xf]
    %v9059 = vld [vmem:[%s25 + $0xa8] sm:$0xf]
    %v9060 = vld [vmem:[%s25 + $0xac] sm:$0xf]
    %v9061 = vld [vmem:[%s25 + $0xb0] sm:$0xf]
    %v9062 = vld [vmem:[%s25 + $0xb4] sm:$0xf]
    %v9063 = vld [vmem:[%s25 + $0xb8] sm:$0xf]
    %v9064 = vld [vmem:[%s25 + $0xbc] sm:$0xf]
    %v9065 = vpack.c.bf16 %v9014, %v9014
    %v9066 = vpack.c.bf16 %v9015, %v9015
    %v9067 = vpack.c.bf16 %v9016, %v9016
    %v9068 = vld [vmem:[%s26] sm:$0x1]
    %v9070 = vperm.slane %v9068, 0
    %v9120 = vunpack.c.l.b16 %v9017
    %v9121 = vunpack.c.l.b16 %v9018
    %v9122 = vunpack.c.l.b16 %v9019
    %v9123 = vunpack.c.l.b16 %v9020
    %v9124 = vunpack.c.l.b16 %v9021
    %v9125 = vunpack.c.l.b16 %v9022
    %v9126 = vunpack.c.l.b16 %v9023
    %v9127 = vunpack.c.l.b16 %v9024
    %v9128 = vunpack.c.l.b16 %v9025
    %v9129 = vunpack.c.l.b16 %v9026
    %v9130 = vunpack.c.l.b16 %v9027
    %v9131 = vunpack.c.l.b16 %v9028
    %v9132 = vunpack.c.l.b16 %v9029
    %v9133 = vunpack.c.l.b16 %v9030
    %v9134 = vunpack.c.l.b16 %v9031
    %v9135 = vunpack.c.l.b16 %v9032
    %v9136 = vunpack.c.l.b16 %v9033
    %v9137 = vunpack.c.l.b16 %v9034
    %v9138 = vunpack.c.l.b16 %v9035
    %v9139 = vunpack.c.l.b16 %v9036
    %v9140 = vunpack.c.l.b16 %v9037
    %v9141 = vunpack.c.l.b16 %v9038
    %v9142 = vunpack.c.l.b16 %v9039
    %v9143 = vunpack.c.l.b16 %v9040
    %v9144 = vunpack.c.l.b16 %v9041
    %v9145 = vunpack.c.l.b16 %v9042
    %v9146 = vunpack.c.l.b16 %v9043
    %v9147 = vunpack.c.l.b16 %v9044
    %v9148 = vunpack.c.l.b16 %v9045
    %v9149 = vunpack.c.l.b16 %v9046
    %v9150 = vunpack.c.l.b16 %v9047
    %v9151 = vunpack.c.l.b16 %v9048
    %v9152 = vunpack.c.l.b16 %v9049
    %v9153 = vunpack.c.l.b16 %v9050
    %v9154 = vunpack.c.l.b16 %v9051
    %v9155 = vunpack.c.l.b16 %v9052
    %v9156 = vunpack.c.l.b16 %v9053
    %v9157 = vunpack.c.l.b16 %v9054
    %v9158 = vunpack.c.l.b16 %v9055
    %v9159 = vunpack.c.l.b16 %v9056
    %v9160 = vunpack.c.l.b16 %v9057
    %v9161 = vunpack.c.l.b16 %v9058
    %v9162 = vunpack.c.l.b16 %v9059
    %v9163 = vunpack.c.l.b16 %v9060
    %v9164 = vunpack.c.l.b16 %v9061
    %v9165 = vunpack.c.l.b16 %v9062
    %v9166 = vunpack.c.l.b16 %v9063
    %v9167 = vunpack.c.l.b16 %v9064
    %v9168 = vpack.c.b16 %v9121, %v9120
    %v9169 = vpack.c.b16 %v9123, %v9122
    %v9170 = vpack.c.b16 %v9125, %v9124
    %v9171 = vpack.c.b16 %v9127, %v9126
    %v9172 = vpack.c.b16 %v9129, %v9128
    %v9173 = vpack.c.b16 %v9131, %v9130
    %v9174 = vpack.c.b16 %v9133, %v9132
    %v9175 = vpack.c.b16 %v9135, %v9134
    %v9176 = vpack.c.b16 %v9137, %v9136
    %v9177 = vpack.c.b16 %v9139, %v9138
    %v9178 = vpack.c.b16 %v9141, %v9140
    %v9179 = vpack.c.b16 %v9143, %v9142
    %v9180 = vpack.c.b16 %v9145, %v9144
    %v9181 = vpack.c.b16 %v9147, %v9146
    %v9182 = vpack.c.b16 %v9149, %v9148
    %v9183 = vpack.c.b16 %v9151, %v9150
    %v9184 = vpack.c.b16 %v9153, %v9152
    %v9185 = vpack.c.b16 %v9155, %v9154
    %v9186 = vpack.c.b16 %v9157, %v9156
    %v9187 = vpack.c.b16 %v9159, %v9158
    %v9188 = vpack.c.b16 %v9161, %v9160
    %v9189 = vpack.c.b16 %v9163, %v9162
    %v9190 = vpack.c.b16 %v9165, %v9164
    %v9191 = vpack.c.b16 %v9167, %v9166
    %9216 = vmatpush.bf16.msra.mxu0 %v9175
    %9217 = vmatpush.bf16.msra.mxu0 %v9174
    %9218 = vmatpush.bf16.msra.mxu0 %v9173
    %9219 = vmatpush.bf16.msra.mxu0 %v9172
    %9220 = vmatpush.bf16.msra.mxu0 %v9171
    %9221 = vmatpush.bf16.msra.mxu0 %v9170
    %9222 = vmatpush.bf16.msra.mxu0 %v9169
    %9223 = vmatpush.bf16.msra.mxu0 %v9168
    %9224 = vmatmul.bf16.gmra.mxu0 %v9065
    %v9225 = vpop.f32.mrf.mxu0
    %v9226 = vadd.f32 %v9070, %v9225
    %v9227 = vpop.f32.mrf.mxu0
    %9228 = vdwg.mxu0
    %9229 = vmatpush.bf16.msra.mxu0 %v9183
    %9230 = vmatpush.bf16.msra.mxu0 %v9182
    %9231 = vmatpush.bf16.msra.mxu0 %v9181
    %9232 = vmatpush.bf16.msra.mxu0 %v9180
    %9233 = vmatpush.bf16.msra.mxu0 %v9179
    %9234 = vmatpush.bf16.msra.mxu0 %v9178
    %9235 = vmatpush.bf16.msra.mxu0 %v9177
    %9236 = vmatpush.bf16.msra.mxu0 %v9176
    %9237 = vmatmul.bf16.gmra.mxu0 %v9066
    %v9238 = vpop.f32.mrf.mxu0
    %v9239 = vadd.f32 %v9226, %v9238
    %v9240 = vpop.f32.mrf.mxu0
    %9241 = vdwg.mxu0
    %9242 = vmatpush.bf16.msra.mxu0 %v9191
    %9243 = vmatpush.bf16.msra.mxu0 %v9190
    %9244 = vmatpush.bf16.msra.mxu0 %v9189
    %9245 = vmatpush.bf16.msra.mxu0 %v9188
    %9246 = vmatpush.bf16.msra.mxu0 %v9187
    %9247 = vmatpush.bf16.msra.mxu0 %v9186
    %9248 = vmatpush.bf16.msra.mxu0 %v9185
    %9249 = vmatpush.bf16.msra.mxu0 %v9184
    %9250 = vmatmul.bf16.gmra.mxu0 %v9067
    %v9251 = vpop.f32.mrf.mxu0
    %v9252 = vadd.f32 %v9239, %v9251
    %v9253 = vpop.f32.mrf.mxu0
    %9254 = vdwg.mxu0
    %9255 = vst [vmem:[%s27] sm:$0xff] %v9252
    // Predicated region
    $region146: #{merge_model_forward.1} parent=1 // pred_check
      _
    $region147: #{merge_model_forward.1} parent=1 // pred_check_branch
      %9257 = sbr.rel (0) target = $region149
    $region148: #{merge_model_forward.1} parent=1 // pred_region
      _
    $region149: #{merge_model_forward.1} parent=1 // pred_fallthru
      _
    // Predicated region
    $region150: #{merge_model_forward.1} parent=1 // pred_check
      _
    $region151: #{merge_model_forward.1} parent=1 // pred_check_branch
      %9259 = sbr.rel (0) target = $region153
    $region152: #{merge_model_forward.1} parent=1 // pred_region
      _
    $region153: #{merge_model_forward.1} parent=1 // pred_fallthru
      _
    %9260 = vsyncpa [#allocation3], 1
    %9261 = vsyncpa [#allocation5], 1
    %9262 = vsyncpa [#allocation8], 1
    %9263 = vsyncpa [#allocation11], 1
    %9264 = vsyncpa [#allocation14], 1

</llo_original>
